<compile_context>
chip_gen: v7x
topology: tpu7x:2x2x1
jax: 0.10.0
libtpu: 0.0.40
codegen_flags: <defaults>
</compile_context>

<pallas_src>
import functools
import math

import jax
import jax.numpy as jnp
from jax import lax
from jax.experimental import pallas as pl
from jax.experimental.pallas import tpu as pltpu


_TC = 16      # timesteps per unrolled scan chunk (aligned for bf16 sublane tiles)
_LANE = 128


def mamba_block_kernel(
    x_ref,        # [Bt, Lt, D]   input tile
    w_in_ref,     # [D, E]  bf16  in_proj.weight.T
    b_in_ref,     # [1, E]  f32
    w_gate_ref,   # [D, E]  bf16  gate_proj.weight.T
    b_gate_ref,   # [1, E]  f32
    a_d_ref,      # [S, E]  f32   exp(A_log * dt), transposed (precomputed)
    cb_ref,       # [S, E]  f32   (C * B).T   (C folded into the recurrence)
    w_out_ref,    # [E, H]  bf16  out_proj.weight.T
    b_out_ref,    # [1, H]
    gamma_ref,    # [1, H]  LayerNorm weight
    beta_ref,     # [1, H]  LayerNorm bias
    o_ref,        # [Bt, Lt, H]
    y_sc,         # VMEM [Bt, Lt, E] f32 : u before the scan, y*gate after it
    gate_sc,      # VMEM [Bt, Lt, E] bf16: sigmoid(gate)
    st_sc,        # VMEM [Bt, S, E]  f32 : carried (C-weighted) SSM state
    *,
    e_blk,        # static: E-block width kept vreg-resident during the scan
    use_concat,   # static: chunk-row assembly via concat (fast) vs where (safe)
):
    Bt, Lt, D = x_ref.shape
    S, E = a_d_ref.shape
    H = o_ref.shape[2]

    # ---- input + gate projections: two bf16 MXU passes, f32 accumulation,
    # written directly into their scratches.
    x2 = x_ref[...].reshape(Bt * Lt, D).astype(jnp.bfloat16)
    u = jnp.dot(x2, w_in_ref[...], preferred_element_type=jnp.float32) + b_in_ref[...]
    y_sc[...] = u.reshape(Bt, Lt, E)
    g = jnp.dot(x2, w_gate_ref[...], preferred_element_type=jnp.float32) + b_gate_ref[...]
    gate_sc[...] = jax.nn.sigmoid(g).reshape(Bt, Lt, E).astype(gate_sc.dtype)

    # ---- selective scan over this sequence tile (state carried across tiles) ----
    @pl.when(pl.program_id(1) == 0)
    def _():
        st_sc[...] = jnp.zeros(st_sc.shape, st_sc.dtype)

    n_chunks = Lt // _TC
    for eb in range(E // e_blk):                 # static E-block loop
        e0 = eb * e_blk
        a_d = a_d_ref[:, pl.ds(e0, e_blk)][None]      # [1, S, Eb]
        cb = cb_ref[:, pl.ds(e0, e_blk)][None]        # [1, S, Eb]

        def chunk_body(ci, state):                    # state: [Bt, S, Eb] in vregs
            t0 = pl.multiple_of(ci * _TC, _TC)
            u_chunk = y_sc[:, pl.ds(t0, _TC), pl.ds(e0, e_blk)]          # [Bt,TC,Eb]
            g_chunk = gate_sc[:, pl.ds(t0, _TC), pl.ds(e0, e_blk)]       # bf16
            if use_concat:
                ys = []
                for j in range(_TC):                                      # unrolled
                    u_t = u_chunk[:, j:j + 1, :]                          # [Bt,1,Eb]
                    state = a_d * state + cb * u_t                        # [Bt,S,Eb]
                    ys.append(jnp.sum(state, axis=1, keepdims=True))      # [Bt,1,Eb]
                y_chunk = jnp.concatenate(ys, axis=1)                     # [Bt,TC,Eb]
            else:
                t_idx = lax.broadcasted_iota(jnp.int32, (1, _TC, 1), 1)
                y_chunk = jnp.zeros((Bt, _TC, e_blk), jnp.float32)
                for j in range(_TC):
                    u_t = u_chunk[:, j:j + 1, :]
                    state = a_d * state + cb * u_t
                    y_t = jnp.sum(state, axis=1, keepdims=True)
                    y_chunk = jnp.where(t_idx == j, y_t, y_chunk)
            # gate fused into the chunk writeback (no post-scan full-tile sweep)
            y_sc[:, pl.ds(t0, _TC), pl.ds(e0, e_blk)] = (
                y_chunk * g_chunk.astype(jnp.float32))
            return state

        st = lax.fori_loop(0, n_chunks, chunk_body,
                           st_sc[:, :, pl.ds(e0, e_blk)])
        st_sc[:, :, pl.ds(e0, e_blk)] = st            # carry to next seq tile

    # ---- output projection + residual + LayerNorm ----
    y = y_sc[...].reshape(Bt * Lt, E)                  # already gated
    out = jnp.dot(y.astype(jnp.bfloat16), w_out_ref[...],
                  preferred_element_type=jnp.float32) + b_out_ref[...]
    res = x_ref[...].reshape(Bt * Lt, D).astype(jnp.float32) + out   # needs D == H
    mean = jnp.mean(res, axis=-1, keepdims=True)
    var = jnp.mean(jnp.square(res - mean), axis=-1, keepdims=True)
    normed = (res - mean) * lax.rsqrt(var + 1e-5)
    o = normed * gamma_ref[...] + beta_ref[...]
    o_ref[...] = o.reshape(Bt, Lt, H).astype(o_ref.dtype)


def _round_up(n, m):
    return ((n + m - 1) // m) * m


def _pad_last(a, n):
    if a.shape[-1] == n:
        return a
    pad = [(0, 0)] * (a.ndim - 1) + [(0, n - a.shape[-1])]
    return jnp.pad(a, pad)


def mamba_block_forward(x, params, *, bt=None, lt=None):
    B, L, D = x.shape
    E = params["W_in"].shape[0]
    S = params["A_log"].shape[1]
    H = params["W_out"].shape[0]
    assert D == H, "residual connection requires input_size == hidden_size"

    # Lane-dense E: pad to a multiple of 128.  Padded columns are exact no-ops
    # (W_in/b_in/cb pad with zeros -> u = 0, state contribution = 0, and the
    # padded W_out rows are zero), so they never reach the output.
    E_pad = _round_up(E, _LANE)

    # ---- generation-aware tiles / VMEM budget --------------------------------
    try:
        vmem_cap = int(pltpu.get_tpu_info().vmem_capacity_bytes)
    except Exception:
        vmem_cap = 64 * 1024 * 1024              # assume the smallest (v7x) part
    vmem_limit = max(32 * 1024 * 1024,
                     min(vmem_cap * 3 // 4, vmem_cap - (8 << 20)))

    if bt is None:
        bt = min(B, 8)
        while B % bt:
            bt -= 1
        # keep >= 2 batch tiles so the "parallel" axis can feed both v7x cores
        while bt > 1 and B // bt < 2:
            bt //= 2
            while B % bt:
                bt -= 1
    assert B % bt == 0

    if lt is None:
        # fit 2x x-buffers + 2x out-buffers + y_sc(f32) + gate_sc(bf16) + st_sc
        # + (conservatively double-buffered) constants inside the VMEM budget.
        const_bytes = 2 * (2 * D * E_pad * 2 + E_pad * H * 2 + (64 << 10))
        fixed = bt * S * E_pad * 4 + const_bytes
        per_row = bt * (2 * D * 4 + 2 * H * 4 + E_pad * 4 + E_pad * 2)
        budget = int(vmem_limit * 0.7) - fixed
        lt_cap = max(_TC, (budget // max(per_row, 1)) // _TC * _TC)
        lt_soft = 512 if vmem_cap <= (64 << 20) else 1024   # bigger tiles on 128MiB parts
        lt = min(lt_soft, _round_up(L, _TC), lt_cap)
    lt = max(_TC, (lt // _TC) * _TC)
    Lp = _round_up(L, lt)

    # E-block width so the fori-carried state stays comfortably in vregs.
    e_blk = E_pad
    max_state_bytes = 64 * 1024
    if bt * S * E_pad * 4 > max_state_bytes:
        e_blk = max(_LANE, (max_state_bytes // (bt * S * 4)) // _LANE * _LANE)
        while E_pad % e_blk:
            e_blk -= _LANE
    assert e_blk >= _LANE and E_pad % e_blk == 0

    if Lp != L:   # zero-padded tail steps are causal no-ops; outputs sliced off
        x = jnp.pad(x, ((0, 0), (0, Lp - L), (0, 0)))

    # ---- parameter prep (plain JAX glue, done once) --------------------------
    f32, bf16 = jnp.float32, jnp.bfloat16
    w_in = _pad_last(params["W_in"].T.astype(f32), E_pad).astype(bf16)        # [D,Ep]
    b_in = _pad_last(params["b_in"].reshape(1, E).astype(f32), E_pad)
    w_gate = _pad_last(params["W_gate"].T.astype(f32), E_pad).astype(bf16)
    b_gate = _pad_last(params["b_gate"].reshape(1, E).astype(f32), E_pad)
    a_d = _pad_last(jnp.exp(params["A_log"].T * params["dt"][None, :]).astype(f32),
                    E_pad)                                                    # [S,Ep]
    cb = _pad_last((params["C"] * params["B"]).T.astype(f32), E_pad)          # [S,Ep]
    w_out = jnp.pad(params["W_out"].T, ((0, E_pad - E), (0, 0))).astype(bf16) # [Ep,H]
    b_out = params["b_out"].reshape(1, H).astype(f32)
    gamma = params["gamma"].reshape(1, H).astype(f32)
    beta = params["beta"].reshape(1, H).astype(f32)

    consts = (w_in, b_in, w_gate, b_gate, a_d, cb, w_out, b_out, gamma, beta)

    def run(single_buffer_consts, use_concat):
        def const_spec(arr):
            if single_buffer_consts:
                return pl.BlockSpec(arr.shape, lambda b, l: (0, 0),
                                    pipeline_mode=pl.Buffered(1))
            return pl.BlockSpec(arr.shape, lambda b, l: (0, 0))

        kernel = functools.partial(mamba_block_kernel,
                                   e_blk=e_blk, use_concat=use_concat)
        out = pl.pallas_call(
            kernel,
            out_shape=jax.ShapeDtypeStruct((B, Lp, H), jnp.float32),
            grid_spec=pltpu.PrefetchScalarGridSpec(
                num_scalar_prefetch=0,
                grid=(B // bt, Lp // lt),
                in_specs=[pl.BlockSpec((bt, lt, D), lambda b, l: (b, l, 0))]
                         + [const_spec(a) for a in consts],
                out_specs=pl.BlockSpec((bt, lt, H), lambda b, l: (b, l, 0)),
                scratch_shapes=[
                    pltpu.VMEM((bt, lt, E_pad), jnp.float32),   # u -> y*gate
                    pltpu.VMEM((bt, lt, E_pad), jnp.bfloat16),  # gate
                    pltpu.VMEM((bt, S, E_pad), jnp.float32),    # carried state
                ],
            ),
            compiler_params=pltpu.CompilerParams(
                dimension_semantics=("parallel", "arbitrary"),
                vmem_limit_bytes=vmem_limit),
        )(x, *consts)
        return jax.block_until_ready(out)

    # Fallback chain: prefer single-buffered constants + per-chunk concat; fall
    # back if this jax build lacks BlockSpec.pipeline_mode or unaligned concat.
    out = None
    last_err = None
    for single_buf, use_concat in ((True, True), (False, True),
                                   (True, False), (False, False)):
        try:
            out = run(single_buf, use_concat)
            break
        except Exception as e:          # noqa: BLE001 - retry with safer config
            last_err = e
    if out is None:
        raise last_err
    return out[:, :L, :]


def mamba_block_reference(x, p):
    """Pure-JAX f32 reference mirroring the (intended) PyTorch forward."""
    u = jnp.einsum("bld,ed->ble", x, p["W_in"],
                   precision=lax.Precision.HIGHEST) + p["b_in"]
    gate = jax.nn.sigmoid(
        jnp.einsum("bld,ed->ble", x, p["W_gate"],
                   precision=lax.Precision.HIGHEST) + p["b_gate"])
    a_d = jnp.exp(p["A_log"] * p["dt"][:, None])          # [E, S]

    def step(state, u_t):                                  # state [B, E, S], u_t [B, E]
        state = a_d[None] * state + p["B"][None] * u_t[:, :, None]
        y_t = jnp.sum(p["C"][None] * state, axis=-1)
        return state, y_t

    Bsz = x.shape[0]
    init = jnp.zeros((Bsz,) + p["A_log"].shape, x.dtype)
    _, ys = lax.scan(step, init, jnp.swapaxes(u, 0, 1))
    y = jnp.swapaxes(ys, 0, 1) * gate
    y = jnp.einsum("ble,he->blh", y, p["W_out"],
                   precision=lax.Precision.HIGHEST) + p["b_out"]
    res = x + y
    mean = res.mean(-1, keepdims=True)
    var = ((res - mean) ** 2).mean(-1, keepdims=True)
    return (res - mean) / jnp.sqrt(var + 1e-5) * p["gamma"] + p["beta"]


def make_params(input_size, hidden_size, state_size=16, expand_factor=2,
                dt_min=1e-3, dt_max=1e-1, key=None):
    E = int(hidden_size * expand_factor)
    ks = jax.random.split(key, 10)
    return {
        "W_in":   jax.random.normal(ks[0], (E, input_size), jnp.float32) * 0.1,
        "b_in":   jax.random.normal(ks[1], (E,), jnp.float32) * 0.1,
        "W_gate": jax.random.normal(ks[2], (E, input_size), jnp.float32) * 0.1,
        "b_gate": jax.random.normal(ks[3], (E,), jnp.float32) * 0.1,
        "A_log":  jax.random.normal(ks[4], (E, state_size), jnp.float32),
        "B":      jax.random.normal(ks[5], (E, state_size), jnp.float32) * 0.1,
        "C":      jax.random.normal(ks[6], (E, state_size), jnp.float32) * 0.1,
        "dt":     jnp.exp(jax.random.uniform(ks[7], (E,), jnp.float32)
                          * (math.log(dt_max) - math.log(dt_min)) + math.log(dt_min)),
        "W_out":  jax.random.normal(ks[8], (hidden_size, E), jnp.float32) * 0.1,
        "b_out":  jax.random.normal(ks[9], (hidden_size,), jnp.float32) * 0.1,
        "gamma":  jnp.ones((hidden_size,), jnp.float32),
        "beta":   jnp.zeros((hidden_size,), jnp.float32),
    }


if __name__ == "__main__":
    input_size = 32
    hidden_size = 32      # must equal input_size for the residual connection
    state_size = 16
    batch, seq_len = 2, 8

    key = jax.random.PRNGKey(0)
    k_param, k_x = jax.random.split(key)
    params = make_params(input_size, hidden_size, state_size, key=k_param)
    x = jax.random.normal(k_x, (batch, seq_len, input_size), jnp.float32)

    out = jax.block_until_ready(mamba_block_forward(x, params))
    ref = jax.block_until_ready(mamba_block_reference(x, params))

    assert out.shape == (batch, seq_len, hidden_size)
    # bf16 matmul operands + bf16 gate scratch vs an f32 HIGHEST reference.
    assert jnp.allclose(out, ref, atol=5e-2, rtol=5e-2), (
        f"max abs diff {float(jnp.max(jnp.abs(out - ref)))}")

    print("KERNEL_OK")
</pallas_src>

<mosaic_0001>
module attributes {stable_mosaic.version = 11 : i64} {
  func.func @mamba_block_kernel(%arg0: i32, %arg1: i32, %arg2: memref<1x16x32xf32, #tpu.memory_space<vmem>>, %arg3: memref<32x128xbf16, #tpu.memory_space<vmem>>, %arg4: memref<1x128xf32, #tpu.memory_space<vmem>>, %arg5: memref<32x128xbf16, #tpu.memory_space<vmem>>, %arg6: memref<1x128xf32, #tpu.memory_space<vmem>>, %arg7: memref<16x128xf32, #tpu.memory_space<vmem>>, %arg8: memref<16x128xf32, #tpu.memory_space<vmem>>, %arg9: memref<128x32xbf16, #tpu.memory_space<vmem>>, %arg10: memref<1x32xf32, #tpu.memory_space<vmem>>, %arg11: memref<1x32xf32, #tpu.memory_space<vmem>>, %arg12: memref<1x32xf32, #tpu.memory_space<vmem>>, %arg13: memref<1x16x32xf32, #tpu.memory_space<vmem>>, %arg14: memref<1x16x128xf32, #tpu.memory_space<vmem>>, %arg15: memref<1x16x128xbf16, #tpu.memory_space<vmem>>, %arg16: memref<1x16x128xf32, #tpu.memory_space<vmem>>) attributes {dimension_semantics = [#tpu.dimension_semantics<parallel>, #tpu.dimension_semantics<arbitrary>], iteration_bounds = array<i64: 2, 1>, scalar_prefetch = 0 : i64, scratch_operands = 3 : i64, tpu.core_type = #tpu.core_type<tc>, window_params = [{transform_indices = @transform_0, window_bounds = array<i64: 1, 16, 32>}, {pipeline_mode = #tpu.pipeline_mode<synchronous>, transform_indices = @transform_1, window_bounds = array<i64: 32, 128>}, {pipeline_mode = #tpu.pipeline_mode<synchronous>, transform_indices = @transform_2, window_bounds = array<i64: 1, 128>}, {pipeline_mode = #tpu.pipeline_mode<synchronous>, transform_indices = @transform_3, window_bounds = array<i64: 32, 128>}, {pipeline_mode = #tpu.pipeline_mode<synchronous>, transform_indices = @transform_4, window_bounds = array<i64: 1, 128>}, {pipeline_mode = #tpu.pipeline_mode<synchronous>, transform_indices = @transform_5, window_bounds = array<i64: 16, 128>}, {pipeline_mode = #tpu.pipeline_mode<synchronous>, transform_indices = @transform_6, window_bounds = array<i64: 16, 128>}, {pipeline_mode = #tpu.pipeline_mode<synchronous>, transform_indices = @transform_7, window_bounds = array<i64: 128, 32>}, {pipeline_mode = #tpu.pipeline_mode<synchronous>, transform_indices = @transform_8, window_bounds = array<i64: 1, 32>}, {pipeline_mode = #tpu.pipeline_mode<synchronous>, transform_indices = @transform_9, window_bounds = array<i64: 1, 32>}, {pipeline_mode = #tpu.pipeline_mode<synchronous>, transform_indices = @transform_10, window_bounds = array<i64: 1, 32>}, {transform_indices = @transform_11, window_bounds = array<i64: 1, 16, 32>}]} {
    %c0 = arith.constant 0 : index
    %c0_0 = arith.constant 0 : index
    %c0_1 = arith.constant 0 : index
    %0 = vector.load %arg2[%c0, %c0_0, %c0_1] : memref<1x16x32xf32, #tpu.memory_space<vmem>>, vector<1x16x32xf32>
    %1 = vector.shape_cast %0 : vector<1x16x32xf32> to vector<16x32xf32>
    %2 = arith.truncf %1 : vector<16x32xf32> to vector<16x32xbf16>
    %c0_2 = arith.constant 0 : index
    %c0_3 = arith.constant 0 : index
    %3 = vector.load %arg3[%c0_2, %c0_3] : memref<32x128xbf16, #tpu.memory_space<vmem>>, vector<32x128xbf16>
    %cst = arith.constant dense<0.000000e+00> : vector<16x128xf32>
    %4 = tpu.matmul %2, %3, %cst {dimension_numbers = #tpu.dot_dimension_numbers<[1], [0], [0], [1], [0, 0, 1, 1], [], []>} : vector<16x32xbf16>, vector<32x128xbf16>, vector<16x128xf32> -> vector<16x128xf32>
    %c0_4 = arith.constant 0 : index
    %c0_5 = arith.constant 0 : index
    %5 = vector.load %arg4[%c0_4, %c0_5] : memref<1x128xf32, #tpu.memory_space<vmem>>, vector<1x128xf32>
    %6 = vector.broadcast %5 : vector<1x128xf32> to vector<16x128xf32>
    %7 = arith.addf %4, %6 : vector<16x128xf32>
    %8 = vector.shape_cast %7 : vector<16x128xf32> to vector<1x16x128xf32>
    %c0_6 = arith.constant 0 : index
    %c0_7 = arith.constant 0 : index
    %c0_8 = arith.constant 0 : index
    %9 = vector.load %arg14[%c0_6, %c0_7, %c0_8] : memref<1x16x128xf32, #tpu.memory_space<vmem>>, vector<1x16x128xf32>
    tpu.vector_store %arg14[%c0_6, %c0_7, %c0_8], %8 {strides = array<i32>} : memref<1x16x128xf32, #tpu.memory_space<vmem>>, vector<1x16x128xf32>,
    %c0_9 = arith.constant 0 : index
    %c0_10 = arith.constant 0 : index
    %10 = vector.load %arg5[%c0_9, %c0_10] : memref<32x128xbf16, #tpu.memory_space<vmem>>, vector<32x128xbf16>
    %cst_11 = arith.constant dense<0.000000e+00> : vector<16x128xf32>
    %11 = tpu.matmul %2, %10, %cst_11 {dimension_numbers = #tpu.dot_dimension_numbers<[1], [0], [0], [1], [0, 0, 1, 1], [], []>} : vector<16x32xbf16>, vector<32x128xbf16>, vector<16x128xf32> -> vector<16x128xf32>
    %c0_12 = arith.constant 0 : index
    %c0_13 = arith.constant 0 : index
    %12 = vector.load %arg6[%c0_12, %c0_13] : memref<1x128xf32, #tpu.memory_space<vmem>>, vector<1x128xf32>
    %13 = vector.broadcast %12 : vector<1x128xf32> to vector<16x128xf32>
    %14 = arith.addf %11, %13 : vector<16x128xf32>
    %15 = arith.negf %14 : vector<16x128xf32>
    %16 = math.exp %15 : vector<16x128xf32>
    %cst_14 = arith.constant 1.000000e+00 : f32
    %17 = vector.broadcast %cst_14 : f32 to vector<16x128xf32>
    %18 = arith.addf %17, %16 : vector<16x128xf32>
    %19 = arith.divf %17, %18 : vector<16x128xf32>
    %20 = vector.shape_cast %19 : vector<16x128xf32> to vector<1x16x128xf32>
    %21 = arith.truncf %20 : vector<1x16x128xf32> to vector<1x16x128xbf16>
    %c0_15 = arith.constant 0 : index
    %c0_16 = arith.constant 0 : index
    %c0_17 = arith.constant 0 : index
    %22 = vector.load %arg15[%c0_15, %c0_16, %c0_17] : memref<1x16x128xbf16, #tpu.memory_space<vmem>>, vector<1x16x128xbf16>
    tpu.vector_store %arg15[%c0_15, %c0_16, %c0_17], %21 {strides = array<i32>} : memref<1x16x128xbf16, #tpu.memory_space<vmem>>, vector<1x16x128xbf16>,
    %c0_i32 = arith.constant 0 : i32
    %23 = arith.cmpi eq, %arg1, %c0_i32 : i32
    %24 = arith.extui %23 : i1 to i32
    %c0_i32_18 = arith.constant 0 : i32
    %25 = arith.cmpi ne, %24, %c0_i32_18 : i32
    scf.if %25 {
      %cst_75 = arith.constant 0.000000e+00 : f32
      %192 = vector.broadcast %cst_75 : f32 to vector<1x16x128xf32>
      %c0_76 = arith.constant 0 : index
      %c0_77 = arith.constant 0 : index
      %c0_78 = arith.constant 0 : index
      %193 = vector.load %arg16[%c0_76, %c0_77, %c0_78] : memref<1x16x128xf32, #tpu.memory_space<vmem>>, vector<1x16x128xf32>
      tpu.vector_store %arg16[%c0_76, %c0_77, %c0_78], %192 {strides = array<i32>} : memref<1x16x128xf32, #tpu.memory_space<vmem>>, vector<1x16x128xf32>,
    } else {
    }
    %c0_19 = arith.constant 0 : index
    %c0_20 = arith.constant 0 : index
    %26 = vector.load %arg7[%c0_19, %c0_20] : memref<16x128xf32, #tpu.memory_space<vmem>>, vector<16x128xf32>
    %27 = vector.shape_cast %26 : vector<16x128xf32> to vector<1x16x128xf32>
    %c0_21 = arith.constant 0 : index
    %c0_22 = arith.constant 0 : index
    %28 = vector.load %arg8[%c0_21, %c0_22] : memref<16x128xf32, #tpu.memory_space<vmem>>, vector<16x128xf32>
    %29 = vector.shape_cast %28 : vector<16x128xf32> to vector<1x16x128xf32>
    %c0_23 = arith.constant 0 : index
    %c0_24 = arith.constant 0 : index
    %c0_25 = arith.constant 0 : index
    %30 = vector.load %arg16[%c0_23, %c0_24, %c0_25] : memref<1x16x128xf32, #tpu.memory_space<vmem>>, vector<1x16x128xf32>
    %c0_i32_26 = arith.constant 0 : i32
    %c16_i32 = arith.constant 16 : i32
    %31 = arith.muli %c0_i32_26, %c16_i32 : i32
    %32 = tpu.assume_multiple %31, 16 : i32
    %c0_27 = arith.constant 0 : index
    %33 = arith.index_cast %32 : i32 to index
    %c0_28 = arith.constant 0 : index
    %34 = vector.load %arg14[%c0_27, %33, %c0_28] : memref<1x16x128xf32, #tpu.memory_space<vmem>>, vector<1x16x128xf32>
    %c0_29 = arith.constant 0 : index
    %35 = arith.index_cast %32 : i32 to index
    %c0_30 = arith.constant 0 : index
    %36 = vector.load %arg15[%c0_29, %35, %c0_30] : memref<1x16x128xbf16, #tpu.memory_space<vmem>>, vector<1x16x128xbf16>
    %37 = vector.extract_strided_slice %34 {offsets = [0, 0, 0], sizes = [1, 1, 128], strides = [1, 1, 1]} : vector<1x16x128xf32> to vector<1x1x128xf32>
    %38 = arith.mulf %27, %30 : vector<1x16x128xf32>
    %39 = vector.broadcast %37 : vector<1x1x128xf32> to vector<1x16x128xf32>
    %40 = arith.mulf %29, %39 : vector<1x16x128xf32>
    %41 = arith.addf %38, %40 : vector<1x16x128xf32>
    %cst_31 = arith.constant dense<0.000000e+00> : vector<1x128xf32>
    %42 = vector.multi_reduction <add>, %41, %cst_31 [1] : vector<1x16x128xf32> to vector<1x128xf32>
    %43 = vector.shape_cast %42 : vector<1x128xf32> to vector<1x1x128xf32>
    %44 = vector.extract_strided_slice %34 {offsets = [0, 1, 0], sizes = [1, 1, 128], strides = [1, 1, 1]} : vector<1x16x128xf32> to vector<1x1x128xf32>
    %45 = arith.mulf %27, %41 : vector<1x16x128xf32>
    %46 = vector.broadcast %44 : vector<1x1x128xf32> to vector<1x16x128xf32>
    %47 = arith.mulf %29, %46 : vector<1x16x128xf32>
    %48 = arith.addf %45, %47 : vector<1x16x128xf32>
    %cst_32 = arith.constant dense<0.000000e+00> : vector<1x128xf32>
    %49 = vector.multi_reduction <add>, %48, %cst_32 [1] : vector<1x16x128xf32> to vector<1x128xf32>
    %50 = vector.shape_cast %49 : vector<1x128xf32> to vector<1x1x128xf32>
    %51 = vector.extract_strided_slice %34 {offsets = [0, 2, 0], sizes = [1, 1, 128], strides = [1, 1, 1]} : vector<1x16x128xf32> to vector<1x1x128xf32>
    %52 = arith.mulf %27, %48 : vector<1x16x128xf32>
    %53 = vector.broadcast %51 : vector<1x1x128xf32> to vector<1x16x128xf32>
    %54 = arith.mulf %29, %53 : vector<1x16x128xf32>
    %55 = arith.addf %52, %54 : vector<1x16x128xf32>
    %cst_33 = arith.constant dense<0.000000e+00> : vector<1x128xf32>
    %56 = vector.multi_reduction <add>, %55, %cst_33 [1] : vector<1x16x128xf32> to vector<1x128xf32>
    %57 = vector.shape_cast %56 : vector<1x128xf32> to vector<1x1x128xf32>
    %58 = vector.extract_strided_slice %34 {offsets = [0, 3, 0], sizes = [1, 1, 128], strides = [1, 1, 1]} : vector<1x16x128xf32> to vector<1x1x128xf32>
    %59 = arith.mulf %27, %55 : vector<1x16x128xf32>
    %60 = vector.broadcast %58 : vector<1x1x128xf32> to vector<1x16x128xf32>
    %61 = arith.mulf %29, %60 : vector<1x16x128xf32>
    %62 = arith.addf %59, %61 : vector<1x16x128xf32>
    %cst_34 = arith.constant dense<0.000000e+00> : vector<1x128xf32>
    %63 = vector.multi_reduction <add>, %62, %cst_34 [1] : vector<1x16x128xf32> to vector<1x128xf32>
    %64 = vector.shape_cast %63 : vector<1x128xf32> to vector<1x1x128xf32>
    %65 = vector.extract_strided_slice %34 {offsets = [0, 4, 0], sizes = [1, 1, 128], strides = [1, 1, 1]} : vector<1x16x128xf32> to vector<1x1x128xf32>
    %66 = arith.mulf %27, %62 : vector<1x16x128xf32>
    %67 = vector.broadcast %65 : vector<1x1x128xf32> to vector<1x16x128xf32>
    %68 = arith.mulf %29, %67 : vector<1x16x128xf32>
    %69 = arith.addf %66, %68 : vector<1x16x128xf32>
    %cst_35 = arith.constant dense<0.000000e+00> : vector<1x128xf32>
    %70 = vector.multi_reduction <add>, %69, %cst_35 [1] : vector<1x16x128xf32> to vector<1x128xf32>
    %71 = vector.shape_cast %70 : vector<1x128xf32> to vector<1x1x128xf32>
    %72 = vector.extract_strided_slice %34 {offsets = [0, 5, 0], sizes = [1, 1, 128], strides = [1, 1, 1]} : vector<1x16x128xf32> to vector<1x1x128xf32>
    %73 = arith.mulf %27, %69 : vector<1x16x128xf32>
    %74 = vector.broadcast %72 : vector<1x1x128xf32> to vector<1x16x128xf32>
    %75 = arith.mulf %29, %74 : vector<1x16x128xf32>
    %76 = arith.addf %73, %75 : vector<1x16x128xf32>
    %cst_36 = arith.constant dense<0.000000e+00> : vector<1x128xf32>
    %77 = vector.multi_reduction <add>, %76, %cst_36 [1] : vector<1x16x128xf32> to vector<1x128xf32>
    %78 = vector.shape_cast %77 : vector<1x128xf32> to vector<1x1x128xf32>
    %79 = vector.extract_strided_slice %34 {offsets = [0, 6, 0], sizes = [1, 1, 128], strides = [1, 1, 1]} : vector<1x16x128xf32> to vector<1x1x128xf32>
    %80 = arith.mulf %27, %76 : vector<1x16x128xf32>
    %81 = vector.broadcast %79 : vector<1x1x128xf32> to vector<1x16x128xf32>
    %82 = arith.mulf %29, %81 : vector<1x16x128xf32>
    %83 = arith.addf %80, %82 : vector<1x16x128xf32>
    %cst_37 = arith.constant dense<0.000000e+00> : vector<1x128xf32>
    %84 = vector.multi_reduction <add>, %83, %cst_37 [1] : vector<1x16x128xf32> to vector<1x128xf32>
    %85 = vector.shape_cast %84 : vector<1x128xf32> to vector<1x1x128xf32>
    %86 = vector.extract_strided_slice %34 {offsets = [0, 7, 0], sizes = [1, 1, 128], strides = [1, 1, 1]} : vector<1x16x128xf32> to vector<1x1x128xf32>
    %87 = arith.mulf %27, %83 : vector<1x16x128xf32>
    %88 = vector.broadcast %86 : vector<1x1x128xf32> to vector<1x16x128xf32>
    %89 = arith.mulf %29, %88 : vector<1x16x128xf32>
    %90 = arith.addf %87, %89 : vector<1x16x128xf32>
    %cst_38 = arith.constant dense<0.000000e+00> : vector<1x128xf32>
    %91 = vector.multi_reduction <add>, %90, %cst_38 [1] : vector<1x16x128xf32> to vector<1x128xf32>
    %92 = vector.shape_cast %91 : vector<1x128xf32> to vector<1x1x128xf32>
    %93 = vector.extract_strided_slice %34 {offsets = [0, 8, 0], sizes = [1, 1, 128], strides = [1, 1, 1]} : vector<1x16x128xf32> to vector<1x1x128xf32>
    %94 = arith.mulf %27, %90 : vector<1x16x128xf32>
    %95 = vector.broadcast %93 : vector<1x1x128xf32> to vector<1x16x128xf32>
    %96 = arith.mulf %29, %95 : vector<1x16x128xf32>
    %97 = arith.addf %94, %96 : vector<1x16x128xf32>
    %cst_39 = arith.constant dense<0.000000e+00> : vector<1x128xf32>
    %98 = vector.multi_reduction <add>, %97, %cst_39 [1] : vector<1x16x128xf32> to vector<1x128xf32>
    %99 = vector.shape_cast %98 : vector<1x128xf32> to vector<1x1x128xf32>
    %100 = vector.extract_strided_slice %34 {offsets = [0, 9, 0], sizes = [1, 1, 128], strides = [1, 1, 1]} : vector<1x16x128xf32> to vector<1x1x128xf32>
    %101 = arith.mulf %27, %97 : vector<1x16x128xf32>
    %102 = vector.broadcast %100 : vector<1x1x128xf32> to vector<1x16x128xf32>
    %103 = arith.mulf %29, %102 : vector<1x16x128xf32>
    %104 = arith.addf %101, %103 : vector<1x16x128xf32>
    %cst_40 = arith.constant dense<0.000000e+00> : vector<1x128xf32>
    %105 = vector.multi_reduction <add>, %104, %cst_40 [1] : vector<1x16x128xf32> to vector<1x128xf32>
    %106 = vector.shape_cast %105 : vector<1x128xf32> to vector<1x1x128xf32>
    %107 = vector.extract_strided_slice %34 {offsets = [0, 10, 0], sizes = [1, 1, 128], strides = [1, 1, 1]} : vector<1x16x128xf32> to vector<1x1x128xf32>
    %108 = arith.mulf %27, %104 : vector<1x16x128xf32>
    %109 = vector.broadcast %107 : vector<1x1x128xf32> to vector<1x16x128xf32>
    %110 = arith.mulf %29, %109 : vector<1x16x128xf32>
    %111 = arith.addf %108, %110 : vector<1x16x128xf32>
    %cst_41 = arith.constant dense<0.000000e+00> : vector<1x128xf32>
    %112 = vector.multi_reduction <add>, %111, %cst_41 [1] : vector<1x16x128xf32> to vector<1x128xf32>
    %113 = vector.shape_cast %112 : vector<1x128xf32> to vector<1x1x128xf32>
    %114 = vector.extract_strided_slice %34 {offsets = [0, 11, 0], sizes = [1, 1, 128], strides = [1, 1, 1]} : vector<1x16x128xf32> to vector<1x1x128xf32>
    %115 = arith.mulf %27, %111 : vector<1x16x128xf32>
    %116 = vector.broadcast %114 : vector<1x1x128xf32> to vector<1x16x128xf32>
    %117 = arith.mulf %29, %116 : vector<1x16x128xf32>
    %118 = arith.addf %115, %117 : vector<1x16x128xf32>
    %cst_42 = arith.constant dense<0.000000e+00> : vector<1x128xf32>
    %119 = vector.multi_reduction <add>, %118, %cst_42 [1] : vector<1x16x128xf32> to vector<1x128xf32>
    %120 = vector.shape_cast %119 : vector<1x128xf32> to vector<1x1x128xf32>
    %121 = vector.extract_strided_slice %34 {offsets = [0, 12, 0], sizes = [1, 1, 128], strides = [1, 1, 1]} : vector<1x16x128xf32> to vector<1x1x128xf32>
    %122 = arith.mulf %27, %118 : vector<1x16x128xf32>
    %123 = vector.broadcast %121 : vector<1x1x128xf32> to vector<1x16x128xf32>
    %124 = arith.mulf %29, %123 : vector<1x16x128xf32>
    %125 = arith.addf %122, %124 : vector<1x16x128xf32>
    %cst_43 = arith.constant dense<0.000000e+00> : vector<1x128xf32>
    %126 = vector.multi_reduction <add>, %125, %cst_43 [1] : vector<1x16x128xf32> to vector<1x128xf32>
    %127 = vector.shape_cast %126 : vector<1x128xf32> to vector<1x1x128xf32>
    %128 = vector.extract_strided_slice %34 {offsets = [0, 13, 0], sizes = [1, 1, 128], strides = [1, 1, 1]} : vector<1x16x128xf32> to vector<1x1x128xf32>
    %129 = arith.mulf %27, %125 : vector<1x16x128xf32>
    %130 = vector.broadcast %128 : vector<1x1x128xf32> to vector<1x16x128xf32>
    %131 = arith.mulf %29, %130 : vector<1x16x128xf32>
    %132 = arith.addf %129, %131 : vector<1x16x128xf32>
    %cst_44 = arith.constant dense<0.000000e+00> : vector<1x128xf32>
    %133 = vector.multi_reduction <add>, %132, %cst_44 [1] : vector<1x16x128xf32> to vector<1x128xf32>
    %134 = vector.shape_cast %133 : vector<1x128xf32> to vector<1x1x128xf32>
    %135 = vector.extract_strided_slice %34 {offsets = [0, 14, 0], sizes = [1, 1, 128], strides = [1, 1, 1]} : vector<1x16x128xf32> to vector<1x1x128xf32>
    %136 = arith.mulf %27, %132 : vector<1x16x128xf32>
    %137 = vector.broadcast %135 : vector<1x1x128xf32> to vector<1x16x128xf32>
    %138 = arith.mulf %29, %137 : vector<1x16x128xf32>
    %139 = arith.addf %136, %138 : vector<1x16x128xf32>
    %cst_45 = arith.constant dense<0.000000e+00> : vector<1x128xf32>
    %140 = vector.multi_reduction <add>, %139, %cst_45 [1] : vector<1x16x128xf32> to vector<1x128xf32>
    %141 = vector.shape_cast %140 : vector<1x128xf32> to vector<1x1x128xf32>
    %142 = vector.extract_strided_slice %34 {offsets = [0, 15, 0], sizes = [1, 1, 128], strides = [1, 1, 1]} : vector<1x16x128xf32> to vector<1x1x128xf32>
    %143 = arith.mulf %27, %139 : vector<1x16x128xf32>
    %144 = vector.broadcast %142 : vector<1x1x128xf32> to vector<1x16x128xf32>
    %145 = arith.mulf %29, %144 : vector<1x16x128xf32>
    %146 = arith.addf %143, %145 : vector<1x16x128xf32>
    %cst_46 = arith.constant dense<0.000000e+00> : vector<1x128xf32>
    %147 = vector.multi_reduction <add>, %146, %cst_46 [1] : vector<1x16x128xf32> to vector<1x128xf32>
    %148 = vector.shape_cast %147 : vector<1x128xf32> to vector<1x1x128xf32>
    %149 = tpu.concatenate %43, %50, %57, %64, %71, %78, %85, %92, %99, %106, %113, %120, %127, %134, %141, %148 in 1 : vector<1x1x128xf32>, vector<1x1x128xf32>, vector<1x1x128xf32>, vector<1x1x128xf32>, vector<1x1x128xf32>, vector<1x1x128xf32>, vector<1x1x128xf32>, vector<1x1x128xf32>, vector<1x1x128xf32>, vector<1x1x128xf32>, vector<1x1x128xf32>, vector<1x1x128xf32>, vector<1x1x128xf32>, vector<1x1x128xf32>, vector<1x1x128xf32>, vector<1x1x128xf32> -> vector<1x16x128xf32>
    %150 = arith.extf %36 : vector<1x16x128xbf16> to vector<1x16x128xf32>
    %151 = arith.mulf %149, %150 : vector<1x16x128xf32>
    %c0_47 = arith.constant 0 : index
    %152 = arith.index_cast %32 : i32 to index
    %c0_48 = arith.constant 0 : index
    %153 = vector.load %arg14[%c0_47, %152, %c0_48] : memref<1x16x128xf32, #tpu.memory_space<vmem>>, vector<1x16x128xf32>
    tpu.vector_store %arg14[%c0_47, %152, %c0_48], %151 {strides = array<i32>} : memref<1x16x128xf32, #tpu.memory_space<vmem>>, vector<1x16x128xf32>,
    %c1_i32 = arith.constant 1 : i32
    %c0_49 = arith.constant 0 : index
    %c0_50 = arith.constant 0 : index
    %c0_51 = arith.constant 0 : index
    %154 = vector.load %arg16[%c0_49, %c0_50, %c0_51] : memref<1x16x128xf32, #tpu.memory_space<vmem>>, vector<1x16x128xf32>
    tpu.vector_store %arg16[%c0_49, %c0_50, %c0_51], %146 {strides = array<i32>} : memref<1x16x128xf32, #tpu.memory_space<vmem>>, vector<1x16x128xf32>,
    %c0_52 = arith.constant 0 : index
    %c0_53 = arith.constant 0 : index
    %c0_54 = arith.constant 0 : index
    %155 = vector.load %arg14[%c0_52, %c0_53, %c0_54] : memref<1x16x128xf32, #tpu.memory_space<vmem>>, vector<1x16x128xf32>
    %156 = vector.shape_cast %155 : vector<1x16x128xf32> to vector<16x128xf32>
    %157 = arith.truncf %156 : vector<16x128xf32> to vector<16x128xbf16>
    %c0_55 = arith.constant 0 : index
    %c0_56 = arith.constant 0 : index
    %158 = vector.load %arg9[%c0_55, %c0_56] : memref<128x32xbf16, #tpu.memory_space<vmem>>, vector<128x32xbf16>
    %cst_57 = arith.constant dense<0.000000e+00> : vector<16x32xf32>
    %159 = tpu.matmul %157, %158, %cst_57 {dimension_numbers = #tpu.dot_dimension_numbers<[1], [0], [0], [1], [0, 0, 1, 1], [], []>} : vector<16x128xbf16>, vector<128x32xbf16>, vector<16x32xf32> -> vector<16x32xf32>
    %c0_58 = arith.constant 0 : index
    %c0_59 = arith.constant 0 : index
    %160 = vector.load %arg10[%c0_58, %c0_59] : memref<1x32xf32, #tpu.memory_space<vmem>>, vector<1x32xf32>
    %161 = vector.broadcast %160 : vector<1x32xf32> to vector<16x32xf32>
    %162 = arith.addf %159, %161 : vector<16x32xf32>
    %c0_60 = arith.constant 0 : index
    %c0_61 = arith.constant 0 : index
    %c0_62 = arith.constant 0 : index
    %163 = vector.load %arg2[%c0_60, %c0_61, %c0_62] : memref<1x16x32xf32, #tpu.memory_space<vmem>>, vector<1x16x32xf32>
    %164 = vector.shape_cast %163 : vector<1x16x32xf32> to vector<16x32xf32>
    %165 = arith.addf %164, %162 : vector<16x32xf32>
    %cst_63 = arith.constant dense<0.000000e+00> : vector<16xf32>
    %166 = vector.multi_reduction <add>, %165, %cst_63 [1] : vector<16x32xf32> to vector<16xf32>
    %167 = vector.shape_cast %166 : vector<16xf32> to vector<16x1xf32>
    %cst_64 = arith.constant 3.200000e+01 : f32
    %168 = vector.broadcast %cst_64 : f32 to vector<16x1xf32>
    %169 = arith.divf %167, %168 : vector<16x1xf32>
    %170 = vector.broadcast %169 : vector<16x1xf32> to vector<16x32xf32>
    %171 = arith.subf %165, %170 : vector<16x32xf32>
    %172 = arith.mulf %171, %171 : vector<16x32xf32>
    %cst_65 = arith.constant dense<0.000000e+00> : vector<16xf32>
    %173 = vector.multi_reduction <add>, %172, %cst_65 [1] : vector<16x32xf32> to vector<16xf32>
    %174 = vector.shape_cast %173 : vector<16xf32> to vector<16x1xf32>
    %cst_66 = arith.constant 3.200000e+01 : f32
    %175 = vector.broadcast %cst_66 : f32 to vector<16x1xf32>
    %176 = arith.divf %174, %175 : vector<16x1xf32>
    %177 = vector.broadcast %169 : vector<16x1xf32> to vector<16x32xf32>
    %178 = arith.subf %165, %177 : vector<16x32xf32>
    %cst_67 = arith.constant 9.99999974E-6 : f32
    %179 = vector.broadcast %cst_67 : f32 to vector<16x1xf32>
    %180 = arith.addf %176, %179 : vector<16x1xf32>
    %181 = math.rsqrt %180 : vector<16x1xf32>
    %182 = vector.broadcast %181 : vector<16x1xf32> to vector<16x32xf32>
    %183 = arith.mulf %178, %182 : vector<16x32xf32>
    %c0_68 = arith.constant 0 : index
    %c0_69 = arith.constant 0 : index
    %184 = vector.load %arg11[%c0_68, %c0_69] : memref<1x32xf32, #tpu.memory_space<vmem>>, vector<1x32xf32>
    %185 = vector.broadcast %184 : vector<1x32xf32> to vector<16x32xf32>
    %186 = arith.mulf %183, %185 : vector<16x32xf32>
    %c0_70 = arith.constant 0 : index
    %c0_71 = arith.constant 0 : index
    %187 = vector.load %arg12[%c0_70, %c0_71] : memref<1x32xf32, #tpu.memory_space<vmem>>, vector<1x32xf32>
    %188 = vector.broadcast %187 : vector<1x32xf32> to vector<16x32xf32>
    %189 = arith.addf %186, %188 : vector<16x32xf32>
    %190 = vector.shape_cast %189 : vector<16x32xf32> to vector<1x16x32xf32>
    %c0_72 = arith.constant 0 : index
    %c0_73 = arith.constant 0 : index
    %c0_74 = arith.constant 0 : index
    %191 = vector.load %arg13[%c0_72, %c0_73, %c0_74] : memref<1x16x32xf32, #tpu.memory_space<vmem>>, vector<1x16x32xf32>
    tpu.vector_store %arg13[%c0_72, %c0_73, %c0_74], %190 {strides = array<i32>} : memref<1x16x32xf32, #tpu.memory_space<vmem>>, vector<1x16x32xf32>,
    return
  }
  func.func @transform_0(%arg0: i32, %arg1: i32) -> (i32, i32, i32) {
    %c0_i32 = arith.constant 0 : i32
    %c0_i32_0 = arith.constant 0 : i32
    return %arg0, %arg1, %c0_i32 : i32, i32, i32
  }
  func.func @transform_1(%arg0: i32, %arg1: i32) -> (i32, i32) {
    %c0_i32 = arith.constant 0 : i32
    %c0_i32_0 = arith.constant 0 : i32
    %c0_i32_1 = arith.constant 0 : i32
    return %c0_i32, %c0_i32_0 : i32, i32
  }
  func.func @transform_2(%arg0: i32, %arg1: i32) -> (i32, i32) {
    %c0_i32 = arith.constant 0 : i32
    %c0_i32_0 = arith.constant 0 : i32
    %c0_i32_1 = arith.constant 0 : i32
    return %c0_i32, %c0_i32_0 : i32, i32
  }
  func.func @transform_3(%arg0: i32, %arg1: i32) -> (i32, i32) {
    %c0_i32 = arith.constant 0 : i32
    %c0_i32_0 = arith.constant 0 : i32
    %c0_i32_1 = arith.constant 0 : i32
    return %c0_i32, %c0_i32_0 : i32, i32
  }
  func.func @transform_4(%arg0: i32, %arg1: i32) -> (i32, i32) {
    %c0_i32 = arith.constant 0 : i32
    %c0_i32_0 = arith.constant 0 : i32
    %c0_i32_1 = arith.constant 0 : i32
    return %c0_i32, %c0_i32_0 : i32, i32
  }
  func.func @transform_5(%arg0: i32, %arg1: i32) -> (i32, i32) {
    %c0_i32 = arith.constant 0 : i32
    %c0_i32_0 = arith.constant 0 : i32
    %c0_i32_1 = arith.constant 0 : i32
    return %c0_i32, %c0_i32_0 : i32, i32
  }
  func.func @transform_6(%arg0: i32, %arg1: i32) -> (i32, i32) {
    %c0_i32 = arith.constant 0 : i32
    %c0_i32_0 = arith.constant 0 : i32
    %c0_i32_1 = arith.constant 0 : i32
    return %c0_i32, %c0_i32_0 : i32, i32
  }
  func.func @transform_7(%arg0: i32, %arg1: i32) -> (i32, i32) {
    %c0_i32 = arith.constant 0 : i32
    %c0_i32_0 = arith.constant 0 : i32
    %c0_i32_1 = arith.constant 0 : i32
    return %c0_i32, %c0_i32_0 : i32, i32
  }
  func.func @transform_8(%arg0: i32, %arg1: i32) -> (i32, i32) {
    %c0_i32 = arith.constant 0 : i32
    %c0_i32_0 = arith.constant 0 : i32
    %c0_i32_1 = arith.constant 0 : i32
    return %c0_i32, %c0_i32_0 : i32, i32
  }
  func.func @transform_9(%arg0: i32, %arg1: i32) -> (i32, i32) {
    %c0_i32 = arith.constant 0 : i32
    %c0_i32_0 = arith.constant 0 : i32
    %c0_i32_1 = arith.constant 0 : i32
    return %c0_i32, %c0_i32_0 : i32, i32
  }
  func.func @transform_10(%arg0: i32, %arg1: i32) -> (i32, i32) {
    %c0_i32 = arith.constant 0 : i32
    %c0_i32_0 = arith.constant 0 : i32
    %c0_i32_1 = arith.constant 0 : i32
    return %c0_i32, %c0_i32_0 : i32, i32
  }
  func.func @transform_11(%arg0: i32, %arg1: i32) -> (i32, i32, i32) {
    %c0_i32 = arith.constant 0 : i32
    %c0_i32_0 = arith.constant 0 : i32
    return %arg0, %arg1, %c0_i32 : i32, i32, i32
  }
}

module attributes {stable_mosaic.version = 11 : i64} {
  func.func @mamba_block_kernel(%arg0: i32, %arg1: i32, %arg2: memref<1x16x32xf32, #tpu.memory_space<vmem>>, %arg3: memref<32x128xbf16, #tpu.memory_space<vmem>>, %arg4: memref<1x128xf32, #tpu.memory_space<vmem>>, %arg5: memref<32x128xbf16, #tpu.memory_space<vmem>>, %arg6: memref<1x128xf32, #tpu.memory_space<vmem>>, %arg7: memref<16x128xf32, #tpu.memory_space<vmem>>, %arg8: memref<16x128xf32, #tpu.memory_space<vmem>>, %arg9: memref<128x32xbf16, #tpu.memory_space<vmem>>, %arg10: memref<1x32xf32, #tpu.memory_space<vmem>>, %arg11: memref<1x32xf32, #tpu.memory_space<vmem>>, %arg12: memref<1x32xf32, #tpu.memory_space<vmem>>, %arg13: memref<1x16x32xf32, #tpu.memory_space<vmem>>, %arg14: memref<1x16x128xf32, #tpu.memory_space<vmem>>, %arg15: memref<1x16x128xbf16, #tpu.memory_space<vmem>>, %arg16: memref<1x16x128xf32, #tpu.memory_space<vmem>>) attributes {dimension_semantics = [#tpu.dimension_semantics<parallel>, #tpu.dimension_semantics<arbitrary>], iteration_bounds = array<i64: 2, 1>, scalar_prefetch = 0 : i64, scratch_operands = 3 : i64, tpu.core_type = #tpu.core_type<tc>, window_params = [{transform_indices = @transform_0, window_bounds = array<i64: 1, 16, 32>}, {pipeline_mode = #tpu.pipeline_mode<synchronous>, transform_indices = @transform_1, window_bounds = array<i64: 32, 128>}, {pipeline_mode = #tpu.pipeline_mode<synchronous>, transform_indices = @transform_2, window_bounds = array<i64: 1, 128>}, {pipeline_mode = #tpu.pipeline_mode<synchronous>, transform_indices = @transform_3, window_bounds = array<i64: 32, 128>}, {pipeline_mode = #tpu.pipeline_mode<synchronous>, transform_indices = @transform_4, window_bounds = array<i64: 1, 128>}, {pipeline_mode = #tpu.pipeline_mode<synchronous>, transform_indices = @transform_5, window_bounds = array<i64: 16, 128>}, {pipeline_mode = #tpu.pipeline_mode<synchronous>, transform_indices = @transform_6, window_bounds = array<i64: 16, 128>}, {pipeline_mode = #tpu.pipeline_mode<synchronous>, transform_indices = @transform_7, window_bounds = array<i64: 128, 32>}, {pipeline_mode = #tpu.pipeline_mode<synchronous>, transform_indices = @transform_8, window_bounds = array<i64: 1, 32>}, {pipeline_mode = #tpu.pipeline_mode<synchronous>, transform_indices = @transform_9, window_bounds = array<i64: 1, 32>}, {pipeline_mode = #tpu.pipeline_mode<synchronous>, transform_indices = @transform_10, window_bounds = array<i64: 1, 32>}, {transform_indices = @transform_11, window_bounds = array<i64: 1, 16, 32>}]} {
    %c0 = arith.constant 0 : index
    %c0_0 = arith.constant 0 : index
    %c0_1 = arith.constant 0 : index
    %0 = vector.load %arg2[%c0, %c0_0, %c0_1] : memref<1x16x32xf32, #tpu.memory_space<vmem>>, vector<1x16x32xf32>
    %1 = vector.shape_cast %0 : vector<1x16x32xf32> to vector<16x32xf32>
    %2 = arith.truncf %1 : vector<16x32xf32> to vector<16x32xbf16>
    %c0_2 = arith.constant 0 : index
    %c0_3 = arith.constant 0 : index
    %3 = vector.load %arg3[%c0_2, %c0_3] : memref<32x128xbf16, #tpu.memory_space<vmem>>, vector<32x128xbf16>
    %cst = arith.constant dense<0.000000e+00> : vector<16x128xf32>
    %4 = tpu.matmul %2, %3, %cst {dimension_numbers = #tpu.dot_dimension_numbers<[1], [0], [0], [1], [0, 0, 1, 1], [], []>} : vector<16x32xbf16>, vector<32x128xbf16>, vector<16x128xf32> -> vector<16x128xf32>
    %c0_4 = arith.constant 0 : index
    %c0_5 = arith.constant 0 : index
    %5 = vector.load %arg4[%c0_4, %c0_5] : memref<1x128xf32, #tpu.memory_space<vmem>>, vector<1x128xf32>
    %6 = vector.broadcast %5 : vector<1x128xf32> to vector<16x128xf32>
    %7 = arith.addf %4, %6 : vector<16x128xf32>
    %8 = vector.shape_cast %7 : vector<16x128xf32> to vector<1x16x128xf32>
    %c0_6 = arith.constant 0 : index
    %c0_7 = arith.constant 0 : index
    %c0_8 = arith.constant 0 : index
    %9 = vector.load %arg14[%c0_6, %c0_7, %c0_8] : memref<1x16x128xf32, #tpu.memory_space<vmem>>, vector<1x16x128xf32>
    tpu.vector_store %arg14[%c0_6, %c0_7, %c0_8], %8 {strides = array<i32>} : memref<1x16x128xf32, #tpu.memory_space<vmem>>, vector<1x16x128xf32>,
    %c0_9 = arith.constant 0 : index
    %c0_10 = arith.constant 0 : index
    %10 = vector.load %arg5[%c0_9, %c0_10] : memref<32x128xbf16, #tpu.memory_space<vmem>>, vector<32x128xbf16>
    %cst_11 = arith.constant dense<0.000000e+00> : vector<16x128xf32>
    %11 = tpu.matmul %2, %10, %cst_11 {dimension_numbers = #tpu.dot_dimension_numbers<[1], [0], [0], [1], [0, 0, 1, 1], [], []>} : vector<16x32xbf16>, vector<32x128xbf16>, vector<16x128xf32> -> vector<16x128xf32>
    %c0_12 = arith.constant 0 : index
    %c0_13 = arith.constant 0 : index
    %12 = vector.load %arg6[%c0_12, %c0_13] : memref<1x128xf32, #tpu.memory_space<vmem>>, vector<1x128xf32>
    %13 = vector.broadcast %12 : vector<1x128xf32> to vector<16x128xf32>
    %14 = arith.addf %11, %13 : vector<16x128xf32>
    %15 = arith.negf %14 : vector<16x128xf32>
    %16 = math.exp %15 : vector<16x128xf32>
    %cst_14 = arith.constant 1.000000e+00 : f32
    %17 = vector.broadcast %cst_14 : f32 to vector<16x128xf32>
    %18 = arith.addf %17, %16 : vector<16x128xf32>
    %19 = arith.divf %17, %18 : vector<16x128xf32>
    %20 = vector.shape_cast %19 : vector<16x128xf32> to vector<1x16x128xf32>
    %21 = arith.truncf %20 : vector<1x16x128xf32> to vector<1x16x128xbf16>
    %c0_15 = arith.constant 0 : index
    %c0_16 = arith.constant 0 : index
    %c0_17 = arith.constant 0 : index
    %22 = vector.load %arg15[%c0_15, %c0_16, %c0_17] : memref<1x16x128xbf16, #tpu.memory_space<vmem>>, vector<1x16x128xbf16>
    tpu.vector_store %arg15[%c0_15, %c0_16, %c0_17], %21 {strides = array<i32>} : memref<1x16x128xbf16, #tpu.memory_space<vmem>>, vector<1x16x128xbf16>,
    %c0_i32 = arith.constant 0 : i32
    %23 = arith.cmpi eq, %arg1, %c0_i32 : i32
    %24 = arith.extui %23 : i1 to i32
    %c0_i32_18 = arith.constant 0 : i32
    %25 = arith.cmpi ne, %24, %c0_i32_18 : i32
    scf.if %25 {
      %cst_75 = arith.constant 0.000000e+00 : f32
      %192 = vector.broadcast %cst_75 : f32 to vector<1x16x128xf32>
      %c0_76 = arith.constant 0 : index
      %c0_77 = arith.constant 0 : index
      %c0_78 = arith.constant 0 : index
      %193 = vector.load %arg16[%c0_76, %c0_77, %c0_78] : memref<1x16x128xf32, #tpu.memory_space<vmem>>, vector<1x16x128xf32>
      tpu.vector_store %arg16[%c0_76, %c0_77, %c0_78], %192 {strides = array<i32>} : memref<1x16x128xf32, #tpu.memory_space<vmem>>, vector<1x16x128xf32>,
    } else {
    }
    %c0_19 = arith.constant 0 : index
    %c0_20 = arith.constant 0 : index
    %26 = vector.load %arg7[%c0_19, %c0_20] : memref<16x128xf32, #tpu.memory_space<vmem>>, vector<16x128xf32>
    %27 = vector.shape_cast %26 : vector<16x128xf32> to vector<1x16x128xf32>
    %c0_21 = arith.constant 0 : index
    %c0_22 = arith.constant 0 : index
    %28 = vector.load %arg8[%c0_21, %c0_22] : memref<16x128xf32, #tpu.memory_space<vmem>>, vector<16x128xf32>
    %29 = vector.shape_cast %28 : vector<16x128xf32> to vector<1x16x128xf32>
    %c0_23 = arith.constant 0 : index
    %c0_24 = arith.constant 0 : index
    %c0_25 = arith.constant 0 : index
    %30 = vector.load %arg16[%c0_23, %c0_24, %c0_25] : memref<1x16x128xf32, #tpu.memory_space<vmem>>, vector<1x16x128xf32>
    %c0_i32_26 = arith.constant 0 : i32
    %c16_i32 = arith.constant 16 : i32
    %31 = arith.muli %c0_i32_26, %c16_i32 : i32
    %32 = tpu.assume_multiple %31, 16 : i32
    %c0_27 = arith.constant 0 : index
    %33 = arith.index_cast %32 : i32 to index
    %c0_28 = arith.constant 0 : index
    %34 = vector.load %arg14[%c0_27, %33, %c0_28] : memref<1x16x128xf32, #tpu.memory_space<vmem>>, vector<1x16x128xf32>
    %c0_29 = arith.constant 0 : index
    %35 = arith.index_cast %32 : i32 to index
    %c0_30 = arith.constant 0 : index
    %36 = vector.load %arg15[%c0_29, %35, %c0_30] : memref<1x16x128xbf16, #tpu.memory_space<vmem>>, vector<1x16x128xbf16>
    %37 = vector.extract_strided_slice %34 {offsets = [0, 0, 0], sizes = [1, 1, 128], strides = [1, 1, 1]} : vector<1x16x128xf32> to vector<1x1x128xf32>
    %38 = arith.mulf %27, %30 : vector<1x16x128xf32>
    %39 = vector.broadcast %37 : vector<1x1x128xf32> to vector<1x16x128xf32>
    %40 = arith.mulf %29, %39 : vector<1x16x128xf32>
    %41 = arith.addf %38, %40 : vector<1x16x128xf32>
    %cst_31 = arith.constant dense<0.000000e+00> : vector<1x128xf32>
    %42 = vector.multi_reduction <add>, %41, %cst_31 [1] : vector<1x16x128xf32> to vector<1x128xf32>
    %43 = vector.shape_cast %42 : vector<1x128xf32> to vector<1x1x128xf32>
    %44 = vector.extract_strided_slice %34 {offsets = [0, 1, 0], sizes = [1, 1, 128], strides = [1, 1, 1]} : vector<1x16x128xf32> to vector<1x1x128xf32>
    %45 = arith.mulf %27, %41 : vector<1x16x128xf32>
    %46 = vector.broadcast %44 : vector<1x1x128xf32> to vector<1x16x128xf32>
    %47 = arith.mulf %29, %46 : vector<1x16x128xf32>
    %48 = arith.addf %45, %47 : vector<1x16x128xf32>
    %cst_32 = arith.constant dense<0.000000e+00> : vector<1x128xf32>
    %49 = vector.multi_reduction <add>, %48, %cst_32 [1] : vector<1x16x128xf32> to vector<1x128xf32>
    %50 = vector.shape_cast %49 : vector<1x128xf32> to vector<1x1x128xf32>
    %51 = vector.extract_strided_slice %34 {offsets = [0, 2, 0], sizes = [1, 1, 128], strides = [1, 1, 1]} : vector<1x16x128xf32> to vector<1x1x128xf32>
    %52 = arith.mulf %27, %48 : vector<1x16x128xf32>
    %53 = vector.broadcast %51 : vector<1x1x128xf32> to vector<1x16x128xf32>
    %54 = arith.mulf %29, %53 : vector<1x16x128xf32>
    %55 = arith.addf %52, %54 : vector<1x16x128xf32>
    %cst_33 = arith.constant dense<0.000000e+00> : vector<1x128xf32>
    %56 = vector.multi_reduction <add>, %55, %cst_33 [1] : vector<1x16x128xf32> to vector<1x128xf32>
    %57 = vector.shape_cast %56 : vector<1x128xf32> to vector<1x1x128xf32>
    %58 = vector.extract_strided_slice %34 {offsets = [0, 3, 0], sizes = [1, 1, 128], strides = [1, 1, 1]} : vector<1x16x128xf32> to vector<1x1x128xf32>
    %59 = arith.mulf %27, %55 : vector<1x16x128xf32>
    %60 = vector.broadcast %58 : vector<1x1x128xf32> to vector<1x16x128xf32>
    %61 = arith.mulf %29, %60 : vector<1x16x128xf32>
    %62 = arith.addf %59, %61 : vector<1x16x128xf32>
    %cst_34 = arith.constant dense<0.000000e+00> : vector<1x128xf32>
    %63 = vector.multi_reduction <add>, %62, %cst_34 [1] : vector<1x16x128xf32> to vector<1x128xf32>
    %64 = vector.shape_cast %63 : vector<1x128xf32> to vector<1x1x128xf32>
    %65 = vector.extract_strided_slice %34 {offsets = [0, 4, 0], sizes = [1, 1, 128], strides = [1, 1, 1]} : vector<1x16x128xf32> to vector<1x1x128xf32>
    %66 = arith.mulf %27, %62 : vector<1x16x128xf32>
    %67 = vector.broadcast %65 : vector<1x1x128xf32> to vector<1x16x128xf32>
    %68 = arith.mulf %29, %67 : vector<1x16x128xf32>
    %69 = arith.addf %66, %68 : vector<1x16x128xf32>
    %cst_35 = arith.constant dense<0.000000e+00> : vector<1x128xf32>
    %70 = vector.multi_reduction <add>, %69, %cst_35 [1] : vector<1x16x128xf32> to vector<1x128xf32>
    %71 = vector.shape_cast %70 : vector<1x128xf32> to vector<1x1x128xf32>
    %72 = vector.extract_strided_slice %34 {offsets = [0, 5, 0], sizes = [1, 1, 128], strides = [1, 1, 1]} : vector<1x16x128xf32> to vector<1x1x128xf32>
    %73 = arith.mulf %27, %69 : vector<1x16x128xf32>
    %74 = vector.broadcast %72 : vector<1x1x128xf32> to vector<1x16x128xf32>
    %75 = arith.mulf %29, %74 : vector<1x16x128xf32>
    %76 = arith.addf %73, %75 : vector<1x16x128xf32>
    %cst_36 = arith.constant dense<0.000000e+00> : vector<1x128xf32>
    %77 = vector.multi_reduction <add>, %76, %cst_36 [1] : vector<1x16x128xf32> to vector<1x128xf32>
    %78 = vector.shape_cast %77 : vector<1x128xf32> to vector<1x1x128xf32>
    %79 = vector.extract_strided_slice %34 {offsets = [0, 6, 0], sizes = [1, 1, 128], strides = [1, 1, 1]} : vector<1x16x128xf32> to vector<1x1x128xf32>
    %80 = arith.mulf %27, %76 : vector<1x16x128xf32>
    %81 = vector.broadcast %79 : vector<1x1x128xf32> to vector<1x16x128xf32>
    %82 = arith.mulf %29, %81 : vector<1x16x128xf32>
    %83 = arith.addf %80, %82 : vector<1x16x128xf32>
    %cst_37 = arith.constant dense<0.000000e+00> : vector<1x128xf32>
    %84 = vector.multi_reduction <add>, %83, %cst_37 [1] : vector<1x16x128xf32> to vector<1x128xf32>
    %85 = vector.shape_cast %84 : vector<1x128xf32> to vector<1x1x128xf32>
    %86 = vector.extract_strided_slice %34 {offsets = [0, 7, 0], sizes = [1, 1, 128], strides = [1, 1, 1]} : vector<1x16x128xf32> to vector<1x1x128xf32>
    %87 = arith.mulf %27, %83 : vector<1x16x128xf32>
    %88 = vector.broadcast %86 : vector<1x1x128xf32> to vector<1x16x128xf32>
    %89 = arith.mulf %29, %88 : vector<1x16x128xf32>
    %90 = arith.addf %87, %89 : vector<1x16x128xf32>
    %cst_38 = arith.constant dense<0.000000e+00> : vector<1x128xf32>
    %91 = vector.multi_reduction <add>, %90, %cst_38 [1] : vector<1x16x128xf32> to vector<1x128xf32>
    %92 = vector.shape_cast %91 : vector<1x128xf32> to vector<1x1x128xf32>
    %93 = vector.extract_strided_slice %34 {offsets = [0, 8, 0], sizes = [1, 1, 128], strides = [1, 1, 1]} : vector<1x16x128xf32> to vector<1x1x128xf32>
    %94 = arith.mulf %27, %90 : vector<1x16x128xf32>
    %95 = vector.broadcast %93 : vector<1x1x128xf32> to vector<1x16x128xf32>
    %96 = arith.mulf %29, %95 : vector<1x16x128xf32>
    %97 = arith.addf %94, %96 : vector<1x16x128xf32>
    %cst_39 = arith.constant dense<0.000000e+00> : vector<1x128xf32>
    %98 = vector.multi_reduction <add>, %97, %cst_39 [1] : vector<1x16x128xf32> to vector<1x128xf32>
    %99 = vector.shape_cast %98 : vector<1x128xf32> to vector<1x1x128xf32>
    %100 = vector.extract_strided_slice %34 {offsets = [0, 9, 0], sizes = [1, 1, 128], strides = [1, 1, 1]} : vector<1x16x128xf32> to vector<1x1x128xf32>
    %101 = arith.mulf %27, %97 : vector<1x16x128xf32>
    %102 = vector.broadcast %100 : vector<1x1x128xf32> to vector<1x16x128xf32>
    %103 = arith.mulf %29, %102 : vector<1x16x128xf32>
    %104 = arith.addf %101, %103 : vector<1x16x128xf32>
    %cst_40 = arith.constant dense<0.000000e+00> : vector<1x128xf32>
    %105 = vector.multi_reduction <add>, %104, %cst_40 [1] : vector<1x16x128xf32> to vector<1x128xf32>
    %106 = vector.shape_cast %105 : vector<1x128xf32> to vector<1x1x128xf32>
    %107 = vector.extract_strided_slice %34 {offsets = [0, 10, 0], sizes = [1, 1, 128], strides = [1, 1, 1]} : vector<1x16x128xf32> to vector<1x1x128xf32>
    %108 = arith.mulf %27, %104 : vector<1x16x128xf32>
    %109 = vector.broadcast %107 : vector<1x1x128xf32> to vector<1x16x128xf32>
    %110 = arith.mulf %29, %109 : vector<1x16x128xf32>
    %111 = arith.addf %108, %110 : vector<1x16x128xf32>
    %cst_41 = arith.constant dense<0.000000e+00> : vector<1x128xf32>
    %112 = vector.multi_reduction <add>, %111, %cst_41 [1] : vector<1x16x128xf32> to vector<1x128xf32>
    %113 = vector.shape_cast %112 : vector<1x128xf32> to vector<1x1x128xf32>
    %114 = vector.extract_strided_slice %34 {offsets = [0, 11, 0], sizes = [1, 1, 128], strides = [1, 1, 1]} : vector<1x16x128xf32> to vector<1x1x128xf32>
    %115 = arith.mulf %27, %111 : vector<1x16x128xf32>
    %116 = vector.broadcast %114 : vector<1x1x128xf32> to vector<1x16x128xf32>
    %117 = arith.mulf %29, %116 : vector<1x16x128xf32>
    %118 = arith.addf %115, %117 : vector<1x16x128xf32>
    %cst_42 = arith.constant dense<0.000000e+00> : vector<1x128xf32>
    %119 = vector.multi_reduction <add>, %118, %cst_42 [1] : vector<1x16x128xf32> to vector<1x128xf32>
    %120 = vector.shape_cast %119 : vector<1x128xf32> to vector<1x1x128xf32>
    %121 = vector.extract_strided_slice %34 {offsets = [0, 12, 0], sizes = [1, 1, 128], strides = [1, 1, 1]} : vector<1x16x128xf32> to vector<1x1x128xf32>
    %122 = arith.mulf %27, %118 : vector<1x16x128xf32>
    %123 = vector.broadcast %121 : vector<1x1x128xf32> to vector<1x16x128xf32>
    %124 = arith.mulf %29, %123 : vector<1x16x128xf32>
    %125 = arith.addf %122, %124 : vector<1x16x128xf32>
    %cst_43 = arith.constant dense<0.000000e+00> : vector<1x128xf32>
    %126 = vector.multi_reduction <add>, %125, %cst_43 [1] : vector<1x16x128xf32> to vector<1x128xf32>
    %127 = vector.shape_cast %126 : vector<1x128xf32> to vector<1x1x128xf32>
    %128 = vector.extract_strided_slice %34 {offsets = [0, 13, 0], sizes = [1, 1, 128], strides = [1, 1, 1]} : vector<1x16x128xf32> to vector<1x1x128xf32>
    %129 = arith.mulf %27, %125 : vector<1x16x128xf32>
    %130 = vector.broadcast %128 : vector<1x1x128xf32> to vector<1x16x128xf32>
    %131 = arith.mulf %29, %130 : vector<1x16x128xf32>
    %132 = arith.addf %129, %131 : vector<1x16x128xf32>
    %cst_44 = arith.constant dense<0.000000e+00> : vector<1x128xf32>
    %133 = vector.multi_reduction <add>, %132, %cst_44 [1] : vector<1x16x128xf32> to vector<1x128xf32>
    %134 = vector.shape_cast %133 : vector<1x128xf32> to vector<1x1x128xf32>
    %135 = vector.extract_strided_slice %34 {offsets = [0, 14, 0], sizes = [1, 1, 128], strides = [1, 1, 1]} : vector<1x16x128xf32> to vector<1x1x128xf32>
    %136 = arith.mulf %27, %132 : vector<1x16x128xf32>
    %137 = vector.broadcast %135 : vector<1x1x128xf32> to vector<1x16x128xf32>
    %138 = arith.mulf %29, %137 : vector<1x16x128xf32>
    %139 = arith.addf %136, %138 : vector<1x16x128xf32>
    %cst_45 = arith.constant dense<0.000000e+00> : vector<1x128xf32>
    %140 = vector.multi_reduction <add>, %139, %cst_45 [1] : vector<1x16x128xf32> to vector<1x128xf32>
    %141 = vector.shape_cast %140 : vector<1x128xf32> to vector<1x1x128xf32>
    %142 = vector.extract_strided_slice %34 {offsets = [0, 15, 0], sizes = [1, 1, 128], strides = [1, 1, 1]} : vector<1x16x128xf32> to vector<1x1x128xf32>
    %143 = arith.mulf %27, %139 : vector<1x16x128xf32>
    %144 = vector.broadcast %142 : vector<1x1x128xf32> to vector<1x16x128xf32>
    %145 = arith.mulf %29, %144 : vector<1x16x128xf32>
    %146 = arith.addf %143, %145 : vector<1x16x128xf32>
    %cst_46 = arith.constant dense<0.000000e+00> : vector<1x128xf32>
    %147 = vector.multi_reduction <add>, %146, %cst_46 [1] : vector<1x16x128xf32> to vector<1x128xf32>
    %148 = vector.shape_cast %147 : vector<1x128xf32> to vector<1x1x128xf32>
    %149 = tpu.concatenate %43, %50, %57, %64, %71, %78, %85, %92, %99, %106, %113, %120, %127, %134, %141, %148 in 1 : vector<1x1x128xf32>, vector<1x1x128xf32>, vector<1x1x128xf32>, vector<1x1x128xf32>, vector<1x1x128xf32>, vector<1x1x128xf32>, vector<1x1x128xf32>, vector<1x1x128xf32>, vector<1x1x128xf32>, vector<1x1x128xf32>, vector<1x1x128xf32>, vector<1x1x128xf32>, vector<1x1x128xf32>, vector<1x1x128xf32>, vector<1x1x128xf32>, vector<1x1x128xf32> -> vector<1x16x128xf32>
    %150 = arith.extf %36 : vector<1x16x128xbf16> to vector<1x16x128xf32>
    %151 = arith.mulf %149, %150 : vector<1x16x128xf32>
    %c0_47 = arith.constant 0 : index
    %152 = arith.index_cast %32 : i32 to index
    %c0_48 = arith.constant 0 : index
    %153 = vector.load %arg14[%c0_47, %152, %c0_48] : memref<1x16x128xf32, #tpu.memory_space<vmem>>, vector<1x16x128xf32>
    tpu.vector_store %arg14[%c0_47, %152, %c0_48], %151 {strides = array<i32>} : memref<1x16x128xf32, #tpu.memory_space<vmem>>, vector<1x16x128xf32>,
    %c1_i32 = arith.constant 1 : i32
    %c0_49 = arith.constant 0 : index
    %c0_50 = arith.constant 0 : index
    %c0_51 = arith.constant 0 : index
    %154 = vector.load %arg16[%c0_49, %c0_50, %c0_51] : memref<1x16x128xf32, #tpu.memory_space<vmem>>, vector<1x16x128xf32>
    tpu.vector_store %arg16[%c0_49, %c0_50, %c0_51], %146 {strides = array<i32>} : memref<1x16x128xf32, #tpu.memory_space<vmem>>, vector<1x16x128xf32>,
    %c0_52 = arith.constant 0 : index
    %c0_53 = arith.constant 0 : index
    %c0_54 = arith.constant 0 : index
    %155 = vector.load %arg14[%c0_52, %c0_53, %c0_54] : memref<1x16x128xf32, #tpu.memory_space<vmem>>, vector<1x16x128xf32>
    %156 = vector.shape_cast %155 : vector<1x16x128xf32> to vector<16x128xf32>
    %157 = arith.truncf %156 : vector<16x128xf32> to vector<16x128xbf16>
    %c0_55 = arith.constant 0 : index
    %c0_56 = arith.constant 0 : index
    %158 = vector.load %arg9[%c0_55, %c0_56] : memref<128x32xbf16, #tpu.memory_space<vmem>>, vector<128x32xbf16>
    %cst_57 = arith.constant dense<0.000000e+00> : vector<16x32xf32>
    %159 = tpu.matmul %157, %158, %cst_57 {dimension_numbers = #tpu.dot_dimension_numbers<[1], [0], [0], [1], [0, 0, 1, 1], [], []>} : vector<16x128xbf16>, vector<128x32xbf16>, vector<16x32xf32> -> vector<16x32xf32>
    %c0_58 = arith.constant 0 : index
    %c0_59 = arith.constant 0 : index
    %160 = vector.load %arg10[%c0_58, %c0_59] : memref<1x32xf32, #tpu.memory_space<vmem>>, vector<1x32xf32>
    %161 = vector.broadcast %160 : vector<1x32xf32> to vector<16x32xf32>
    %162 = arith.addf %159, %161 : vector<16x32xf32>
    %c0_60 = arith.constant 0 : index
    %c0_61 = arith.constant 0 : index
    %c0_62 = arith.constant 0 : index
    %163 = vector.load %arg2[%c0_60, %c0_61, %c0_62] : memref<1x16x32xf32, #tpu.memory_space<vmem>>, vector<1x16x32xf32>
    %164 = vector.shape_cast %163 : vector<1x16x32xf32> to vector<16x32xf32>
    %165 = arith.addf %164, %162 : vector<16x32xf32>
    %cst_63 = arith.constant dense<0.000000e+00> : vector<16xf32>
    %166 = vector.multi_reduction <add>, %165, %cst_63 [1] : vector<16x32xf32> to vector<16xf32>
    %167 = vector.shape_cast %166 : vector<16xf32> to vector<16x1xf32>
    %cst_64 = arith.constant 3.200000e+01 : f32
    %168 = vector.broadcast %cst_64 : f32 to vector<16x1xf32>
    %169 = arith.divf %167, %168 : vector<16x1xf32>
    %170 = vector.broadcast %169 : vector<16x1xf32> to vector<16x32xf32>
    %171 = arith.subf %165, %170 : vector<16x32xf32>
    %172 = arith.mulf %171, %171 : vector<16x32xf32>
    %cst_65 = arith.constant dense<0.000000e+00> : vector<16xf32>
    %173 = vector.multi_reduction <add>, %172, %cst_65 [1] : vector<16x32xf32> to vector<16xf32>
    %174 = vector.shape_cast %173 : vector<16xf32> to vector<16x1xf32>
    %cst_66 = arith.constant 3.200000e+01 : f32
    %175 = vector.broadcast %cst_66 : f32 to vector<16x1xf32>
    %176 = arith.divf %174, %175 : vector<16x1xf32>
    %177 = vector.broadcast %169 : vector<16x1xf32> to vector<16x32xf32>
    %178 = arith.subf %165, %177 : vector<16x32xf32>
    %cst_67 = arith.constant 9.99999974E-6 : f32
    %179 = vector.broadcast %cst_67 : f32 to vector<16x1xf32>
    %180 = arith.addf %176, %179 : vector<16x1xf32>
    %181 = math.rsqrt %180 : vector<16x1xf32>
    %182 = vector.broadcast %181 : vector<16x1xf32> to vector<16x32xf32>
    %183 = arith.mulf %178, %182 : vector<16x32xf32>
    %c0_68 = arith.constant 0 : index
    %c0_69 = arith.constant 0 : index
    %184 = vector.load %arg11[%c0_68, %c0_69] : memref<1x32xf32, #tpu.memory_space<vmem>>, vector<1x32xf32>
    %185 = vector.broadcast %184 : vector<1x32xf32> to vector<16x32xf32>
    %186 = arith.mulf %183, %185 : vector<16x32xf32>
    %c0_70 = arith.constant 0 : index
    %c0_71 = arith.constant 0 : index
    %187 = vector.load %arg12[%c0_70, %c0_71] : memref<1x32xf32, #tpu.memory_space<vmem>>, vector<1x32xf32>
    %188 = vector.broadcast %187 : vector<1x32xf32> to vector<16x32xf32>
    %189 = arith.addf %186, %188 : vector<16x32xf32>
    %190 = vector.shape_cast %189 : vector<16x32xf32> to vector<1x16x32xf32>
    %c0_72 = arith.constant 0 : index
    %c0_73 = arith.constant 0 : index
    %c0_74 = arith.constant 0 : index
    %191 = vector.load %arg13[%c0_72, %c0_73, %c0_74] : memref<1x16x32xf32, #tpu.memory_space<vmem>>, vector<1x16x32xf32>
    tpu.vector_store %arg13[%c0_72, %c0_73, %c0_74], %190 {strides = array<i32>} : memref<1x16x32xf32, #tpu.memory_space<vmem>>, vector<1x16x32xf32>,
    return
  }
  func.func @transform_0(%arg0: i32, %arg1: i32) -> (i32, i32, i32) {
    %c0_i32 = arith.constant 0 : i32
    %c0_i32_0 = arith.constant 0 : i32
    return %arg0, %arg1, %c0_i32 : i32, i32, i32
  }
  func.func @transform_1(%arg0: i32, %arg1: i32) -> (i32, i32) {
    %c0_i32 = arith.constant 0 : i32
    %c0_i32_0 = arith.constant 0 : i32
    %c0_i32_1 = arith.constant 0 : i32
    return %c0_i32, %c0_i32_0 : i32, i32
  }
  func.func @transform_2(%arg0: i32, %arg1: i32) -> (i32, i32) {
    %c0_i32 = arith.constant 0 : i32
    %c0_i32_0 = arith.constant 0 : i32
    %c0_i32_1 = arith.constant 0 : i32
    return %c0_i32, %c0_i32_0 : i32, i32
  }
  func.func @transform_3(%arg0: i32, %arg1: i32) -> (i32, i32) {
    %c0_i32 = arith.constant 0 : i32
    %c0_i32_0 = arith.constant 0 : i32
    %c0_i32_1 = arith.constant 0 : i32
    return %c0_i32, %c0_i32_0 : i32, i32
  }
  func.func @transform_4(%arg0: i32, %arg1: i32) -> (i32, i32) {
    %c0_i32 = arith.constant 0 : i32
    %c0_i32_0 = arith.constant 0 : i32
    %c0_i32_1 = arith.constant 0 : i32
    return %c0_i32, %c0_i32_0 : i32, i32
  }
  func.func @transform_5(%arg0: i32, %arg1: i32) -> (i32, i32) {
    %c0_i32 = arith.constant 0 : i32
    %c0_i32_0 = arith.constant 0 : i32
    %c0_i32_1 = arith.constant 0 : i32
    return %c0_i32, %c0_i32_0 : i32, i32
  }
  func.func @transform_6(%arg0: i32, %arg1: i32) -> (i32, i32) {
    %c0_i32 = arith.constant 0 : i32
    %c0_i32_0 = arith.constant 0 : i32
    %c0_i32_1 = arith.constant 0 : i32
    return %c0_i32, %c0_i32_0 : i32, i32
  }
  func.func @transform_7(%arg0: i32, %arg1: i32) -> (i32, i32) {
    %c0_i32 = arith.constant 0 : i32
    %c0_i32_0 = arith.constant 0 : i32
    %c0_i32_1 = arith.constant 0 : i32
    return %c0_i32, %c0_i32_0 : i32, i32
  }
  func.func @transform_8(%arg0: i32, %arg1: i32) -> (i32, i32) {
    %c0_i32 = arith.constant 0 : i32
    %c0_i32_0 = arith.constant 0 : i32
    %c0_i32_1 = arith.constant 0 : i32
    return %c0_i32, %c0_i32_0 : i32, i32
  }
  func.func @transform_9(%arg0: i32, %arg1: i32) -> (i32, i32) {
    %c0_i32 = arith.constant 0 : i32
    %c0_i32_0 = arith.constant 0 : i32
    %c0_i32_1 = arith.constant 0 : i32
    return %c0_i32, %c0_i32_0 : i32, i32
  }
  func.func @transform_10(%arg0: i32, %arg1: i32) -> (i32, i32) {
    %c0_i32 = arith.constant 0 : i32
    %c0_i32_0 = arith.constant 0 : i32
    %c0_i32_1 = arith.constant 0 : i32
    return %c0_i32, %c0_i32_0 : i32, i32
  }
  func.func @transform_11(%arg0: i32, %arg1: i32) -> (i32, i32, i32) {
    %c0_i32 = arith.constant 0 : i32
    %c0_i32_0 = arith.constant 0 : i32
    return %arg0, %arg1, %c0_i32 : i32, i32, i32
  }
}

module attributes {stable_mosaic.version = 11 : i64} {
  func.func @mamba_block_kernel(%arg0: i32, %arg1: i32, %arg2: memref<1x16x32xf32, #tpu.memory_space<vmem>>, %arg3: memref<32x128xbf16, #tpu.memory_space<vmem>>, %arg4: memref<1x128xf32, #tpu.memory_space<vmem>>, %arg5: memref<32x128xbf16, #tpu.memory_space<vmem>>, %arg6: memref<1x128xf32, #tpu.memory_space<vmem>>, %arg7: memref<16x128xf32, #tpu.memory_space<vmem>>, %arg8: memref<16x128xf32, #tpu.memory_space<vmem>>, %arg9: memref<128x32xbf16, #tpu.memory_space<vmem>>, %arg10: memref<1x32xf32, #tpu.memory_space<vmem>>, %arg11: memref<1x32xf32, #tpu.memory_space<vmem>>, %arg12: memref<1x32xf32, #tpu.memory_space<vmem>>, %arg13: memref<1x16x32xf32, #tpu.memory_space<vmem>>, %arg14: memref<1x16x128xf32, #tpu.memory_space<vmem>>, %arg15: memref<1x16x128xbf16, #tpu.memory_space<vmem>>, %arg16: memref<1x16x128xf32, #tpu.memory_space<vmem>>) attributes {dimension_semantics = [#tpu.dimension_semantics<parallel>, #tpu.dimension_semantics<arbitrary>], iteration_bounds = array<i64: 2, 1>, scalar_prefetch = 0 : i64, scratch_operands = 3 : i64, tpu.core_type = #tpu.core_type<tc>, window_params = [{transform_indices = @transform_0, window_bounds = array<i64: 1, 16, 32>}, {pipeline_mode = #tpu.pipeline_mode<synchronous>, transform_indices = @transform_1, window_bounds = array<i64: 32, 128>}, {pipeline_mode = #tpu.pipeline_mode<synchronous>, transform_indices = @transform_2, window_bounds = array<i64: 1, 128>}, {pipeline_mode = #tpu.pipeline_mode<synchronous>, transform_indices = @transform_3, window_bounds = array<i64: 32, 128>}, {pipeline_mode = #tpu.pipeline_mode<synchronous>, transform_indices = @transform_4, window_bounds = array<i64: 1, 128>}, {pipeline_mode = #tpu.pipeline_mode<synchronous>, transform_indices = @transform_5, window_bounds = array<i64: 16, 128>}, {pipeline_mode = #tpu.pipeline_mode<synchronous>, transform_indices = @transform_6, window_bounds = array<i64: 16, 128>}, {pipeline_mode = #tpu.pipeline_mode<synchronous>, transform_indices = @transform_7, window_bounds = array<i64: 128, 32>}, {pipeline_mode = #tpu.pipeline_mode<synchronous>, transform_indices = @transform_8, window_bounds = array<i64: 1, 32>}, {pipeline_mode = #tpu.pipeline_mode<synchronous>, transform_indices = @transform_9, window_bounds = array<i64: 1, 32>}, {pipeline_mode = #tpu.pipeline_mode<synchronous>, transform_indices = @transform_10, window_bounds = array<i64: 1, 32>}, {transform_indices = @transform_11, window_bounds = array<i64: 1, 16, 32>}]} {
    %c0 = arith.constant 0 : index
    %c0_0 = arith.constant 0 : index
    %c0_1 = arith.constant 0 : index
    %0 = vector.load %arg2[%c0, %c0_0, %c0_1] : memref<1x16x32xf32, #tpu.memory_space<vmem>>, vector<1x16x32xf32>
    %1 = vector.shape_cast %0 : vector<1x16x32xf32> to vector<16x32xf32>
    %2 = arith.truncf %1 : vector<16x32xf32> to vector<16x32xbf16>
    %c0_2 = arith.constant 0 : index
    %c0_3 = arith.constant 0 : index
    %3 = vector.load %arg3[%c0_2, %c0_3] : memref<32x128xbf16, #tpu.memory_space<vmem>>, vector<32x128xbf16>
    %cst = arith.constant dense<0.000000e+00> : vector<16x128xf32>
    %4 = tpu.matmul %2, %3, %cst {dimension_numbers = #tpu.dot_dimension_numbers<[1], [0], [0], [1], [0, 0, 1, 1], [], []>} : vector<16x32xbf16>, vector<32x128xbf16>, vector<16x128xf32> -> vector<16x128xf32>
    %c0_4 = arith.constant 0 : index
    %c0_5 = arith.constant 0 : index
    %5 = vector.load %arg4[%c0_4, %c0_5] : memref<1x128xf32, #tpu.memory_space<vmem>>, vector<1x128xf32>
    %6 = vector.broadcast %5 : vector<1x128xf32> to vector<16x128xf32>
    %7 = arith.addf %4, %6 : vector<16x128xf32>
    %8 = vector.shape_cast %7 : vector<16x128xf32> to vector<1x16x128xf32>
    %c0_6 = arith.constant 0 : index
    %c0_7 = arith.constant 0 : index
    %c0_8 = arith.constant 0 : index
    %9 = vector.load %arg14[%c0_6, %c0_7, %c0_8] : memref<1x16x128xf32, #tpu.memory_space<vmem>>, vector<1x16x128xf32>
    tpu.vector_store %arg14[%c0_6, %c0_7, %c0_8], %8 {strides = array<i32>} : memref<1x16x128xf32, #tpu.memory_space<vmem>>, vector<1x16x128xf32>,
    %c0_9 = arith.constant 0 : index
    %c0_10 = arith.constant 0 : index
    %10 = vector.load %arg5[%c0_9, %c0_10] : memref<32x128xbf16, #tpu.memory_space<vmem>>, vector<32x128xbf16>
    %cst_11 = arith.constant dense<0.000000e+00> : vector<16x128xf32>
    %11 = tpu.matmul %2, %10, %cst_11 {dimension_numbers = #tpu.dot_dimension_numbers<[1], [0], [0], [1], [0, 0, 1, 1], [], []>} : vector<16x32xbf16>, vector<32x128xbf16>, vector<16x128xf32> -> vector<16x128xf32>
    %c0_12 = arith.constant 0 : index
    %c0_13 = arith.constant 0 : index
    %12 = vector.load %arg6[%c0_12, %c0_13] : memref<1x128xf32, #tpu.memory_space<vmem>>, vector<1x128xf32>
    %13 = vector.broadcast %12 : vector<1x128xf32> to vector<16x128xf32>
    %14 = arith.addf %11, %13 : vector<16x128xf32>
    %15 = arith.negf %14 : vector<16x128xf32>
    %16 = math.exp %15 : vector<16x128xf32>
    %cst_14 = arith.constant 1.000000e+00 : f32
    %17 = vector.broadcast %cst_14 : f32 to vector<16x128xf32>
    %18 = arith.addf %17, %16 : vector<16x128xf32>
    %19 = arith.divf %17, %18 : vector<16x128xf32>
    %20 = vector.shape_cast %19 : vector<16x128xf32> to vector<1x16x128xf32>
    %21 = arith.truncf %20 : vector<1x16x128xf32> to vector<1x16x128xbf16>
    %c0_15 = arith.constant 0 : index
    %c0_16 = arith.constant 0 : index
    %c0_17 = arith.constant 0 : index
    %22 = vector.load %arg15[%c0_15, %c0_16, %c0_17] : memref<1x16x128xbf16, #tpu.memory_space<vmem>>, vector<1x16x128xbf16>
    tpu.vector_store %arg15[%c0_15, %c0_16, %c0_17], %21 {strides = array<i32>} : memref<1x16x128xbf16, #tpu.memory_space<vmem>>, vector<1x16x128xbf16>,
    %c0_i32 = arith.constant 0 : i32
    %23 = arith.cmpi eq, %arg1, %c0_i32 : i32
    %24 = arith.extui %23 : i1 to i32
    %c0_i32_18 = arith.constant 0 : i32
    %25 = arith.cmpi ne, %24, %c0_i32_18 : i32
    scf.if %25 {
      %cst_78 = arith.constant 0.000000e+00 : f32
      %305 = vector.broadcast %cst_78 : f32 to vector<1x16x128xf32>
      %c0_79 = arith.constant 0 : index
      %c0_80 = arith.constant 0 : index
      %c0_81 = arith.constant 0 : index
      %306 = vector.load %arg16[%c0_79, %c0_80, %c0_81] : memref<1x16x128xf32, #tpu.memory_space<vmem>>, vector<1x16x128xf32>
      tpu.vector_store %arg16[%c0_79, %c0_80, %c0_81], %305 {strides = array<i32>} : memref<1x16x128xf32, #tpu.memory_space<vmem>>, vector<1x16x128xf32>,
    } else {
    }
    %c0_19 = arith.constant 0 : index
    %c0_20 = arith.constant 0 : index
    %26 = vector.load %arg7[%c0_19, %c0_20] : memref<16x128xf32, #tpu.memory_space<vmem>>, vector<16x128xf32>
    %27 = vector.shape_cast %26 : vector<16x128xf32> to vector<1x16x128xf32>
    %c0_21 = arith.constant 0 : index
    %c0_22 = arith.constant 0 : index
    %28 = vector.load %arg8[%c0_21, %c0_22] : memref<16x128xf32, #tpu.memory_space<vmem>>, vector<16x128xf32>
    %29 = vector.shape_cast %28 : vector<16x128xf32> to vector<1x16x128xf32>
    %c0_23 = arith.constant 0 : index
    %c0_24 = arith.constant 0 : index
    %c0_25 = arith.constant 0 : index
    %30 = vector.load %arg16[%c0_23, %c0_24, %c0_25] : memref<1x16x128xf32, #tpu.memory_space<vmem>>, vector<1x16x128xf32>
    %c0_i32_26 = arith.constant 0 : i32
    %c16_i32 = arith.constant 16 : i32
    %31 = arith.muli %c0_i32_26, %c16_i32 : i32
    %32 = tpu.assume_multiple %31, 16 : i32
    %c0_27 = arith.constant 0 : index
    %33 = arith.index_cast %32 : i32 to index
    %c0_28 = arith.constant 0 : index
    %34 = vector.load %arg14[%c0_27, %33, %c0_28] : memref<1x16x128xf32, #tpu.memory_space<vmem>>, vector<1x16x128xf32>
    %c0_29 = arith.constant 0 : index
    %35 = arith.index_cast %32 : i32 to index
    %c0_30 = arith.constant 0 : index
    %36 = vector.load %arg15[%c0_29, %35, %c0_30] : memref<1x16x128xbf16, #tpu.memory_space<vmem>>, vector<1x16x128xbf16>
    %37 = tpu.iota {dimensions = array<i32: 1>} : vector<1x16x1xi32>
    %cst_31 = arith.constant 0.000000e+00 : f32
    %38 = vector.broadcast %cst_31 : f32 to vector<1x16x128xf32>
    %39 = vector.extract_strided_slice %34 {offsets = [0, 0, 0], sizes = [1, 1, 128], strides = [1, 1, 1]} : vector<1x16x128xf32> to vector<1x1x128xf32>
    %40 = arith.mulf %27, %30 : vector<1x16x128xf32>
    %41 = vector.broadcast %39 : vector<1x1x128xf32> to vector<1x16x128xf32>
    %42 = arith.mulf %29, %41 : vector<1x16x128xf32>
    %43 = arith.addf %40, %42 : vector<1x16x128xf32>
    %cst_32 = arith.constant dense<0.000000e+00> : vector<1x128xf32>
    %44 = vector.multi_reduction <add>, %43, %cst_32 [1] : vector<1x16x128xf32> to vector<1x128xf32>
    %45 = vector.shape_cast %44 : vector<1x128xf32> to vector<1x1x128xf32>
    %c0_i32_33 = arith.constant 0 : i32
    %46 = vector.broadcast %c0_i32_33 : i32 to vector<1x16x1xi32>
    %47 = arith.cmpi eq, %37, %46 : vector<1x16x1xi32>
    %48 = vector.shape_cast %47 : vector<1x16x1xi1> to vector<1x16x1xi1>
    %49 = vector.broadcast %48 : vector<1x16x1xi1> to vector<1x16x128xi1>
    %50 = vector.shape_cast %45 : vector<1x1x128xf32> to vector<1x1x128xf32>
    %51 = vector.broadcast %50 : vector<1x1x128xf32> to vector<1x16x128xf32>
    %52 = arith.select %49, %51, %38 : vector<1x16x128xi1>, vector<1x16x128xf32>
    %53 = vector.extract_strided_slice %34 {offsets = [0, 1, 0], sizes = [1, 1, 128], strides = [1, 1, 1]} : vector<1x16x128xf32> to vector<1x1x128xf32>
    %54 = arith.mulf %27, %43 : vector<1x16x128xf32>
    %55 = vector.broadcast %53 : vector<1x1x128xf32> to vector<1x16x128xf32>
    %56 = arith.mulf %29, %55 : vector<1x16x128xf32>
    %57 = arith.addf %54, %56 : vector<1x16x128xf32>
    %cst_34 = arith.constant dense<0.000000e+00> : vector<1x128xf32>
    %58 = vector.multi_reduction <add>, %57, %cst_34 [1] : vector<1x16x128xf32> to vector<1x128xf32>
    %59 = vector.shape_cast %58 : vector<1x128xf32> to vector<1x1x128xf32>
    %c1_i32 = arith.constant 1 : i32
    %60 = vector.broadcast %c1_i32 : i32 to vector<1x16x1xi32>
    %61 = arith.cmpi eq, %37, %60 : vector<1x16x1xi32>
    %62 = vector.shape_cast %61 : vector<1x16x1xi1> to vector<1x16x1xi1>
    %63 = vector.broadcast %62 : vector<1x16x1xi1> to vector<1x16x128xi1>
    %64 = vector.shape_cast %59 : vector<1x1x128xf32> to vector<1x1x128xf32>
    %65 = vector.broadcast %64 : vector<1x1x128xf32> to vector<1x16x128xf32>
    %66 = arith.select %63, %65, %52 : vector<1x16x128xi1>, vector<1x16x128xf32>
    %67 = vector.extract_strided_slice %34 {offsets = [0, 2, 0], sizes = [1, 1, 128], strides = [1, 1, 1]} : vector<1x16x128xf32> to vector<1x1x128xf32>
    %68 = arith.mulf %27, %57 : vector<1x16x128xf32>
    %69 = vector.broadcast %67 : vector<1x1x128xf32> to vector<1x16x128xf32>
    %70 = arith.mulf %29, %69 : vector<1x16x128xf32>
    %71 = arith.addf %68, %70 : vector<1x16x128xf32>
    %cst_35 = arith.constant dense<0.000000e+00> : vector<1x128xf32>
    %72 = vector.multi_reduction <add>, %71, %cst_35 [1] : vector<1x16x128xf32> to vector<1x128xf32>
    %73 = vector.shape_cast %72 : vector<1x128xf32> to vector<1x1x128xf32>
    %c2_i32 = arith.constant 2 : i32
    %74 = vector.broadcast %c2_i32 : i32 to vector<1x16x1xi32>
    %75 = arith.cmpi eq, %37, %74 : vector<1x16x1xi32>
    %76 = vector.shape_cast %75 : vector<1x16x1xi1> to vector<1x16x1xi1>
    %77 = vector.broadcast %76 : vector<1x16x1xi1> to vector<1x16x128xi1>
    %78 = vector.shape_cast %73 : vector<1x1x128xf32> to vector<1x1x128xf32>
    %79 = vector.broadcast %78 : vector<1x1x128xf32> to vector<1x16x128xf32>
    %80 = arith.select %77, %79, %66 : vector<1x16x128xi1>, vector<1x16x128xf32>
    %81 = vector.extract_strided_slice %34 {offsets = [0, 3, 0], sizes = [1, 1, 128], strides = [1, 1, 1]} : vector<1x16x128xf32> to vector<1x1x128xf32>
    %82 = arith.mulf %27, %71 : vector<1x16x128xf32>
    %83 = vector.broadcast %81 : vector<1x1x128xf32> to vector<1x16x128xf32>
    %84 = arith.mulf %29, %83 : vector<1x16x128xf32>
    %85 = arith.addf %82, %84 : vector<1x16x128xf32>
    %cst_36 = arith.constant dense<0.000000e+00> : vector<1x128xf32>
    %86 = vector.multi_reduction <add>, %85, %cst_36 [1] : vector<1x16x128xf32> to vector<1x128xf32>
    %87 = vector.shape_cast %86 : vector<1x128xf32> to vector<1x1x128xf32>
    %c3_i32 = arith.constant 3 : i32
    %88 = vector.broadcast %c3_i32 : i32 to vector<1x16x1xi32>
    %89 = arith.cmpi eq, %37, %88 : vector<1x16x1xi32>
    %90 = vector.shape_cast %89 : vector<1x16x1xi1> to vector<1x16x1xi1>
    %91 = vector.broadcast %90 : vector<1x16x1xi1> to vector<1x16x128xi1>
    %92 = vector.shape_cast %87 : vector<1x1x128xf32> to vector<1x1x128xf32>
    %93 = vector.broadcast %92 : vector<1x1x128xf32> to vector<1x16x128xf32>
    %94 = arith.select %91, %93, %80 : vector<1x16x128xi1>, vector<1x16x128xf32>
    %95 = vector.extract_strided_slice %34 {offsets = [0, 4, 0], sizes = [1, 1, 128], strides = [1, 1, 1]} : vector<1x16x128xf32> to vector<1x1x128xf32>
    %96 = arith.mulf %27, %85 : vector<1x16x128xf32>
    %97 = vector.broadcast %95 : vector<1x1x128xf32> to vector<1x16x128xf32>
    %98 = arith.mulf %29, %97 : vector<1x16x128xf32>
    %99 = arith.addf %96, %98 : vector<1x16x128xf32>
    %cst_37 = arith.constant dense<0.000000e+00> : vector<1x128xf32>
    %100 = vector.multi_reduction <add>, %99, %cst_37 [1] : vector<1x16x128xf32> to vector<1x128xf32>
    %101 = vector.shape_cast %100 : vector<1x128xf32> to vector<1x1x128xf32>
    %c4_i32 = arith.constant 4 : i32
    %102 = vector.broadcast %c4_i32 : i32 to vector<1x16x1xi32>
    %103 = arith.cmpi eq, %37, %102 : vector<1x16x1xi32>
    %104 = vector.shape_cast %103 : vector<1x16x1xi1> to vector<1x16x1xi1>
    %105 = vector.broadcast %104 : vector<1x16x1xi1> to vector<1x16x128xi1>
    %106 = vector.shape_cast %101 : vector<1x1x128xf32> to vector<1x1x128xf32>
    %107 = vector.broadcast %106 : vector<1x1x128xf32> to vector<1x16x128xf32>
    %108 = arith.select %105, %107, %94 : vector<1x16x128xi1>, vector<1x16x128xf32>
    %109 = vector.extract_strided_slice %34 {offsets = [0, 5, 0], sizes = [1, 1, 128], strides = [1, 1, 1]} : vector<1x16x128xf32> to vector<1x1x128xf32>
    %110 = arith.mulf %27, %99 : vector<1x16x128xf32>
    %111 = vector.broadcast %109 : vector<1x1x128xf32> to vector<1x16x128xf32>
    %112 = arith.mulf %29, %111 : vector<1x16x128xf32>
    %113 = arith.addf %110, %112 : vector<1x16x128xf32>
    %cst_38 = arith.constant dense<0.000000e+00> : vector<1x128xf32>
    %114 = vector.multi_reduction <add>, %113, %cst_38 [1] : vector<1x16x128xf32> to vector<1x128xf32>
    %115 = vector.shape_cast %114 : vector<1x128xf32> to vector<1x1x128xf32>
    %c5_i32 = arith.constant 5 : i32
    %116 = vector.broadcast %c5_i32 : i32 to vector<1x16x1xi32>
    %117 = arith.cmpi eq, %37, %116 : vector<1x16x1xi32>
    %118 = vector.shape_cast %117 : vector<1x16x1xi1> to vector<1x16x1xi1>
    %119 = vector.broadcast %118 : vector<1x16x1xi1> to vector<1x16x128xi1>
    %120 = vector.shape_cast %115 : vector<1x1x128xf32> to vector<1x1x128xf32>
    %121 = vector.broadcast %120 : vector<1x1x128xf32> to vector<1x16x128xf32>
    %122 = arith.select %119, %121, %108 : vector<1x16x128xi1>, vector<1x16x128xf32>
    %123 = vector.extract_strided_slice %34 {offsets = [0, 6, 0], sizes = [1, 1, 128], strides = [1, 1, 1]} : vector<1x16x128xf32> to vector<1x1x128xf32>
    %124 = arith.mulf %27, %113 : vector<1x16x128xf32>
    %125 = vector.broadcast %123 : vector<1x1x128xf32> to vector<1x16x128xf32>
    %126 = arith.mulf %29, %125 : vector<1x16x128xf32>
    %127 = arith.addf %124, %126 : vector<1x16x128xf32>
    %cst_39 = arith.constant dense<0.000000e+00> : vector<1x128xf32>
    %128 = vector.multi_reduction <add>, %127, %cst_39 [1] : vector<1x16x128xf32> to vector<1x128xf32>
    %129 = vector.shape_cast %128 : vector<1x128xf32> to vector<1x1x128xf32>
    %c6_i32 = arith.constant 6 : i32
    %130 = vector.broadcast %c6_i32 : i32 to vector<1x16x1xi32>
    %131 = arith.cmpi eq, %37, %130 : vector<1x16x1xi32>
    %132 = vector.shape_cast %131 : vector<1x16x1xi1> to vector<1x16x1xi1>
    %133 = vector.broadcast %132 : vector<1x16x1xi1> to vector<1x16x128xi1>
    %134 = vector.shape_cast %129 : vector<1x1x128xf32> to vector<1x1x128xf32>
    %135 = vector.broadcast %134 : vector<1x1x128xf32> to vector<1x16x128xf32>
    %136 = arith.select %133, %135, %122 : vector<1x16x128xi1>, vector<1x16x128xf32>
    %137 = vector.extract_strided_slice %34 {offsets = [0, 7, 0], sizes = [1, 1, 128], strides = [1, 1, 1]} : vector<1x16x128xf32> to vector<1x1x128xf32>
    %138 = arith.mulf %27, %127 : vector<1x16x128xf32>
    %139 = vector.broadcast %137 : vector<1x1x128xf32> to vector<1x16x128xf32>
    %140 = arith.mulf %29, %139 : vector<1x16x128xf32>
    %141 = arith.addf %138, %140 : vector<1x16x128xf32>
    %cst_40 = arith.constant dense<0.000000e+00> : vector<1x128xf32>
    %142 = vector.multi_reduction <add>, %141, %cst_40 [1] : vector<1x16x128xf32> to vector<1x128xf32>
    %143 = vector.shape_cast %142 : vector<1x128xf32> to vector<1x1x128xf32>
    %c7_i32 = arith.constant 7 : i32
    %144 = vector.broadcast %c7_i32 : i32 to vector<1x16x1xi32>
    %145 = arith.cmpi eq, %37, %144 : vector<1x16x1xi32>
    %146 = vector.shape_cast %145 : vector<1x16x1xi1> to vector<1x16x1xi1>
    %147 = vector.broadcast %146 : vector<1x16x1xi1> to vector<1x16x128xi1>
    %148 = vector.shape_cast %143 : vector<1x1x128xf32> to vector<1x1x128xf32>
    %149 = vector.broadcast %148 : vector<1x1x128xf32> to vector<1x16x128xf32>
    %150 = arith.select %147, %149, %136 : vector<1x16x128xi1>, vector<1x16x128xf32>
    %151 = vector.extract_strided_slice %34 {offsets = [0, 8, 0], sizes = [1, 1, 128], strides = [1, 1, 1]} : vector<1x16x128xf32> to vector<1x1x128xf32>
    %152 = arith.mulf %27, %141 : vector<1x16x128xf32>
    %153 = vector.broadcast %151 : vector<1x1x128xf32> to vector<1x16x128xf32>
    %154 = arith.mulf %29, %153 : vector<1x16x128xf32>
    %155 = arith.addf %152, %154 : vector<1x16x128xf32>
    %cst_41 = arith.constant dense<0.000000e+00> : vector<1x128xf32>
    %156 = vector.multi_reduction <add>, %155, %cst_41 [1] : vector<1x16x128xf32> to vector<1x128xf32>
    %157 = vector.shape_cast %156 : vector<1x128xf32> to vector<1x1x128xf32>
    %c8_i32 = arith.constant 8 : i32
    %158 = vector.broadcast %c8_i32 : i32 to vector<1x16x1xi32>
    %159 = arith.cmpi eq, %37, %158 : vector<1x16x1xi32>
    %160 = vector.shape_cast %159 : vector<1x16x1xi1> to vector<1x16x1xi1>
    %161 = vector.broadcast %160 : vector<1x16x1xi1> to vector<1x16x128xi1>
    %162 = vector.shape_cast %157 : vector<1x1x128xf32> to vector<1x1x128xf32>
    %163 = vector.broadcast %162 : vector<1x1x128xf32> to vector<1x16x128xf32>
    %164 = arith.select %161, %163, %150 : vector<1x16x128xi1>, vector<1x16x128xf32>
    %165 = vector.extract_strided_slice %34 {offsets = [0, 9, 0], sizes = [1, 1, 128], strides = [1, 1, 1]} : vector<1x16x128xf32> to vector<1x1x128xf32>
    %166 = arith.mulf %27, %155 : vector<1x16x128xf32>
    %167 = vector.broadcast %165 : vector<1x1x128xf32> to vector<1x16x128xf32>
    %168 = arith.mulf %29, %167 : vector<1x16x128xf32>
    %169 = arith.addf %166, %168 : vector<1x16x128xf32>
    %cst_42 = arith.constant dense<0.000000e+00> : vector<1x128xf32>
    %170 = vector.multi_reduction <add>, %169, %cst_42 [1] : vector<1x16x128xf32> to vector<1x128xf32>
    %171 = vector.shape_cast %170 : vector<1x128xf32> to vector<1x1x128xf32>
    %c9_i32 = arith.constant 9 : i32
    %172 = vector.broadcast %c9_i32 : i32 to vector<1x16x1xi32>
    %173 = arith.cmpi eq, %37, %172 : vector<1x16x1xi32>
    %174 = vector.shape_cast %173 : vector<1x16x1xi1> to vector<1x16x1xi1>
    %175 = vector.broadcast %174 : vector<1x16x1xi1> to vector<1x16x128xi1>
    %176 = vector.shape_cast %171 : vector<1x1x128xf32> to vector<1x1x128xf32>
    %177 = vector.broadcast %176 : vector<1x1x128xf32> to vector<1x16x128xf32>
    %178 = arith.select %175, %177, %164 : vector<1x16x128xi1>, vector<1x16x128xf32>
    %179 = vector.extract_strided_slice %34 {offsets = [0, 10, 0], sizes = [1, 1, 128], strides = [1, 1, 1]} : vector<1x16x128xf32> to vector<1x1x128xf32>
    %180 = arith.mulf %27, %169 : vector<1x16x128xf32>
    %181 = vector.broadcast %179 : vector<1x1x128xf32> to vector<1x16x128xf32>
    %182 = arith.mulf %29, %181 : vector<1x16x128xf32>
    %183 = arith.addf %180, %182 : vector<1x16x128xf32>
    %cst_43 = arith.constant dense<0.000000e+00> : vector<1x128xf32>
    %184 = vector.multi_reduction <add>, %183, %cst_43 [1] : vector<1x16x128xf32> to vector<1x128xf32>
    %185 = vector.shape_cast %184 : vector<1x128xf32> to vector<1x1x128xf32>
    %c10_i32 = arith.constant 10 : i32
    %186 = vector.broadcast %c10_i32 : i32 to vector<1x16x1xi32>
    %187 = arith.cmpi eq, %37, %186 : vector<1x16x1xi32>
    %188 = vector.shape_cast %187 : vector<1x16x1xi1> to vector<1x16x1xi1>
    %189 = vector.broadcast %188 : vector<1x16x1xi1> to vector<1x16x128xi1>
    %190 = vector.shape_cast %185 : vector<1x1x128xf32> to vector<1x1x128xf32>
    %191 = vector.broadcast %190 : vector<1x1x128xf32> to vector<1x16x128xf32>
    %192 = arith.select %189, %191, %178 : vector<1x16x128xi1>, vector<1x16x128xf32>
    %193 = vector.extract_strided_slice %34 {offsets = [0, 11, 0], sizes = [1, 1, 128], strides = [1, 1, 1]} : vector<1x16x128xf32> to vector<1x1x128xf32>
    %194 = arith.mulf %27, %183 : vector<1x16x128xf32>
    %195 = vector.broadcast %193 : vector<1x1x128xf32> to vector<1x16x128xf32>
    %196 = arith.mulf %29, %195 : vector<1x16x128xf32>
    %197 = arith.addf %194, %196 : vector<1x16x128xf32>
    %cst_44 = arith.constant dense<0.000000e+00> : vector<1x128xf32>
    %198 = vector.multi_reduction <add>, %197, %cst_44 [1] : vector<1x16x128xf32> to vector<1x128xf32>
    %199 = vector.shape_cast %198 : vector<1x128xf32> to vector<1x1x128xf32>
    %c11_i32 = arith.constant 11 : i32
    %200 = vector.broadcast %c11_i32 : i32 to vector<1x16x1xi32>
    %201 = arith.cmpi eq, %37, %200 : vector<1x16x1xi32>
    %202 = vector.shape_cast %201 : vector<1x16x1xi1> to vector<1x16x1xi1>
    %203 = vector.broadcast %202 : vector<1x16x1xi1> to vector<1x16x128xi1>
    %204 = vector.shape_cast %199 : vector<1x1x128xf32> to vector<1x1x128xf32>
    %205 = vector.broadcast %204 : vector<1x1x128xf32> to vector<1x16x128xf32>
    %206 = arith.select %203, %205, %192 : vector<1x16x128xi1>, vector<1x16x128xf32>
    %207 = vector.extract_strided_slice %34 {offsets = [0, 12, 0], sizes = [1, 1, 128], strides = [1, 1, 1]} : vector<1x16x128xf32> to vector<1x1x128xf32>
    %208 = arith.mulf %27, %197 : vector<1x16x128xf32>
    %209 = vector.broadcast %207 : vector<1x1x128xf32> to vector<1x16x128xf32>
    %210 = arith.mulf %29, %209 : vector<1x16x128xf32>
    %211 = arith.addf %208, %210 : vector<1x16x128xf32>
    %cst_45 = arith.constant dense<0.000000e+00> : vector<1x128xf32>
    %212 = vector.multi_reduction <add>, %211, %cst_45 [1] : vector<1x16x128xf32> to vector<1x128xf32>
    %213 = vector.shape_cast %212 : vector<1x128xf32> to vector<1x1x128xf32>
    %c12_i32 = arith.constant 12 : i32
    %214 = vector.broadcast %c12_i32 : i32 to vector<1x16x1xi32>
    %215 = arith.cmpi eq, %37, %214 : vector<1x16x1xi32>
    %216 = vector.shape_cast %215 : vector<1x16x1xi1> to vector<1x16x1xi1>
    %217 = vector.broadcast %216 : vector<1x16x1xi1> to vector<1x16x128xi1>
    %218 = vector.shape_cast %213 : vector<1x1x128xf32> to vector<1x1x128xf32>
    %219 = vector.broadcast %218 : vector<1x1x128xf32> to vector<1x16x128xf32>
    %220 = arith.select %217, %219, %206 : vector<1x16x128xi1>, vector<1x16x128xf32>
    %221 = vector.extract_strided_slice %34 {offsets = [0, 13, 0], sizes = [1, 1, 128], strides = [1, 1, 1]} : vector<1x16x128xf32> to vector<1x1x128xf32>
    %222 = arith.mulf %27, %211 : vector<1x16x128xf32>
    %223 = vector.broadcast %221 : vector<1x1x128xf32> to vector<1x16x128xf32>
    %224 = arith.mulf %29, %223 : vector<1x16x128xf32>
    %225 = arith.addf %222, %224 : vector<1x16x128xf32>
    %cst_46 = arith.constant dense<0.000000e+00> : vector<1x128xf32>
    %226 = vector.multi_reduction <add>, %225, %cst_46 [1] : vector<1x16x128xf32> to vector<1x128xf32>
    %227 = vector.shape_cast %226 : vector<1x128xf32> to vector<1x1x128xf32>
    %c13_i32 = arith.constant 13 : i32
    %228 = vector.broadcast %c13_i32 : i32 to vector<1x16x1xi32>
    %229 = arith.cmpi eq, %37, %228 : vector<1x16x1xi32>
    %230 = vector.shape_cast %229 : vector<1x16x1xi1> to vector<1x16x1xi1>
    %231 = vector.broadcast %230 : vector<1x16x1xi1> to vector<1x16x128xi1>
    %232 = vector.shape_cast %227 : vector<1x1x128xf32> to vector<1x1x128xf32>
    %233 = vector.broadcast %232 : vector<1x1x128xf32> to vector<1x16x128xf32>
    %234 = arith.select %231, %233, %220 : vector<1x16x128xi1>, vector<1x16x128xf32>
    %235 = vector.extract_strided_slice %34 {offsets = [0, 14, 0], sizes = [1, 1, 128], strides = [1, 1, 1]} : vector<1x16x128xf32> to vector<1x1x128xf32>
    %236 = arith.mulf %27, %225 : vector<1x16x128xf32>
    %237 = vector.broadcast %235 : vector<1x1x128xf32> to vector<1x16x128xf32>
    %238 = arith.mulf %29, %237 : vector<1x16x128xf32>
    %239 = arith.addf %236, %238 : vector<1x16x128xf32>
    %cst_47 = arith.constant dense<0.000000e+00> : vector<1x128xf32>
    %240 = vector.multi_reduction <add>, %239, %cst_47 [1] : vector<1x16x128xf32> to vector<1x128xf32>
    %241 = vector.shape_cast %240 : vector<1x128xf32> to vector<1x1x128xf32>
    %c14_i32 = arith.constant 14 : i32
    %242 = vector.broadcast %c14_i32 : i32 to vector<1x16x1xi32>
    %243 = arith.cmpi eq, %37, %242 : vector<1x16x1xi32>
    %244 = vector.shape_cast %243 : vector<1x16x1xi1> to vector<1x16x1xi1>
    %245 = vector.broadcast %244 : vector<1x16x1xi1> to vector<1x16x128xi1>
    %246 = vector.shape_cast %241 : vector<1x1x128xf32> to vector<1x1x128xf32>
    %247 = vector.broadcast %246 : vector<1x1x128xf32> to vector<1x16x128xf32>
    %248 = arith.select %245, %247, %234 : vector<1x16x128xi1>, vector<1x16x128xf32>
    %249 = vector.extract_strided_slice %34 {offsets = [0, 15, 0], sizes = [1, 1, 128], strides = [1, 1, 1]} : vector<1x16x128xf32> to vector<1x1x128xf32>
    %250 = arith.mulf %27, %239 : vector<1x16x128xf32>
    %251 = vector.broadcast %249 : vector<1x1x128xf32> to vector<1x16x128xf32>
    %252 = arith.mulf %29, %251 : vector<1x16x128xf32>
    %253 = arith.addf %250, %252 : vector<1x16x128xf32>
    %cst_48 = arith.constant dense<0.000000e+00> : vector<1x128xf32>
    %254 = vector.multi_reduction <add>, %253, %cst_48 [1] : vector<1x16x128xf32> to vector<1x128xf32>
    %255 = vector.shape_cast %254 : vector<1x128xf32> to vector<1x1x128xf32>
    %c15_i32 = arith.constant 15 : i32
    %256 = vector.broadcast %c15_i32 : i32 to vector<1x16x1xi32>
    %257 = arith.cmpi eq, %37, %256 : vector<1x16x1xi32>
    %258 = vector.shape_cast %257 : vector<1x16x1xi1> to vector<1x16x1xi1>
    %259 = vector.broadcast %258 : vector<1x16x1xi1> to vector<1x16x128xi1>
    %260 = vector.shape_cast %255 : vector<1x1x128xf32> to vector<1x1x128xf32>
    %261 = vector.broadcast %260 : vector<1x1x128xf32> to vector<1x16x128xf32>
    %262 = arith.select %259, %261, %248 : vector<1x16x128xi1>, vector<1x16x128xf32>
    %263 = arith.extf %36 : vector<1x16x128xbf16> to vector<1x16x128xf32>
    %264 = arith.mulf %262, %263 : vector<1x16x128xf32>
    %c0_49 = arith.constant 0 : index
    %265 = arith.index_cast %32 : i32 to index
    %c0_50 = arith.constant 0 : index
    %266 = vector.load %arg14[%c0_49, %265, %c0_50] : memref<1x16x128xf32, #tpu.memory_space<vmem>>, vector<1x16x128xf32>
    tpu.vector_store %arg14[%c0_49, %265, %c0_50], %264 {strides = array<i32>} : memref<1x16x128xf32, #tpu.memory_space<vmem>>, vector<1x16x128xf32>,
    %c1_i32_51 = arith.constant 1 : i32
    %c0_52 = arith.constant 0 : index
    %c0_53 = arith.constant 0 : index
    %c0_54 = arith.constant 0 : index
    %267 = vector.load %arg16[%c0_52, %c0_53, %c0_54] : memref<1x16x128xf32, #tpu.memory_space<vmem>>, vector<1x16x128xf32>
    tpu.vector_store %arg16[%c0_52, %c0_53, %c0_54], %253 {strides = array<i32>} : memref<1x16x128xf32, #tpu.memory_space<vmem>>, vector<1x16x128xf32>,
    %c0_55 = arith.constant 0 : index
    %c0_56 = arith.constant 0 : index
    %c0_57 = arith.constant 0 : index
    %268 = vector.load %arg14[%c0_55, %c0_56, %c0_57] : memref<1x16x128xf32, #tpu.memory_space<vmem>>, vector<1x16x128xf32>
    %269 = vector.shape_cast %268 : vector<1x16x128xf32> to vector<16x128xf32>
    %270 = arith.truncf %269 : vector<16x128xf32> to vector<16x128xbf16>
    %c0_58 = arith.constant 0 : index
    %c0_59 = arith.constant 0 : index
    %271 = vector.load %arg9[%c0_58, %c0_59] : memref<128x32xbf16, #tpu.memory_space<vmem>>, vector<128x32xbf16>
    %cst_60 = arith.constant dense<0.000000e+00> : vector<16x32xf32>
    %272 = tpu.matmul %270, %271, %cst_60 {dimension_numbers = #tpu.dot_dimension_numbers<[1], [0], [0], [1], [0, 0, 1, 1], [], []>} : vector<16x128xbf16>, vector<128x32xbf16>, vector<16x32xf32> -> vector<16x32xf32>
    %c0_61 = arith.constant 0 : index
    %c0_62 = arith.constant 0 : index
    %273 = vector.load %arg10[%c0_61, %c0_62] : memref<1x32xf32, #tpu.memory_space<vmem>>, vector<1x32xf32>
    %274 = vector.broadcast %273 : vector<1x32xf32> to vector<16x32xf32>
    %275 = arith.addf %272, %274 : vector<16x32xf32>
    %c0_63 = arith.constant 0 : index
    %c0_64 = arith.constant 0 : index
    %c0_65 = arith.constant 0 : index
    %276 = vector.load %arg2[%c0_63, %c0_64, %c0_65] : memref<1x16x32xf32, #tpu.memory_space<vmem>>, vector<1x16x32xf32>
    %277 = vector.shape_cast %276 : vector<1x16x32xf32> to vector<16x32xf32>
    %278 = arith.addf %277, %275 : vector<16x32xf32>
    %cst_66 = arith.constant dense<0.000000e+00> : vector<16xf32>
    %279 = vector.multi_reduction <add>, %278, %cst_66 [1] : vector<16x32xf32> to vector<16xf32>
    %280 = vector.shape_cast %279 : vector<16xf32> to vector<16x1xf32>
    %cst_67 = arith.constant 3.200000e+01 : f32
    %281 = vector.broadcast %cst_67 : f32 to vector<16x1xf32>
    %282 = arith.divf %280, %281 : vector<16x1xf32>
    %283 = vector.broadcast %282 : vector<16x1xf32> to vector<16x32xf32>
    %284 = arith.subf %278, %283 : vector<16x32xf32>
    %285 = arith.mulf %284, %284 : vector<16x32xf32>
    %cst_68 = arith.constant dense<0.000000e+00> : vector<16xf32>
    %286 = vector.multi_reduction <add>, %285, %cst_68 [1] : vector<16x32xf32> to vector<16xf32>
    %287 = vector.shape_cast %286 : vector<16xf32> to vector<16x1xf32>
    %cst_69 = arith.constant 3.200000e+01 : f32
    %288 = vector.broadcast %cst_69 : f32 to vector<16x1xf32>
    %289 = arith.divf %287, %288 : vector<16x1xf32>
    %290 = vector.broadcast %282 : vector<16x1xf32> to vector<16x32xf32>
    %291 = arith.subf %278, %290 : vector<16x32xf32>
    %cst_70 = arith.constant 9.99999974E-6 : f32
    %292 = vector.broadcast %cst_70 : f32 to vector<16x1xf32>
    %293 = arith.addf %289, %292 : vector<16x1xf32>
    %294 = math.rsqrt %293 : vector<16x1xf32>
    %295 = vector.broadcast %294 : vector<16x1xf32> to vector<16x32xf32>
    %296 = arith.mulf %291, %295 : vector<16x32xf32>
    %c0_71 = arith.constant 0 : index
    %c0_72 = arith.constant 0 : index
    %297 = vector.load %arg11[%c0_71, %c0_72] : memref<1x32xf32, #tpu.memory_space<vmem>>, vector<1x32xf32>
    %298 = vector.broadcast %297 : vector<1x32xf32> to vector<16x32xf32>
    %299 = arith.mulf %296, %298 : vector<16x32xf32>
    %c0_73 = arith.constant 0 : index
    %c0_74 = arith.constant 0 : index
    %300 = vector.load %arg12[%c0_73, %c0_74] : memref<1x32xf32, #tpu.memory_space<vmem>>, vector<1x32xf32>
    %301 = vector.broadcast %300 : vector<1x32xf32> to vector<16x32xf32>
    %302 = arith.addf %299, %301 : vector<16x32xf32>
    %303 = vector.shape_cast %302 : vector<16x32xf32> to vector<1x16x32xf32>
    %c0_75 = arith.constant 0 : index
    %c0_76 = arith.constant 0 : index
    %c0_77 = arith.constant 0 : index
    %304 = vector.load %arg13[%c0_75, %c0_76, %c0_77] : memref<1x16x32xf32, #tpu.memory_space<vmem>>, vector<1x16x32xf32>
    tpu.vector_store %arg13[%c0_75, %c0_76, %c0_77], %303 {strides = array<i32>} : memref<1x16x32xf32, #tpu.memory_space<vmem>>, vector<1x16x32xf32>,
    return
  }
  func.func @transform_0(%arg0: i32, %arg1: i32) -> (i32, i32, i32) {
    %c0_i32 = arith.constant 0 : i32
    %c0_i32_0 = arith.constant 0 : i32
    return %arg0, %arg1, %c0_i32 : i32, i32, i32
  }
  func.func @transform_1(%arg0: i32, %arg1: i32) -> (i32, i32) {
    %c0_i32 = arith.constant 0 : i32
    %c0_i32_0 = arith.constant 0 : i32
    %c0_i32_1 = arith.constant 0 : i32
    return %c0_i32, %c0_i32_0 : i32, i32
  }
  func.func @transform_2(%arg0: i32, %arg1: i32) -> (i32, i32) {
    %c0_i32 = arith.constant 0 : i32
    %c0_i32_0 = arith.constant 0 : i32
    %c0_i32_1 = arith.constant 0 : i32
    return %c0_i32, %c0_i32_0 : i32, i32
  }
  func.func @transform_3(%arg0: i32, %arg1: i32) -> (i32, i32) {
    %c0_i32 = arith.constant 0 : i32
    %c0_i32_0 = arith.constant 0 : i32
    %c0_i32_1 = arith.constant 0 : i32
    return %c0_i32, %c0_i32_0 : i32, i32
  }
  func.func @transform_4(%arg0: i32, %arg1: i32) -> (i32, i32) {
    %c0_i32 = arith.constant 0 : i32
    %c0_i32_0 = arith.constant 0 : i32
    %c0_i32_1 = arith.constant 0 : i32
    return %c0_i32, %c0_i32_0 : i32, i32
  }
  func.func @transform_5(%arg0: i32, %arg1: i32) -> (i32, i32) {
    %c0_i32 = arith.constant 0 : i32
    %c0_i32_0 = arith.constant 0 : i32
    %c0_i32_1 = arith.constant 0 : i32
    return %c0_i32, %c0_i32_0 : i32, i32
  }
  func.func @transform_6(%arg0: i32, %arg1: i32) -> (i32, i32) {
    %c0_i32 = arith.constant 0 : i32
    %c0_i32_0 = arith.constant 0 : i32
    %c0_i32_1 = arith.constant 0 : i32
    return %c0_i32, %c0_i32_0 : i32, i32
  }
  func.func @transform_7(%arg0: i32, %arg1: i32) -> (i32, i32) {
    %c0_i32 = arith.constant 0 : i32
    %c0_i32_0 = arith.constant 0 : i32
    %c0_i32_1 = arith.constant 0 : i32
    return %c0_i32, %c0_i32_0 : i32, i32
  }
  func.func @transform_8(%arg0: i32, %arg1: i32) -> (i32, i32) {
    %c0_i32 = arith.constant 0 : i32
    %c0_i32_0 = arith.constant 0 : i32
    %c0_i32_1 = arith.constant 0 : i32
    return %c0_i32, %c0_i32_0 : i32, i32
  }
  func.func @transform_9(%arg0: i32, %arg1: i32) -> (i32, i32) {
    %c0_i32 = arith.constant 0 : i32
    %c0_i32_0 = arith.constant 0 : i32
    %c0_i32_1 = arith.constant 0 : i32
    return %c0_i32, %c0_i32_0 : i32, i32
  }
  func.func @transform_10(%arg0: i32, %arg1: i32) -> (i32, i32) {
    %c0_i32 = arith.constant 0 : i32
    %c0_i32_0 = arith.constant 0 : i32
    %c0_i32_1 = arith.constant 0 : i32
    return %c0_i32, %c0_i32_0 : i32, i32
  }
  func.func @transform_11(%arg0: i32, %arg1: i32) -> (i32, i32, i32) {
    %c0_i32 = arith.constant 0 : i32
    %c0_i32_0 = arith.constant 0 : i32
    return %arg0, %arg1, %c0_i32 : i32, i32, i32
  }
}

module attributes {stable_mosaic.version = 11 : i64} {
  func.func @mamba_block_kernel(%arg0: i32, %arg1: i32, %arg2: memref<1x16x32xf32, #tpu.memory_space<vmem>>, %arg3: memref<32x128xbf16, #tpu.memory_space<vmem>>, %arg4: memref<1x128xf32, #tpu.memory_space<vmem>>, %arg5: memref<32x128xbf16, #tpu.memory_space<vmem>>, %arg6: memref<1x128xf32, #tpu.memory_space<vmem>>, %arg7: memref<16x128xf32, #tpu.memory_space<vmem>>, %arg8: memref<16x128xf32, #tpu.memory_space<vmem>>, %arg9: memref<128x32xbf16, #tpu.memory_space<vmem>>, %arg10: memref<1x32xf32, #tpu.memory_space<vmem>>, %arg11: memref<1x32xf32, #tpu.memory_space<vmem>>, %arg12: memref<1x32xf32, #tpu.memory_space<vmem>>, %arg13: memref<1x16x32xf32, #tpu.memory_space<vmem>>, %arg14: memref<1x16x128xf32, #tpu.memory_space<vmem>>, %arg15: memref<1x16x128xbf16, #tpu.memory_space<vmem>>, %arg16: memref<1x16x128xf32, #tpu.memory_space<vmem>>) attributes {dimension_semantics = [#tpu.dimension_semantics<parallel>, #tpu.dimension_semantics<arbitrary>], iteration_bounds = array<i64: 2, 1>, scalar_prefetch = 0 : i64, scratch_operands = 3 : i64, tpu.core_type = #tpu.core_type<tc>, window_params = [{transform_indices = @transform_0, window_bounds = array<i64: 1, 16, 32>}, {pipeline_mode = #tpu.pipeline_mode<synchronous>, transform_indices = @transform_1, window_bounds = array<i64: 32, 128>}, {pipeline_mode = #tpu.pipeline_mode<synchronous>, transform_indices = @transform_2, window_bounds = array<i64: 1, 128>}, {pipeline_mode = #tpu.pipeline_mode<synchronous>, transform_indices = @transform_3, window_bounds = array<i64: 32, 128>}, {pipeline_mode = #tpu.pipeline_mode<synchronous>, transform_indices = @transform_4, window_bounds = array<i64: 1, 128>}, {pipeline_mode = #tpu.pipeline_mode<synchronous>, transform_indices = @transform_5, window_bounds = array<i64: 16, 128>}, {pipeline_mode = #tpu.pipeline_mode<synchronous>, transform_indices = @transform_6, window_bounds = array<i64: 16, 128>}, {pipeline_mode = #tpu.pipeline_mode<synchronous>, transform_indices = @transform_7, window_bounds = array<i64: 128, 32>}, {pipeline_mode = #tpu.pipeline_mode<synchronous>, transform_indices = @transform_8, window_bounds = array<i64: 1, 32>}, {pipeline_mode = #tpu.pipeline_mode<synchronous>, transform_indices = @transform_9, window_bounds = array<i64: 1, 32>}, {pipeline_mode = #tpu.pipeline_mode<synchronous>, transform_indices = @transform_10, window_bounds = array<i64: 1, 32>}, {transform_indices = @transform_11, window_bounds = array<i64: 1, 16, 32>}]} {
    %c0 = arith.constant 0 : index
    %c0_0 = arith.constant 0 : index
    %c0_1 = arith.constant 0 : index
    %0 = vector.load %arg2[%c0, %c0_0, %c0_1] : memref<1x16x32xf32, #tpu.memory_space<vmem>>, vector<1x16x32xf32>
    %1 = vector.shape_cast %0 : vector<1x16x32xf32> to vector<16x32xf32>
    %2 = arith.truncf %1 : vector<16x32xf32> to vector<16x32xbf16>
    %c0_2 = arith.constant 0 : index
    %c0_3 = arith.constant 0 : index
    %3 = vector.load %arg3[%c0_2, %c0_3] : memref<32x128xbf16, #tpu.memory_space<vmem>>, vector<32x128xbf16>
    %cst = arith.constant dense<0.000000e+00> : vector<16x128xf32>
    %4 = tpu.matmul %2, %3, %cst {dimension_numbers = #tpu.dot_dimension_numbers<[1], [0], [0], [1], [0, 0, 1, 1], [], []>} : vector<16x32xbf16>, vector<32x128xbf16>, vector<16x128xf32> -> vector<16x128xf32>
    %c0_4 = arith.constant 0 : index
    %c0_5 = arith.constant 0 : index
    %5 = vector.load %arg4[%c0_4, %c0_5] : memref<1x128xf32, #tpu.memory_space<vmem>>, vector<1x128xf32>
    %6 = vector.broadcast %5 : vector<1x128xf32> to vector<16x128xf32>
    %7 = arith.addf %4, %6 : vector<16x128xf32>
    %8 = vector.shape_cast %7 : vector<16x128xf32> to vector<1x16x128xf32>
    %c0_6 = arith.constant 0 : index
    %c0_7 = arith.constant 0 : index
    %c0_8 = arith.constant 0 : index
    %9 = vector.load %arg14[%c0_6, %c0_7, %c0_8] : memref<1x16x128xf32, #tpu.memory_space<vmem>>, vector<1x16x128xf32>
    tpu.vector_store %arg14[%c0_6, %c0_7, %c0_8], %8 {strides = array<i32>} : memref<1x16x128xf32, #tpu.memory_space<vmem>>, vector<1x16x128xf32>,
    %c0_9 = arith.constant 0 : index
    %c0_10 = arith.constant 0 : index
    %10 = vector.load %arg5[%c0_9, %c0_10] : memref<32x128xbf16, #tpu.memory_space<vmem>>, vector<32x128xbf16>
    %cst_11 = arith.constant dense<0.000000e+00> : vector<16x128xf32>
    %11 = tpu.matmul %2, %10, %cst_11 {dimension_numbers = #tpu.dot_dimension_numbers<[1], [0], [0], [1], [0, 0, 1, 1], [], []>} : vector<16x32xbf16>, vector<32x128xbf16>, vector<16x128xf32> -> vector<16x128xf32>
    %c0_12 = arith.constant 0 : index
    %c0_13 = arith.constant 0 : index
    %12 = vector.load %arg6[%c0_12, %c0_13] : memref<1x128xf32, #tpu.memory_space<vmem>>, vector<1x128xf32>
    %13 = vector.broadcast %12 : vector<1x128xf32> to vector<16x128xf32>
    %14 = arith.addf %11, %13 : vector<16x128xf32>
    %15 = arith.negf %14 : vector<16x128xf32>
    %16 = math.exp %15 : vector<16x128xf32>
    %cst_14 = arith.constant 1.000000e+00 : f32
    %17 = vector.broadcast %cst_14 : f32 to vector<16x128xf32>
    %18 = arith.addf %17, %16 : vector<16x128xf32>
    %19 = arith.divf %17, %18 : vector<16x128xf32>
    %20 = vector.shape_cast %19 : vector<16x128xf32> to vector<1x16x128xf32>
    %21 = arith.truncf %20 : vector<1x16x128xf32> to vector<1x16x128xbf16>
    %c0_15 = arith.constant 0 : index
    %c0_16 = arith.constant 0 : index
    %c0_17 = arith.constant 0 : index
    %22 = vector.load %arg15[%c0_15, %c0_16, %c0_17] : memref<1x16x128xbf16, #tpu.memory_space<vmem>>, vector<1x16x128xbf16>
    tpu.vector_store %arg15[%c0_15, %c0_16, %c0_17], %21 {strides = array<i32>} : memref<1x16x128xbf16, #tpu.memory_space<vmem>>, vector<1x16x128xbf16>,
    %c0_i32 = arith.constant 0 : i32
    %23 = arith.cmpi eq, %arg1, %c0_i32 : i32
    %24 = arith.extui %23 : i1 to i32
    %c0_i32_18 = arith.constant 0 : i32
    %25 = arith.cmpi ne, %24, %c0_i32_18 : i32
    scf.if %25 {
      %cst_78 = arith.constant 0.000000e+00 : f32
      %305 = vector.broadcast %cst_78 : f32 to vector<1x16x128xf32>
      %c0_79 = arith.constant 0 : index
      %c0_80 = arith.constant 0 : index
      %c0_81 = arith.constant 0 : index
      %306 = vector.load %arg16[%c0_79, %c0_80, %c0_81] : memref<1x16x128xf32, #tpu.memory_space<vmem>>, vector<1x16x128xf32>
      tpu.vector_store %arg16[%c0_79, %c0_80, %c0_81], %305 {strides = array<i32>} : memref<1x16x128xf32, #tpu.memory_space<vmem>>, vector<1x16x128xf32>,
    } else {
    }
    %c0_19 = arith.constant 0 : index
    %c0_20 = arith.constant 0 : index
    %26 = vector.load %arg7[%c0_19, %c0_20] : memref<16x128xf32, #tpu.memory_space<vmem>>, vector<16x128xf32>
    %27 = vector.shape_cast %26 : vector<16x128xf32> to vector<1x16x128xf32>
    %c0_21 = arith.constant 0 : index
    %c0_22 = arith.constant 0 : index
    %28 = vector.load %arg8[%c0_21, %c0_22] : memref<16x128xf32, #tpu.memory_space<vmem>>, vector<16x128xf32>
    %29 = vector.shape_cast %28 : vector<16x128xf32> to vector<1x16x128xf32>
    %c0_23 = arith.constant 0 : index
    %c0_24 = arith.constant 0 : index
    %c0_25 = arith.constant 0 : index
    %30 = vector.load %arg16[%c0_23, %c0_24, %c0_25] : memref<1x16x128xf32, #tpu.memory_space<vmem>>, vector<1x16x128xf32>
    %c0_i32_26 = arith.constant 0 : i32
    %c16_i32 = arith.constant 16 : i32
    %31 = arith.muli %c0_i32_26, %c16_i32 : i32
    %32 = tpu.assume_multiple %31, 16 : i32
    %c0_27 = arith.constant 0 : index
    %33 = arith.index_cast %32 : i32 to index
    %c0_28 = arith.constant 0 : index
    %34 = vector.load %arg14[%c0_27, %33, %c0_28] : memref<1x16x128xf32, #tpu.memory_space<vmem>>, vector<1x16x128xf32>
    %c0_29 = arith.constant 0 : index
    %35 = arith.index_cast %32 : i32 to index
    %c0_30 = arith.constant 0 : index
    %36 = vector.load %arg15[%c0_29, %35, %c0_30] : memref<1x16x128xbf16, #tpu.memory_space<vmem>>, vector<1x16x128xbf16>
    %37 = tpu.iota {dimensions = array<i32: 1>} : vector<1x16x1xi32>
    %cst_31 = arith.constant 0.000000e+00 : f32
    %38 = vector.broadcast %cst_31 : f32 to vector<1x16x128xf32>
    %39 = vector.extract_strided_slice %34 {offsets = [0, 0, 0], sizes = [1, 1, 128], strides = [1, 1, 1]} : vector<1x16x128xf32> to vector<1x1x128xf32>
    %40 = arith.mulf %27, %30 : vector<1x16x128xf32>
    %41 = vector.broadcast %39 : vector<1x1x128xf32> to vector<1x16x128xf32>
    %42 = arith.mulf %29, %41 : vector<1x16x128xf32>
    %43 = arith.addf %40, %42 : vector<1x16x128xf32>
    %cst_32 = arith.constant dense<0.000000e+00> : vector<1x128xf32>
    %44 = vector.multi_reduction <add>, %43, %cst_32 [1] : vector<1x16x128xf32> to vector<1x128xf32>
    %45 = vector.shape_cast %44 : vector<1x128xf32> to vector<1x1x128xf32>
    %c0_i32_33 = arith.constant 0 : i32
    %46 = vector.broadcast %c0_i32_33 : i32 to vector<1x16x1xi32>
    %47 = arith.cmpi eq, %37, %46 : vector<1x16x1xi32>
    %48 = vector.shape_cast %47 : vector<1x16x1xi1> to vector<1x16x1xi1>
    %49 = vector.broadcast %48 : vector<1x16x1xi1> to vector<1x16x128xi1>
    %50 = vector.shape_cast %45 : vector<1x1x128xf32> to vector<1x1x128xf32>
    %51 = vector.broadcast %50 : vector<1x1x128xf32> to vector<1x16x128xf32>
    %52 = arith.select %49, %51, %38 : vector<1x16x128xi1>, vector<1x16x128xf32>
    %53 = vector.extract_strided_slice %34 {offsets = [0, 1, 0], sizes = [1, 1, 128], strides = [1, 1, 1]} : vector<1x16x128xf32> to vector<1x1x128xf32>
    %54 = arith.mulf %27, %43 : vector<1x16x128xf32>
    %55 = vector.broadcast %53 : vector<1x1x128xf32> to vector<1x16x128xf32>
    %56 = arith.mulf %29, %55 : vector<1x16x128xf32>
    %57 = arith.addf %54, %56 : vector<1x16x128xf32>
    %cst_34 = arith.constant dense<0.000000e+00> : vector<1x128xf32>
    %58 = vector.multi_reduction <add>, %57, %cst_34 [1] : vector<1x16x128xf32> to vector<1x128xf32>
    %59 = vector.shape_cast %58 : vector<1x128xf32> to vector<1x1x128xf32>
    %c1_i32 = arith.constant 1 : i32
    %60 = vector.broadcast %c1_i32 : i32 to vector<1x16x1xi32>
    %61 = arith.cmpi eq, %37, %60 : vector<1x16x1xi32>
    %62 = vector.shape_cast %61 : vector<1x16x1xi1> to vector<1x16x1xi1>
    %63 = vector.broadcast %62 : vector<1x16x1xi1> to vector<1x16x128xi1>
    %64 = vector.shape_cast %59 : vector<1x1x128xf32> to vector<1x1x128xf32>
    %65 = vector.broadcast %64 : vector<1x1x128xf32> to vector<1x16x128xf32>
    %66 = arith.select %63, %65, %52 : vector<1x16x128xi1>, vector<1x16x128xf32>
    %67 = vector.extract_strided_slice %34 {offsets = [0, 2, 0], sizes = [1, 1, 128], strides = [1, 1, 1]} : vector<1x16x128xf32> to vector<1x1x128xf32>
    %68 = arith.mulf %27, %57 : vector<1x16x128xf32>
    %69 = vector.broadcast %67 : vector<1x1x128xf32> to vector<1x16x128xf32>
    %70 = arith.mulf %29, %69 : vector<1x16x128xf32>
    %71 = arith.addf %68, %70 : vector<1x16x128xf32>
    %cst_35 = arith.constant dense<0.000000e+00> : vector<1x128xf32>
    %72 = vector.multi_reduction <add>, %71, %cst_35 [1] : vector<1x16x128xf32> to vector<1x128xf32>
    %73 = vector.shape_cast %72 : vector<1x128xf32> to vector<1x1x128xf32>
    %c2_i32 = arith.constant 2 : i32
    %74 = vector.broadcast %c2_i32 : i32 to vector<1x16x1xi32>
    %75 = arith.cmpi eq, %37, %74 : vector<1x16x1xi32>
    %76 = vector.shape_cast %75 : vector<1x16x1xi1> to vector<1x16x1xi1>
    %77 = vector.broadcast %76 : vector<1x16x1xi1> to vector<1x16x128xi1>
    %78 = vector.shape_cast %73 : vector<1x1x128xf32> to vector<1x1x128xf32>
    %79 = vector.broadcast %78 : vector<1x1x128xf32> to vector<1x16x128xf32>
    %80 = arith.select %77, %79, %66 : vector<1x16x128xi1>, vector<1x16x128xf32>
    %81 = vector.extract_strided_slice %34 {offsets = [0, 3, 0], sizes = [1, 1, 128], strides = [1, 1, 1]} : vector<1x16x128xf32> to vector<1x1x128xf32>
    %82 = arith.mulf %27, %71 : vector<1x16x128xf32>
    %83 = vector.broadcast %81 : vector<1x1x128xf32> to vector<1x16x128xf32>
    %84 = arith.mulf %29, %83 : vector<1x16x128xf32>
    %85 = arith.addf %82, %84 : vector<1x16x128xf32>
    %cst_36 = arith.constant dense<0.000000e+00> : vector<1x128xf32>
    %86 = vector.multi_reduction <add>, %85, %cst_36 [1] : vector<1x16x128xf32> to vector<1x128xf32>
    %87 = vector.shape_cast %86 : vector<1x128xf32> to vector<1x1x128xf32>
    %c3_i32 = arith.constant 3 : i32
    %88 = vector.broadcast %c3_i32 : i32 to vector<1x16x1xi32>
    %89 = arith.cmpi eq, %37, %88 : vector<1x16x1xi32>
    %90 = vector.shape_cast %89 : vector<1x16x1xi1> to vector<1x16x1xi1>
    %91 = vector.broadcast %90 : vector<1x16x1xi1> to vector<1x16x128xi1>
    %92 = vector.shape_cast %87 : vector<1x1x128xf32> to vector<1x1x128xf32>
    %93 = vector.broadcast %92 : vector<1x1x128xf32> to vector<1x16x128xf32>
    %94 = arith.select %91, %93, %80 : vector<1x16x128xi1>, vector<1x16x128xf32>
    %95 = vector.extract_strided_slice %34 {offsets = [0, 4, 0], sizes = [1, 1, 128], strides = [1, 1, 1]} : vector<1x16x128xf32> to vector<1x1x128xf32>
    %96 = arith.mulf %27, %85 : vector<1x16x128xf32>
    %97 = vector.broadcast %95 : vector<1x1x128xf32> to vector<1x16x128xf32>
    %98 = arith.mulf %29, %97 : vector<1x16x128xf32>
    %99 = arith.addf %96, %98 : vector<1x16x128xf32>
    %cst_37 = arith.constant dense<0.000000e+00> : vector<1x128xf32>
    %100 = vector.multi_reduction <add>, %99, %cst_37 [1] : vector<1x16x128xf32> to vector<1x128xf32>
    %101 = vector.shape_cast %100 : vector<1x128xf32> to vector<1x1x128xf32>
    %c4_i32 = arith.constant 4 : i32
    %102 = vector.broadcast %c4_i32 : i32 to vector<1x16x1xi32>
    %103 = arith.cmpi eq, %37, %102 : vector<1x16x1xi32>
    %104 = vector.shape_cast %103 : vector<1x16x1xi1> to vector<1x16x1xi1>
    %105 = vector.broadcast %104 : vector<1x16x1xi1> to vector<1x16x128xi1>
    %106 = vector.shape_cast %101 : vector<1x1x128xf32> to vector<1x1x128xf32>
    %107 = vector.broadcast %106 : vector<1x1x128xf32> to vector<1x16x128xf32>
    %108 = arith.select %105, %107, %94 : vector<1x16x128xi1>, vector<1x16x128xf32>
    %109 = vector.extract_strided_slice %34 {offsets = [0, 5, 0], sizes = [1, 1, 128], strides = [1, 1, 1]} : vector<1x16x128xf32> to vector<1x1x128xf32>
    %110 = arith.mulf %27, %99 : vector<1x16x128xf32>
    %111 = vector.broadcast %109 : vector<1x1x128xf32> to vector<1x16x128xf32>
    %112 = arith.mulf %29, %111 : vector<1x16x128xf32>
    %113 = arith.addf %110, %112 : vector<1x16x128xf32>
    %cst_38 = arith.constant dense<0.000000e+00> : vector<1x128xf32>
    %114 = vector.multi_reduction <add>, %113, %cst_38 [1] : vector<1x16x128xf32> to vector<1x128xf32>
    %115 = vector.shape_cast %114 : vector<1x128xf32> to vector<1x1x128xf32>
    %c5_i32 = arith.constant 5 : i32
    %116 = vector.broadcast %c5_i32 : i32 to vector<1x16x1xi32>
    %117 = arith.cmpi eq, %37, %116 : vector<1x16x1xi32>
    %118 = vector.shape_cast %117 : vector<1x16x1xi1> to vector<1x16x1xi1>
    %119 = vector.broadcast %118 : vector<1x16x1xi1> to vector<1x16x128xi1>
    %120 = vector.shape_cast %115 : vector<1x1x128xf32> to vector<1x1x128xf32>
    %121 = vector.broadcast %120 : vector<1x1x128xf32> to vector<1x16x128xf32>
    %122 = arith.select %119, %121, %108 : vector<1x16x128xi1>, vector<1x16x128xf32>
    %123 = vector.extract_strided_slice %34 {offsets = [0, 6, 0], sizes = [1, 1, 128], strides = [1, 1, 1]} : vector<1x16x128xf32> to vector<1x1x128xf32>
    %124 = arith.mulf %27, %113 : vector<1x16x128xf32>
    %125 = vector.broadcast %123 : vector<1x1x128xf32> to vector<1x16x128xf32>
    %126 = arith.mulf %29, %125 : vector<1x16x128xf32>
    %127 = arith.addf %124, %126 : vector<1x16x128xf32>
    %cst_39 = arith.constant dense<0.000000e+00> : vector<1x128xf32>
    %128 = vector.multi_reduction <add>, %127, %cst_39 [1] : vector<1x16x128xf32> to vector<1x128xf32>
    %129 = vector.shape_cast %128 : vector<1x128xf32> to vector<1x1x128xf32>
    %c6_i32 = arith.constant 6 : i32
    %130 = vector.broadcast %c6_i32 : i32 to vector<1x16x1xi32>
    %131 = arith.cmpi eq, %37, %130 : vector<1x16x1xi32>
    %132 = vector.shape_cast %131 : vector<1x16x1xi1> to vector<1x16x1xi1>
    %133 = vector.broadcast %132 : vector<1x16x1xi1> to vector<1x16x128xi1>
    %134 = vector.shape_cast %129 : vector<1x1x128xf32> to vector<1x1x128xf32>
    %135 = vector.broadcast %134 : vector<1x1x128xf32> to vector<1x16x128xf32>
    %136 = arith.select %133, %135, %122 : vector<1x16x128xi1>, vector<1x16x128xf32>
    %137 = vector.extract_strided_slice %34 {offsets = [0, 7, 0], sizes = [1, 1, 128], strides = [1, 1, 1]} : vector<1x16x128xf32> to vector<1x1x128xf32>
    %138 = arith.mulf %27, %127 : vector<1x16x128xf32>
    %139 = vector.broadcast %137 : vector<1x1x128xf32> to vector<1x16x128xf32>
    %140 = arith.mulf %29, %139 : vector<1x16x128xf32>
    %141 = arith.addf %138, %140 : vector<1x16x128xf32>
    %cst_40 = arith.constant dense<0.000000e+00> : vector<1x128xf32>
    %142 = vector.multi_reduction <add>, %141, %cst_40 [1] : vector<1x16x128xf32> to vector<1x128xf32>
    %143 = vector.shape_cast %142 : vector<1x128xf32> to vector<1x1x128xf32>
    %c7_i32 = arith.constant 7 : i32
    %144 = vector.broadcast %c7_i32 : i32 to vector<1x16x1xi32>
    %145 = arith.cmpi eq, %37, %144 : vector<1x16x1xi32>
    %146 = vector.shape_cast %145 : vector<1x16x1xi1> to vector<1x16x1xi1>
    %147 = vector.broadcast %146 : vector<1x16x1xi1> to vector<1x16x128xi1>
    %148 = vector.shape_cast %143 : vector<1x1x128xf32> to vector<1x1x128xf32>
    %149 = vector.broadcast %148 : vector<1x1x128xf32> to vector<1x16x128xf32>
    %150 = arith.select %147, %149, %136 : vector<1x16x128xi1>, vector<1x16x128xf32>
    %151 = vector.extract_strided_slice %34 {offsets = [0, 8, 0], sizes = [1, 1, 128], strides = [1, 1, 1]} : vector<1x16x128xf32> to vector<1x1x128xf32>
    %152 = arith.mulf %27, %141 : vector<1x16x128xf32>
    %153 = vector.broadcast %151 : vector<1x1x128xf32> to vector<1x16x128xf32>
    %154 = arith.mulf %29, %153 : vector<1x16x128xf32>
    %155 = arith.addf %152, %154 : vector<1x16x128xf32>
    %cst_41 = arith.constant dense<0.000000e+00> : vector<1x128xf32>
    %156 = vector.multi_reduction <add>, %155, %cst_41 [1] : vector<1x16x128xf32> to vector<1x128xf32>
    %157 = vector.shape_cast %156 : vector<1x128xf32> to vector<1x1x128xf32>
    %c8_i32 = arith.constant 8 : i32
    %158 = vector.broadcast %c8_i32 : i32 to vector<1x16x1xi32>
    %159 = arith.cmpi eq, %37, %158 : vector<1x16x1xi32>
    %160 = vector.shape_cast %159 : vector<1x16x1xi1> to vector<1x16x1xi1>
    %161 = vector.broadcast %160 : vector<1x16x1xi1> to vector<1x16x128xi1>
    %162 = vector.shape_cast %157 : vector<1x1x128xf32> to vector<1x1x128xf32>
    %163 = vector.broadcast %162 : vector<1x1x128xf32> to vector<1x16x128xf32>
    %164 = arith.select %161, %163, %150 : vector<1x16x128xi1>, vector<1x16x128xf32>
    %165 = vector.extract_strided_slice %34 {offsets = [0, 9, 0], sizes = [1, 1, 128], strides = [1, 1, 1]} : vector<1x16x128xf32> to vector<1x1x128xf32>
    %166 = arith.mulf %27, %155 : vector<1x16x128xf32>
    %167 = vector.broadcast %165 : vector<1x1x128xf32> to vector<1x16x128xf32>
    %168 = arith.mulf %29, %167 : vector<1x16x128xf32>
    %169 = arith.addf %166, %168 : vector<1x16x128xf32>
    %cst_42 = arith.constant dense<0.000000e+00> : vector<1x128xf32>
    %170 = vector.multi_reduction <add>, %169, %cst_42 [1] : vector<1x16x128xf32> to vector<1x128xf32>
    %171 = vector.shape_cast %170 : vector<1x128xf32> to vector<1x1x128xf32>
    %c9_i32 = arith.constant 9 : i32
    %172 = vector.broadcast %c9_i32 : i32 to vector<1x16x1xi32>
    %173 = arith.cmpi eq, %37, %172 : vector<1x16x1xi32>
    %174 = vector.shape_cast %173 : vector<1x16x1xi1> to vector<1x16x1xi1>
    %175 = vector.broadcast %174 : vector<1x16x1xi1> to vector<1x16x128xi1>
    %176 = vector.shape_cast %171 : vector<1x1x128xf32> to vector<1x1x128xf32>
    %177 = vector.broadcast %176 : vector<1x1x128xf32> to vector<1x16x128xf32>
    %178 = arith.select %175, %177, %164 : vector<1x16x128xi1>, vector<1x16x128xf32>
    %179 = vector.extract_strided_slice %34 {offsets = [0, 10, 0], sizes = [1, 1, 128], strides = [1, 1, 1]} : vector<1x16x128xf32> to vector<1x1x128xf32>
    %180 = arith.mulf %27, %169 : vector<1x16x128xf32>
    %181 = vector.broadcast %179 : vector<1x1x128xf32> to vector<1x16x128xf32>
    %182 = arith.mulf %29, %181 : vector<1x16x128xf32>
    %183 = arith.addf %180, %182 : vector<1x16x128xf32>
    %cst_43 = arith.constant dense<0.000000e+00> : vector<1x128xf32>
    %184 = vector.multi_reduction <add>, %183, %cst_43 [1] : vector<1x16x128xf32> to vector<1x128xf32>
    %185 = vector.shape_cast %184 : vector<1x128xf32> to vector<1x1x128xf32>
    %c10_i32 = arith.constant 10 : i32
    %186 = vector.broadcast %c10_i32 : i32 to vector<1x16x1xi32>
    %187 = arith.cmpi eq, %37, %186 : vector<1x16x1xi32>
    %188 = vector.shape_cast %187 : vector<1x16x1xi1> to vector<1x16x1xi1>
    %189 = vector.broadcast %188 : vector<1x16x1xi1> to vector<1x16x128xi1>
    %190 = vector.shape_cast %185 : vector<1x1x128xf32> to vector<1x1x128xf32>
    %191 = vector.broadcast %190 : vector<1x1x128xf32> to vector<1x16x128xf32>
    %192 = arith.select %189, %191, %178 : vector<1x16x128xi1>, vector<1x16x128xf32>
    %193 = vector.extract_strided_slice %34 {offsets = [0, 11, 0], sizes = [1, 1, 128], strides = [1, 1, 1]} : vector<1x16x128xf32> to vector<1x1x128xf32>
    %194 = arith.mulf %27, %183 : vector<1x16x128xf32>
    %195 = vector.broadcast %193 : vector<1x1x128xf32> to vector<1x16x128xf32>
    %196 = arith.mulf %29, %195 : vector<1x16x128xf32>
    %197 = arith.addf %194, %196 : vector<1x16x128xf32>
    %cst_44 = arith.constant dense<0.000000e+00> : vector<1x128xf32>
    %198 = vector.multi_reduction <add>, %197, %cst_44 [1] : vector<1x16x128xf32> to vector<1x128xf32>
    %199 = vector.shape_cast %198 : vector<1x128xf32> to vector<1x1x128xf32>
    %c11_i32 = arith.constant 11 : i32
    %200 = vector.broadcast %c11_i32 : i32 to vector<1x16x1xi32>
    %201 = arith.cmpi eq, %37, %200 : vector<1x16x1xi32>
    %202 = vector.shape_cast %201 : vector<1x16x1xi1> to vector<1x16x1xi1>
    %203 = vector.broadcast %202 : vector<1x16x1xi1> to vector<1x16x128xi1>
    %204 = vector.shape_cast %199 : vector<1x1x128xf32> to vector<1x1x128xf32>
    %205 = vector.broadcast %204 : vector<1x1x128xf32> to vector<1x16x128xf32>
    %206 = arith.select %203, %205, %192 : vector<1x16x128xi1>, vector<1x16x128xf32>
    %207 = vector.extract_strided_slice %34 {offsets = [0, 12, 0], sizes = [1, 1, 128], strides = [1, 1, 1]} : vector<1x16x128xf32> to vector<1x1x128xf32>
    %208 = arith.mulf %27, %197 : vector<1x16x128xf32>
    %209 = vector.broadcast %207 : vector<1x1x128xf32> to vector<1x16x128xf32>
    %210 = arith.mulf %29, %209 : vector<1x16x128xf32>
    %211 = arith.addf %208, %210 : vector<1x16x128xf32>
    %cst_45 = arith.constant dense<0.000000e+00> : vector<1x128xf32>
    %212 = vector.multi_reduction <add>, %211, %cst_45 [1] : vector<1x16x128xf32> to vector<1x128xf32>
    %213 = vector.shape_cast %212 : vector<1x128xf32> to vector<1x1x128xf32>
    %c12_i32 = arith.constant 12 : i32
    %214 = vector.broadcast %c12_i32 : i32 to vector<1x16x1xi32>
    %215 = arith.cmpi eq, %37, %214 : vector<1x16x1xi32>
    %216 = vector.shape_cast %215 : vector<1x16x1xi1> to vector<1x16x1xi1>
    %217 = vector.broadcast %216 : vector<1x16x1xi1> to vector<1x16x128xi1>
    %218 = vector.shape_cast %213 : vector<1x1x128xf32> to vector<1x1x128xf32>
    %219 = vector.broadcast %218 : vector<1x1x128xf32> to vector<1x16x128xf32>
    %220 = arith.select %217, %219, %206 : vector<1x16x128xi1>, vector<1x16x128xf32>
    %221 = vector.extract_strided_slice %34 {offsets = [0, 13, 0], sizes = [1, 1, 128], strides = [1, 1, 1]} : vector<1x16x128xf32> to vector<1x1x128xf32>
    %222 = arith.mulf %27, %211 : vector<1x16x128xf32>
    %223 = vector.broadcast %221 : vector<1x1x128xf32> to vector<1x16x128xf32>
    %224 = arith.mulf %29, %223 : vector<1x16x128xf32>
    %225 = arith.addf %222, %224 : vector<1x16x128xf32>
    %cst_46 = arith.constant dense<0.000000e+00> : vector<1x128xf32>
    %226 = vector.multi_reduction <add>, %225, %cst_46 [1] : vector<1x16x128xf32> to vector<1x128xf32>
    %227 = vector.shape_cast %226 : vector<1x128xf32> to vector<1x1x128xf32>
    %c13_i32 = arith.constant 13 : i32
    %228 = vector.broadcast %c13_i32 : i32 to vector<1x16x1xi32>
    %229 = arith.cmpi eq, %37, %228 : vector<1x16x1xi32>
    %230 = vector.shape_cast %229 : vector<1x16x1xi1> to vector<1x16x1xi1>
    %231 = vector.broadcast %230 : vector<1x16x1xi1> to vector<1x16x128xi1>
    %232 = vector.shape_cast %227 : vector<1x1x128xf32> to vector<1x1x128xf32>
    %233 = vector.broadcast %232 : vector<1x1x128xf32> to vector<1x16x128xf32>
    %234 = arith.select %231, %233, %220 : vector<1x16x128xi1>, vector<1x16x128xf32>
    %235 = vector.extract_strided_slice %34 {offsets = [0, 14, 0], sizes = [1, 1, 128], strides = [1, 1, 1]} : vector<1x16x128xf32> to vector<1x1x128xf32>
    %236 = arith.mulf %27, %225 : vector<1x16x128xf32>
    %237 = vector.broadcast %235 : vector<1x1x128xf32> to vector<1x16x128xf32>
    %238 = arith.mulf %29, %237 : vector<1x16x128xf32>
    %239 = arith.addf %236, %238 : vector<1x16x128xf32>
    %cst_47 = arith.constant dense<0.000000e+00> : vector<1x128xf32>
    %240 = vector.multi_reduction <add>, %239, %cst_47 [1] : vector<1x16x128xf32> to vector<1x128xf32>
    %241 = vector.shape_cast %240 : vector<1x128xf32> to vector<1x1x128xf32>
    %c14_i32 = arith.constant 14 : i32
    %242 = vector.broadcast %c14_i32 : i32 to vector<1x16x1xi32>
    %243 = arith.cmpi eq, %37, %242 : vector<1x16x1xi32>
    %244 = vector.shape_cast %243 : vector<1x16x1xi1> to vector<1x16x1xi1>
    %245 = vector.broadcast %244 : vector<1x16x1xi1> to vector<1x16x128xi1>
    %246 = vector.shape_cast %241 : vector<1x1x128xf32> to vector<1x1x128xf32>
    %247 = vector.broadcast %246 : vector<1x1x128xf32> to vector<1x16x128xf32>
    %248 = arith.select %245, %247, %234 : vector<1x16x128xi1>, vector<1x16x128xf32>
    %249 = vector.extract_strided_slice %34 {offsets = [0, 15, 0], sizes = [1, 1, 128], strides = [1, 1, 1]} : vector<1x16x128xf32> to vector<1x1x128xf32>
    %250 = arith.mulf %27, %239 : vector<1x16x128xf32>
    %251 = vector.broadcast %249 : vector<1x1x128xf32> to vector<1x16x128xf32>
    %252 = arith.mulf %29, %251 : vector<1x16x128xf32>
    %253 = arith.addf %250, %252 : vector<1x16x128xf32>
    %cst_48 = arith.constant dense<0.000000e+00> : vector<1x128xf32>
    %254 = vector.multi_reduction <add>, %253, %cst_48 [1] : vector<1x16x128xf32> to vector<1x128xf32>
    %255 = vector.shape_cast %254 : vector<1x128xf32> to vector<1x1x128xf32>
    %c15_i32 = arith.constant 15 : i32
    %256 = vector.broadcast %c15_i32 : i32 to vector<1x16x1xi32>
    %257 = arith.cmpi eq, %37, %256 : vector<1x16x1xi32>
    %258 = vector.shape_cast %257 : vector<1x16x1xi1> to vector<1x16x1xi1>
    %259 = vector.broadcast %258 : vector<1x16x1xi1> to vector<1x16x128xi1>
    %260 = vector.shape_cast %255 : vector<1x1x128xf32> to vector<1x1x128xf32>
    %261 = vector.broadcast %260 : vector<1x1x128xf32> to vector<1x16x128xf32>
    %262 = arith.select %259, %261, %248 : vector<1x16x128xi1>, vector<1x16x128xf32>
    %263 = arith.extf %36 : vector<1x16x128xbf16> to vector<1x16x128xf32>
    %264 = arith.mulf %262, %263 : vector<1x16x128xf32>
    %c0_49 = arith.constant 0 : index
    %265 = arith.index_cast %32 : i32 to index
    %c0_50 = arith.constant 0 : index
    %266 = vector.load %arg14[%c0_49, %265, %c0_50] : memref<1x16x128xf32, #tpu.memory_space<vmem>>, vector<1x16x128xf32>
    tpu.vector_store %arg14[%c0_49, %265, %c0_50], %264 {strides = array<i32>} : memref<1x16x128xf32, #tpu.memory_space<vmem>>, vector<1x16x128xf32>,
    %c1_i32_51 = arith.constant 1 : i32
    %c0_52 = arith.constant 0 : index
    %c0_53 = arith.constant 0 : index
    %c0_54 = arith.constant 0 : index
    %267 = vector.load %arg16[%c0_52, %c0_53, %c0_54] : memref<1x16x128xf32, #tpu.memory_space<vmem>>, vector<1x16x128xf32>
    tpu.vector_store %arg16[%c0_52, %c0_53, %c0_54], %253 {strides = array<i32>} : memref<1x16x128xf32, #tpu.memory_space<vmem>>, vector<1x16x128xf32>,
    %c0_55 = arith.constant 0 : index
    %c0_56 = arith.constant 0 : index
    %c0_57 = arith.constant 0 : index
    %268 = vector.load %arg14[%c0_55, %c0_56, %c0_57] : memref<1x16x128xf32, #tpu.memory_space<vmem>>, vector<1x16x128xf32>
    %269 = vector.shape_cast %268 : vector<1x16x128xf32> to vector<16x128xf32>
    %270 = arith.truncf %269 : vector<16x128xf32> to vector<16x128xbf16>
    %c0_58 = arith.constant 0 : index
    %c0_59 = arith.constant 0 : index
    %271 = vector.load %arg9[%c0_58, %c0_59] : memref<128x32xbf16, #tpu.memory_space<vmem>>, vector<128x32xbf16>
    %cst_60 = arith.constant dense<0.000000e+00> : vector<16x32xf32>
    %272 = tpu.matmul %270, %271, %cst_60 {dimension_numbers = #tpu.dot_dimension_numbers<[1], [0], [0], [1], [0, 0, 1, 1], [], []>} : vector<16x128xbf16>, vector<128x32xbf16>, vector<16x32xf32> -> vector<16x32xf32>
    %c0_61 = arith.constant 0 : index
    %c0_62 = arith.constant 0 : index
    %273 = vector.load %arg10[%c0_61, %c0_62] : memref<1x32xf32, #tpu.memory_space<vmem>>, vector<1x32xf32>
    %274 = vector.broadcast %273 : vector<1x32xf32> to vector<16x32xf32>
    %275 = arith.addf %272, %274 : vector<16x32xf32>
    %c0_63 = arith.constant 0 : index
    %c0_64 = arith.constant 0 : index
    %c0_65 = arith.constant 0 : index
    %276 = vector.load %arg2[%c0_63, %c0_64, %c0_65] : memref<1x16x32xf32, #tpu.memory_space<vmem>>, vector<1x16x32xf32>
    %277 = vector.shape_cast %276 : vector<1x16x32xf32> to vector<16x32xf32>
    %278 = arith.addf %277, %275 : vector<16x32xf32>
    %cst_66 = arith.constant dense<0.000000e+00> : vector<16xf32>
    %279 = vector.multi_reduction <add>, %278, %cst_66 [1] : vector<16x32xf32> to vector<16xf32>
    %280 = vector.shape_cast %279 : vector<16xf32> to vector<16x1xf32>
    %cst_67 = arith.constant 3.200000e+01 : f32
    %281 = vector.broadcast %cst_67 : f32 to vector<16x1xf32>
    %282 = arith.divf %280, %281 : vector<16x1xf32>
    %283 = vector.broadcast %282 : vector<16x1xf32> to vector<16x32xf32>
    %284 = arith.subf %278, %283 : vector<16x32xf32>
    %285 = arith.mulf %284, %284 : vector<16x32xf32>
    %cst_68 = arith.constant dense<0.000000e+00> : vector<16xf32>
    %286 = vector.multi_reduction <add>, %285, %cst_68 [1] : vector<16x32xf32> to vector<16xf32>
    %287 = vector.shape_cast %286 : vector<16xf32> to vector<16x1xf32>
    %cst_69 = arith.constant 3.200000e+01 : f32
    %288 = vector.broadcast %cst_69 : f32 to vector<16x1xf32>
    %289 = arith.divf %287, %288 : vector<16x1xf32>
    %290 = vector.broadcast %282 : vector<16x1xf32> to vector<16x32xf32>
    %291 = arith.subf %278, %290 : vector<16x32xf32>
    %cst_70 = arith.constant 9.99999974E-6 : f32
    %292 = vector.broadcast %cst_70 : f32 to vector<16x1xf32>
    %293 = arith.addf %289, %292 : vector<16x1xf32>
    %294 = math.rsqrt %293 : vector<16x1xf32>
    %295 = vector.broadcast %294 : vector<16x1xf32> to vector<16x32xf32>
    %296 = arith.mulf %291, %295 : vector<16x32xf32>
    %c0_71 = arith.constant 0 : index
    %c0_72 = arith.constant 0 : index
    %297 = vector.load %arg11[%c0_71, %c0_72] : memref<1x32xf32, #tpu.memory_space<vmem>>, vector<1x32xf32>
    %298 = vector.broadcast %297 : vector<1x32xf32> to vector<16x32xf32>
    %299 = arith.mulf %296, %298 : vector<16x32xf32>
    %c0_73 = arith.constant 0 : index
    %c0_74 = arith.constant 0 : index
    %300 = vector.load %arg12[%c0_73, %c0_74] : memref<1x32xf32, #tpu.memory_space<vmem>>, vector<1x32xf32>
    %301 = vector.broadcast %300 : vector<1x32xf32> to vector<16x32xf32>
    %302 = arith.addf %299, %301 : vector<16x32xf32>
    %303 = vector.shape_cast %302 : vector<16x32xf32> to vector<1x16x32xf32>
    %c0_75 = arith.constant 0 : index
    %c0_76 = arith.constant 0 : index
    %c0_77 = arith.constant 0 : index
    %304 = vector.load %arg13[%c0_75, %c0_76, %c0_77] : memref<1x16x32xf32, #tpu.memory_space<vmem>>, vector<1x16x32xf32>
    tpu.vector_store %arg13[%c0_75, %c0_76, %c0_77], %303 {strides = array<i32>} : memref<1x16x32xf32, #tpu.memory_space<vmem>>, vector<1x16x32xf32>,
    return
  }
  func.func @transform_0(%arg0: i32, %arg1: i32) -> (i32, i32, i32) {
    %c0_i32 = arith.constant 0 : i32
    %c0_i32_0 = arith.constant 0 : i32
    return %arg0, %arg1, %c0_i32 : i32, i32, i32
  }
  func.func @transform_1(%arg0: i32, %arg1: i32) -> (i32, i32) {
    %c0_i32 = arith.constant 0 : i32
    %c0_i32_0 = arith.constant 0 : i32
    %c0_i32_1 = arith.constant 0 : i32
    return %c0_i32, %c0_i32_0 : i32, i32
  }
  func.func @transform_2(%arg0: i32, %arg1: i32) -> (i32, i32) {
    %c0_i32 = arith.constant 0 : i32
    %c0_i32_0 = arith.constant 0 : i32
    %c0_i32_1 = arith.constant 0 : i32
    return %c0_i32, %c0_i32_0 : i32, i32
  }
  func.func @transform_3(%arg0: i32, %arg1: i32) -> (i32, i32) {
    %c0_i32 = arith.constant 0 : i32
    %c0_i32_0 = arith.constant 0 : i32
    %c0_i32_1 = arith.constant 0 : i32
    return %c0_i32, %c0_i32_0 : i32, i32
  }
  func.func @transform_4(%arg0: i32, %arg1: i32) -> (i32, i32) {
    %c0_i32 = arith.constant 0 : i32
    %c0_i32_0 = arith.constant 0 : i32
    %c0_i32_1 = arith.constant 0 : i32
    return %c0_i32, %c0_i32_0 : i32, i32
  }
  func.func @transform_5(%arg0: i32, %arg1: i32) -> (i32, i32) {
    %c0_i32 = arith.constant 0 : i32
    %c0_i32_0 = arith.constant 0 : i32
    %c0_i32_1 = arith.constant 0 : i32
    return %c0_i32, %c0_i32_0 : i32, i32
  }
  func.func @transform_6(%arg0: i32, %arg1: i32) -> (i32, i32) {
    %c0_i32 = arith.constant 0 : i32
    %c0_i32_0 = arith.constant 0 : i32
    %c0_i32_1 = arith.constant 0 : i32
    return %c0_i32, %c0_i32_0 : i32, i32
  }
  func.func @transform_7(%arg0: i32, %arg1: i32) -> (i32, i32) {
    %c0_i32 = arith.constant 0 : i32
    %c0_i32_0 = arith.constant 0 : i32
    %c0_i32_1 = arith.constant 0 : i32
    return %c0_i32, %c0_i32_0 : i32, i32
  }
  func.func @transform_8(%arg0: i32, %arg1: i32) -> (i32, i32) {
    %c0_i32 = arith.constant 0 : i32
    %c0_i32_0 = arith.constant 0 : i32
    %c0_i32_1 = arith.constant 0 : i32
    return %c0_i32, %c0_i32_0 : i32, i32
  }
  func.func @transform_9(%arg0: i32, %arg1: i32) -> (i32, i32) {
    %c0_i32 = arith.constant 0 : i32
    %c0_i32_0 = arith.constant 0 : i32
    %c0_i32_1 = arith.constant 0 : i32
    return %c0_i32, %c0_i32_0 : i32, i32
  }
  func.func @transform_10(%arg0: i32, %arg1: i32) -> (i32, i32) {
    %c0_i32 = arith.constant 0 : i32
    %c0_i32_0 = arith.constant 0 : i32
    %c0_i32_1 = arith.constant 0 : i32
    return %c0_i32, %c0_i32_0 : i32, i32
  }
  func.func @transform_11(%arg0: i32, %arg1: i32) -> (i32, i32, i32) {
    %c0_i32 = arith.constant 0 : i32
    %c0_i32_0 = arith.constant 0 : i32
    return %arg0, %arg1, %c0_i32 : i32, i32, i32
  }
}

</mosaic_0001>

<llo_original>
// kernel: tpu_custom_call.1
$region0: #{tpu_custom_call.1}
  #allocation0 [shape = 'u32[]', space=smem, size = 0x4, offset = 0x4, fixed_abs, tag = 'smem constant byte address 0x4 - core index']
  #allocation1 [shape = 'u32[144,128]{1,0:T(1,128)}', space=vmem, size = 0x12000, scoped, tag = 'internal scratch']
  #allocation2 [shape = 'f32[1,16,128]{2,1,0:T(8,128)}', space=vmem, size = 0x2000, scoped, tag = 'scratch operand']
  #allocation3 [shape = 'bf16[1,16,128]{2,1,0:T(16,128)(2,1)}', space=vmem, size = 0x1000, scoped, tag = 'scratch operand']
  #allocation4 [shape = 'f32[1,16,128]{2,1,0:T(8,128)}', space=vmem, size = 0x2000, scoped, tag = 'scratch operand']
  %s0 = inlined_call_operand.vmem [shape: f32[2,16,32], index: 0, kind: input, shape index: {}]
  %s1 = inlined_call_operand.vmem [shape: bf16[32,128], index: 1, kind: input, shape index: {}]
  %s2 = inlined_call_operand.vmem [shape: f32[1,128], index: 2, kind: input, shape index: {}]
  %s3 = inlined_call_operand.vmem [shape: bf16[32,128], index: 3, kind: input, shape index: {}]
  %s4 = inlined_call_operand.vmem [shape: f32[1,128], index: 4, kind: input, shape index: {}]
  %s5 = inlined_call_operand.vmem [shape: f32[16,128], index: 5, kind: input, shape index: {}]
  %s6 = inlined_call_operand.hbm [shape: f32[16,128], index: 6, kind: input, shape index: {}]
  %s7 = inlined_call_operand.vmem [shape: bf16[128,32], index: 7, kind: input, shape index: {}]
  %s8 = inlined_call_operand.vmem [shape: f32[1,32], index: 8, kind: input, shape index: {}]
  %s9 = inlined_call_operand.vmem [shape: f32[1,32], index: 9, kind: input, shape index: {}]
  %s10 = inlined_call_operand.vmem [shape: f32[1,32], index: 10, kind: input, shape index: {}]
  %s11 = inlined_call_operand.hbm [shape: f32[2,16,32], index: 11, kind: output, shape index: {}]
  %s12 = sld [smem:[#allocation0]]
  $region85: #{tpu_custom_call.1} parent=0
    _
  %s14 = ssub.s32 1, %s12
  %s15 = scalar_select 0, %s14, %s12
  $region1: #{tpu_custom_call.1} parent=0
    #allocation5 [shape = 'u8[8192]{0}', space=vmem, size = 0x2000, scoped, tag = 'input window, operand 6, single buffered']
    #allocation6 [shape = 's32[2]{0}', space=sflag, size = 0x8, scoped, tag = 'scoped memory for tpu_custom_call.1']
    #allocation7 [shape = 's32[2]{0}', space=sflag, size = 0x8, scoped, tag = 'scoped memory for tpu_custom_call.1']
    #allocation8 [shape = 'u8[16384]{0}', space=vmem, size = 0x4000, scoped, tag = 'output window, operand 0']
    %16 = vsyncpa [#allocation6], 0
    %17 = vsyncpa [#allocation7], 0
    %s18 = scalar_lea.sflag [#allocation7], 1
    %19 = vsyncpa %s18, 0
    loop: start=0, step=1, limit=4
    $region2: #{tpu_custom_call.1} parent=1 // loop_pre_header
      _
    $region3: #{tpu_custom_call.1} parent=1 // loop_header
      %s21 = sphi 0, %s25
      %p22 = scmp.ge.s32.totalorder %s21, 4
      %s28 = sphi 0, %s40
      %s29 = sphi 0, %s36
      %s30 = sphi 0, %s28
      %s31 = sphi 0, %s29
      %s32 = sphi 0, %s30
      %s33 = sphi 0, %s31
      %s45 = sphi 0, %s47
      %s48 = sphi 0, %s45
      %s49 = sphi 0, %s48
      %s65 = sphi 0, %s49
      %s69 = sphi 0, %s69
      %s71 = sphi 0, %s69
      %s72 = sphi 0, %s71
      %s86 = sphi 0, %s72
      %s90 = sphi 0, %s90
      %s92 = sphi 0, %s90
      %s93 = sphi 0, %s92
      %s107 = sphi 0, %s93
      %s111 = sphi 0, %s111
      %s113 = sphi 0, %s111
      %s114 = sphi 0, %s113
      %s128 = sphi 0, %s114
      %s132 = sphi 0, %s132
      %s134 = sphi 0, %s132
      %s135 = sphi 0, %s134
      %s149 = sphi 0, %s135
      %s153 = sphi 0, %s153
      %s155 = sphi 0, %s153
      %s156 = sphi 0, %s155
      %s170 = sphi 0, %s156
      %s174 = sphi 0, %s174
      %s176 = sphi 0, %s174
      %s177 = sphi 0, %s176
      %s191 = sphi 0, %s177
      %s195 = sphi 0, %s195
      %s197 = sphi 0, %s195
      %s198 = sphi 0, %s197
      %s212 = sphi 0, %s198
      %s216 = sphi 0, %s216
      %s218 = sphi 0, %s216
      %s219 = sphi 0, %s218
      %s233 = sphi 0, %s219
      %s237 = sphi 0, %s237
      %s239 = sphi 0, %s237
      %s240 = sphi 0, %s239
      %s254 = sphi 0, %s240
      %s258 = sphi 0, %s258
      %s260 = sphi 0, %s258
      %s261 = sphi 0, %s260
      %s275 = sphi 0, %s261
      %s283 = sphi 0, %s285
      %s286 = sphi 0, %s283
      %s287 = sphi 0, %s286
      %s303 = sphi 0, %s287
    $region4: #{tpu_custom_call.1} parent=1 // loop_header_branch
      %24 = sbr.rel (%p22) target = $region8
    $region5: #{tpu_custom_call.1} parent=1 // loop_body
      %s26 = ssub.s32 %s21, 1
      %s27 = ssub.s32 %s21, 2
      %s34 = sadd.s32 1, %s29
      %p35 = scmp.ge.s32.totalorder %s34, 1
      %s36 = scalar_select %p35, 0, %s34
      %s37 = sadd.s32 1, %s28
      %s38 = scalar_select %p35, %s37, %s28
      %p39 = scmp.ge.s32.totalorder %s38, 2
      %s40 = scalar_select %p39, 0, %s38
      %s41 = ssub.s32 %s28, %s40
      %s42 = ssub.s32 %s29, %s36
      %s43 = sor.u32 %s41, %s42
      %p44 = scmp.eq.s32.totalorder %s43, 0
      %s46 = sadd.s32 %s45, 1
      %s47 = scalar_select %p44, %s45, %s46
      %p50 = pneg %p44
      %p51 = scmp.eq.s32.totalorder %s21, 1
      %p52 = por %p50, %p51
      %p53 = scmp.ne.s32.totalorder %s45, %s48
      %p54 = scmp.eq.s32.totalorder %s21, 0
      %p55 = por %p53, %p54
      %p56 = scmp.ne.s32.totalorder %s45, %s48
      %p57 = scmp.eq.s32.totalorder %s26, 1
      %p58 = por %p56, %p57
      %p59 = scmp.ne.s32.totalorder %s48, %s49
      %p60 = scmp.eq.s32.totalorder %s26, 0
      %p61 = por %p59, %p60
      %p62 = scmp.ne.s32.totalorder %s48, %s49
      %p63 = scmp.eq.s32.totalorder %s27, 1
      %p64 = por %p62, %p63
      %p66 = scmp.ne.s32.totalorder %s49, %s65
      %p67 = scmp.eq.s32.totalorder %s27, 0
      %p68 = por %p66, %p67
      %s70 = sadd.s32 %s69, 1
      %p73 = scmp.eq.s32.totalorder %s21, 1
      %p74 = scmp.ne.s32.totalorder %s69, %s71
      %p75 = scmp.eq.s32.totalorder %s21, 0
      %p76 = por %p74, %p75
      %p77 = scmp.ne.s32.totalorder %s69, %s71
      %p78 = scmp.eq.s32.totalorder %s26, 1
      %p79 = por %p77, %p78
      %p80 = scmp.ne.s32.totalorder %s71, %s72
      %p81 = scmp.eq.s32.totalorder %s26, 0
      %p82 = por %p80, %p81
      %p83 = scmp.ne.s32.totalorder %s71, %s72
      %p84 = scmp.eq.s32.totalorder %s27, 1
      %p85 = por %p83, %p84
      %p87 = scmp.ne.s32.totalorder %s72, %s86
      %p88 = scmp.eq.s32.totalorder %s27, 0
      %p89 = por %p87, %p88
      %s91 = sadd.s32 %s90, 1
      %p94 = scmp.eq.s32.totalorder %s21, 1
      %p95 = scmp.ne.s32.totalorder %s90, %s92
      %p96 = scmp.eq.s32.totalorder %s21, 0
      %p97 = por %p95, %p96
      %p98 = scmp.ne.s32.totalorder %s90, %s92
      %p99 = scmp.eq.s32.totalorder %s26, 1
      %p100 = por %p98, %p99
      %p101 = scmp.ne.s32.totalorder %s92, %s93
      %p102 = scmp.eq.s32.totalorder %s26, 0
      %p103 = por %p101, %p102
      %p104 = scmp.ne.s32.totalorder %s92, %s93
      %p105 = scmp.eq.s32.totalorder %s27, 1
      %p106 = por %p104, %p105
      %p108 = scmp.ne.s32.totalorder %s93, %s107
      %p109 = scmp.eq.s32.totalorder %s27, 0
      %p110 = por %p108, %p109
      %s112 = sadd.s32 %s111, 1
      %p115 = scmp.eq.s32.totalorder %s21, 1
      %p116 = scmp.ne.s32.totalorder %s111, %s113
      %p117 = scmp.eq.s32.totalorder %s21, 0
      %p118 = por %p116, %p117
      %p119 = scmp.ne.s32.totalorder %s111, %s113
      %p120 = scmp.eq.s32.totalorder %s26, 1
      %p121 = por %p119, %p120
      %p122 = scmp.ne.s32.totalorder %s113, %s114
      %p123 = scmp.eq.s32.totalorder %s26, 0
      %p124 = por %p122, %p123
      %p125 = scmp.ne.s32.totalorder %s113, %s114
      %p126 = scmp.eq.s32.totalorder %s27, 1
      %p127 = por %p125, %p126
      %p129 = scmp.ne.s32.totalorder %s114, %s128
      %p130 = scmp.eq.s32.totalorder %s27, 0
      %p131 = por %p129, %p130
      %s133 = sadd.s32 %s132, 1
      %p136 = scmp.eq.s32.totalorder %s21, 1
      %p137 = scmp.ne.s32.totalorder %s132, %s134
      %p138 = scmp.eq.s32.totalorder %s21, 0
      %p139 = por %p137, %p138
      %p140 = scmp.ne.s32.totalorder %s132, %s134
      %p141 = scmp.eq.s32.totalorder %s26, 1
      %p142 = por %p140, %p141
      %p143 = scmp.ne.s32.totalorder %s134, %s135
      %p144 = scmp.eq.s32.totalorder %s26, 0
      %p145 = por %p143, %p144
      %p146 = scmp.ne.s32.totalorder %s134, %s135
      %p147 = scmp.eq.s32.totalorder %s27, 1
      %p148 = por %p146, %p147
      %p150 = scmp.ne.s32.totalorder %s135, %s149
      %p151 = scmp.eq.s32.totalorder %s27, 0
      %p152 = por %p150, %p151
      %s154 = sadd.s32 %s153, 1
      %p157 = scmp.eq.s32.totalorder %s21, 1
      %p158 = scmp.ne.s32.totalorder %s153, %s155
      %p159 = scmp.eq.s32.totalorder %s21, 0
      %p160 = por %p158, %p159
      %p161 = scmp.ne.s32.totalorder %s153, %s155
      %p162 = scmp.eq.s32.totalorder %s26, 1
      %p163 = por %p161, %p162
      %p164 = scmp.ne.s32.totalorder %s155, %s156
      %p165 = scmp.eq.s32.totalorder %s26, 0
      %p166 = por %p164, %p165
      %p167 = scmp.ne.s32.totalorder %s155, %s156
      %p168 = scmp.eq.s32.totalorder %s27, 1
      %p169 = por %p167, %p168
      %p171 = scmp.ne.s32.totalorder %s156, %s170
      %p172 = scmp.eq.s32.totalorder %s27, 0
      %p173 = por %p171, %p172
      %s175 = sadd.s32 %s174, 1
      %p178 = scmp.eq.s32.totalorder %s21, 1
      %p179 = scmp.ne.s32.totalorder %s174, %s176
      %p180 = scmp.eq.s32.totalorder %s21, 0
      %p181 = por %p179, %p180
      %p182 = scmp.ne.s32.totalorder %s174, %s176
      %p183 = scmp.eq.s32.totalorder %s26, 1
      %p184 = por %p182, %p183
      %p185 = scmp.ne.s32.totalorder %s176, %s177
      %p186 = scmp.eq.s32.totalorder %s26, 0
      %p187 = por %p185, %p186
      %p188 = scmp.ne.s32.totalorder %s176, %s177
      %p189 = scmp.eq.s32.totalorder %s27, 1
      %p190 = por %p188, %p189
      %p192 = scmp.ne.s32.totalorder %s177, %s191
      %p193 = scmp.eq.s32.totalorder %s27, 0
      %p194 = por %p192, %p193
      %s196 = sadd.s32 %s195, 1
      %p199 = scmp.eq.s32.totalorder %s21, 1
      %p200 = scmp.ne.s32.totalorder %s195, %s197
      %p201 = scmp.eq.s32.totalorder %s21, 0
      %p202 = por %p200, %p201
      %p203 = scmp.ne.s32.totalorder %s195, %s197
      %p204 = scmp.eq.s32.totalorder %s26, 1
      %p205 = por %p203, %p204
      %p206 = scmp.ne.s32.totalorder %s197, %s198
      %p207 = scmp.eq.s32.totalorder %s26, 0
      %p208 = por %p206, %p207
      %p209 = scmp.ne.s32.totalorder %s197, %s198
      %p210 = scmp.eq.s32.totalorder %s27, 1
      %p211 = por %p209, %p210
      %p213 = scmp.ne.s32.totalorder %s198, %s212
      %p214 = scmp.eq.s32.totalorder %s27, 0
      %p215 = por %p213, %p214
      %s217 = sadd.s32 %s216, 1
      %p220 = scmp.eq.s32.totalorder %s21, 1
      %p221 = scmp.ne.s32.totalorder %s216, %s218
      %p222 = scmp.eq.s32.totalorder %s21, 0
      %p223 = por %p221, %p222
      %p224 = scmp.ne.s32.totalorder %s216, %s218
      %p225 = scmp.eq.s32.totalorder %s26, 1
      %p226 = por %p224, %p225
      %p227 = scmp.ne.s32.totalorder %s218, %s219
      %p228 = scmp.eq.s32.totalorder %s26, 0
      %p229 = por %p227, %p228
      %p230 = scmp.ne.s32.totalorder %s218, %s219
      %p231 = scmp.eq.s32.totalorder %s27, 1
      %p232 = por %p230, %p231
      %p234 = scmp.ne.s32.totalorder %s219, %s233
      %p235 = scmp.eq.s32.totalorder %s27, 0
      %p236 = por %p234, %p235
      %s238 = sadd.s32 %s237, 1
      %p241 = scmp.eq.s32.totalorder %s21, 1
      %p242 = scmp.ne.s32.totalorder %s237, %s239
      %p243 = scmp.eq.s32.totalorder %s21, 0
      %p244 = por %p242, %p243
      %p245 = scmp.ne.s32.totalorder %s237, %s239
      %p246 = scmp.eq.s32.totalorder %s26, 1
      %p247 = por %p245, %p246
      %p248 = scmp.ne.s32.totalorder %s239, %s240
      %p249 = scmp.eq.s32.totalorder %s26, 0
      %p250 = por %p248, %p249
      %p251 = scmp.ne.s32.totalorder %s239, %s240
      %p252 = scmp.eq.s32.totalorder %s27, 1
      %p253 = por %p251, %p252
      %p255 = scmp.ne.s32.totalorder %s240, %s254
      %p256 = scmp.eq.s32.totalorder %s27, 0
      %p257 = por %p255, %p256
      %s259 = sadd.s32 %s258, 1
      %p262 = scmp.eq.s32.totalorder %s21, 1
      %p263 = scmp.ne.s32.totalorder %s258, %s260
      %p264 = scmp.eq.s32.totalorder %s21, 0
      %p265 = por %p263, %p264
      %p266 = scmp.ne.s32.totalorder %s258, %s260
      %p267 = scmp.eq.s32.totalorder %s26, 1
      %p268 = por %p266, %p267
      %p269 = scmp.ne.s32.totalorder %s260, %s261
      %p270 = scmp.eq.s32.totalorder %s26, 0
      %p271 = por %p269, %p270
      %p272 = scmp.ne.s32.totalorder %s260, %s261
      %p273 = scmp.eq.s32.totalorder %s27, 1
      %p274 = por %p272, %p273
      %p276 = scmp.ne.s32.totalorder %s261, %s275
      %p277 = scmp.eq.s32.totalorder %s27, 0
      %p278 = por %p276, %p277
      %s279 = ssub.s32 %s28, %s40
      %s280 = ssub.s32 %s29, %s36
      %s281 = sor.u32 %s279, %s280
      %p282 = scmp.eq.s32.totalorder %s281, 0
      %s284 = sadd.s32 %s283, 1
      %s285 = scalar_select %p282, %s283, %s284
      %p288 = pneg %p282
      %p289 = scmp.eq.s32.totalorder %s21, 1
      %p290 = por %p288, %p289
      %p291 = scmp.ne.s32.totalorder %s283, %s286
      %p292 = scmp.eq.s32.totalorder %s21, 0
      %p293 = por %p291, %p292
      %p294 = scmp.ne.s32.totalorder %s283, %s286
      %p295 = scmp.eq.s32.totalorder %s26, 1
      %p296 = por %p294, %p295
      %p297 = scmp.ne.s32.totalorder %s286, %s287
      %p298 = scmp.eq.s32.totalorder %s26, 0
      %p299 = por %p297, %p298
      %p300 = scmp.ne.s32.totalorder %s286, %s287
      %p301 = scmp.eq.s32.totalorder %s27, 1
      %p302 = por %p300, %p301
      %p304 = scmp.ne.s32.totalorder %s287, %s303
      %p305 = scmp.eq.s32.totalorder %s27, 0
      %p306 = por %p304, %p305
      %p307 = scmp.le.s32.totalorder 1, %s21
      %p308 = scmp.lt.s32.totalorder %s21, 3
      %p309 = pnand %p307, %p308
      %p310 = pneg %p309
      // Predicated region
      $region9: #{tpu_custom_call.1} parent=5 // pred_check
        _
      $region10: #{tpu_custom_call.1} parent=5 // pred_check_branch
        %312 = sbr.rel (%p309) target = $region12
      $region11: #{tpu_custom_call.1} parent=5 // pred_region
        %s313 = ssub.s32 %s21, 1
        // Predicated region
        $region13: #{tpu_custom_call.1} parent=11 // pred_check
          %p314 = pneg %p82
        $region14: #{tpu_custom_call.1} parent=11 // pred_check_branch
          %316 = sbr.rel (%p314) target = $region16
        $region15: #{tpu_custom_call.1} parent=11 // pred_region
          _
        $region16: #{tpu_custom_call.1} parent=11 // pred_fallthru
          _
        // Predicated region
        $region17: #{tpu_custom_call.1} parent=11 // pred_check
          %p317 = pneg %p103
        $region18: #{tpu_custom_call.1} parent=11 // pred_check_branch
          %319 = sbr.rel (%p317) target = $region20
        $region19: #{tpu_custom_call.1} parent=11 // pred_region
          _
        $region20: #{tpu_custom_call.1} parent=11 // pred_fallthru
          _
        // Predicated region
        $region21: #{tpu_custom_call.1} parent=11 // pred_check
          %p320 = pneg %p124
        $region22: #{tpu_custom_call.1} parent=11 // pred_check_branch
          %322 = sbr.rel (%p320) target = $region24
        $region23: #{tpu_custom_call.1} parent=11 // pred_region
          _
        $region24: #{tpu_custom_call.1} parent=11 // pred_fallthru
          _
        // Predicated region
        $region25: #{tpu_custom_call.1} parent=11 // pred_check
          %p323 = pneg %p145
        $region26: #{tpu_custom_call.1} parent=11 // pred_check_branch
          %325 = sbr.rel (%p323) target = $region28
        $region27: #{tpu_custom_call.1} parent=11 // pred_region
          _
        $region28: #{tpu_custom_call.1} parent=11 // pred_fallthru
          _
        // Predicated region
        $region29: #{tpu_custom_call.1} parent=11 // pred_check
          %p326 = pneg %p166
        $region30: #{tpu_custom_call.1} parent=11 // pred_check_branch
          %328 = sbr.rel (%p326) target = $region32
        $region31: #{tpu_custom_call.1} parent=11 // pred_region
          _
        $region32: #{tpu_custom_call.1} parent=11 // pred_fallthru
          _
        // Predicated region
        $region33: #{tpu_custom_call.1} parent=11 // pred_check
          %p329 = pneg %p187
        $region34: #{tpu_custom_call.1} parent=11 // pred_check_branch
          %331 = sbr.rel (%p329) target = $region36
        $region35: #{tpu_custom_call.1} parent=11 // pred_region
          %s333 = ssub.s32 256, 256
          %334 = vsyncadd [#allocation6], %s333
          %s335 = sshll.u32 [#allocation5], 4
          %s336 = int_to_ptr.vmem [resolvable:$true] %s335
          %341 = dma.hbm_to_vmem [thread:$0]  %s6, 256, %s336, [#allocation6], 128, 128, 8
        $region36: #{tpu_custom_call.1} parent=11 // pred_fallthru
          _
        // Predicated region
        $region37: #{tpu_custom_call.1} parent=11 // pred_check
          %p342 = pneg %p208
        $region38: #{tpu_custom_call.1} parent=11 // pred_check_branch
          %344 = sbr.rel (%p342) target = $region40
        $region39: #{tpu_custom_call.1} parent=11 // pred_region
          _
        $region40: #{tpu_custom_call.1} parent=11 // pred_fallthru
          _
        // Predicated region
        $region41: #{tpu_custom_call.1} parent=11 // pred_check
          %p345 = pneg %p229
        $region42: #{tpu_custom_call.1} parent=11 // pred_check_branch
          %347 = sbr.rel (%p345) target = $region44
        $region43: #{tpu_custom_call.1} parent=11 // pred_region
          _
        $region44: #{tpu_custom_call.1} parent=11 // pred_fallthru
          _
        // Predicated region
        $region45: #{tpu_custom_call.1} parent=11 // pred_check
          %p348 = pneg %p250
        $region46: #{tpu_custom_call.1} parent=11 // pred_check_branch
          %350 = sbr.rel (%p348) target = $region48
        $region47: #{tpu_custom_call.1} parent=11 // pred_region
          _
        $region48: #{tpu_custom_call.1} parent=11 // pred_fallthru
          _
        // Predicated region
        $region49: #{tpu_custom_call.1} parent=11 // pred_check
          %p351 = pneg %p271
        $region50: #{tpu_custom_call.1} parent=11 // pred_check_branch
          %353 = sbr.rel (%p351) target = $region52
        $region51: #{tpu_custom_call.1} parent=11 // pred_region
          _
        $region52: #{tpu_custom_call.1} parent=11 // pred_fallthru
          _
      $region12: #{tpu_custom_call.1} parent=5 // pred_fallthru
        _
      %p354 = scmp.lt.s32.totalorder %s21, 2
      // Predicated region
      $region53: #{tpu_custom_call.1} parent=5 // pred_check
        %p355 = pneg %p354
      $region54: #{tpu_custom_call.1} parent=5 // pred_check_branch
        %357 = sbr.rel (%p355) target = $region56
      $region55: #{tpu_custom_call.1} parent=5 // pred_region
        // Predicated region
        $region57: #{tpu_custom_call.1} parent=55 // pred_check
          %p358 = pneg %p55
        $region58: #{tpu_custom_call.1} parent=55 // pred_check_branch
          %360 = sbr.rel (%p358) target = $region60
        $region59: #{tpu_custom_call.1} parent=55 // pred_region
          %s361 = smul.u32 2, %s29
          %p362 = scmp.lt.s32.totalorder %s28, 1
          %s363 = scalar_select %p362, %s28, 1
          %p364 = scmp.lt.s32.totalorder %s361, 1
          %s365 = scalar_select %p364, %s361, 1
          %s366 = smul.addr %s363, 2
          %s367 = sadd.s32 %s365, %s366
          %s368 = smul.addr %s367, 8
          %s369 = scalar_lea.vmem %s0, %s368
          %s370 = smul.u32 2, %s29
        $region60: #{tpu_custom_call.1} parent=55 // pred_fallthru
          _
      $region56: #{tpu_custom_call.1} parent=5 // pred_fallthru
        _
      %p371 = scmp.le.s32.totalorder 1, %s21
      %p372 = scmp.lt.s32.totalorder %s21, 3
      %p373 = pnand %p371, %p372
      %p374 = pneg %p373
      // Predicated region
      $region61: #{tpu_custom_call.1} parent=5 // pred_check
        _
      $region62: #{tpu_custom_call.1} parent=5 // pred_check_branch
        %376 = sbr.rel (%p373) target = $region64
      $region63: #{tpu_custom_call.1} parent=5 // pred_region
        %s377 = ssub.s32 %s21, 1
        // Predicated region
        $region65: #{tpu_custom_call.1} parent=63 // pred_check
          %p378 = pneg %p187
        $region66: #{tpu_custom_call.1} parent=63 // pred_check_branch
          %380 = sbr.rel (%p378) target = $region68
        $region67: #{tpu_custom_call.1} parent=63 // pred_region
          %381 = dma.done [#allocation6], 256
        $region68: #{tpu_custom_call.1} parent=63 // pred_fallthru
          _
        %s382 = smul.u32 2, %s31
        %p383 = scmp.lt.s32.totalorder %s30, 1
        %s384 = scalar_select %p383, %s30, 1
        %p385 = scmp.lt.s32.totalorder %s382, 1
        %s386 = scalar_select %p385, %s382, 1
        %s387 = smul.addr %s384, 2
        %s388 = sadd.s32 %s386, %s387
        %s389 = smul.addr %s388, 8
        %s390 = scalar_lea.vmem %s0, %s389
        %p391 = pneg %p61
        %p392 = pneg %p58
        %p393 = pneg %p82
        %p394 = pneg %p79
        %p395 = pneg %p103
        %p396 = pneg %p100
        %p397 = pneg %p124
        %p398 = pneg %p121
        %p399 = pneg %p145
        %p400 = pneg %p142
        %p401 = pneg %p166
        %p402 = pneg %p163
        %p403 = pneg %p187
        %p404 = pneg %p184
        %p405 = pneg %p208
        %p406 = pneg %p205
        %p407 = pneg %p229
        %p408 = pneg %p226
        %p409 = pneg %p250
        %p410 = pneg %p247
        %p411 = pneg %p271
        %p412 = pneg %p268
        %p413 = pneg %p299
        %p414 = pneg %p296
        %s415 = sand.u32 %s286, 1
        %s416 = scalar_lea.sflag [#allocation7], %s415
        %s417 = sand.u32 %s286, 1
        %s418 = smul.addr %s417, 16
        %s419 = scalar_lea.vmem [#allocation8], %s418
        %s420 = smul.u32 2, %s31
        %p421 = scmp.lt.s32.totalorder %s30, 1
        %s422 = scalar_select %p421, %s30, 1
        %p423 = scmp.lt.s32.totalorder %s420, 1
        %s424 = scalar_select %p423, %s420, 1
        %s425 = smul.addr %s422, 2
        %s426 = sadd.s32 %s424, %s425
        %s427 = smul.addr %s426, 8
        %s428 = scalar_lea.vmem %s0, %s427
        %s429 = smul.u32 2, %s31
        %s430 = smul.u32 2, %s31
        %v432 = vld [vmem:[%s428] sm:$0xff]
        %v433 = vld [vmem:[%s428 + $0x8] sm:$0xff]
        %v434 = vpack.c.bf16 %v433, %v432
        %v435 = vld [vmem:[%s1] sm:$0xf]
        %v436 = vld [vmem:[%s1 + $0x4] sm:$0xf]
        %v437 = vld [vmem:[%s1 + $0x8] sm:$0xf]
        %v438 = vld [vmem:[%s1 + $0xc] sm:$0xf]
        %v439 = vld [vmem:[%s2] sm:$0x1]
        %v441 = vlaneseq
        %v442 = vshrl.u32 %v441, 7
        %v443 = vsub.s32 0, %v442
        %v444 = vrot.slane %v439, %v443
        %v450 = vunpack.c.l.b16 %v435
        %v451 = vunpack.c.l.b16 %v436
        %v452 = vunpack.c.l.b16 %v437
        %v453 = vunpack.c.l.b16 %v438
        %v454 = vpack.c.b16 %v451, %v450
        %v455 = vpack.c.b16 %v453, %v452
        %vm458 = vcmask 261120
        %v460 = vsel %vm458, %v434, 0
        %462 = vmatprep.subr.bf16.mxu0 0
        %463 = vmatpush1.bf16.msra.mxu0 %v454
        %464 = vmatprep.subr.bf16.mxu0 0
        %465 = vmatpush1.bf16.msra.mxu0 %v455
        %466 = vmatprep.subr.bf16.mxu0 0
        %467 = vmatpush1.bf16.msra.mxu0 0
        %468 = vmatprep.subr.bf16.mxu0 0
        %469 = vmatpush1.bf16.msra.mxu0 0
        %470 = vmatprep.subr.bf16.mxu0 0
        %471 = vmatpush1.bf16.msra.mxu0 0
        %472 = vmatprep.subr.bf16.mxu0 0
        %473 = vmatpush1.bf16.msra.mxu0 0
        %474 = vmatprep.subr.bf16.mxu0 0
        %475 = vmatpush1.bf16.msra.mxu0 0
        %476 = vmatprep.subr.bf16.mxu0 0
        %477 = vmatpush1.bf16.msra.mxu0 0
        %478 = vmatprep.subr.bf16.mxu0 0
        %479 = vmatpush1.bf16.msra.mxu0 0
        %480 = vmatprep.subr.bf16.mxu0 0
        %481 = vmatpush1.bf16.msra.mxu0 0
        %482 = vmatprep.subr.bf16.mxu0 0
        %483 = vmatpush1.bf16.msra.mxu0 0
        %484 = vmatprep.subr.bf16.mxu0 0
        %485 = vmatpush1.bf16.msra.mxu0 0
        %486 = vmatprep.subr.bf16.mxu0 0
        %487 = vmatpush1.bf16.msra.mxu0 0
        %488 = vmatprep.subr.bf16.mxu0 0
        %489 = vmatpush1.bf16.msra.mxu0 0
        %490 = vmatprep.subr.bf16.mxu0 0
        %491 = vmatpush1.bf16.msra.mxu0 0
        %492 = vmatprep.subr.bf16.mxu0 0
        %493 = vmatpush1.bf16.msra.mxu0 0
        %494 = vmatprep.mubr.bf16.mxu0 0
        %495 = vmatmul.mubr.bf16.gmra.mrb[0].mxu0 %v460
        %v496 = vpop.f32.mrb[0].mxu0
        %v497 = vadd.f32 %v444, %v496
        %v498 = vpop.f32.mrb[0].mxu0
        %v499 = vpop.f32.mrb[0].mxu0
        %v500 = vadd.f32 %v444, %v499
        %v501 = vpop.f32.mrb[0].mxu0
        %502 = vdwg.mxu0
        %503 = vst [vmem:[#allocation2] sm:$0xff] %v497
        %504 = vst [vmem:[#allocation2 + $0x8] sm:$0xff] %v500
        %v505 = vld [vmem:[%s3] sm:$0xf]
        %v506 = vld [vmem:[%s3 + $0x4] sm:$0xf]
        %v507 = vld [vmem:[%s3 + $0x8] sm:$0xf]
        %v508 = vld [vmem:[%s3 + $0xc] sm:$0xf]
        %v509 = vld [vmem:[%s4] sm:$0x1]
        %v511 = vlaneseq
        %v512 = vshrl.u32 %v511, 7
        %v513 = vsub.s32 0, %v512
        %v514 = vrot.slane %v509, %v513
        %v520 = vunpack.c.l.b16 %v505
        %v521 = vunpack.c.l.b16 %v506
        %v522 = vunpack.c.l.b16 %v507
        %v523 = vunpack.c.l.b16 %v508
        %v524 = vpack.c.b16 %v521, %v520
        %v525 = vpack.c.b16 %v523, %v522
        %528 = vmatprep.subr.bf16.mxu0 0
        %529 = vmatpush1.bf16.msra.mxu0 %v524
        %530 = vmatprep.subr.bf16.mxu0 0
        %531 = vmatpush1.bf16.msra.mxu0 %v525
        %532 = vmatprep.subr.bf16.mxu0 0
        %533 = vmatpush1.bf16.msra.mxu0 0
        %534 = vmatprep.subr.bf16.mxu0 0
        %535 = vmatpush1.bf16.msra.mxu0 0
        %536 = vmatprep.subr.bf16.mxu0 0
        %537 = vmatpush1.bf16.msra.mxu0 0
        %538 = vmatprep.subr.bf16.mxu0 0
        %539 = vmatpush1.bf16.msra.mxu0 0
        %540 = vmatprep.subr.bf16.mxu0 0
        %541 = vmatpush1.bf16.msra.mxu0 0
        %542 = vmatprep.subr.bf16.mxu0 0
        %543 = vmatpush1.bf16.msra.mxu0 0
        %544 = vmatprep.subr.bf16.mxu0 0
        %545 = vmatpush1.bf16.msra.mxu0 0
        %546 = vmatprep.subr.bf16.mxu0 0
        %547 = vmatpush1.bf16.msra.mxu0 0
        %548 = vmatprep.subr.bf16.mxu0 0
        %549 = vmatpush1.bf16.msra.mxu0 0
        %550 = vmatprep.subr.bf16.mxu0 0
        %551 = vmatpush1.bf16.msra.mxu0 0
        %552 = vmatprep.subr.bf16.mxu0 0
        %553 = vmatpush1.bf16.msra.mxu0 0
        %554 = vmatprep.subr.bf16.mxu0 0
        %555 = vmatpush1.bf16.msra.mxu0 0
        %556 = vmatprep.subr.bf16.mxu0 0
        %557 = vmatpush1.bf16.msra.mxu0 0
        %558 = vmatprep.subr.bf16.mxu0 0
        %559 = vmatpush1.bf16.msra.mxu0 0
        %560 = vmatprep.mubr.bf16.mxu0 0
        %561 = vmatmul.mubr.bf16.gmra.mrb[0].mxu0 %v460
        %v562 = vpop.f32.mrb[0].mxu0
        %v563 = vadd.f32 %v514, %v562
        %v564 = vpop.f32.mrb[0].mxu0
        %v565 = vpop.f32.mrb[0].mxu0
        %v566 = vadd.f32 %v514, %v565
        %v567 = vpop.f32.mrb[0].mxu0
        %568 = vdwg.mxu0
        %v569 = vxor.u32 %v563, 2147483648
        %v570 = vxor.u32 %v566, 2147483648
        %v571 = vmul.f32 %v569, 1.442695
        %v572 = vpow.pop %v571
        %v573 = vmul.f32 %v570, 1.442695
        %v574 = vpow.pop %v573
        %v575 = vadd.f32 %v572, 1.0
        %v576 = vadd.f32 %v574, 1.0
        %v577 = vrcp.pop %v575
        %v578 = vmul.f32 1.0, %v577
        %v579 = vrcp.pop %v576
        %v580 = vmul.f32 1.0, %v579
        %v581 = vpack.c.bf16 %v580, %v578
        %582 = vst [vmem:[#allocation3] sm:$0xff] %v581
        %p583 = scmp.eq.s32.totalorder %s31, 0
        // Predicated region
        $region69: #{tpu_custom_call.1} parent=63 // pred_check
          %p584 = pneg %p583
        $region70: #{tpu_custom_call.1} parent=63 // pred_check_branch
          %586 = sbr.rel (%p584) target = $region72
        $region71: #{tpu_custom_call.1} parent=63 // pred_region
          %587 = vst [vmem:[#allocation4] sm:$0xff] 0.0
          %588 = vst [vmem:[#allocation4 + $0x8] sm:$0xff] 0.0
        $region72: #{tpu_custom_call.1} parent=63 // pred_fallthru
          _
        %v589 = vld [vmem:[%s5] sm:$0xff]
        %v590 = vld [vmem:[%s5 + $0x8] sm:$0xff]
        %v591 = vld [vmem:[#allocation5] sm:$0xff]
        %v592 = vld [vmem:[#allocation5 + $0x8] sm:$0xff]
        %v593 = vld [vmem:[#allocation4] sm:$0xff]
        %v594 = vld [vmem:[#allocation4 + $0x8] sm:$0xff]
        %v595 = vld [vmem:[#allocation2] sm:$0xff]
        %v596 = vld [vmem:[#allocation2 + $0x8] sm:$0xff]
        %v597 = vld [vmem:[#allocation3] sm:$0xff]
        %v598 = vmul.f32 %v589, %v593
        %v599 = vmul.f32 %v590, %v594
        %v600 = vlaneseq
        %v601 = vshrl.u32 %v600, 7
        %v602 = vsub.s32 0, %v601
        %v603 = vrot.slane %v595, %v602
        %v604 = vmul.f32 %v591, %v603
        %v605 = vmul.f32 %v592, %v603
        %v606 = vadd.f32 %v598, %v604
        %v607 = vadd.f32 %v599, %v605
        %v608 = vadd.f32 %v606, %v607
        %v609 = vrot.slane %v608, 4
        %v610 = vadd.f32 %v608, %v609
        %v611 = vrot.slane %v610, 2
        %v612 = vadd.f32 %v610, %v611
        %v613 = vrot.slane %v612, 1
        %v614 = vadd.f32 %v612, %v613
        %v615 = vmul.f32 %v589, %v606
        %v616 = vmul.f32 %v590, %v607
        %v617 = vlaneseq
        %v618 = vshrl.u32 %v617, 7
        %v619 = vsub.s32 1, %v618
        %v620 = vrot.slane %v595, %v619
        %v621 = vmul.f32 %v591, %v620
        %v622 = vmul.f32 %v592, %v620
        %v623 = vadd.f32 %v615, %v621
        %v624 = vadd.f32 %v616, %v622
        %v625 = vadd.f32 %v623, %v624
        %v626 = vrot.slane %v625, 4
        %v627 = vadd.f32 %v625, %v626
        %v628 = vrot.slane %v627, 2
        %v629 = vadd.f32 %v627, %v628
        %v630 = vrot.slane %v629, 1
        %v631 = vadd.f32 %v629, %v630
        %v632 = vmul.f32 %v589, %v623
        %v633 = vmul.f32 %v590, %v624
        %v634 = vlaneseq
        %v635 = vshrl.u32 %v634, 7
        %v636 = vsub.s32 2, %v635
        %v637 = vrot.slane %v595, %v636
        %v638 = vmul.f32 %v591, %v637
        %v639 = vmul.f32 %v592, %v637
        %v640 = vadd.f32 %v632, %v638
        %v641 = vadd.f32 %v633, %v639
        %v642 = vadd.f32 %v640, %v641
        %v643 = vrot.slane %v642, 4
        %v644 = vadd.f32 %v642, %v643
        %v645 = vrot.slane %v644, 2
        %v646 = vadd.f32 %v644, %v645
        %v647 = vrot.slane %v646, 1
        %v648 = vadd.f32 %v646, %v647
        %v649 = vmul.f32 %v589, %v640
        %v650 = vmul.f32 %v590, %v641
        %v651 = vlaneseq
        %v652 = vshrl.u32 %v651, 7
        %v653 = vsub.s32 3, %v652
        %v654 = vrot.slane %v595, %v653
        %v655 = vmul.f32 %v591, %v654
        %v656 = vmul.f32 %v592, %v654
        %v657 = vadd.f32 %v649, %v655
        %v658 = vadd.f32 %v650, %v656
        %v659 = vadd.f32 %v657, %v658
        %v660 = vrot.slane %v659, 4
        %v661 = vadd.f32 %v659, %v660
        %v662 = vrot.slane %v661, 2
        %v663 = vadd.f32 %v661, %v662
        %v664 = vrot.slane %v663, 1
        %v665 = vadd.f32 %v663, %v664
        %v666 = vmul.f32 %v589, %v657
        %v667 = vmul.f32 %v590, %v658
        %v668 = vlaneseq
        %v669 = vshrl.u32 %v668, 7
        %v670 = vsub.s32 4, %v669
        %v671 = vrot.slane %v595, %v670
        %v672 = vmul.f32 %v591, %v671
        %v673 = vmul.f32 %v592, %v671
        %v674 = vadd.f32 %v666, %v672
        %v675 = vadd.f32 %v667, %v673
        %v676 = vadd.f32 %v674, %v675
        %v677 = vrot.slane %v676, 4
        %v678 = vadd.f32 %v676, %v677
        %v679 = vrot.slane %v678, 2
        %v680 = vadd.f32 %v678, %v679
        %v681 = vrot.slane %v680, 1
        %v682 = vadd.f32 %v680, %v681
        %v683 = vmul.f32 %v589, %v674
        %v684 = vmul.f32 %v590, %v675
        %v685 = vlaneseq
        %v686 = vshrl.u32 %v685, 7
        %v687 = vsub.s32 5, %v686
        %v688 = vrot.slane %v595, %v687
        %v689 = vmul.f32 %v591, %v688
        %v690 = vmul.f32 %v592, %v688
        %v691 = vadd.f32 %v683, %v689
        %v692 = vadd.f32 %v684, %v690
        %v693 = vadd.f32 %v691, %v692
        %v694 = vrot.slane %v693, 4
        %v695 = vadd.f32 %v693, %v694
        %v696 = vrot.slane %v695, 2
        %v697 = vadd.f32 %v695, %v696
        %v698 = vrot.slane %v697, 1
        %v699 = vadd.f32 %v697, %v698
        %v700 = vmul.f32 %v589, %v691
        %v701 = vmul.f32 %v590, %v692
        %v702 = vlaneseq
        %v703 = vshrl.u32 %v702, 7
        %v704 = vsub.s32 6, %v703
        %v705 = vrot.slane %v595, %v704
        %v706 = vmul.f32 %v591, %v705
        %v707 = vmul.f32 %v592, %v705
        %v708 = vadd.f32 %v700, %v706
        %v709 = vadd.f32 %v701, %v707
        %v710 = vadd.f32 %v708, %v709
        %v711 = vrot.slane %v710, 4
        %v712 = vadd.f32 %v710, %v711
        %v713 = vrot.slane %v712, 2
        %v714 = vadd.f32 %v712, %v713
        %v715 = vrot.slane %v714, 1
        %v716 = vadd.f32 %v714, %v715
        %v717 = vmul.f32 %v589, %v708
        %v718 = vmul.f32 %v590, %v709
        %v719 = vlaneseq
        %v720 = vshrl.u32 %v719, 7
        %v721 = vsub.s32 7, %v720
        %v722 = vrot.slane %v595, %v721
        %v723 = vmul.f32 %v591, %v722
        %v724 = vmul.f32 %v592, %v722
        %v725 = vadd.f32 %v717, %v723
        %v726 = vadd.f32 %v718, %v724
        %v727 = vadd.f32 %v725, %v726
        %v728 = vrot.slane %v727, 4
        %v729 = vadd.f32 %v727, %v728
        %v730 = vrot.slane %v729, 2
        %v731 = vadd.f32 %v729, %v730
        %v732 = vrot.slane %v731, 1
        %v733 = vadd.f32 %v731, %v732
        %v734 = vmul.f32 %v589, %v725
        %v735 = vmul.f32 %v590, %v726
        %v736 = vlaneseq
        %v737 = vshrl.u32 %v736, 7
        %v738 = vsub.s32 0, %v737
        %v739 = vrot.slane %v596, %v738
        %v740 = vmul.f32 %v591, %v739
        %v741 = vmul.f32 %v592, %v739
        %v742 = vadd.f32 %v734, %v740
        %v743 = vadd.f32 %v735, %v741
        %v744 = vadd.f32 %v742, %v743
        %v745 = vrot.slane %v744, 4
        %v746 = vadd.f32 %v744, %v745
        %v747 = vrot.slane %v746, 2
        %v748 = vadd.f32 %v746, %v747
        %v749 = vrot.slane %v748, 1
        %v750 = vadd.f32 %v748, %v749
        %v751 = vmul.f32 %v589, %v742
        %v752 = vmul.f32 %v590, %v743
        %v753 = vlaneseq
        %v754 = vshrl.u32 %v753, 7
        %v755 = vsub.s32 1, %v754
        %v756 = vrot.slane %v596, %v755
        %v757 = vmul.f32 %v591, %v756
        %v758 = vmul.f32 %v592, %v756
        %v759 = vadd.f32 %v751, %v757
        %v760 = vadd.f32 %v752, %v758
        %v761 = vadd.f32 %v759, %v760
        %v762 = vrot.slane %v761, 4
        %v763 = vadd.f32 %v761, %v762
        %v764 = vrot.slane %v763, 2
        %v765 = vadd.f32 %v763, %v764
        %v766 = vrot.slane %v765, 1
        %v767 = vadd.f32 %v765, %v766
        %v768 = vmul.f32 %v589, %v759
        %v769 = vmul.f32 %v590, %v760
        %v770 = vlaneseq
        %v771 = vshrl.u32 %v770, 7
        %v772 = vsub.s32 2, %v771
        %v773 = vrot.slane %v596, %v772
        %v774 = vmul.f32 %v591, %v773
        %v775 = vmul.f32 %v592, %v773
        %v776 = vadd.f32 %v768, %v774
        %v777 = vadd.f32 %v769, %v775
        %v778 = vadd.f32 %v776, %v777
        %v779 = vrot.slane %v778, 4
        %v780 = vadd.f32 %v778, %v779
        %v781 = vrot.slane %v780, 2
        %v782 = vadd.f32 %v780, %v781
        %v783 = vrot.slane %v782, 1
        %v784 = vadd.f32 %v782, %v783
        %v785 = vmul.f32 %v589, %v776
        %v786 = vmul.f32 %v590, %v777
        %v787 = vlaneseq
        %v788 = vshrl.u32 %v787, 7
        %v789 = vsub.s32 3, %v788
        %v790 = vrot.slane %v596, %v789
        %v791 = vmul.f32 %v591, %v790
        %v792 = vmul.f32 %v592, %v790
        %v793 = vadd.f32 %v785, %v791
        %v794 = vadd.f32 %v786, %v792
        %v795 = vadd.f32 %v793, %v794
        %v796 = vrot.slane %v795, 4
        %v797 = vadd.f32 %v795, %v796
        %v798 = vrot.slane %v797, 2
        %v799 = vadd.f32 %v797, %v798
        %v800 = vrot.slane %v799, 1
        %v801 = vadd.f32 %v799, %v800
        %v802 = vmul.f32 %v589, %v793
        %v803 = vmul.f32 %v590, %v794
        %v804 = vlaneseq
        %v805 = vshrl.u32 %v804, 7
        %v806 = vsub.s32 4, %v805
        %v807 = vrot.slane %v596, %v806
        %v808 = vmul.f32 %v591, %v807
        %v809 = vmul.f32 %v592, %v807
        %v810 = vadd.f32 %v802, %v808
        %v811 = vadd.f32 %v803, %v809
        %v812 = vadd.f32 %v810, %v811
        %v813 = vrot.slane %v812, 4
        %v814 = vadd.f32 %v812, %v813
        %v815 = vrot.slane %v814, 2
        %v816 = vadd.f32 %v814, %v815
        %v817 = vrot.slane %v816, 1
        %v818 = vadd.f32 %v816, %v817
        %v819 = vmul.f32 %v589, %v810
        %v820 = vmul.f32 %v590, %v811
        %v821 = vlaneseq
        %v822 = vshrl.u32 %v821, 7
        %v823 = vsub.s32 5, %v822
        %v824 = vrot.slane %v596, %v823
        %v825 = vmul.f32 %v591, %v824
        %v826 = vmul.f32 %v592, %v824
        %v827 = vadd.f32 %v819, %v825
        %v828 = vadd.f32 %v820, %v826
        %v829 = vadd.f32 %v827, %v828
        %v830 = vrot.slane %v829, 4
        %v831 = vadd.f32 %v829, %v830
        %v832 = vrot.slane %v831, 2
        %v833 = vadd.f32 %v831, %v832
        %v834 = vrot.slane %v833, 1
        %v835 = vadd.f32 %v833, %v834
        %v836 = vmul.f32 %v589, %v827
        %v837 = vmul.f32 %v590, %v828
        %v838 = vlaneseq
        %v839 = vshrl.u32 %v838, 7
        %v840 = vsub.s32 6, %v839
        %v841 = vrot.slane %v596, %v840
        %v842 = vmul.f32 %v591, %v841
        %v843 = vmul.f32 %v592, %v841
        %v844 = vadd.f32 %v836, %v842
        %v845 = vadd.f32 %v837, %v843
        %v846 = vadd.f32 %v844, %v845
        %v847 = vrot.slane %v846, 4
        %v848 = vadd.f32 %v846, %v847
        %v849 = vrot.slane %v848, 2
        %v850 = vadd.f32 %v848, %v849
        %v851 = vrot.slane %v850, 1
        %v852 = vadd.f32 %v850, %v851
        %v853 = vmul.f32 %v589, %v844
        %v854 = vmul.f32 %v590, %v845
        %v855 = vlaneseq
        %v856 = vshrl.u32 %v855, 7
        %v857 = vsub.s32 7, %v856
        %v858 = vrot.slane %v596, %v857
        %v859 = vmul.f32 %v591, %v858
        %v860 = vmul.f32 %v592, %v858
        %v861 = vadd.f32 %v853, %v859
        %v862 = vadd.f32 %v854, %v860
        %v863 = vadd.f32 %v861, %v862
        %v864 = vrot.slane %v863, 4
        %v865 = vadd.f32 %v863, %v864
        %v866 = vrot.slane %v865, 2
        %v867 = vadd.f32 %v865, %v866
        %v868 = vrot.slane %v867, 1
        %v869 = vadd.f32 %v867, %v868
        %vm870 = vcmask 1040384
        %v871 = vsel %vm870, %v614, %v631
        %vm872 = vcmask 1041408
        %v873 = vsel %vm872, %v871, %v648
        %vm874 = vcmask 1042432
        %v875 = vsel %vm874, %v873, %v665
        %vm876 = vcmask 1043456
        %v877 = vsel %vm876, %v875, %v682
        %vm878 = vcmask 1044480
        %v879 = vsel %vm878, %v877, %v699
        %vm880 = vcmask 1045504
        %v881 = vsel %vm880, %v879, %v716
        %vm882 = vcmask 1046528
        %v883 = vsel %vm882, %v881, %v733
        %v884 = vsel %vm870, %v750, %v767
        %v885 = vsel %vm872, %v884, %v784
        %v886 = vsel %vm874, %v885, %v801
        %v887 = vsel %vm876, %v886, %v818
        %v888 = vsel %vm878, %v887, %v835
        %v889 = vsel %vm880, %v888, %v852
        %v890 = vsel %vm882, %v889, %v869
        %v891 = vunpack.c.l.bf16 %v597
        %v892 = vunpack.c.h.bf16 %v597
        %v893 = vmul.f32 %v883, %v891
        %v894 = vmul.f32 %v890, %v892
        %895 = vst [vmem:[#allocation2] sm:$0xff] %v893
        %896 = vst [vmem:[#allocation2 + $0x8] sm:$0xff] %v894
        %897 = vst [vmem:[#allocation4] sm:$0xff] %v861
        %898 = vst [vmem:[#allocation4 + $0x8] sm:$0xff] %v862
        %v899 = vld [vmem:[#allocation2] sm:$0xff]
        %v900 = vld [vmem:[#allocation2 + $0x8] sm:$0xff]
        %v901 = vpack.c.bf16 %v900, %v899
        %v902 = vld [vmem:[%s7] sm:$0xf]
        %v903 = vld [vmem:[%s7 + $0x4] sm:$0xf]
        %v904 = vld [vmem:[%s7 + $0x8] sm:$0xf]
        %v905 = vld [vmem:[%s7 + $0xc] sm:$0xf]
        %v906 = vld [vmem:[%s7 + $0x10] sm:$0xf]
        %v907 = vld [vmem:[%s7 + $0x14] sm:$0xf]
        %v908 = vld [vmem:[%s7 + $0x18] sm:$0xf]
        %v909 = vld [vmem:[%s7 + $0x1c] sm:$0xf]
        %v910 = vld [vmem:[%s7 + $0x20] sm:$0xf]
        %v911 = vld [vmem:[%s7 + $0x24] sm:$0xf]
        %v912 = vld [vmem:[%s7 + $0x28] sm:$0xf]
        %v913 = vld [vmem:[%s7 + $0x2c] sm:$0xf]
        %v914 = vld [vmem:[%s7 + $0x30] sm:$0xf]
        %v915 = vld [vmem:[%s7 + $0x34] sm:$0xf]
        %v916 = vld [vmem:[%s7 + $0x38] sm:$0xf]
        %v917 = vld [vmem:[%s7 + $0x3c] sm:$0xf]
        %v918 = vld [vmem:[%s8] sm:$0x1]
        %v920 = vlaneseq
        %v921 = vshrl.u32 %v920, 7
        %v922 = vsub.s32 0, %v921
        %v923 = vrot.slane %v918, %v922
        %v941 = vunpack.c.l.b16 %v902
        %v942 = vunpack.c.l.b16 %v903
        %v943 = vunpack.c.l.b16 %v904
        %v944 = vunpack.c.l.b16 %v905
        %v945 = vunpack.c.l.b16 %v906
        %v946 = vunpack.c.l.b16 %v907
        %v947 = vunpack.c.l.b16 %v908
        %v948 = vunpack.c.l.b16 %v909
        %v949 = vunpack.c.l.b16 %v910
        %v950 = vunpack.c.l.b16 %v911
        %v951 = vunpack.c.l.b16 %v912
        %v952 = vunpack.c.l.b16 %v913
        %v953 = vunpack.c.l.b16 %v914
        %v954 = vunpack.c.l.b16 %v915
        %v955 = vunpack.c.l.b16 %v916
        %v956 = vunpack.c.l.b16 %v917
        %v957 = vpack.c.b16 %v942, %v941
        %v958 = vpack.c.b16 %v944, %v943
        %v959 = vpack.c.b16 %v946, %v945
        %v960 = vpack.c.b16 %v948, %v947
        %v961 = vpack.c.b16 %v950, %v949
        %v962 = vpack.c.b16 %v952, %v951
        %v963 = vpack.c.b16 %v954, %v953
        %v964 = vpack.c.b16 %v956, %v955
        %973 = vmatprep.subr.bf16.mxu0 0
        %974 = vmatpush1.bf16.msra.mxu0 %v957
        %975 = vmatprep.subr.bf16.mxu0 0
        %976 = vmatpush1.bf16.msra.mxu0 %v958
        %977 = vmatprep.subr.bf16.mxu0 0
        %978 = vmatpush1.bf16.msra.mxu0 %v959
        %979 = vmatprep.subr.bf16.mxu0 0
        %980 = vmatpush1.bf16.msra.mxu0 %v960
        %981 = vmatprep.subr.bf16.mxu0 0
        %982 = vmatpush1.bf16.msra.mxu0 %v961
        %983 = vmatprep.subr.bf16.mxu0 0
        %984 = vmatpush1.bf16.msra.mxu0 %v962
        %985 = vmatprep.subr.bf16.mxu0 0
        %986 = vmatpush1.bf16.msra.mxu0 %v963
        %987 = vmatprep.subr.bf16.mxu0 0
        %988 = vmatpush1.bf16.msra.mxu0 %v964
        %989 = vmatprep.subr.bf16.mxu0 0
        %990 = vmatpush1.bf16.msra.mxu0 0
        %991 = vmatprep.subr.bf16.mxu0 0
        %992 = vmatpush1.bf16.msra.mxu0 0
        %993 = vmatprep.subr.bf16.mxu0 0
        %994 = vmatpush1.bf16.msra.mxu0 0
        %995 = vmatprep.subr.bf16.mxu0 0
        %996 = vmatpush1.bf16.msra.mxu0 0
        %997 = vmatprep.subr.bf16.mxu0 0
        %998 = vmatpush1.bf16.msra.mxu0 0
        %999 = vmatprep.subr.bf16.mxu0 0
        %1000 = vmatpush1.bf16.msra.mxu0 0
        %1001 = vmatprep.subr.bf16.mxu0 0
        %1002 = vmatpush1.bf16.msra.mxu0 0
        %1003 = vmatprep.subr.bf16.mxu0 0
        %1004 = vmatpush1.bf16.msra.mxu0 0
        %1005 = vmatprep.mubr.bf16.mxu0 0
        %1006 = vmatmul.mubr.bf16.gmra.mrb[0].mxu0 %v901
        %v1007 = vpop.f32.mrb[0].mxu0
        %v1008 = vadd.f32 %v923, %v1007
        %v1009 = vpop.f32.mrb[0].mxu0
        %v1010 = vpop.f32.mrb[0].mxu0
        %v1011 = vadd.f32 %v923, %v1010
        %v1012 = vpop.f32.mrb[0].mxu0
        %1013 = vdwg.mxu0
        %v1014 = vld [vmem:[%s428] sm:$0xff]
        %v1015 = vld [vmem:[%s428 + $0x8] sm:$0xff]
        %v1016 = vadd.f32 %v1014, %v1008
        %v1017 = vadd.f32 %v1015, %v1011
        %v1018 = vsel %vm458, %v1016, 0.0
        %1019 = vadd.xlane.f32.xlu0 %v1018
        %v1020 = vpop.xlane.xlu0 %1019
        %v1021 = vsel %vm458, %v1017, 0.0
        %1022 = vadd.xlane.f32.xlu0 %v1021
        %v1023 = vpop.xlane.xlu0 %1022
        %v1024 = vrcp.pop 32.0
        %v1025 = vmul.f32 %v1020, %v1024
        %v1026 = vmul.f32 %v1023, %v1024
        %v1027 = vsub.f32 %v1016, %v1025
        %v1028 = vsub.f32 %v1017, %v1026
        %v1029 = vmul.f32 %v1027, %v1027
        %v1030 = vmul.f32 %v1028, %v1028
        %v1031 = vsel %vm458, %v1029, 0.0
        %1032 = vadd.xlane.f32.xlu0 %v1031
        %v1033 = vpop.xlane.xlu0 %1032
        %v1034 = vsel %vm458, %v1030, 0.0
        %1035 = vadd.xlane.f32.xlu0 %v1034
        %v1036 = vpop.xlane.xlu0 %1035
        %v1037 = vmul.f32 %v1033, %v1024
        %v1038 = vmul.f32 %v1036, %v1024
        %v1039 = vadd.f32 %v1037, 1e-05
        %v1040 = vadd.f32 %v1038, 1e-05
        %v1041 = vrsqrt.pop %v1039
        %v1042 = vrsqrt.pop %v1040
        %v1043 = vmul.f32 %v1027, %v1041
        %v1044 = vmul.f32 %v1028, %v1042
        %v1045 = vld [vmem:[%s9] sm:$0x1]
        %v1047 = vlaneseq
        %v1048 = vshrl.u32 %v1047, 7
        %v1049 = vsub.s32 0, %v1048
        %v1050 = vrot.slane %v1045, %v1049
        %v1052 = vmul.f32 %v1043, %v1050
        %v1053 = vmul.f32 %v1044, %v1050
        %v1054 = vld [vmem:[%s10] sm:$0x1]
        %v1056 = vlaneseq
        %v1057 = vshrl.u32 %v1056, 7
        %v1058 = vsub.s32 0, %v1057
        %v1059 = vrot.slane %v1054, %v1058
        %v1061 = vadd.f32 %v1052, %v1059
        %v1062 = vadd.f32 %v1053, %v1059
        %1063 = vst.msk [vmem:[%s419] sm:$0xff] %vm458, %v1061
        %1064 = vst.msk [vmem:[%s419 + $0x8] sm:$0xff] %vm458, %v1062
        %s1065 = sand.u32 %s286, 1
        %s1066 = scalar_lea.sflag [#allocation7], %s1065
        %s1067 = sand.u32 %s286, 1
        %s1068 = smul.addr %s1067, 16
        %s1069 = scalar_lea.vmem [#allocation8], %s1068
        // Predicated region
        $region73: #{tpu_custom_call.1} parent=63 // pred_check
          %p1070 = pneg %p296
        $region74: #{tpu_custom_call.1} parent=63 // pred_check_branch
          %1072 = sbr.rel (%p1070) target = $region76
        $region75: #{tpu_custom_call.1} parent=63 // pred_region
          %s1073 = smul.u32 2, %s31
          %s1075 = ssub.s32 256, 256
          %1076 = vsyncadd %s1066, %s1075
          %s1077 = smul.addr %s30, 2
          %s1078 = sadd.s32 %s1073, %s1077
          %s1079 = smul.addr %s1078, 128
          %s1080 = scalar_lea.hbm %s11, %s1079
          %s1081 = sshll.u32 %s1069, 4
          %s1082 = int_to_ptr.vmem [resolvable:$true] %s1081
          %1087 = dma.vmem_to_hbm [thread:$0]  %s1082, 256, %s1080, %s1066, 128, 128, 8
        $region76: #{tpu_custom_call.1} parent=63 // pred_fallthru
          _
      $region64: #{tpu_custom_call.1} parent=5 // pred_fallthru
        _
      %p1088 = scmp.le.s32.totalorder 2, %s21
      // Predicated region
      $region77: #{tpu_custom_call.1} parent=5 // pred_check
        %p1089 = pneg %p1088
      $region78: #{tpu_custom_call.1} parent=5 // pred_check_branch
        %1091 = sbr.rel (%p1089) target = $region80
      $region79: #{tpu_custom_call.1} parent=5 // pred_region
        %s1092 = ssub.s32 %s21, 2
        // Predicated region
        $region81: #{tpu_custom_call.1} parent=79 // pred_check
          %p1093 = pneg %p302
        $region82: #{tpu_custom_call.1} parent=79 // pred_check_branch
          %1095 = sbr.rel (%p1093) target = $region84
        $region83: #{tpu_custom_call.1} parent=79 // pred_region
          %s1096 = sand.u32 %s287, 1
          %s1097 = scalar_lea.sflag [#allocation7], %s1096
          %s1098 = sand.u32 %s287, 1
          %s1099 = smul.addr %s1098, 16
          %s1100 = scalar_lea.vmem [#allocation8], %s1099
          %1101 = dma.done %s1097, 256
        $region84: #{tpu_custom_call.1} parent=79 // pred_fallthru
          _
      $region80: #{tpu_custom_call.1} parent=5 // pred_fallthru
        _
    $region6: #{tpu_custom_call.1} parent=1 // loop_footer
      %s25 = sadd.s32 1, %s21
    $region7: #{tpu_custom_call.1} parent=1 // loop_footer_branch
      %20 = sbr.rel target = $region3
    $region8: #{tpu_custom_call.1} parent=1 // loop_exit
      _
    %1102 = vsyncpa [#allocation6], 1
    %s1103 = scalar_lea.sflag [#allocation6], 1
    %1104 = vsyncpa %s1103, 1
    %1105 = vsyncpa [#allocation7], 1
    %s1106 = scalar_lea.sflag [#allocation7], 1
    %1107 = vsyncpa %s1106, 1

// kernel: tpu_custom_call.1
$region0: #{tpu_custom_call.1}
  #allocation0 [shape = 'u32[]', space=smem, size = 0x4, offset = 0x4, fixed_abs, tag = 'smem constant byte address 0x4 - core index']
  #allocation1 [shape = 'u32[144,128]{1,0:T(1,128)}', space=vmem, size = 0x12000, scoped, tag = 'internal scratch']
  #allocation2 [shape = 'f32[1,16,128]{2,1,0:T(8,128)}', space=vmem, size = 0x2000, scoped, tag = 'scratch operand']
  #allocation3 [shape = 'bf16[1,16,128]{2,1,0:T(16,128)(2,1)}', space=vmem, size = 0x1000, scoped, tag = 'scratch operand']
  #allocation4 [shape = 'f32[1,16,128]{2,1,0:T(8,128)}', space=vmem, size = 0x2000, scoped, tag = 'scratch operand']
  %s0 = inlined_call_operand.vmem [shape: f32[2,16,32], index: 0, kind: input, shape index: {}]
  %s1 = inlined_call_operand.vmem [shape: bf16[32,128], index: 1, kind: input, shape index: {}]
  %s2 = inlined_call_operand.vmem [shape: f32[1,128], index: 2, kind: input, shape index: {}]
  %s3 = inlined_call_operand.vmem [shape: bf16[32,128], index: 3, kind: input, shape index: {}]
  %s4 = inlined_call_operand.vmem [shape: f32[1,128], index: 4, kind: input, shape index: {}]
  %s5 = inlined_call_operand.vmem [shape: f32[16,128], index: 5, kind: input, shape index: {}]
  %s6 = inlined_call_operand.hbm [shape: f32[16,128], index: 6, kind: input, shape index: {}]
  %s7 = inlined_call_operand.vmem [shape: bf16[128,32], index: 7, kind: input, shape index: {}]
  %s8 = inlined_call_operand.vmem [shape: f32[1,32], index: 8, kind: input, shape index: {}]
  %s9 = inlined_call_operand.vmem [shape: f32[1,32], index: 9, kind: input, shape index: {}]
  %s10 = inlined_call_operand.vmem [shape: f32[1,32], index: 10, kind: input, shape index: {}]
  %s11 = inlined_call_operand.hbm [shape: f32[2,16,32], index: 11, kind: output, shape index: {}]
  %s12 = sld [smem:[#allocation0]]
  $region85: #{tpu_custom_call.1} parent=0
    _
  %s14 = ssub.s32 1, %s12
  %s15 = scalar_select 0, %s14, %s12
  $region1: #{tpu_custom_call.1} parent=0
    #allocation5 [shape = 'u8[8192]{0}', space=vmem, size = 0x2000, scoped, tag = 'input window, operand 6, single buffered']
    #allocation6 [shape = 's32[2]{0}', space=sflag, size = 0x8, scoped, tag = 'scoped memory for tpu_custom_call.1']
    #allocation7 [shape = 's32[2]{0}', space=sflag, size = 0x8, scoped, tag = 'scoped memory for tpu_custom_call.1']
    #allocation8 [shape = 'u8[16384]{0}', space=vmem, size = 0x4000, scoped, tag = 'output window, operand 0']
    %16 = vsyncpa [#allocation6], 0
    %17 = vsyncpa [#allocation7], 0
    %s18 = scalar_lea.sflag [#allocation7], 1
    %19 = vsyncpa %s18, 0
    loop: start=0, step=1, limit=4
    $region2: #{tpu_custom_call.1} parent=1 // loop_pre_header
      _
    $region3: #{tpu_custom_call.1} parent=1 // loop_header
      %s21 = sphi 0, %s25
      %p22 = scmp.ge.s32.totalorder %s21, 4
      %s28 = sphi 0, %s40
      %s29 = sphi 0, %s36
      %s30 = sphi 0, %s28
      %s31 = sphi 0, %s29
      %s32 = sphi 0, %s30
      %s33 = sphi 0, %s31
      %s45 = sphi 0, %s47
      %s48 = sphi 0, %s45
      %s49 = sphi 0, %s48
      %s65 = sphi 0, %s49
      %s69 = sphi 0, %s69
      %s71 = sphi 0, %s69
      %s72 = sphi 0, %s71
      %s86 = sphi 0, %s72
      %s90 = sphi 0, %s90
      %s92 = sphi 0, %s90
      %s93 = sphi 0, %s92
      %s107 = sphi 0, %s93
      %s111 = sphi 0, %s111
      %s113 = sphi 0, %s111
      %s114 = sphi 0, %s113
      %s128 = sphi 0, %s114
      %s132 = sphi 0, %s132
      %s134 = sphi 0, %s132
      %s135 = sphi 0, %s134
      %s149 = sphi 0, %s135
      %s153 = sphi 0, %s153
      %s155 = sphi 0, %s153
      %s156 = sphi 0, %s155
      %s170 = sphi 0, %s156
      %s174 = sphi 0, %s174
      %s176 = sphi 0, %s174
      %s177 = sphi 0, %s176
      %s191 = sphi 0, %s177
      %s195 = sphi 0, %s195
      %s197 = sphi 0, %s195
      %s198 = sphi 0, %s197
      %s212 = sphi 0, %s198
      %s216 = sphi 0, %s216
      %s218 = sphi 0, %s216
      %s219 = sphi 0, %s218
      %s233 = sphi 0, %s219
      %s237 = sphi 0, %s237
      %s239 = sphi 0, %s237
      %s240 = sphi 0, %s239
      %s254 = sphi 0, %s240
      %s258 = sphi 0, %s258
      %s260 = sphi 0, %s258
      %s261 = sphi 0, %s260
      %s275 = sphi 0, %s261
      %s283 = sphi 0, %s285
      %s286 = sphi 0, %s283
      %s287 = sphi 0, %s286
      %s303 = sphi 0, %s287
    $region4: #{tpu_custom_call.1} parent=1 // loop_header_branch
      %24 = sbr.rel (%p22) target = $region8
    $region5: #{tpu_custom_call.1} parent=1 // loop_body
      %s26 = ssub.s32 %s21, 1
      %s27 = ssub.s32 %s21, 2
      %s34 = sadd.s32 1, %s29
      %p35 = scmp.ge.s32.totalorder %s34, 1
      %s36 = scalar_select %p35, 0, %s34
      %s37 = sadd.s32 1, %s28
      %s38 = scalar_select %p35, %s37, %s28
      %p39 = scmp.ge.s32.totalorder %s38, 2
      %s40 = scalar_select %p39, 0, %s38
      %s41 = ssub.s32 %s28, %s40
      %s42 = ssub.s32 %s29, %s36
      %s43 = sor.u32 %s41, %s42
      %p44 = scmp.eq.s32.totalorder %s43, 0
      %s46 = sadd.s32 %s45, 1
      %s47 = scalar_select %p44, %s45, %s46
      %p50 = pneg %p44
      %p51 = scmp.eq.s32.totalorder %s21, 1
      %p52 = por %p50, %p51
      %p53 = scmp.ne.s32.totalorder %s45, %s48
      %p54 = scmp.eq.s32.totalorder %s21, 0
      %p55 = por %p53, %p54
      %p56 = scmp.ne.s32.totalorder %s45, %s48
      %p57 = scmp.eq.s32.totalorder %s26, 1
      %p58 = por %p56, %p57
      %p59 = scmp.ne.s32.totalorder %s48, %s49
      %p60 = scmp.eq.s32.totalorder %s26, 0
      %p61 = por %p59, %p60
      %p62 = scmp.ne.s32.totalorder %s48, %s49
      %p63 = scmp.eq.s32.totalorder %s27, 1
      %p64 = por %p62, %p63
      %p66 = scmp.ne.s32.totalorder %s49, %s65
      %p67 = scmp.eq.s32.totalorder %s27, 0
      %p68 = por %p66, %p67
      %s70 = sadd.s32 %s69, 1
      %p73 = scmp.eq.s32.totalorder %s21, 1
      %p74 = scmp.ne.s32.totalorder %s69, %s71
      %p75 = scmp.eq.s32.totalorder %s21, 0
      %p76 = por %p74, %p75
      %p77 = scmp.ne.s32.totalorder %s69, %s71
      %p78 = scmp.eq.s32.totalorder %s26, 1
      %p79 = por %p77, %p78
      %p80 = scmp.ne.s32.totalorder %s71, %s72
      %p81 = scmp.eq.s32.totalorder %s26, 0
      %p82 = por %p80, %p81
      %p83 = scmp.ne.s32.totalorder %s71, %s72
      %p84 = scmp.eq.s32.totalorder %s27, 1
      %p85 = por %p83, %p84
      %p87 = scmp.ne.s32.totalorder %s72, %s86
      %p88 = scmp.eq.s32.totalorder %s27, 0
      %p89 = por %p87, %p88
      %s91 = sadd.s32 %s90, 1
      %p94 = scmp.eq.s32.totalorder %s21, 1
      %p95 = scmp.ne.s32.totalorder %s90, %s92
      %p96 = scmp.eq.s32.totalorder %s21, 0
      %p97 = por %p95, %p96
      %p98 = scmp.ne.s32.totalorder %s90, %s92
      %p99 = scmp.eq.s32.totalorder %s26, 1
      %p100 = por %p98, %p99
      %p101 = scmp.ne.s32.totalorder %s92, %s93
      %p102 = scmp.eq.s32.totalorder %s26, 0
      %p103 = por %p101, %p102
      %p104 = scmp.ne.s32.totalorder %s92, %s93
      %p105 = scmp.eq.s32.totalorder %s27, 1
      %p106 = por %p104, %p105
      %p108 = scmp.ne.s32.totalorder %s93, %s107
      %p109 = scmp.eq.s32.totalorder %s27, 0
      %p110 = por %p108, %p109
      %s112 = sadd.s32 %s111, 1
      %p115 = scmp.eq.s32.totalorder %s21, 1
      %p116 = scmp.ne.s32.totalorder %s111, %s113
      %p117 = scmp.eq.s32.totalorder %s21, 0
      %p118 = por %p116, %p117
      %p119 = scmp.ne.s32.totalorder %s111, %s113
      %p120 = scmp.eq.s32.totalorder %s26, 1
      %p121 = por %p119, %p120
      %p122 = scmp.ne.s32.totalorder %s113, %s114
      %p123 = scmp.eq.s32.totalorder %s26, 0
      %p124 = por %p122, %p123
      %p125 = scmp.ne.s32.totalorder %s113, %s114
      %p126 = scmp.eq.s32.totalorder %s27, 1
      %p127 = por %p125, %p126
      %p129 = scmp.ne.s32.totalorder %s114, %s128
      %p130 = scmp.eq.s32.totalorder %s27, 0
      %p131 = por %p129, %p130
      %s133 = sadd.s32 %s132, 1
      %p136 = scmp.eq.s32.totalorder %s21, 1
      %p137 = scmp.ne.s32.totalorder %s132, %s134
      %p138 = scmp.eq.s32.totalorder %s21, 0
      %p139 = por %p137, %p138
      %p140 = scmp.ne.s32.totalorder %s132, %s134
      %p141 = scmp.eq.s32.totalorder %s26, 1
      %p142 = por %p140, %p141
      %p143 = scmp.ne.s32.totalorder %s134, %s135
      %p144 = scmp.eq.s32.totalorder %s26, 0
      %p145 = por %p143, %p144
      %p146 = scmp.ne.s32.totalorder %s134, %s135
      %p147 = scmp.eq.s32.totalorder %s27, 1
      %p148 = por %p146, %p147
      %p150 = scmp.ne.s32.totalorder %s135, %s149
      %p151 = scmp.eq.s32.totalorder %s27, 0
      %p152 = por %p150, %p151
      %s154 = sadd.s32 %s153, 1
      %p157 = scmp.eq.s32.totalorder %s21, 1
      %p158 = scmp.ne.s32.totalorder %s153, %s155
      %p159 = scmp.eq.s32.totalorder %s21, 0
      %p160 = por %p158, %p159
      %p161 = scmp.ne.s32.totalorder %s153, %s155
      %p162 = scmp.eq.s32.totalorder %s26, 1
      %p163 = por %p161, %p162
      %p164 = scmp.ne.s32.totalorder %s155, %s156
      %p165 = scmp.eq.s32.totalorder %s26, 0
      %p166 = por %p164, %p165
      %p167 = scmp.ne.s32.totalorder %s155, %s156
      %p168 = scmp.eq.s32.totalorder %s27, 1
      %p169 = por %p167, %p168
      %p171 = scmp.ne.s32.totalorder %s156, %s170
      %p172 = scmp.eq.s32.totalorder %s27, 0
      %p173 = por %p171, %p172
      %s175 = sadd.s32 %s174, 1
      %p178 = scmp.eq.s32.totalorder %s21, 1
      %p179 = scmp.ne.s32.totalorder %s174, %s176
      %p180 = scmp.eq.s32.totalorder %s21, 0
      %p181 = por %p179, %p180
      %p182 = scmp.ne.s32.totalorder %s174, %s176
      %p183 = scmp.eq.s32.totalorder %s26, 1
      %p184 = por %p182, %p183
      %p185 = scmp.ne.s32.totalorder %s176, %s177
      %p186 = scmp.eq.s32.totalorder %s26, 0
      %p187 = por %p185, %p186
      %p188 = scmp.ne.s32.totalorder %s176, %s177
      %p189 = scmp.eq.s32.totalorder %s27, 1
      %p190 = por %p188, %p189
      %p192 = scmp.ne.s32.totalorder %s177, %s191
      %p193 = scmp.eq.s32.totalorder %s27, 0
      %p194 = por %p192, %p193
      %s196 = sadd.s32 %s195, 1
      %p199 = scmp.eq.s32.totalorder %s21, 1
      %p200 = scmp.ne.s32.totalorder %s195, %s197
      %p201 = scmp.eq.s32.totalorder %s21, 0
      %p202 = por %p200, %p201
      %p203 = scmp.ne.s32.totalorder %s195, %s197
      %p204 = scmp.eq.s32.totalorder %s26, 1
      %p205 = por %p203, %p204
      %p206 = scmp.ne.s32.totalorder %s197, %s198
      %p207 = scmp.eq.s32.totalorder %s26, 0
      %p208 = por %p206, %p207
      %p209 = scmp.ne.s32.totalorder %s197, %s198
      %p210 = scmp.eq.s32.totalorder %s27, 1
      %p211 = por %p209, %p210
      %p213 = scmp.ne.s32.totalorder %s198, %s212
      %p214 = scmp.eq.s32.totalorder %s27, 0
      %p215 = por %p213, %p214
      %s217 = sadd.s32 %s216, 1
      %p220 = scmp.eq.s32.totalorder %s21, 1
      %p221 = scmp.ne.s32.totalorder %s216, %s218
      %p222 = scmp.eq.s32.totalorder %s21, 0
      %p223 = por %p221, %p222
      %p224 = scmp.ne.s32.totalorder %s216, %s218
      %p225 = scmp.eq.s32.totalorder %s26, 1
      %p226 = por %p224, %p225
      %p227 = scmp.ne.s32.totalorder %s218, %s219
      %p228 = scmp.eq.s32.totalorder %s26, 0
      %p229 = por %p227, %p228
      %p230 = scmp.ne.s32.totalorder %s218, %s219
      %p231 = scmp.eq.s32.totalorder %s27, 1
      %p232 = por %p230, %p231
      %p234 = scmp.ne.s32.totalorder %s219, %s233
      %p235 = scmp.eq.s32.totalorder %s27, 0
      %p236 = por %p234, %p235
      %s238 = sadd.s32 %s237, 1
      %p241 = scmp.eq.s32.totalorder %s21, 1
      %p242 = scmp.ne.s32.totalorder %s237, %s239
      %p243 = scmp.eq.s32.totalorder %s21, 0
      %p244 = por %p242, %p243
      %p245 = scmp.ne.s32.totalorder %s237, %s239
      %p246 = scmp.eq.s32.totalorder %s26, 1
      %p247 = por %p245, %p246
      %p248 = scmp.ne.s32.totalorder %s239, %s240
      %p249 = scmp.eq.s32.totalorder %s26, 0
      %p250 = por %p248, %p249
      %p251 = scmp.ne.s32.totalorder %s239, %s240
      %p252 = scmp.eq.s32.totalorder %s27, 1
      %p253 = por %p251, %p252
      %p255 = scmp.ne.s32.totalorder %s240, %s254
      %p256 = scmp.eq.s32.totalorder %s27, 0
      %p257 = por %p255, %p256
      %s259 = sadd.s32 %s258, 1
      %p262 = scmp.eq.s32.totalorder %s21, 1
      %p263 = scmp.ne.s32.totalorder %s258, %s260
      %p264 = scmp.eq.s32.totalorder %s21, 0
      %p265 = por %p263, %p264
      %p266 = scmp.ne.s32.totalorder %s258, %s260
      %p267 = scmp.eq.s32.totalorder %s26, 1
      %p268 = por %p266, %p267
      %p269 = scmp.ne.s32.totalorder %s260, %s261
      %p270 = scmp.eq.s32.totalorder %s26, 0
      %p271 = por %p269, %p270
      %p272 = scmp.ne.s32.totalorder %s260, %s261
      %p273 = scmp.eq.s32.totalorder %s27, 1
      %p274 = por %p272, %p273
      %p276 = scmp.ne.s32.totalorder %s261, %s275
      %p277 = scmp.eq.s32.totalorder %s27, 0
      %p278 = por %p276, %p277
      %s279 = ssub.s32 %s28, %s40
      %s280 = ssub.s32 %s29, %s36
      %s281 = sor.u32 %s279, %s280
      %p282 = scmp.eq.s32.totalorder %s281, 0
      %s284 = sadd.s32 %s283, 1
      %s285 = scalar_select %p282, %s283, %s284
      %p288 = pneg %p282
      %p289 = scmp.eq.s32.totalorder %s21, 1
      %p290 = por %p288, %p289
      %p291 = scmp.ne.s32.totalorder %s283, %s286
      %p292 = scmp.eq.s32.totalorder %s21, 0
      %p293 = por %p291, %p292
      %p294 = scmp.ne.s32.totalorder %s283, %s286
      %p295 = scmp.eq.s32.totalorder %s26, 1
      %p296 = por %p294, %p295
      %p297 = scmp.ne.s32.totalorder %s286, %s287
      %p298 = scmp.eq.s32.totalorder %s26, 0
      %p299 = por %p297, %p298
      %p300 = scmp.ne.s32.totalorder %s286, %s287
      %p301 = scmp.eq.s32.totalorder %s27, 1
      %p302 = por %p300, %p301
      %p304 = scmp.ne.s32.totalorder %s287, %s303
      %p305 = scmp.eq.s32.totalorder %s27, 0
      %p306 = por %p304, %p305
      %p307 = scmp.le.s32.totalorder 1, %s21
      %p308 = scmp.lt.s32.totalorder %s21, 3
      %p309 = pnand %p307, %p308
      %p310 = pneg %p309
      // Predicated region
      $region9: #{tpu_custom_call.1} parent=5 // pred_check
        _
      $region10: #{tpu_custom_call.1} parent=5 // pred_check_branch
        %312 = sbr.rel (%p309) target = $region12
      $region11: #{tpu_custom_call.1} parent=5 // pred_region
        %s313 = ssub.s32 %s21, 1
        // Predicated region
        $region13: #{tpu_custom_call.1} parent=11 // pred_check
          %p314 = pneg %p82
        $region14: #{tpu_custom_call.1} parent=11 // pred_check_branch
          %316 = sbr.rel (%p314) target = $region16
        $region15: #{tpu_custom_call.1} parent=11 // pred_region
          _
        $region16: #{tpu_custom_call.1} parent=11 // pred_fallthru
          _
        // Predicated region
        $region17: #{tpu_custom_call.1} parent=11 // pred_check
          %p317 = pneg %p103
        $region18: #{tpu_custom_call.1} parent=11 // pred_check_branch
          %319 = sbr.rel (%p317) target = $region20
        $region19: #{tpu_custom_call.1} parent=11 // pred_region
          _
        $region20: #{tpu_custom_call.1} parent=11 // pred_fallthru
          _
        // Predicated region
        $region21: #{tpu_custom_call.1} parent=11 // pred_check
          %p320 = pneg %p124
        $region22: #{tpu_custom_call.1} parent=11 // pred_check_branch
          %322 = sbr.rel (%p320) target = $region24
        $region23: #{tpu_custom_call.1} parent=11 // pred_region
          _
        $region24: #{tpu_custom_call.1} parent=11 // pred_fallthru
          _
        // Predicated region
        $region25: #{tpu_custom_call.1} parent=11 // pred_check
          %p323 = pneg %p145
        $region26: #{tpu_custom_call.1} parent=11 // pred_check_branch
          %325 = sbr.rel (%p323) target = $region28
        $region27: #{tpu_custom_call.1} parent=11 // pred_region
          _
        $region28: #{tpu_custom_call.1} parent=11 // pred_fallthru
          _
        // Predicated region
        $region29: #{tpu_custom_call.1} parent=11 // pred_check
          %p326 = pneg %p166
        $region30: #{tpu_custom_call.1} parent=11 // pred_check_branch
          %328 = sbr.rel (%p326) target = $region32
        $region31: #{tpu_custom_call.1} parent=11 // pred_region
          _
        $region32: #{tpu_custom_call.1} parent=11 // pred_fallthru
          _
        // Predicated region
        $region33: #{tpu_custom_call.1} parent=11 // pred_check
          %p329 = pneg %p187
        $region34: #{tpu_custom_call.1} parent=11 // pred_check_branch
          %331 = sbr.rel (%p329) target = $region36
        $region35: #{tpu_custom_call.1} parent=11 // pred_region
          %s333 = ssub.s32 256, 256
          %334 = vsyncadd [#allocation6], %s333
          %s335 = sshll.u32 [#allocation5], 4
          %s336 = int_to_ptr.vmem [resolvable:$true] %s335
          %341 = dma.hbm_to_vmem [thread:$0]  %s6, 256, %s336, [#allocation6], 128, 128, 8
        $region36: #{tpu_custom_call.1} parent=11 // pred_fallthru
          _
        // Predicated region
        $region37: #{tpu_custom_call.1} parent=11 // pred_check
          %p342 = pneg %p208
        $region38: #{tpu_custom_call.1} parent=11 // pred_check_branch
          %344 = sbr.rel (%p342) target = $region40
        $region39: #{tpu_custom_call.1} parent=11 // pred_region
          _
        $region40: #{tpu_custom_call.1} parent=11 // pred_fallthru
          _
        // Predicated region
        $region41: #{tpu_custom_call.1} parent=11 // pred_check
          %p345 = pneg %p229
        $region42: #{tpu_custom_call.1} parent=11 // pred_check_branch
          %347 = sbr.rel (%p345) target = $region44
        $region43: #{tpu_custom_call.1} parent=11 // pred_region
          _
        $region44: #{tpu_custom_call.1} parent=11 // pred_fallthru
          _
        // Predicated region
        $region45: #{tpu_custom_call.1} parent=11 // pred_check
          %p348 = pneg %p250
        $region46: #{tpu_custom_call.1} parent=11 // pred_check_branch
          %350 = sbr.rel (%p348) target = $region48
        $region47: #{tpu_custom_call.1} parent=11 // pred_region
          _
        $region48: #{tpu_custom_call.1} parent=11 // pred_fallthru
          _
        // Predicated region
        $region49: #{tpu_custom_call.1} parent=11 // pred_check
          %p351 = pneg %p271
        $region50: #{tpu_custom_call.1} parent=11 // pred_check_branch
          %353 = sbr.rel (%p351) target = $region52
        $region51: #{tpu_custom_call.1} parent=11 // pred_region
          _
        $region52: #{tpu_custom_call.1} parent=11 // pred_fallthru
          _
      $region12: #{tpu_custom_call.1} parent=5 // pred_fallthru
        _
      %p354 = scmp.lt.s32.totalorder %s21, 2
      // Predicated region
      $region53: #{tpu_custom_call.1} parent=5 // pred_check
        %p355 = pneg %p354
      $region54: #{tpu_custom_call.1} parent=5 // pred_check_branch
        %357 = sbr.rel (%p355) target = $region56
      $region55: #{tpu_custom_call.1} parent=5 // pred_region
        // Predicated region
        $region57: #{tpu_custom_call.1} parent=55 // pred_check
          %p358 = pneg %p55
        $region58: #{tpu_custom_call.1} parent=55 // pred_check_branch
          %360 = sbr.rel (%p358) target = $region60
        $region59: #{tpu_custom_call.1} parent=55 // pred_region
          %s361 = smul.u32 2, %s29
          %p362 = scmp.lt.s32.totalorder %s28, 1
          %s363 = scalar_select %p362, %s28, 1
          %p364 = scmp.lt.s32.totalorder %s361, 1
          %s365 = scalar_select %p364, %s361, 1
          %s366 = smul.addr %s363, 2
          %s367 = sadd.s32 %s365, %s366
          %s368 = smul.addr %s367, 8
          %s369 = scalar_lea.vmem %s0, %s368
          %s370 = smul.u32 2, %s29
        $region60: #{tpu_custom_call.1} parent=55 // pred_fallthru
          _
      $region56: #{tpu_custom_call.1} parent=5 // pred_fallthru
        _
      %p371 = scmp.le.s32.totalorder 1, %s21
      %p372 = scmp.lt.s32.totalorder %s21, 3
      %p373 = pnand %p371, %p372
      %p374 = pneg %p373
      // Predicated region
      $region61: #{tpu_custom_call.1} parent=5 // pred_check
        _
      $region62: #{tpu_custom_call.1} parent=5 // pred_check_branch
        %376 = sbr.rel (%p373) target = $region64
      $region63: #{tpu_custom_call.1} parent=5 // pred_region
        %s377 = ssub.s32 %s21, 1
        // Predicated region
        $region65: #{tpu_custom_call.1} parent=63 // pred_check
          %p378 = pneg %p187
        $region66: #{tpu_custom_call.1} parent=63 // pred_check_branch
          %380 = sbr.rel (%p378) target = $region68
        $region67: #{tpu_custom_call.1} parent=63 // pred_region
          %381 = dma.done [#allocation6], 256
        $region68: #{tpu_custom_call.1} parent=63 // pred_fallthru
          _
        %s382 = smul.u32 2, %s31
        %p383 = scmp.lt.s32.totalorder %s30, 1
        %s384 = scalar_select %p383, %s30, 1
        %p385 = scmp.lt.s32.totalorder %s382, 1
        %s386 = scalar_select %p385, %s382, 1
        %s387 = smul.addr %s384, 2
        %s388 = sadd.s32 %s386, %s387
        %s389 = smul.addr %s388, 8
        %s390 = scalar_lea.vmem %s0, %s389
        %p391 = pneg %p61
        %p392 = pneg %p58
        %p393 = pneg %p82
        %p394 = pneg %p79
        %p395 = pneg %p103
        %p396 = pneg %p100
        %p397 = pneg %p124
        %p398 = pneg %p121
        %p399 = pneg %p145
        %p400 = pneg %p142
        %p401 = pneg %p166
        %p402 = pneg %p163
        %p403 = pneg %p187
        %p404 = pneg %p184
        %p405 = pneg %p208
        %p406 = pneg %p205
        %p407 = pneg %p229
        %p408 = pneg %p226
        %p409 = pneg %p250
        %p410 = pneg %p247
        %p411 = pneg %p271
        %p412 = pneg %p268
        %p413 = pneg %p299
        %p414 = pneg %p296
        %s415 = sand.u32 %s286, 1
        %s416 = scalar_lea.sflag [#allocation7], %s415
        %s417 = sand.u32 %s286, 1
        %s418 = smul.addr %s417, 16
        %s419 = scalar_lea.vmem [#allocation8], %s418
        %s420 = smul.u32 2, %s31
        %p421 = scmp.lt.s32.totalorder %s30, 1
        %s422 = scalar_select %p421, %s30, 1
        %p423 = scmp.lt.s32.totalorder %s420, 1
        %s424 = scalar_select %p423, %s420, 1
        %s425 = smul.addr %s422, 2
        %s426 = sadd.s32 %s424, %s425
        %s427 = smul.addr %s426, 8
        %s428 = scalar_lea.vmem %s0, %s427
        %s429 = smul.u32 2, %s31
        %s430 = smul.u32 2, %s31
        %v432 = vld [vmem:[%s428] sm:$0xff]
        %v433 = vld [vmem:[%s428 + $0x8] sm:$0xff]
        %v434 = vpack.c.bf16 %v433, %v432
        %v435 = vld [vmem:[%s1] sm:$0xf]
        %v436 = vld [vmem:[%s1 + $0x4] sm:$0xf]
        %v437 = vld [vmem:[%s1 + $0x8] sm:$0xf]
        %v438 = vld [vmem:[%s1 + $0xc] sm:$0xf]
        %v439 = vld [vmem:[%s2] sm:$0x1]
        %v441 = vlaneseq
        %v442 = vshrl.u32 %v441, 7
        %v443 = vsub.s32 0, %v442
        %v444 = vrot.slane %v439, %v443
        %v450 = vunpack.c.l.b16 %v435
        %v451 = vunpack.c.l.b16 %v436
        %v452 = vunpack.c.l.b16 %v437
        %v453 = vunpack.c.l.b16 %v438
        %v454 = vpack.c.b16 %v451, %v450
        %v455 = vpack.c.b16 %v453, %v452
        %vm458 = vcmask 261120
        %v460 = vsel %vm458, %v434, 0
        %462 = vmatprep.subr.bf16.mxu0 0
        %463 = vmatpush1.bf16.msra.mxu0 %v454
        %464 = vmatprep.subr.bf16.mxu0 0
        %465 = vmatpush1.bf16.msra.mxu0 %v455
        %466 = vmatprep.subr.bf16.mxu0 0
        %467 = vmatpush1.bf16.msra.mxu0 0
        %468 = vmatprep.subr.bf16.mxu0 0
        %469 = vmatpush1.bf16.msra.mxu0 0
        %470 = vmatprep.subr.bf16.mxu0 0
        %471 = vmatpush1.bf16.msra.mxu0 0
        %472 = vmatprep.subr.bf16.mxu0 0
        %473 = vmatpush1.bf16.msra.mxu0 0
        %474 = vmatprep.subr.bf16.mxu0 0
        %475 = vmatpush1.bf16.msra.mxu0 0
        %476 = vmatprep.subr.bf16.mxu0 0
        %477 = vmatpush1.bf16.msra.mxu0 0
        %478 = vmatprep.subr.bf16.mxu0 0
        %479 = vmatpush1.bf16.msra.mxu0 0
        %480 = vmatprep.subr.bf16.mxu0 0
        %481 = vmatpush1.bf16.msra.mxu0 0
        %482 = vmatprep.subr.bf16.mxu0 0
        %483 = vmatpush1.bf16.msra.mxu0 0
        %484 = vmatprep.subr.bf16.mxu0 0
        %485 = vmatpush1.bf16.msra.mxu0 0
        %486 = vmatprep.subr.bf16.mxu0 0
        %487 = vmatpush1.bf16.msra.mxu0 0
        %488 = vmatprep.subr.bf16.mxu0 0
        %489 = vmatpush1.bf16.msra.mxu0 0
        %490 = vmatprep.subr.bf16.mxu0 0
        %491 = vmatpush1.bf16.msra.mxu0 0
        %492 = vmatprep.subr.bf16.mxu0 0
        %493 = vmatpush1.bf16.msra.mxu0 0
        %494 = vmatprep.mubr.bf16.mxu0 0
        %495 = vmatmul.mubr.bf16.gmra.mrb[0].mxu0 %v460
        %v496 = vpop.f32.mrb[0].mxu0
        %v497 = vadd.f32 %v444, %v496
        %v498 = vpop.f32.mrb[0].mxu0
        %v499 = vpop.f32.mrb[0].mxu0
        %v500 = vadd.f32 %v444, %v499
        %v501 = vpop.f32.mrb[0].mxu0
        %502 = vdwg.mxu0
        %503 = vst [vmem:[#allocation2] sm:$0xff] %v497
        %504 = vst [vmem:[#allocation2 + $0x8] sm:$0xff] %v500
        %v505 = vld [vmem:[%s3] sm:$0xf]
        %v506 = vld [vmem:[%s3 + $0x4] sm:$0xf]
        %v507 = vld [vmem:[%s3 + $0x8] sm:$0xf]
        %v508 = vld [vmem:[%s3 + $0xc] sm:$0xf]
        %v509 = vld [vmem:[%s4] sm:$0x1]
        %v511 = vlaneseq
        %v512 = vshrl.u32 %v511, 7
        %v513 = vsub.s32 0, %v512
        %v514 = vrot.slane %v509, %v513
        %v520 = vunpack.c.l.b16 %v505
        %v521 = vunpack.c.l.b16 %v506
        %v522 = vunpack.c.l.b16 %v507
        %v523 = vunpack.c.l.b16 %v508
        %v524 = vpack.c.b16 %v521, %v520
        %v525 = vpack.c.b16 %v523, %v522
        %528 = vmatprep.subr.bf16.mxu0 0
        %529 = vmatpush1.bf16.msra.mxu0 %v524
        %530 = vmatprep.subr.bf16.mxu0 0
        %531 = vmatpush1.bf16.msra.mxu0 %v525
        %532 = vmatprep.subr.bf16.mxu0 0
        %533 = vmatpush1.bf16.msra.mxu0 0
        %534 = vmatprep.subr.bf16.mxu0 0
        %535 = vmatpush1.bf16.msra.mxu0 0
        %536 = vmatprep.subr.bf16.mxu0 0
        %537 = vmatpush1.bf16.msra.mxu0 0
        %538 = vmatprep.subr.bf16.mxu0 0
        %539 = vmatpush1.bf16.msra.mxu0 0
        %540 = vmatprep.subr.bf16.mxu0 0
        %541 = vmatpush1.bf16.msra.mxu0 0
        %542 = vmatprep.subr.bf16.mxu0 0
        %543 = vmatpush1.bf16.msra.mxu0 0
        %544 = vmatprep.subr.bf16.mxu0 0
        %545 = vmatpush1.bf16.msra.mxu0 0
        %546 = vmatprep.subr.bf16.mxu0 0
        %547 = vmatpush1.bf16.msra.mxu0 0
        %548 = vmatprep.subr.bf16.mxu0 0
        %549 = vmatpush1.bf16.msra.mxu0 0
        %550 = vmatprep.subr.bf16.mxu0 0
        %551 = vmatpush1.bf16.msra.mxu0 0
        %552 = vmatprep.subr.bf16.mxu0 0
        %553 = vmatpush1.bf16.msra.mxu0 0
        %554 = vmatprep.subr.bf16.mxu0 0
        %555 = vmatpush1.bf16.msra.mxu0 0
        %556 = vmatprep.subr.bf16.mxu0 0
        %557 = vmatpush1.bf16.msra.mxu0 0
        %558 = vmatprep.subr.bf16.mxu0 0
        %559 = vmatpush1.bf16.msra.mxu0 0
        %560 = vmatprep.mubr.bf16.mxu0 0
        %561 = vmatmul.mubr.bf16.gmra.mrb[0].mxu0 %v460
        %v562 = vpop.f32.mrb[0].mxu0
        %v563 = vadd.f32 %v514, %v562
        %v564 = vpop.f32.mrb[0].mxu0
        %v565 = vpop.f32.mrb[0].mxu0
        %v566 = vadd.f32 %v514, %v565
        %v567 = vpop.f32.mrb[0].mxu0
        %568 = vdwg.mxu0
        %v569 = vxor.u32 %v563, 2147483648
        %v570 = vxor.u32 %v566, 2147483648
        %v571 = vmul.f32 %v569, 1.442695
        %v572 = vpow.pop %v571
        %v573 = vmul.f32 %v570, 1.442695
        %v574 = vpow.pop %v573
        %v575 = vadd.f32 %v572, 1.0
        %v576 = vadd.f32 %v574, 1.0
        %v577 = vrcp.pop %v575
        %v578 = vmul.f32 1.0, %v577
        %v579 = vrcp.pop %v576
        %v580 = vmul.f32 1.0, %v579
        %v581 = vpack.c.bf16 %v580, %v578
        %582 = vst [vmem:[#allocation3] sm:$0xff] %v581
        %p583 = scmp.eq.s32.totalorder %s31, 0
        // Predicated region
        $region69: #{tpu_custom_call.1} parent=63 // pred_check
          %p584 = pneg %p583
        $region70: #{tpu_custom_call.1} parent=63 // pred_check_branch
          %586 = sbr.rel (%p584) target = $region72
        $region71: #{tpu_custom_call.1} parent=63 // pred_region
          %587 = vst [vmem:[#allocation4] sm:$0xff] 0.0
          %588 = vst [vmem:[#allocation4 + $0x8] sm:$0xff] 0.0
        $region72: #{tpu_custom_call.1} parent=63 // pred_fallthru
          _
        %v589 = vld [vmem:[%s5] sm:$0xff]
        %v590 = vld [vmem:[%s5 + $0x8] sm:$0xff]
        %v591 = vld [vmem:[#allocation5] sm:$0xff]
        %v592 = vld [vmem:[#allocation5 + $0x8] sm:$0xff]
        %v593 = vld [vmem:[#allocation4] sm:$0xff]
        %v594 = vld [vmem:[#allocation4 + $0x8] sm:$0xff]
        %v595 = vld [vmem:[#allocation2] sm:$0xff]
        %v596 = vld [vmem:[#allocation2 + $0x8] sm:$0xff]
        %v597 = vld [vmem:[#allocation3] sm:$0xff]
        %v598 = vmul.f32 %v589, %v593
        %v599 = vmul.f32 %v590, %v594
        %v600 = vlaneseq
        %v601 = vshrl.u32 %v600, 7
        %v602 = vsub.s32 0, %v601
        %v603 = vrot.slane %v595, %v602
        %v604 = vmul.f32 %v591, %v603
        %v605 = vmul.f32 %v592, %v603
        %v606 = vadd.f32 %v598, %v604
        %v607 = vadd.f32 %v599, %v605
        %v608 = vadd.f32 %v606, %v607
        %v609 = vrot.slane %v608, 4
        %v610 = vadd.f32 %v608, %v609
        %v611 = vrot.slane %v610, 2
        %v612 = vadd.f32 %v610, %v611
        %v613 = vrot.slane %v612, 1
        %v614 = vadd.f32 %v612, %v613
        %v615 = vmul.f32 %v589, %v606
        %v616 = vmul.f32 %v590, %v607
        %v617 = vlaneseq
        %v618 = vshrl.u32 %v617, 7
        %v619 = vsub.s32 1, %v618
        %v620 = vrot.slane %v595, %v619
        %v621 = vmul.f32 %v591, %v620
        %v622 = vmul.f32 %v592, %v620
        %v623 = vadd.f32 %v615, %v621
        %v624 = vadd.f32 %v616, %v622
        %v625 = vadd.f32 %v623, %v624
        %v626 = vrot.slane %v625, 4
        %v627 = vadd.f32 %v625, %v626
        %v628 = vrot.slane %v627, 2
        %v629 = vadd.f32 %v627, %v628
        %v630 = vrot.slane %v629, 1
        %v631 = vadd.f32 %v629, %v630
        %v632 = vmul.f32 %v589, %v623
        %v633 = vmul.f32 %v590, %v624
        %v634 = vlaneseq
        %v635 = vshrl.u32 %v634, 7
        %v636 = vsub.s32 2, %v635
        %v637 = vrot.slane %v595, %v636
        %v638 = vmul.f32 %v591, %v637
        %v639 = vmul.f32 %v592, %v637
        %v640 = vadd.f32 %v632, %v638
        %v641 = vadd.f32 %v633, %v639
        %v642 = vadd.f32 %v640, %v641
        %v643 = vrot.slane %v642, 4
        %v644 = vadd.f32 %v642, %v643
        %v645 = vrot.slane %v644, 2
        %v646 = vadd.f32 %v644, %v645
        %v647 = vrot.slane %v646, 1
        %v648 = vadd.f32 %v646, %v647
        %v649 = vmul.f32 %v589, %v640
        %v650 = vmul.f32 %v590, %v641
        %v651 = vlaneseq
        %v652 = vshrl.u32 %v651, 7
        %v653 = vsub.s32 3, %v652
        %v654 = vrot.slane %v595, %v653
        %v655 = vmul.f32 %v591, %v654
        %v656 = vmul.f32 %v592, %v654
        %v657 = vadd.f32 %v649, %v655
        %v658 = vadd.f32 %v650, %v656
        %v659 = vadd.f32 %v657, %v658
        %v660 = vrot.slane %v659, 4
        %v661 = vadd.f32 %v659, %v660
        %v662 = vrot.slane %v661, 2
        %v663 = vadd.f32 %v661, %v662
        %v664 = vrot.slane %v663, 1
        %v665 = vadd.f32 %v663, %v664
        %v666 = vmul.f32 %v589, %v657
        %v667 = vmul.f32 %v590, %v658
        %v668 = vlaneseq
        %v669 = vshrl.u32 %v668, 7
        %v670 = vsub.s32 4, %v669
        %v671 = vrot.slane %v595, %v670
        %v672 = vmul.f32 %v591, %v671
        %v673 = vmul.f32 %v592, %v671
        %v674 = vadd.f32 %v666, %v672
        %v675 = vadd.f32 %v667, %v673
        %v676 = vadd.f32 %v674, %v675
        %v677 = vrot.slane %v676, 4
        %v678 = vadd.f32 %v676, %v677
        %v679 = vrot.slane %v678, 2
        %v680 = vadd.f32 %v678, %v679
        %v681 = vrot.slane %v680, 1
        %v682 = vadd.f32 %v680, %v681
        %v683 = vmul.f32 %v589, %v674
        %v684 = vmul.f32 %v590, %v675
        %v685 = vlaneseq
        %v686 = vshrl.u32 %v685, 7
        %v687 = vsub.s32 5, %v686
        %v688 = vrot.slane %v595, %v687
        %v689 = vmul.f32 %v591, %v688
        %v690 = vmul.f32 %v592, %v688
        %v691 = vadd.f32 %v683, %v689
        %v692 = vadd.f32 %v684, %v690
        %v693 = vadd.f32 %v691, %v692
        %v694 = vrot.slane %v693, 4
        %v695 = vadd.f32 %v693, %v694
        %v696 = vrot.slane %v695, 2
        %v697 = vadd.f32 %v695, %v696
        %v698 = vrot.slane %v697, 1
        %v699 = vadd.f32 %v697, %v698
        %v700 = vmul.f32 %v589, %v691
        %v701 = vmul.f32 %v590, %v692
        %v702 = vlaneseq
        %v703 = vshrl.u32 %v702, 7
        %v704 = vsub.s32 6, %v703
        %v705 = vrot.slane %v595, %v704
        %v706 = vmul.f32 %v591, %v705
        %v707 = vmul.f32 %v592, %v705
        %v708 = vadd.f32 %v700, %v706
        %v709 = vadd.f32 %v701, %v707
        %v710 = vadd.f32 %v708, %v709
        %v711 = vrot.slane %v710, 4
        %v712 = vadd.f32 %v710, %v711
        %v713 = vrot.slane %v712, 2
        %v714 = vadd.f32 %v712, %v713
        %v715 = vrot.slane %v714, 1
        %v716 = vadd.f32 %v714, %v715
        %v717 = vmul.f32 %v589, %v708
        %v718 = vmul.f32 %v590, %v709
        %v719 = vlaneseq
        %v720 = vshrl.u32 %v719, 7
        %v721 = vsub.s32 7, %v720
        %v722 = vrot.slane %v595, %v721
        %v723 = vmul.f32 %v591, %v722
        %v724 = vmul.f32 %v592, %v722
        %v725 = vadd.f32 %v717, %v723
        %v726 = vadd.f32 %v718, %v724
        %v727 = vadd.f32 %v725, %v726
        %v728 = vrot.slane %v727, 4
        %v729 = vadd.f32 %v727, %v728
        %v730 = vrot.slane %v729, 2
        %v731 = vadd.f32 %v729, %v730
        %v732 = vrot.slane %v731, 1
        %v733 = vadd.f32 %v731, %v732
        %v734 = vmul.f32 %v589, %v725
        %v735 = vmul.f32 %v590, %v726
        %v736 = vlaneseq
        %v737 = vshrl.u32 %v736, 7
        %v738 = vsub.s32 0, %v737
        %v739 = vrot.slane %v596, %v738
        %v740 = vmul.f32 %v591, %v739
        %v741 = vmul.f32 %v592, %v739
        %v742 = vadd.f32 %v734, %v740
        %v743 = vadd.f32 %v735, %v741
        %v744 = vadd.f32 %v742, %v743
        %v745 = vrot.slane %v744, 4
        %v746 = vadd.f32 %v744, %v745
        %v747 = vrot.slane %v746, 2
        %v748 = vadd.f32 %v746, %v747
        %v749 = vrot.slane %v748, 1
        %v750 = vadd.f32 %v748, %v749
        %v751 = vmul.f32 %v589, %v742
        %v752 = vmul.f32 %v590, %v743
        %v753 = vlaneseq
        %v754 = vshrl.u32 %v753, 7
        %v755 = vsub.s32 1, %v754
        %v756 = vrot.slane %v596, %v755
        %v757 = vmul.f32 %v591, %v756
        %v758 = vmul.f32 %v592, %v756
        %v759 = vadd.f32 %v751, %v757
        %v760 = vadd.f32 %v752, %v758
        %v761 = vadd.f32 %v759, %v760
        %v762 = vrot.slane %v761, 4
        %v763 = vadd.f32 %v761, %v762
        %v764 = vrot.slane %v763, 2
        %v765 = vadd.f32 %v763, %v764
        %v766 = vrot.slane %v765, 1
        %v767 = vadd.f32 %v765, %v766
        %v768 = vmul.f32 %v589, %v759
        %v769 = vmul.f32 %v590, %v760
        %v770 = vlaneseq
        %v771 = vshrl.u32 %v770, 7
        %v772 = vsub.s32 2, %v771
        %v773 = vrot.slane %v596, %v772
        %v774 = vmul.f32 %v591, %v773
        %v775 = vmul.f32 %v592, %v773
        %v776 = vadd.f32 %v768, %v774
        %v777 = vadd.f32 %v769, %v775
        %v778 = vadd.f32 %v776, %v777
        %v779 = vrot.slane %v778, 4
        %v780 = vadd.f32 %v778, %v779
        %v781 = vrot.slane %v780, 2
        %v782 = vadd.f32 %v780, %v781
        %v783 = vrot.slane %v782, 1
        %v784 = vadd.f32 %v782, %v783
        %v785 = vmul.f32 %v589, %v776
        %v786 = vmul.f32 %v590, %v777
        %v787 = vlaneseq
        %v788 = vshrl.u32 %v787, 7
        %v789 = vsub.s32 3, %v788
        %v790 = vrot.slane %v596, %v789
        %v791 = vmul.f32 %v591, %v790
        %v792 = vmul.f32 %v592, %v790
        %v793 = vadd.f32 %v785, %v791
        %v794 = vadd.f32 %v786, %v792
        %v795 = vadd.f32 %v793, %v794
        %v796 = vrot.slane %v795, 4
        %v797 = vadd.f32 %v795, %v796
        %v798 = vrot.slane %v797, 2
        %v799 = vadd.f32 %v797, %v798
        %v800 = vrot.slane %v799, 1
        %v801 = vadd.f32 %v799, %v800
        %v802 = vmul.f32 %v589, %v793
        %v803 = vmul.f32 %v590, %v794
        %v804 = vlaneseq
        %v805 = vshrl.u32 %v804, 7
        %v806 = vsub.s32 4, %v805
        %v807 = vrot.slane %v596, %v806
        %v808 = vmul.f32 %v591, %v807
        %v809 = vmul.f32 %v592, %v807
        %v810 = vadd.f32 %v802, %v808
        %v811 = vadd.f32 %v803, %v809
        %v812 = vadd.f32 %v810, %v811
        %v813 = vrot.slane %v812, 4
        %v814 = vadd.f32 %v812, %v813
        %v815 = vrot.slane %v814, 2
        %v816 = vadd.f32 %v814, %v815
        %v817 = vrot.slane %v816, 1
        %v818 = vadd.f32 %v816, %v817
        %v819 = vmul.f32 %v589, %v810
        %v820 = vmul.f32 %v590, %v811
        %v821 = vlaneseq
        %v822 = vshrl.u32 %v821, 7
        %v823 = vsub.s32 5, %v822
        %v824 = vrot.slane %v596, %v823
        %v825 = vmul.f32 %v591, %v824
        %v826 = vmul.f32 %v592, %v824
        %v827 = vadd.f32 %v819, %v825
        %v828 = vadd.f32 %v820, %v826
        %v829 = vadd.f32 %v827, %v828
        %v830 = vrot.slane %v829, 4
        %v831 = vadd.f32 %v829, %v830
        %v832 = vrot.slane %v831, 2
        %v833 = vadd.f32 %v831, %v832
        %v834 = vrot.slane %v833, 1
        %v835 = vadd.f32 %v833, %v834
        %v836 = vmul.f32 %v589, %v827
        %v837 = vmul.f32 %v590, %v828
        %v838 = vlaneseq
        %v839 = vshrl.u32 %v838, 7
        %v840 = vsub.s32 6, %v839
        %v841 = vrot.slane %v596, %v840
        %v842 = vmul.f32 %v591, %v841
        %v843 = vmul.f32 %v592, %v841
        %v844 = vadd.f32 %v836, %v842
        %v845 = vadd.f32 %v837, %v843
        %v846 = vadd.f32 %v844, %v845
        %v847 = vrot.slane %v846, 4
        %v848 = vadd.f32 %v846, %v847
        %v849 = vrot.slane %v848, 2
        %v850 = vadd.f32 %v848, %v849
        %v851 = vrot.slane %v850, 1
        %v852 = vadd.f32 %v850, %v851
        %v853 = vmul.f32 %v589, %v844
        %v854 = vmul.f32 %v590, %v845
        %v855 = vlaneseq
        %v856 = vshrl.u32 %v855, 7
        %v857 = vsub.s32 7, %v856
        %v858 = vrot.slane %v596, %v857
        %v859 = vmul.f32 %v591, %v858
        %v860 = vmul.f32 %v592, %v858
        %v861 = vadd.f32 %v853, %v859
        %v862 = vadd.f32 %v854, %v860
        %v863 = vadd.f32 %v861, %v862
        %v864 = vrot.slane %v863, 4
        %v865 = vadd.f32 %v863, %v864
        %v866 = vrot.slane %v865, 2
        %v867 = vadd.f32 %v865, %v866
        %v868 = vrot.slane %v867, 1
        %v869 = vadd.f32 %v867, %v868
        %vm870 = vcmask 1040384
        %v871 = vsel %vm870, %v614, %v631
        %vm872 = vcmask 1041408
        %v873 = vsel %vm872, %v871, %v648
        %vm874 = vcmask 1042432
        %v875 = vsel %vm874, %v873, %v665
        %vm876 = vcmask 1043456
        %v877 = vsel %vm876, %v875, %v682
        %vm878 = vcmask 1044480
        %v879 = vsel %vm878, %v877, %v699
        %vm880 = vcmask 1045504
        %v881 = vsel %vm880, %v879, %v716
        %vm882 = vcmask 1046528
        %v883 = vsel %vm882, %v881, %v733
        %v884 = vsel %vm870, %v750, %v767
        %v885 = vsel %vm872, %v884, %v784
        %v886 = vsel %vm874, %v885, %v801
        %v887 = vsel %vm876, %v886, %v818
        %v888 = vsel %vm878, %v887, %v835
        %v889 = vsel %vm880, %v888, %v852
        %v890 = vsel %vm882, %v889, %v869
        %v891 = vunpack.c.l.bf16 %v597
        %v892 = vunpack.c.h.bf16 %v597
        %v893 = vmul.f32 %v883, %v891
        %v894 = vmul.f32 %v890, %v892
        %895 = vst [vmem:[#allocation2] sm:$0xff] %v893
        %896 = vst [vmem:[#allocation2 + $0x8] sm:$0xff] %v894
        %897 = vst [vmem:[#allocation4] sm:$0xff] %v861
        %898 = vst [vmem:[#allocation4 + $0x8] sm:$0xff] %v862
        %v899 = vld [vmem:[#allocation2] sm:$0xff]
        %v900 = vld [vmem:[#allocation2 + $0x8] sm:$0xff]
        %v901 = vpack.c.bf16 %v900, %v899
        %v902 = vld [vmem:[%s7] sm:$0xf]
        %v903 = vld [vmem:[%s7 + $0x4] sm:$0xf]
        %v904 = vld [vmem:[%s7 + $0x8] sm:$0xf]
        %v905 = vld [vmem:[%s7 + $0xc] sm:$0xf]
        %v906 = vld [vmem:[%s7 + $0x10] sm:$0xf]
        %v907 = vld [vmem:[%s7 + $0x14] sm:$0xf]
        %v908 = vld [vmem:[%s7 + $0x18] sm:$0xf]
        %v909 = vld [vmem:[%s7 + $0x1c] sm:$0xf]
        %v910 = vld [vmem:[%s7 + $0x20] sm:$0xf]
        %v911 = vld [vmem:[%s7 + $0x24] sm:$0xf]
        %v912 = vld [vmem:[%s7 + $0x28] sm:$0xf]
        %v913 = vld [vmem:[%s7 + $0x2c] sm:$0xf]
        %v914 = vld [vmem:[%s7 + $0x30] sm:$0xf]
        %v915 = vld [vmem:[%s7 + $0x34] sm:$0xf]
        %v916 = vld [vmem:[%s7 + $0x38] sm:$0xf]
        %v917 = vld [vmem:[%s7 + $0x3c] sm:$0xf]
        %v918 = vld [vmem:[%s8] sm:$0x1]
        %v920 = vlaneseq
        %v921 = vshrl.u32 %v920, 7
        %v922 = vsub.s32 0, %v921
        %v923 = vrot.slane %v918, %v922
        %v941 = vunpack.c.l.b16 %v902
        %v942 = vunpack.c.l.b16 %v903
        %v943 = vunpack.c.l.b16 %v904
        %v944 = vunpack.c.l.b16 %v905
        %v945 = vunpack.c.l.b16 %v906
        %v946 = vunpack.c.l.b16 %v907
        %v947 = vunpack.c.l.b16 %v908
        %v948 = vunpack.c.l.b16 %v909
        %v949 = vunpack.c.l.b16 %v910
        %v950 = vunpack.c.l.b16 %v911
        %v951 = vunpack.c.l.b16 %v912
        %v952 = vunpack.c.l.b16 %v913
        %v953 = vunpack.c.l.b16 %v914
        %v954 = vunpack.c.l.b16 %v915
        %v955 = vunpack.c.l.b16 %v916
        %v956 = vunpack.c.l.b16 %v917
        %v957 = vpack.c.b16 %v942, %v941
        %v958 = vpack.c.b16 %v944, %v943
        %v959 = vpack.c.b16 %v946, %v945
        %v960 = vpack.c.b16 %v948, %v947
        %v961 = vpack.c.b16 %v950, %v949
        %v962 = vpack.c.b16 %v952, %v951
        %v963 = vpack.c.b16 %v954, %v953
        %v964 = vpack.c.b16 %v956, %v955
        %973 = vmatprep.subr.bf16.mxu0 0
        %974 = vmatpush1.bf16.msra.mxu0 %v957
        %975 = vmatprep.subr.bf16.mxu0 0
        %976 = vmatpush1.bf16.msra.mxu0 %v958
        %977 = vmatprep.subr.bf16.mxu0 0
        %978 = vmatpush1.bf16.msra.mxu0 %v959
        %979 = vmatprep.subr.bf16.mxu0 0
        %980 = vmatpush1.bf16.msra.mxu0 %v960
        %981 = vmatprep.subr.bf16.mxu0 0
        %982 = vmatpush1.bf16.msra.mxu0 %v961
        %983 = vmatprep.subr.bf16.mxu0 0
        %984 = vmatpush1.bf16.msra.mxu0 %v962
        %985 = vmatprep.subr.bf16.mxu0 0
        %986 = vmatpush1.bf16.msra.mxu0 %v963
        %987 = vmatprep.subr.bf16.mxu0 0
        %988 = vmatpush1.bf16.msra.mxu0 %v964
        %989 = vmatprep.subr.bf16.mxu0 0
        %990 = vmatpush1.bf16.msra.mxu0 0
        %991 = vmatprep.subr.bf16.mxu0 0
        %992 = vmatpush1.bf16.msra.mxu0 0
        %993 = vmatprep.subr.bf16.mxu0 0
        %994 = vmatpush1.bf16.msra.mxu0 0
        %995 = vmatprep.subr.bf16.mxu0 0
        %996 = vmatpush1.bf16.msra.mxu0 0
        %997 = vmatprep.subr.bf16.mxu0 0
        %998 = vmatpush1.bf16.msra.mxu0 0
        %999 = vmatprep.subr.bf16.mxu0 0
        %1000 = vmatpush1.bf16.msra.mxu0 0
        %1001 = vmatprep.subr.bf16.mxu0 0
        %1002 = vmatpush1.bf16.msra.mxu0 0
        %1003 = vmatprep.subr.bf16.mxu0 0
        %1004 = vmatpush1.bf16.msra.mxu0 0
        %1005 = vmatprep.mubr.bf16.mxu0 0
        %1006 = vmatmul.mubr.bf16.gmra.mrb[0].mxu0 %v901
        %v1007 = vpop.f32.mrb[0].mxu0
        %v1008 = vadd.f32 %v923, %v1007
        %v1009 = vpop.f32.mrb[0].mxu0
        %v1010 = vpop.f32.mrb[0].mxu0
        %v1011 = vadd.f32 %v923, %v1010
        %v1012 = vpop.f32.mrb[0].mxu0
        %1013 = vdwg.mxu0
        %v1014 = vld [vmem:[%s428] sm:$0xff]
        %v1015 = vld [vmem:[%s428 + $0x8] sm:$0xff]
        %v1016 = vadd.f32 %v1014, %v1008
        %v1017 = vadd.f32 %v1015, %v1011
        %v1018 = vsel %vm458, %v1016, 0.0
        %1019 = vadd.xlane.f32.xlu0 %v1018
        %v1020 = vpop.xlane.xlu0 %1019
        %v1021 = vsel %vm458, %v1017, 0.0
        %1022 = vadd.xlane.f32.xlu0 %v1021
        %v1023 = vpop.xlane.xlu0 %1022
        %v1024 = vrcp.pop 32.0
        %v1025 = vmul.f32 %v1020, %v1024
        %v1026 = vmul.f32 %v1023, %v1024
        %v1027 = vsub.f32 %v1016, %v1025
        %v1028 = vsub.f32 %v1017, %v1026
        %v1029 = vmul.f32 %v1027, %v1027
        %v1030 = vmul.f32 %v1028, %v1028
        %v1031 = vsel %vm458, %v1029, 0.0
        %1032 = vadd.xlane.f32.xlu0 %v1031
        %v1033 = vpop.xlane.xlu0 %1032
        %v1034 = vsel %vm458, %v1030, 0.0
        %1035 = vadd.xlane.f32.xlu0 %v1034
        %v1036 = vpop.xlane.xlu0 %1035
        %v1037 = vmul.f32 %v1033, %v1024
        %v1038 = vmul.f32 %v1036, %v1024
        %v1039 = vadd.f32 %v1037, 1e-05
        %v1040 = vadd.f32 %v1038, 1e-05
        %v1041 = vrsqrt.pop %v1039
        %v1042 = vrsqrt.pop %v1040
        %v1043 = vmul.f32 %v1027, %v1041
        %v1044 = vmul.f32 %v1028, %v1042
        %v1045 = vld [vmem:[%s9] sm:$0x1]
        %v1047 = vlaneseq
        %v1048 = vshrl.u32 %v1047, 7
        %v1049 = vsub.s32 0, %v1048
        %v1050 = vrot.slane %v1045, %v1049
        %v1052 = vmul.f32 %v1043, %v1050
        %v1053 = vmul.f32 %v1044, %v1050
        %v1054 = vld [vmem:[%s10] sm:$0x1]
        %v1056 = vlaneseq
        %v1057 = vshrl.u32 %v1056, 7
        %v1058 = vsub.s32 0, %v1057
        %v1059 = vrot.slane %v1054, %v1058
        %v1061 = vadd.f32 %v1052, %v1059
        %v1062 = vadd.f32 %v1053, %v1059
        %1063 = vst.msk [vmem:[%s419] sm:$0xff] %vm458, %v1061
        %1064 = vst.msk [vmem:[%s419 + $0x8] sm:$0xff] %vm458, %v1062
        %s1065 = sand.u32 %s286, 1
        %s1066 = scalar_lea.sflag [#allocation7], %s1065
        %s1067 = sand.u32 %s286, 1
        %s1068 = smul.addr %s1067, 16
        %s1069 = scalar_lea.vmem [#allocation8], %s1068
        // Predicated region
        $region73: #{tpu_custom_call.1} parent=63 // pred_check
          %p1070 = pneg %p296
        $region74: #{tpu_custom_call.1} parent=63 // pred_check_branch
          %1072 = sbr.rel (%p1070) target = $region76
        $region75: #{tpu_custom_call.1} parent=63 // pred_region
          %s1073 = smul.u32 2, %s31
          %s1075 = ssub.s32 256, 256
          %1076 = vsyncadd %s1066, %s1075
          %s1077 = smul.addr %s30, 2
          %s1078 = sadd.s32 %s1073, %s1077
          %s1079 = smul.addr %s1078, 128
          %s1080 = scalar_lea.hbm %s11, %s1079
          %s1081 = sshll.u32 %s1069, 4
          %s1082 = int_to_ptr.vmem [resolvable:$true] %s1081
          %1087 = dma.vmem_to_hbm [thread:$0]  %s1082, 256, %s1080, %s1066, 128, 128, 8
        $region76: #{tpu_custom_call.1} parent=63 // pred_fallthru
          _
      $region64: #{tpu_custom_call.1} parent=5 // pred_fallthru
        _
      %p1088 = scmp.le.s32.totalorder 2, %s21
      // Predicated region
      $region77: #{tpu_custom_call.1} parent=5 // pred_check
        %p1089 = pneg %p1088
      $region78: #{tpu_custom_call.1} parent=5 // pred_check_branch
        %1091 = sbr.rel (%p1089) target = $region80
      $region79: #{tpu_custom_call.1} parent=5 // pred_region
        %s1092 = ssub.s32 %s21, 2
        // Predicated region
        $region81: #{tpu_custom_call.1} parent=79 // pred_check
          %p1093 = pneg %p302
        $region82: #{tpu_custom_call.1} parent=79 // pred_check_branch
          %1095 = sbr.rel (%p1093) target = $region84
        $region83: #{tpu_custom_call.1} parent=79 // pred_region
          %s1096 = sand.u32 %s287, 1
          %s1097 = scalar_lea.sflag [#allocation7], %s1096
          %s1098 = sand.u32 %s287, 1
          %s1099 = smul.addr %s1098, 16
          %s1100 = scalar_lea.vmem [#allocation8], %s1099
          %1101 = dma.done %s1097, 256
        $region84: #{tpu_custom_call.1} parent=79 // pred_fallthru
          _
      $region80: #{tpu_custom_call.1} parent=5 // pred_fallthru
        _
    $region6: #{tpu_custom_call.1} parent=1 // loop_footer
      %s25 = sadd.s32 1, %s21
    $region7: #{tpu_custom_call.1} parent=1 // loop_footer_branch
      %20 = sbr.rel target = $region3
    $region8: #{tpu_custom_call.1} parent=1 // loop_exit
      _
    %1102 = vsyncpa [#allocation6], 1
    %s1103 = scalar_lea.sflag [#allocation6], 1
    %1104 = vsyncpa %s1103, 1
    %1105 = vsyncpa [#allocation7], 1
    %s1106 = scalar_lea.sflag [#allocation7], 1
    %1107 = vsyncpa %s1106, 1

// kernel: tpu_custom_call.1
$region0: #{tpu_custom_call.1}
  #allocation0 [shape = 'u32[]', space=smem, size = 0x4, offset = 0x4, fixed_abs, tag = 'smem constant byte address 0x4 - core index']
  #allocation1 [shape = 'u32[144,128]{1,0:T(1,128)}', space=vmem, size = 0x12000, scoped, tag = 'internal scratch']
  #allocation2 [shape = 'f32[1,16,128]{2,1,0:T(8,128)}', space=vmem, size = 0x2000, scoped, tag = 'scratch operand']
  #allocation3 [shape = 'bf16[1,16,128]{2,1,0:T(16,128)(2,1)}', space=vmem, size = 0x1000, scoped, tag = 'scratch operand']
  #allocation4 [shape = 'f32[1,16,128]{2,1,0:T(8,128)}', space=vmem, size = 0x2000, scoped, tag = 'scratch operand']
  %s0 = inlined_call_operand.vmem [shape: f32[2,16,32], index: 0, kind: input, shape index: {}]
  %s1 = inlined_call_operand.vmem [shape: bf16[32,128], index: 1, kind: input, shape index: {}]
  %s2 = inlined_call_operand.vmem [shape: f32[1,128], index: 2, kind: input, shape index: {}]
  %s3 = inlined_call_operand.vmem [shape: bf16[32,128], index: 3, kind: input, shape index: {}]
  %s4 = inlined_call_operand.vmem [shape: f32[1,128], index: 4, kind: input, shape index: {}]
  %s5 = inlined_call_operand.vmem [shape: f32[16,128], index: 5, kind: input, shape index: {}]
  %s6 = inlined_call_operand.hbm [shape: f32[16,128], index: 6, kind: input, shape index: {}]
  %s7 = inlined_call_operand.vmem [shape: bf16[128,32], index: 7, kind: input, shape index: {}]
  %s8 = inlined_call_operand.vmem [shape: f32[1,32], index: 8, kind: input, shape index: {}]
  %s9 = inlined_call_operand.vmem [shape: f32[1,32], index: 9, kind: input, shape index: {}]
  %s10 = inlined_call_operand.vmem [shape: f32[1,32], index: 10, kind: input, shape index: {}]
  %s11 = inlined_call_operand.hbm [shape: f32[2,16,32], index: 11, kind: output, shape index: {}]
  %s12 = sld [smem:[#allocation0]]
  $region85: #{tpu_custom_call.1} parent=0
    _
  %s14 = ssub.s32 1, %s12
  %s15 = scalar_select 0, %s14, %s12
  $region1: #{tpu_custom_call.1} parent=0
    #allocation5 [shape = 'u8[8192]{0}', space=vmem, size = 0x2000, scoped, tag = 'input window, operand 6, single buffered']
    #allocation6 [shape = 's32[2]{0}', space=sflag, size = 0x8, scoped, tag = 'scoped memory for tpu_custom_call.1']
    #allocation7 [shape = 's32[2]{0}', space=sflag, size = 0x8, scoped, tag = 'scoped memory for tpu_custom_call.1']
    #allocation8 [shape = 'u8[16384]{0}', space=vmem, size = 0x4000, scoped, tag = 'output window, operand 0']
    %16 = vsyncpa [#allocation6], 0
    %17 = vsyncpa [#allocation7], 0
    %s18 = scalar_lea.sflag [#allocation7], 1
    %19 = vsyncpa %s18, 0
    loop: start=0, step=1, limit=4
    $region2: #{tpu_custom_call.1} parent=1 // loop_pre_header
      _
    $region3: #{tpu_custom_call.1} parent=1 // loop_header
      %s21 = sphi 0, %s25
      %p22 = scmp.ge.s32.totalorder %s21, 4
      %s28 = sphi 0, %s40
      %s29 = sphi 0, %s36
      %s30 = sphi 0, %s28
      %s31 = sphi 0, %s29
      %s32 = sphi 0, %s30
      %s33 = sphi 0, %s31
      %s45 = sphi 0, %s47
      %s48 = sphi 0, %s45
      %s49 = sphi 0, %s48
      %s65 = sphi 0, %s49
      %s69 = sphi 0, %s69
      %s71 = sphi 0, %s69
      %s72 = sphi 0, %s71
      %s86 = sphi 0, %s72
      %s90 = sphi 0, %s90
      %s92 = sphi 0, %s90
      %s93 = sphi 0, %s92
      %s107 = sphi 0, %s93
      %s111 = sphi 0, %s111
      %s113 = sphi 0, %s111
      %s114 = sphi 0, %s113
      %s128 = sphi 0, %s114
      %s132 = sphi 0, %s132
      %s134 = sphi 0, %s132
      %s135 = sphi 0, %s134
      %s149 = sphi 0, %s135
      %s153 = sphi 0, %s153
      %s155 = sphi 0, %s153
      %s156 = sphi 0, %s155
      %s170 = sphi 0, %s156
      %s174 = sphi 0, %s174
      %s176 = sphi 0, %s174
      %s177 = sphi 0, %s176
      %s191 = sphi 0, %s177
      %s195 = sphi 0, %s195
      %s197 = sphi 0, %s195
      %s198 = sphi 0, %s197
      %s212 = sphi 0, %s198
      %s216 = sphi 0, %s216
      %s218 = sphi 0, %s216
      %s219 = sphi 0, %s218
      %s233 = sphi 0, %s219
      %s237 = sphi 0, %s237
      %s239 = sphi 0, %s237
      %s240 = sphi 0, %s239
      %s254 = sphi 0, %s240
      %s258 = sphi 0, %s258
      %s260 = sphi 0, %s258
      %s261 = sphi 0, %s260
      %s275 = sphi 0, %s261
      %s283 = sphi 0, %s285
      %s286 = sphi 0, %s283
      %s287 = sphi 0, %s286
      %s303 = sphi 0, %s287
    $region4: #{tpu_custom_call.1} parent=1 // loop_header_branch
      %24 = sbr.rel (%p22) target = $region8
    $region5: #{tpu_custom_call.1} parent=1 // loop_body
      %s26 = ssub.s32 %s21, 1
      %s27 = ssub.s32 %s21, 2
      %s34 = sadd.s32 1, %s29
      %p35 = scmp.ge.s32.totalorder %s34, 1
      %s36 = scalar_select %p35, 0, %s34
      %s37 = sadd.s32 1, %s28
      %s38 = scalar_select %p35, %s37, %s28
      %p39 = scmp.ge.s32.totalorder %s38, 2
      %s40 = scalar_select %p39, 0, %s38
      %s41 = ssub.s32 %s28, %s40
      %s42 = ssub.s32 %s29, %s36
      %s43 = sor.u32 %s41, %s42
      %p44 = scmp.eq.s32.totalorder %s43, 0
      %s46 = sadd.s32 %s45, 1
      %s47 = scalar_select %p44, %s45, %s46
      %p50 = pneg %p44
      %p51 = scmp.eq.s32.totalorder %s21, 1
      %p52 = por %p50, %p51
      %p53 = scmp.ne.s32.totalorder %s45, %s48
      %p54 = scmp.eq.s32.totalorder %s21, 0
      %p55 = por %p53, %p54
      %p56 = scmp.ne.s32.totalorder %s45, %s48
      %p57 = scmp.eq.s32.totalorder %s26, 1
      %p58 = por %p56, %p57
      %p59 = scmp.ne.s32.totalorder %s48, %s49
      %p60 = scmp.eq.s32.totalorder %s26, 0
      %p61 = por %p59, %p60
      %p62 = scmp.ne.s32.totalorder %s48, %s49
      %p63 = scmp.eq.s32.totalorder %s27, 1
      %p64 = por %p62, %p63
      %p66 = scmp.ne.s32.totalorder %s49, %s65
      %p67 = scmp.eq.s32.totalorder %s27, 0
      %p68 = por %p66, %p67
      %s70 = sadd.s32 %s69, 1
      %p73 = scmp.eq.s32.totalorder %s21, 1
      %p74 = scmp.ne.s32.totalorder %s69, %s71
      %p75 = scmp.eq.s32.totalorder %s21, 0
      %p76 = por %p74, %p75
      %p77 = scmp.ne.s32.totalorder %s69, %s71
      %p78 = scmp.eq.s32.totalorder %s26, 1
      %p79 = por %p77, %p78
      %p80 = scmp.ne.s32.totalorder %s71, %s72
      %p81 = scmp.eq.s32.totalorder %s26, 0
      %p82 = por %p80, %p81
      %p83 = scmp.ne.s32.totalorder %s71, %s72
      %p84 = scmp.eq.s32.totalorder %s27, 1
      %p85 = por %p83, %p84
      %p87 = scmp.ne.s32.totalorder %s72, %s86
      %p88 = scmp.eq.s32.totalorder %s27, 0
      %p89 = por %p87, %p88
      %s91 = sadd.s32 %s90, 1
      %p94 = scmp.eq.s32.totalorder %s21, 1
      %p95 = scmp.ne.s32.totalorder %s90, %s92
      %p96 = scmp.eq.s32.totalorder %s21, 0
      %p97 = por %p95, %p96
      %p98 = scmp.ne.s32.totalorder %s90, %s92
      %p99 = scmp.eq.s32.totalorder %s26, 1
      %p100 = por %p98, %p99
      %p101 = scmp.ne.s32.totalorder %s92, %s93
      %p102 = scmp.eq.s32.totalorder %s26, 0
      %p103 = por %p101, %p102
      %p104 = scmp.ne.s32.totalorder %s92, %s93
      %p105 = scmp.eq.s32.totalorder %s27, 1
      %p106 = por %p104, %p105
      %p108 = scmp.ne.s32.totalorder %s93, %s107
      %p109 = scmp.eq.s32.totalorder %s27, 0
      %p110 = por %p108, %p109
      %s112 = sadd.s32 %s111, 1
      %p115 = scmp.eq.s32.totalorder %s21, 1
      %p116 = scmp.ne.s32.totalorder %s111, %s113
      %p117 = scmp.eq.s32.totalorder %s21, 0
      %p118 = por %p116, %p117
      %p119 = scmp.ne.s32.totalorder %s111, %s113
      %p120 = scmp.eq.s32.totalorder %s26, 1
      %p121 = por %p119, %p120
      %p122 = scmp.ne.s32.totalorder %s113, %s114
      %p123 = scmp.eq.s32.totalorder %s26, 0
      %p124 = por %p122, %p123
      %p125 = scmp.ne.s32.totalorder %s113, %s114
      %p126 = scmp.eq.s32.totalorder %s27, 1
      %p127 = por %p125, %p126
      %p129 = scmp.ne.s32.totalorder %s114, %s128
      %p130 = scmp.eq.s32.totalorder %s27, 0
      %p131 = por %p129, %p130
      %s133 = sadd.s32 %s132, 1
      %p136 = scmp.eq.s32.totalorder %s21, 1
      %p137 = scmp.ne.s32.totalorder %s132, %s134
      %p138 = scmp.eq.s32.totalorder %s21, 0
      %p139 = por %p137, %p138
      %p140 = scmp.ne.s32.totalorder %s132, %s134
      %p141 = scmp.eq.s32.totalorder %s26, 1
      %p142 = por %p140, %p141
      %p143 = scmp.ne.s32.totalorder %s134, %s135
      %p144 = scmp.eq.s32.totalorder %s26, 0
      %p145 = por %p143, %p144
      %p146 = scmp.ne.s32.totalorder %s134, %s135
      %p147 = scmp.eq.s32.totalorder %s27, 1
      %p148 = por %p146, %p147
      %p150 = scmp.ne.s32.totalorder %s135, %s149
      %p151 = scmp.eq.s32.totalorder %s27, 0
      %p152 = por %p150, %p151
      %s154 = sadd.s32 %s153, 1
      %p157 = scmp.eq.s32.totalorder %s21, 1
      %p158 = scmp.ne.s32.totalorder %s153, %s155
      %p159 = scmp.eq.s32.totalorder %s21, 0
      %p160 = por %p158, %p159
      %p161 = scmp.ne.s32.totalorder %s153, %s155
      %p162 = scmp.eq.s32.totalorder %s26, 1
      %p163 = por %p161, %p162
      %p164 = scmp.ne.s32.totalorder %s155, %s156
      %p165 = scmp.eq.s32.totalorder %s26, 0
      %p166 = por %p164, %p165
      %p167 = scmp.ne.s32.totalorder %s155, %s156
      %p168 = scmp.eq.s32.totalorder %s27, 1
      %p169 = por %p167, %p168
      %p171 = scmp.ne.s32.totalorder %s156, %s170
      %p172 = scmp.eq.s32.totalorder %s27, 0
      %p173 = por %p171, %p172
      %s175 = sadd.s32 %s174, 1
      %p178 = scmp.eq.s32.totalorder %s21, 1
      %p179 = scmp.ne.s32.totalorder %s174, %s176
      %p180 = scmp.eq.s32.totalorder %s21, 0
      %p181 = por %p179, %p180
      %p182 = scmp.ne.s32.totalorder %s174, %s176
      %p183 = scmp.eq.s32.totalorder %s26, 1
      %p184 = por %p182, %p183
      %p185 = scmp.ne.s32.totalorder %s176, %s177
      %p186 = scmp.eq.s32.totalorder %s26, 0
      %p187 = por %p185, %p186
      %p188 = scmp.ne.s32.totalorder %s176, %s177
      %p189 = scmp.eq.s32.totalorder %s27, 1
      %p190 = por %p188, %p189
      %p192 = scmp.ne.s32.totalorder %s177, %s191
      %p193 = scmp.eq.s32.totalorder %s27, 0
      %p194 = por %p192, %p193
      %s196 = sadd.s32 %s195, 1
      %p199 = scmp.eq.s32.totalorder %s21, 1
      %p200 = scmp.ne.s32.totalorder %s195, %s197
      %p201 = scmp.eq.s32.totalorder %s21, 0
      %p202 = por %p200, %p201
      %p203 = scmp.ne.s32.totalorder %s195, %s197
      %p204 = scmp.eq.s32.totalorder %s26, 1
      %p205 = por %p203, %p204
      %p206 = scmp.ne.s32.totalorder %s197, %s198
      %p207 = scmp.eq.s32.totalorder %s26, 0
      %p208 = por %p206, %p207
      %p209 = scmp.ne.s32.totalorder %s197, %s198
      %p210 = scmp.eq.s32.totalorder %s27, 1
      %p211 = por %p209, %p210
      %p213 = scmp.ne.s32.totalorder %s198, %s212
      %p214 = scmp.eq.s32.totalorder %s27, 0
      %p215 = por %p213, %p214
      %s217 = sadd.s32 %s216, 1
      %p220 = scmp.eq.s32.totalorder %s21, 1
      %p221 = scmp.ne.s32.totalorder %s216, %s218
      %p222 = scmp.eq.s32.totalorder %s21, 0
      %p223 = por %p221, %p222
      %p224 = scmp.ne.s32.totalorder %s216, %s218
      %p225 = scmp.eq.s32.totalorder %s26, 1
      %p226 = por %p224, %p225
      %p227 = scmp.ne.s32.totalorder %s218, %s219
      %p228 = scmp.eq.s32.totalorder %s26, 0
      %p229 = por %p227, %p228
      %p230 = scmp.ne.s32.totalorder %s218, %s219
      %p231 = scmp.eq.s32.totalorder %s27, 1
      %p232 = por %p230, %p231
      %p234 = scmp.ne.s32.totalorder %s219, %s233
      %p235 = scmp.eq.s32.totalorder %s27, 0
      %p236 = por %p234, %p235
      %s238 = sadd.s32 %s237, 1
      %p241 = scmp.eq.s32.totalorder %s21, 1
      %p242 = scmp.ne.s32.totalorder %s237, %s239
      %p243 = scmp.eq.s32.totalorder %s21, 0
      %p244 = por %p242, %p243
      %p245 = scmp.ne.s32.totalorder %s237, %s239
      %p246 = scmp.eq.s32.totalorder %s26, 1
      %p247 = por %p245, %p246
      %p248 = scmp.ne.s32.totalorder %s239, %s240
      %p249 = scmp.eq.s32.totalorder %s26, 0
      %p250 = por %p248, %p249
      %p251 = scmp.ne.s32.totalorder %s239, %s240
      %p252 = scmp.eq.s32.totalorder %s27, 1
      %p253 = por %p251, %p252
      %p255 = scmp.ne.s32.totalorder %s240, %s254
      %p256 = scmp.eq.s32.totalorder %s27, 0
      %p257 = por %p255, %p256
      %s259 = sadd.s32 %s258, 1
      %p262 = scmp.eq.s32.totalorder %s21, 1
      %p263 = scmp.ne.s32.totalorder %s258, %s260
      %p264 = scmp.eq.s32.totalorder %s21, 0
      %p265 = por %p263, %p264
      %p266 = scmp.ne.s32.totalorder %s258, %s260
      %p267 = scmp.eq.s32.totalorder %s26, 1
      %p268 = por %p266, %p267
      %p269 = scmp.ne.s32.totalorder %s260, %s261
      %p270 = scmp.eq.s32.totalorder %s26, 0
      %p271 = por %p269, %p270
      %p272 = scmp.ne.s32.totalorder %s260, %s261
      %p273 = scmp.eq.s32.totalorder %s27, 1
      %p274 = por %p272, %p273
      %p276 = scmp.ne.s32.totalorder %s261, %s275
      %p277 = scmp.eq.s32.totalorder %s27, 0
      %p278 = por %p276, %p277
      %s279 = ssub.s32 %s28, %s40
      %s280 = ssub.s32 %s29, %s36
      %s281 = sor.u32 %s279, %s280
      %p282 = scmp.eq.s32.totalorder %s281, 0
      %s284 = sadd.s32 %s283, 1
      %s285 = scalar_select %p282, %s283, %s284
      %p288 = pneg %p282
      %p289 = scmp.eq.s32.totalorder %s21, 1
      %p290 = por %p288, %p289
      %p291 = scmp.ne.s32.totalorder %s283, %s286
      %p292 = scmp.eq.s32.totalorder %s21, 0
      %p293 = por %p291, %p292
      %p294 = scmp.ne.s32.totalorder %s283, %s286
      %p295 = scmp.eq.s32.totalorder %s26, 1
      %p296 = por %p294, %p295
      %p297 = scmp.ne.s32.totalorder %s286, %s287
      %p298 = scmp.eq.s32.totalorder %s26, 0
      %p299 = por %p297, %p298
      %p300 = scmp.ne.s32.totalorder %s286, %s287
      %p301 = scmp.eq.s32.totalorder %s27, 1
      %p302 = por %p300, %p301
      %p304 = scmp.ne.s32.totalorder %s287, %s303
      %p305 = scmp.eq.s32.totalorder %s27, 0
      %p306 = por %p304, %p305
      %p307 = scmp.le.s32.totalorder 1, %s21
      %p308 = scmp.lt.s32.totalorder %s21, 3
      %p309 = pnand %p307, %p308
      %p310 = pneg %p309
      // Predicated region
      $region9: #{tpu_custom_call.1} parent=5 // pred_check
        _
      $region10: #{tpu_custom_call.1} parent=5 // pred_check_branch
        %312 = sbr.rel (%p309) target = $region12
      $region11: #{tpu_custom_call.1} parent=5 // pred_region
        %s313 = ssub.s32 %s21, 1
        // Predicated region
        $region13: #{tpu_custom_call.1} parent=11 // pred_check
          %p314 = pneg %p82
        $region14: #{tpu_custom_call.1} parent=11 // pred_check_branch
          %316 = sbr.rel (%p314) target = $region16
        $region15: #{tpu_custom_call.1} parent=11 // pred_region
          _
        $region16: #{tpu_custom_call.1} parent=11 // pred_fallthru
          _
        // Predicated region
        $region17: #{tpu_custom_call.1} parent=11 // pred_check
          %p317 = pneg %p103
        $region18: #{tpu_custom_call.1} parent=11 // pred_check_branch
          %319 = sbr.rel (%p317) target = $region20
        $region19: #{tpu_custom_call.1} parent=11 // pred_region
          _
        $region20: #{tpu_custom_call.1} parent=11 // pred_fallthru
          _
        // Predicated region
        $region21: #{tpu_custom_call.1} parent=11 // pred_check
          %p320 = pneg %p124
        $region22: #{tpu_custom_call.1} parent=11 // pred_check_branch
          %322 = sbr.rel (%p320) target = $region24
        $region23: #{tpu_custom_call.1} parent=11 // pred_region
          _
        $region24: #{tpu_custom_call.1} parent=11 // pred_fallthru
          _
        // Predicated region
        $region25: #{tpu_custom_call.1} parent=11 // pred_check
          %p323 = pneg %p145
        $region26: #{tpu_custom_call.1} parent=11 // pred_check_branch
          %325 = sbr.rel (%p323) target = $region28
        $region27: #{tpu_custom_call.1} parent=11 // pred_region
          _
        $region28: #{tpu_custom_call.1} parent=11 // pred_fallthru
          _
        // Predicated region
        $region29: #{tpu_custom_call.1} parent=11 // pred_check
          %p326 = pneg %p166
        $region30: #{tpu_custom_call.1} parent=11 // pred_check_branch
          %328 = sbr.rel (%p326) target = $region32
        $region31: #{tpu_custom_call.1} parent=11 // pred_region
          _
        $region32: #{tpu_custom_call.1} parent=11 // pred_fallthru
          _
        // Predicated region
        $region33: #{tpu_custom_call.1} parent=11 // pred_check
          %p329 = pneg %p187
        $region34: #{tpu_custom_call.1} parent=11 // pred_check_branch
          %331 = sbr.rel (%p329) target = $region36
        $region35: #{tpu_custom_call.1} parent=11 // pred_region
          %s333 = ssub.s32 256, 256
          %334 = vsyncadd [#allocation6], %s333
          %s335 = sshll.u32 [#allocation5], 4
          %s336 = int_to_ptr.vmem [resolvable:$true] %s335
          %341 = dma.hbm_to_vmem [thread:$0]  %s6, 256, %s336, [#allocation6], 128, 128, 8
        $region36: #{tpu_custom_call.1} parent=11 // pred_fallthru
          _
        // Predicated region
        $region37: #{tpu_custom_call.1} parent=11 // pred_check
          %p342 = pneg %p208
        $region38: #{tpu_custom_call.1} parent=11 // pred_check_branch
          %344 = sbr.rel (%p342) target = $region40
        $region39: #{tpu_custom_call.1} parent=11 // pred_region
          _
        $region40: #{tpu_custom_call.1} parent=11 // pred_fallthru
          _
        // Predicated region
        $region41: #{tpu_custom_call.1} parent=11 // pred_check
          %p345 = pneg %p229
        $region42: #{tpu_custom_call.1} parent=11 // pred_check_branch
          %347 = sbr.rel (%p345) target = $region44
        $region43: #{tpu_custom_call.1} parent=11 // pred_region
          _
        $region44: #{tpu_custom_call.1} parent=11 // pred_fallthru
          _
        // Predicated region
        $region45: #{tpu_custom_call.1} parent=11 // pred_check
          %p348 = pneg %p250
        $region46: #{tpu_custom_call.1} parent=11 // pred_check_branch
          %350 = sbr.rel (%p348) target = $region48
        $region47: #{tpu_custom_call.1} parent=11 // pred_region
          _
        $region48: #{tpu_custom_call.1} parent=11 // pred_fallthru
          _
        // Predicated region
        $region49: #{tpu_custom_call.1} parent=11 // pred_check
          %p351 = pneg %p271
        $region50: #{tpu_custom_call.1} parent=11 // pred_check_branch
          %353 = sbr.rel (%p351) target = $region52
        $region51: #{tpu_custom_call.1} parent=11 // pred_region
          _
        $region52: #{tpu_custom_call.1} parent=11 // pred_fallthru
          _
      $region12: #{tpu_custom_call.1} parent=5 // pred_fallthru
        _
      %p354 = scmp.lt.s32.totalorder %s21, 2
      // Predicated region
      $region53: #{tpu_custom_call.1} parent=5 // pred_check
        %p355 = pneg %p354
      $region54: #{tpu_custom_call.1} parent=5 // pred_check_branch
        %357 = sbr.rel (%p355) target = $region56
      $region55: #{tpu_custom_call.1} parent=5 // pred_region
        // Predicated region
        $region57: #{tpu_custom_call.1} parent=55 // pred_check
          %p358 = pneg %p55
        $region58: #{tpu_custom_call.1} parent=55 // pred_check_branch
          %360 = sbr.rel (%p358) target = $region60
        $region59: #{tpu_custom_call.1} parent=55 // pred_region
          %s361 = smul.u32 2, %s29
          %p362 = scmp.lt.s32.totalorder %s28, 1
          %s363 = scalar_select %p362, %s28, 1
          %p364 = scmp.lt.s32.totalorder %s361, 1
          %s365 = scalar_select %p364, %s361, 1
          %s366 = smul.addr %s363, 2
          %s367 = sadd.s32 %s365, %s366
          %s368 = smul.addr %s367, 8
          %s369 = scalar_lea.vmem %s0, %s368
          %s370 = smul.u32 2, %s29
        $region60: #{tpu_custom_call.1} parent=55 // pred_fallthru
          _
      $region56: #{tpu_custom_call.1} parent=5 // pred_fallthru
        _
      %p371 = scmp.le.s32.totalorder 1, %s21
      %p372 = scmp.lt.s32.totalorder %s21, 3
      %p373 = pnand %p371, %p372
      %p374 = pneg %p373
      // Predicated region
      $region61: #{tpu_custom_call.1} parent=5 // pred_check
        _
      $region62: #{tpu_custom_call.1} parent=5 // pred_check_branch
        %376 = sbr.rel (%p373) target = $region64
      $region63: #{tpu_custom_call.1} parent=5 // pred_region
        %s377 = ssub.s32 %s21, 1
        // Predicated region
        $region65: #{tpu_custom_call.1} parent=63 // pred_check
          %p378 = pneg %p187
        $region66: #{tpu_custom_call.1} parent=63 // pred_check_branch
          %380 = sbr.rel (%p378) target = $region68
        $region67: #{tpu_custom_call.1} parent=63 // pred_region
          %381 = dma.done [#allocation6], 256
        $region68: #{tpu_custom_call.1} parent=63 // pred_fallthru
          _
        %s382 = smul.u32 2, %s31
        %p383 = scmp.lt.s32.totalorder %s30, 1
        %s384 = scalar_select %p383, %s30, 1
        %p385 = scmp.lt.s32.totalorder %s382, 1
        %s386 = scalar_select %p385, %s382, 1
        %s387 = smul.addr %s384, 2
        %s388 = sadd.s32 %s386, %s387
        %s389 = smul.addr %s388, 8
        %s390 = scalar_lea.vmem %s0, %s389
        %p391 = pneg %p61
        %p392 = pneg %p58
        %p393 = pneg %p82
        %p394 = pneg %p79
        %p395 = pneg %p103
        %p396 = pneg %p100
        %p397 = pneg %p124
        %p398 = pneg %p121
        %p399 = pneg %p145
        %p400 = pneg %p142
        %p401 = pneg %p166
        %p402 = pneg %p163
        %p403 = pneg %p187
        %p404 = pneg %p184
        %p405 = pneg %p208
        %p406 = pneg %p205
        %p407 = pneg %p229
        %p408 = pneg %p226
        %p409 = pneg %p250
        %p410 = pneg %p247
        %p411 = pneg %p271
        %p412 = pneg %p268
        %p413 = pneg %p299
        %p414 = pneg %p296
        %s415 = sand.u32 %s286, 1
        %s416 = scalar_lea.sflag [#allocation7], %s415
        %s417 = sand.u32 %s286, 1
        %s418 = smul.addr %s417, 16
        %s419 = scalar_lea.vmem [#allocation8], %s418
        %s420 = smul.u32 2, %s31
        %p421 = scmp.lt.s32.totalorder %s30, 1
        %s422 = scalar_select %p421, %s30, 1
        %p423 = scmp.lt.s32.totalorder %s420, 1
        %s424 = scalar_select %p423, %s420, 1
        %s425 = smul.addr %s422, 2
        %s426 = sadd.s32 %s424, %s425
        %s427 = smul.addr %s426, 8
        %s428 = scalar_lea.vmem %s0, %s427
        %s429 = smul.u32 2, %s31
        %s430 = smul.u32 2, %s31
        %v432 = vld [vmem:[%s428] sm:$0xff]
        %v433 = vld [vmem:[%s428 + $0x8] sm:$0xff]
        %v434 = vpack.c.bf16 %v433, %v432
        %v435 = vld [vmem:[%s1] sm:$0xf]
        %v436 = vld [vmem:[%s1 + $0x4] sm:$0xf]
        %v437 = vld [vmem:[%s1 + $0x8] sm:$0xf]
        %v438 = vld [vmem:[%s1 + $0xc] sm:$0xf]
        %v439 = vld [vmem:[%s2] sm:$0x1]
        %v441 = vlaneseq
        %v442 = vshrl.u32 %v441, 7
        %v443 = vsub.s32 0, %v442
        %v444 = vrot.slane %v439, %v443
        %v450 = vunpack.c.l.b16 %v435
        %v451 = vunpack.c.l.b16 %v436
        %v452 = vunpack.c.l.b16 %v437
        %v453 = vunpack.c.l.b16 %v438
        %v454 = vpack.c.b16 %v451, %v450
        %v455 = vpack.c.b16 %v453, %v452
        %vm458 = vcmask 261120
        %v460 = vsel %vm458, %v434, 0
        %462 = vmatprep.subr.bf16.mxu0 0
        %463 = vmatpush1.bf16.msra.mxu0 %v454
        %464 = vmatprep.subr.bf16.mxu0 0
        %465 = vmatpush1.bf16.msra.mxu0 %v455
        %466 = vmatprep.subr.bf16.mxu0 0
        %467 = vmatpush1.bf16.msra.mxu0 0
        %468 = vmatprep.subr.bf16.mxu0 0
        %469 = vmatpush1.bf16.msra.mxu0 0
        %470 = vmatprep.subr.bf16.mxu0 0
        %471 = vmatpush1.bf16.msra.mxu0 0
        %472 = vmatprep.subr.bf16.mxu0 0
        %473 = vmatpush1.bf16.msra.mxu0 0
        %474 = vmatprep.subr.bf16.mxu0 0
        %475 = vmatpush1.bf16.msra.mxu0 0
        %476 = vmatprep.subr.bf16.mxu0 0
        %477 = vmatpush1.bf16.msra.mxu0 0
        %478 = vmatprep.subr.bf16.mxu0 0
        %479 = vmatpush1.bf16.msra.mxu0 0
        %480 = vmatprep.subr.bf16.mxu0 0
        %481 = vmatpush1.bf16.msra.mxu0 0
        %482 = vmatprep.subr.bf16.mxu0 0
        %483 = vmatpush1.bf16.msra.mxu0 0
        %484 = vmatprep.subr.bf16.mxu0 0
        %485 = vmatpush1.bf16.msra.mxu0 0
        %486 = vmatprep.subr.bf16.mxu0 0
        %487 = vmatpush1.bf16.msra.mxu0 0
        %488 = vmatprep.subr.bf16.mxu0 0
        %489 = vmatpush1.bf16.msra.mxu0 0
        %490 = vmatprep.subr.bf16.mxu0 0
        %491 = vmatpush1.bf16.msra.mxu0 0
        %492 = vmatprep.subr.bf16.mxu0 0
        %493 = vmatpush1.bf16.msra.mxu0 0
        %494 = vmatprep.mubr.bf16.mxu0 0
        %495 = vmatmul.mubr.bf16.gmra.mrb[0].mxu0 %v460
        %v496 = vpop.f32.mrb[0].mxu0
        %v497 = vadd.f32 %v444, %v496
        %v498 = vpop.f32.mrb[0].mxu0
        %v499 = vpop.f32.mrb[0].mxu0
        %v500 = vadd.f32 %v444, %v499
        %v501 = vpop.f32.mrb[0].mxu0
        %502 = vdwg.mxu0
        %503 = vst [vmem:[#allocation2] sm:$0xff] %v497
        %504 = vst [vmem:[#allocation2 + $0x8] sm:$0xff] %v500
        %v505 = vld [vmem:[%s3] sm:$0xf]
        %v506 = vld [vmem:[%s3 + $0x4] sm:$0xf]
        %v507 = vld [vmem:[%s3 + $0x8] sm:$0xf]
        %v508 = vld [vmem:[%s3 + $0xc] sm:$0xf]
        %v509 = vld [vmem:[%s4] sm:$0x1]
        %v511 = vlaneseq
        %v512 = vshrl.u32 %v511, 7
        %v513 = vsub.s32 0, %v512
        %v514 = vrot.slane %v509, %v513
        %v520 = vunpack.c.l.b16 %v505
        %v521 = vunpack.c.l.b16 %v506
        %v522 = vunpack.c.l.b16 %v507
        %v523 = vunpack.c.l.b16 %v508
        %v524 = vpack.c.b16 %v521, %v520
        %v525 = vpack.c.b16 %v523, %v522
        %528 = vmatprep.subr.bf16.mxu0 0
        %529 = vmatpush1.bf16.msra.mxu0 %v524
        %530 = vmatprep.subr.bf16.mxu0 0
        %531 = vmatpush1.bf16.msra.mxu0 %v525
        %532 = vmatprep.subr.bf16.mxu0 0
        %533 = vmatpush1.bf16.msra.mxu0 0
        %534 = vmatprep.subr.bf16.mxu0 0
        %535 = vmatpush1.bf16.msra.mxu0 0
        %536 = vmatprep.subr.bf16.mxu0 0
        %537 = vmatpush1.bf16.msra.mxu0 0
        %538 = vmatprep.subr.bf16.mxu0 0
        %539 = vmatpush1.bf16.msra.mxu0 0
        %540 = vmatprep.subr.bf16.mxu0 0
        %541 = vmatpush1.bf16.msra.mxu0 0
        %542 = vmatprep.subr.bf16.mxu0 0
        %543 = vmatpush1.bf16.msra.mxu0 0
        %544 = vmatprep.subr.bf16.mxu0 0
        %545 = vmatpush1.bf16.msra.mxu0 0
        %546 = vmatprep.subr.bf16.mxu0 0
        %547 = vmatpush1.bf16.msra.mxu0 0
        %548 = vmatprep.subr.bf16.mxu0 0
        %549 = vmatpush1.bf16.msra.mxu0 0
        %550 = vmatprep.subr.bf16.mxu0 0
        %551 = vmatpush1.bf16.msra.mxu0 0
        %552 = vmatprep.subr.bf16.mxu0 0
        %553 = vmatpush1.bf16.msra.mxu0 0
        %554 = vmatprep.subr.bf16.mxu0 0
        %555 = vmatpush1.bf16.msra.mxu0 0
        %556 = vmatprep.subr.bf16.mxu0 0
        %557 = vmatpush1.bf16.msra.mxu0 0
        %558 = vmatprep.subr.bf16.mxu0 0
        %559 = vmatpush1.bf16.msra.mxu0 0
        %560 = vmatprep.mubr.bf16.mxu0 0
        %561 = vmatmul.mubr.bf16.gmra.mrb[0].mxu0 %v460
        %v562 = vpop.f32.mrb[0].mxu0
        %v563 = vadd.f32 %v514, %v562
        %v564 = vpop.f32.mrb[0].mxu0
        %v565 = vpop.f32.mrb[0].mxu0
        %v566 = vadd.f32 %v514, %v565
        %v567 = vpop.f32.mrb[0].mxu0
        %568 = vdwg.mxu0
        %v569 = vxor.u32 %v563, 2147483648
        %v570 = vxor.u32 %v566, 2147483648
        %v571 = vmul.f32 %v569, 1.442695
        %v572 = vpow.pop %v571
        %v573 = vmul.f32 %v570, 1.442695
        %v574 = vpow.pop %v573
        %v575 = vadd.f32 %v572, 1.0
        %v576 = vadd.f32 %v574, 1.0
        %v577 = vrcp.pop %v575
        %v578 = vmul.f32 1.0, %v577
        %v579 = vrcp.pop %v576
        %v580 = vmul.f32 1.0, %v579
        %v581 = vpack.c.bf16 %v580, %v578
        %582 = vst [vmem:[#allocation3] sm:$0xff] %v581
        %p583 = scmp.eq.s32.totalorder %s31, 0
        // Predicated region
        $region69: #{tpu_custom_call.1} parent=63 // pred_check
          %p584 = pneg %p583
        $region70: #{tpu_custom_call.1} parent=63 // pred_check_branch
          %586 = sbr.rel (%p584) target = $region72
        $region71: #{tpu_custom_call.1} parent=63 // pred_region
          %587 = vst [vmem:[#allocation4] sm:$0xff] 0.0
          %588 = vst [vmem:[#allocation4 + $0x8] sm:$0xff] 0.0
        $region72: #{tpu_custom_call.1} parent=63 // pred_fallthru
          _
        %v589 = vld [vmem:[%s5] sm:$0xff]
        %v590 = vld [vmem:[%s5 + $0x8] sm:$0xff]
        %v591 = vld [vmem:[#allocation5] sm:$0xff]
        %v592 = vld [vmem:[#allocation5 + $0x8] sm:$0xff]
        %v593 = vld [vmem:[#allocation4] sm:$0xff]
        %v594 = vld [vmem:[#allocation4 + $0x8] sm:$0xff]
        %v595 = vld [vmem:[#allocation2] sm:$0xff]
        %v596 = vld [vmem:[#allocation2 + $0x8] sm:$0xff]
        %v597 = vld [vmem:[#allocation3] sm:$0xff]
        %v598 = vlaneseq
        %v599 = vshrl.u32 %v598, 7
        %v600 = vadd.s32 %v599, 8
        %v601 = vmul.f32 %v589, %v593
        %v602 = vmul.f32 %v590, %v594
        %v603 = vlaneseq
        %v604 = vshrl.u32 %v603, 7
        %v605 = vsub.s32 0, %v604
        %v606 = vrot.slane %v595, %v605
        %v607 = vmul.f32 %v591, %v606
        %v608 = vmul.f32 %v592, %v606
        %v609 = vadd.f32 %v601, %v607
        %v610 = vadd.f32 %v602, %v608
        %v611 = vadd.f32 %v609, %v610
        %v612 = vrot.slane %v611, 4
        %v613 = vadd.f32 %v611, %v612
        %v614 = vrot.slane %v613, 2
        %v615 = vadd.f32 %v613, %v614
        %v616 = vrot.slane %v615, 1
        %v617 = vadd.f32 %v615, %v616
        %vm618 = vcmp.eq.s32.totalorder %v599, 0
        %vm619 = vcmp.eq.s32.totalorder %v600, 0
        %v620 = vsel %vm618, 1, 0
        %v621 = vsel %vm619, 1, 0
        %vm622 = vcmp.eq.s32.totalorder %v620, 1
        %vm623 = vcmp.eq.s32.totalorder %v621, 1
        %v624 = vsel %vm622, %v617, 0.0
        %v625 = vsel %vm623, %v617, 0.0
        %v626 = vmul.f32 %v589, %v609
        %v627 = vmul.f32 %v590, %v610
        %v628 = vlaneseq
        %v629 = vshrl.u32 %v628, 7
        %v630 = vsub.s32 1, %v629
        %v631 = vrot.slane %v595, %v630
        %v632 = vmul.f32 %v591, %v631
        %v633 = vmul.f32 %v592, %v631
        %v634 = vadd.f32 %v626, %v632
        %v635 = vadd.f32 %v627, %v633
        %v636 = vadd.f32 %v634, %v635
        %v637 = vrot.slane %v636, 4
        %v638 = vadd.f32 %v636, %v637
        %v639 = vrot.slane %v638, 2
        %v640 = vadd.f32 %v638, %v639
        %v641 = vrot.slane %v640, 1
        %v642 = vadd.f32 %v640, %v641
        %vm643 = vcmp.eq.s32.totalorder %v599, 1
        %vm644 = vcmp.eq.s32.totalorder %v600, 1
        %v645 = vsel %vm643, 1, 0
        %v646 = vsel %vm644, 1, 0
        %vm647 = vcmp.eq.s32.totalorder %v645, 1
        %vm648 = vcmp.eq.s32.totalorder %v646, 1
        %v649 = vsel %vm647, %v642, %v624
        %v650 = vsel %vm648, %v642, %v625
        %v651 = vmul.f32 %v589, %v634
        %v652 = vmul.f32 %v590, %v635
        %v653 = vlaneseq
        %v654 = vshrl.u32 %v653, 7
        %v655 = vsub.s32 2, %v654
        %v656 = vrot.slane %v595, %v655
        %v657 = vmul.f32 %v591, %v656
        %v658 = vmul.f32 %v592, %v656
        %v659 = vadd.f32 %v651, %v657
        %v660 = vadd.f32 %v652, %v658
        %v661 = vadd.f32 %v659, %v660
        %v662 = vrot.slane %v661, 4
        %v663 = vadd.f32 %v661, %v662
        %v664 = vrot.slane %v663, 2
        %v665 = vadd.f32 %v663, %v664
        %v666 = vrot.slane %v665, 1
        %v667 = vadd.f32 %v665, %v666
        %vm668 = vcmp.eq.s32.totalorder %v599, 2
        %vm669 = vcmp.eq.s32.totalorder %v600, 2
        %v670 = vsel %vm668, 1, 0
        %v671 = vsel %vm669, 1, 0
        %vm672 = vcmp.eq.s32.totalorder %v670, 1
        %vm673 = vcmp.eq.s32.totalorder %v671, 1
        %v674 = vsel %vm672, %v667, %v649
        %v675 = vsel %vm673, %v667, %v650
        %v676 = vmul.f32 %v589, %v659
        %v677 = vmul.f32 %v590, %v660
        %v678 = vlaneseq
        %v679 = vshrl.u32 %v678, 7
        %v680 = vsub.s32 3, %v679
        %v681 = vrot.slane %v595, %v680
        %v682 = vmul.f32 %v591, %v681
        %v683 = vmul.f32 %v592, %v681
        %v684 = vadd.f32 %v676, %v682
        %v685 = vadd.f32 %v677, %v683
        %v686 = vadd.f32 %v684, %v685
        %v687 = vrot.slane %v686, 4
        %v688 = vadd.f32 %v686, %v687
        %v689 = vrot.slane %v688, 2
        %v690 = vadd.f32 %v688, %v689
        %v691 = vrot.slane %v690, 1
        %v692 = vadd.f32 %v690, %v691
        %vm693 = vcmp.eq.s32.totalorder %v599, 3
        %vm694 = vcmp.eq.s32.totalorder %v600, 3
        %v695 = vsel %vm693, 1, 0
        %v696 = vsel %vm694, 1, 0
        %vm697 = vcmp.eq.s32.totalorder %v695, 1
        %vm698 = vcmp.eq.s32.totalorder %v696, 1
        %v699 = vsel %vm697, %v692, %v674
        %v700 = vsel %vm698, %v692, %v675
        %v701 = vmul.f32 %v589, %v684
        %v702 = vmul.f32 %v590, %v685
        %v703 = vlaneseq
        %v704 = vshrl.u32 %v703, 7
        %v705 = vsub.s32 4, %v704
        %v706 = vrot.slane %v595, %v705
        %v707 = vmul.f32 %v591, %v706
        %v708 = vmul.f32 %v592, %v706
        %v709 = vadd.f32 %v701, %v707
        %v710 = vadd.f32 %v702, %v708
        %v711 = vadd.f32 %v709, %v710
        %v712 = vrot.slane %v711, 4
        %v713 = vadd.f32 %v711, %v712
        %v714 = vrot.slane %v713, 2
        %v715 = vadd.f32 %v713, %v714
        %v716 = vrot.slane %v715, 1
        %v717 = vadd.f32 %v715, %v716
        %vm718 = vcmp.eq.s32.totalorder %v599, 4
        %vm719 = vcmp.eq.s32.totalorder %v600, 4
        %v720 = vsel %vm718, 1, 0
        %v721 = vsel %vm719, 1, 0
        %vm722 = vcmp.eq.s32.totalorder %v720, 1
        %vm723 = vcmp.eq.s32.totalorder %v721, 1
        %v724 = vsel %vm722, %v717, %v699
        %v725 = vsel %vm723, %v717, %v700
        %v726 = vmul.f32 %v589, %v709
        %v727 = vmul.f32 %v590, %v710
        %v728 = vlaneseq
        %v729 = vshrl.u32 %v728, 7
        %v730 = vsub.s32 5, %v729
        %v731 = vrot.slane %v595, %v730
        %v732 = vmul.f32 %v591, %v731
        %v733 = vmul.f32 %v592, %v731
        %v734 = vadd.f32 %v726, %v732
        %v735 = vadd.f32 %v727, %v733
        %v736 = vadd.f32 %v734, %v735
        %v737 = vrot.slane %v736, 4
        %v738 = vadd.f32 %v736, %v737
        %v739 = vrot.slane %v738, 2
        %v740 = vadd.f32 %v738, %v739
        %v741 = vrot.slane %v740, 1
        %v742 = vadd.f32 %v740, %v741
        %vm743 = vcmp.eq.s32.totalorder %v599, 5
        %vm744 = vcmp.eq.s32.totalorder %v600, 5
        %v745 = vsel %vm743, 1, 0
        %v746 = vsel %vm744, 1, 0
        %vm747 = vcmp.eq.s32.totalorder %v745, 1
        %vm748 = vcmp.eq.s32.totalorder %v746, 1
        %v749 = vsel %vm747, %v742, %v724
        %v750 = vsel %vm748, %v742, %v725
        %v751 = vmul.f32 %v589, %v734
        %v752 = vmul.f32 %v590, %v735
        %v753 = vlaneseq
        %v754 = vshrl.u32 %v753, 7
        %v755 = vsub.s32 6, %v754
        %v756 = vrot.slane %v595, %v755
        %v757 = vmul.f32 %v591, %v756
        %v758 = vmul.f32 %v592, %v756
        %v759 = vadd.f32 %v751, %v757
        %v760 = vadd.f32 %v752, %v758
        %v761 = vadd.f32 %v759, %v760
        %v762 = vrot.slane %v761, 4
        %v763 = vadd.f32 %v761, %v762
        %v764 = vrot.slane %v763, 2
        %v765 = vadd.f32 %v763, %v764
        %v766 = vrot.slane %v765, 1
        %v767 = vadd.f32 %v765, %v766
        %vm768 = vcmp.eq.s32.totalorder %v599, 6
        %vm769 = vcmp.eq.s32.totalorder %v600, 6
        %v770 = vsel %vm768, 1, 0
        %v771 = vsel %vm769, 1, 0
        %vm772 = vcmp.eq.s32.totalorder %v770, 1
        %vm773 = vcmp.eq.s32.totalorder %v771, 1
        %v774 = vsel %vm772, %v767, %v749
        %v775 = vsel %vm773, %v767, %v750
        %v776 = vmul.f32 %v589, %v759
        %v777 = vmul.f32 %v590, %v760
        %v778 = vlaneseq
        %v779 = vshrl.u32 %v778, 7
        %v780 = vsub.s32 7, %v779
        %v781 = vrot.slane %v595, %v780
        %v782 = vmul.f32 %v591, %v781
        %v783 = vmul.f32 %v592, %v781
        %v784 = vadd.f32 %v776, %v782
        %v785 = vadd.f32 %v777, %v783
        %v786 = vadd.f32 %v784, %v785
        %v787 = vrot.slane %v786, 4
        %v788 = vadd.f32 %v786, %v787
        %v789 = vrot.slane %v788, 2
        %v790 = vadd.f32 %v788, %v789
        %v791 = vrot.slane %v790, 1
        %v792 = vadd.f32 %v790, %v791
        %vm793 = vcmp.eq.s32.totalorder %v599, 7
        %vm794 = vcmp.eq.s32.totalorder %v600, 7
        %v795 = vsel %vm793, 1, 0
        %v796 = vsel %vm794, 1, 0
        %vm797 = vcmp.eq.s32.totalorder %v795, 1
        %vm798 = vcmp.eq.s32.totalorder %v796, 1
        %v799 = vsel %vm797, %v792, %v774
        %v800 = vsel %vm798, %v792, %v775
        %v801 = vmul.f32 %v589, %v784
        %v802 = vmul.f32 %v590, %v785
        %v803 = vlaneseq
        %v804 = vshrl.u32 %v803, 7
        %v805 = vsub.s32 0, %v804
        %v806 = vrot.slane %v596, %v805
        %v807 = vmul.f32 %v591, %v806
        %v808 = vmul.f32 %v592, %v806
        %v809 = vadd.f32 %v801, %v807
        %v810 = vadd.f32 %v802, %v808
        %v811 = vadd.f32 %v809, %v810
        %v812 = vrot.slane %v811, 4
        %v813 = vadd.f32 %v811, %v812
        %v814 = vrot.slane %v813, 2
        %v815 = vadd.f32 %v813, %v814
        %v816 = vrot.slane %v815, 1
        %v817 = vadd.f32 %v815, %v816
        %vm818 = vcmp.eq.s32.totalorder %v599, 8
        %vm819 = vcmp.eq.s32.totalorder %v600, 8
        %v820 = vsel %vm818, 1, 0
        %v821 = vsel %vm819, 1, 0
        %vm822 = vcmp.eq.s32.totalorder %v820, 1
        %vm823 = vcmp.eq.s32.totalorder %v821, 1
        %v824 = vsel %vm822, %v817, %v799
        %v825 = vsel %vm823, %v817, %v800
        %v826 = vmul.f32 %v589, %v809
        %v827 = vmul.f32 %v590, %v810
        %v828 = vlaneseq
        %v829 = vshrl.u32 %v828, 7
        %v830 = vsub.s32 1, %v829
        %v831 = vrot.slane %v596, %v830
        %v832 = vmul.f32 %v591, %v831
        %v833 = vmul.f32 %v592, %v831
        %v834 = vadd.f32 %v826, %v832
        %v835 = vadd.f32 %v827, %v833
        %v836 = vadd.f32 %v834, %v835
        %v837 = vrot.slane %v836, 4
        %v838 = vadd.f32 %v836, %v837
        %v839 = vrot.slane %v838, 2
        %v840 = vadd.f32 %v838, %v839
        %v841 = vrot.slane %v840, 1
        %v842 = vadd.f32 %v840, %v841
        %vm843 = vcmp.eq.s32.totalorder %v599, 9
        %vm844 = vcmp.eq.s32.totalorder %v600, 9
        %v845 = vsel %vm843, 1, 0
        %v846 = vsel %vm844, 1, 0
        %vm847 = vcmp.eq.s32.totalorder %v845, 1
        %vm848 = vcmp.eq.s32.totalorder %v846, 1
        %v849 = vsel %vm847, %v842, %v824
        %v850 = vsel %vm848, %v842, %v825
        %v851 = vmul.f32 %v589, %v834
        %v852 = vmul.f32 %v590, %v835
        %v853 = vlaneseq
        %v854 = vshrl.u32 %v853, 7
        %v855 = vsub.s32 2, %v854
        %v856 = vrot.slane %v596, %v855
        %v857 = vmul.f32 %v591, %v856
        %v858 = vmul.f32 %v592, %v856
        %v859 = vadd.f32 %v851, %v857
        %v860 = vadd.f32 %v852, %v858
        %v861 = vadd.f32 %v859, %v860
        %v862 = vrot.slane %v861, 4
        %v863 = vadd.f32 %v861, %v862
        %v864 = vrot.slane %v863, 2
        %v865 = vadd.f32 %v863, %v864
        %v866 = vrot.slane %v865, 1
        %v867 = vadd.f32 %v865, %v866
        %vm868 = vcmp.eq.s32.totalorder %v599, 10
        %vm869 = vcmp.eq.s32.totalorder %v600, 10
        %v870 = vsel %vm868, 1, 0
        %v871 = vsel %vm869, 1, 0
        %vm872 = vcmp.eq.s32.totalorder %v870, 1
        %vm873 = vcmp.eq.s32.totalorder %v871, 1
        %v874 = vsel %vm872, %v867, %v849
        %v875 = vsel %vm873, %v867, %v850
        %v876 = vmul.f32 %v589, %v859
        %v877 = vmul.f32 %v590, %v860
        %v878 = vlaneseq
        %v879 = vshrl.u32 %v878, 7
        %v880 = vsub.s32 3, %v879
        %v881 = vrot.slane %v596, %v880
        %v882 = vmul.f32 %v591, %v881
        %v883 = vmul.f32 %v592, %v881
        %v884 = vadd.f32 %v876, %v882
        %v885 = vadd.f32 %v877, %v883
        %v886 = vadd.f32 %v884, %v885
        %v887 = vrot.slane %v886, 4
        %v888 = vadd.f32 %v886, %v887
        %v889 = vrot.slane %v888, 2
        %v890 = vadd.f32 %v888, %v889
        %v891 = vrot.slane %v890, 1
        %v892 = vadd.f32 %v890, %v891
        %vm893 = vcmp.eq.s32.totalorder %v599, 11
        %vm894 = vcmp.eq.s32.totalorder %v600, 11
        %v895 = vsel %vm893, 1, 0
        %v896 = vsel %vm894, 1, 0
        %vm897 = vcmp.eq.s32.totalorder %v895, 1
        %vm898 = vcmp.eq.s32.totalorder %v896, 1
        %v899 = vsel %vm897, %v892, %v874
        %v900 = vsel %vm898, %v892, %v875
        %v901 = vmul.f32 %v589, %v884
        %v902 = vmul.f32 %v590, %v885
        %v903 = vlaneseq
        %v904 = vshrl.u32 %v903, 7
        %v905 = vsub.s32 4, %v904
        %v906 = vrot.slane %v596, %v905
        %v907 = vmul.f32 %v591, %v906
        %v908 = vmul.f32 %v592, %v906
        %v909 = vadd.f32 %v901, %v907
        %v910 = vadd.f32 %v902, %v908
        %v911 = vadd.f32 %v909, %v910
        %v912 = vrot.slane %v911, 4
        %v913 = vadd.f32 %v911, %v912
        %v914 = vrot.slane %v913, 2
        %v915 = vadd.f32 %v913, %v914
        %v916 = vrot.slane %v915, 1
        %v917 = vadd.f32 %v915, %v916
        %vm918 = vcmp.eq.s32.totalorder %v599, 12
        %vm919 = vcmp.eq.s32.totalorder %v600, 12
        %v920 = vsel %vm918, 1, 0
        %v921 = vsel %vm919, 1, 0
        %vm922 = vcmp.eq.s32.totalorder %v920, 1
        %vm923 = vcmp.eq.s32.totalorder %v921, 1
        %v924 = vsel %vm922, %v917, %v899
        %v925 = vsel %vm923, %v917, %v900
        %v926 = vmul.f32 %v589, %v909
        %v927 = vmul.f32 %v590, %v910
        %v928 = vlaneseq
        %v929 = vshrl.u32 %v928, 7
        %v930 = vsub.s32 5, %v929
        %v931 = vrot.slane %v596, %v930
        %v932 = vmul.f32 %v591, %v931
        %v933 = vmul.f32 %v592, %v931
        %v934 = vadd.f32 %v926, %v932
        %v935 = vadd.f32 %v927, %v933
        %v936 = vadd.f32 %v934, %v935
        %v937 = vrot.slane %v936, 4
        %v938 = vadd.f32 %v936, %v937
        %v939 = vrot.slane %v938, 2
        %v940 = vadd.f32 %v938, %v939
        %v941 = vrot.slane %v940, 1
        %v942 = vadd.f32 %v940, %v941
        %vm943 = vcmp.eq.s32.totalorder %v599, 13
        %vm944 = vcmp.eq.s32.totalorder %v600, 13
        %v945 = vsel %vm943, 1, 0
        %v946 = vsel %vm944, 1, 0
        %vm947 = vcmp.eq.s32.totalorder %v945, 1
        %vm948 = vcmp.eq.s32.totalorder %v946, 1
        %v949 = vsel %vm947, %v942, %v924
        %v950 = vsel %vm948, %v942, %v925
        %v951 = vmul.f32 %v589, %v934
        %v952 = vmul.f32 %v590, %v935
        %v953 = vlaneseq
        %v954 = vshrl.u32 %v953, 7
        %v955 = vsub.s32 6, %v954
        %v956 = vrot.slane %v596, %v955
        %v957 = vmul.f32 %v591, %v956
        %v958 = vmul.f32 %v592, %v956
        %v959 = vadd.f32 %v951, %v957
        %v960 = vadd.f32 %v952, %v958
        %v961 = vadd.f32 %v959, %v960
        %v962 = vrot.slane %v961, 4
        %v963 = vadd.f32 %v961, %v962
        %v964 = vrot.slane %v963, 2
        %v965 = vadd.f32 %v963, %v964
        %v966 = vrot.slane %v965, 1
        %v967 = vadd.f32 %v965, %v966
        %vm968 = vcmp.eq.s32.totalorder %v599, 14
        %vm969 = vcmp.eq.s32.totalorder %v600, 14
        %v970 = vsel %vm968, 1, 0
        %v971 = vsel %vm969, 1, 0
        %vm972 = vcmp.eq.s32.totalorder %v970, 1
        %vm973 = vcmp.eq.s32.totalorder %v971, 1
        %v974 = vsel %vm972, %v967, %v949
        %v975 = vsel %vm973, %v967, %v950
        %v976 = vmul.f32 %v589, %v959
        %v977 = vmul.f32 %v590, %v960
        %v978 = vlaneseq
        %v979 = vshrl.u32 %v978, 7
        %v980 = vsub.s32 7, %v979
        %v981 = vrot.slane %v596, %v980
        %v982 = vmul.f32 %v591, %v981
        %v983 = vmul.f32 %v592, %v981
        %v984 = vadd.f32 %v976, %v982
        %v985 = vadd.f32 %v977, %v983
        %v986 = vadd.f32 %v984, %v985
        %v987 = vrot.slane %v986, 4
        %v988 = vadd.f32 %v986, %v987
        %v989 = vrot.slane %v988, 2
        %v990 = vadd.f32 %v988, %v989
        %v991 = vrot.slane %v990, 1
        %v992 = vadd.f32 %v990, %v991
        %vm993 = vcmp.eq.s32.totalorder %v599, 15
        %vm994 = vcmp.eq.s32.totalorder %v600, 15
        %v995 = vsel %vm993, 1, 0
        %v996 = vsel %vm994, 1, 0
        %vm997 = vcmp.eq.s32.totalorder %v995, 1
        %vm998 = vcmp.eq.s32.totalorder %v996, 1
        %v999 = vsel %vm997, %v992, %v974
        %v1000 = vsel %vm998, %v992, %v975
        %v1001 = vunpack.c.l.bf16 %v597
        %v1002 = vunpack.c.h.bf16 %v597
        %v1003 = vmul.f32 %v999, %v1001
        %v1004 = vmul.f32 %v1000, %v1002
        %1005 = vst [vmem:[#allocation2] sm:$0xff] %v1003
        %1006 = vst [vmem:[#allocation2 + $0x8] sm:$0xff] %v1004
        %1007 = vst [vmem:[#allocation4] sm:$0xff] %v984
        %1008 = vst [vmem:[#allocation4 + $0x8] sm:$0xff] %v985
        %v1009 = vld [vmem:[#allocation2] sm:$0xff]
        %v1010 = vld [vmem:[#allocation2 + $0x8] sm:$0xff]
        %v1011 = vpack.c.bf16 %v1010, %v1009
        %v1012 = vld [vmem:[%s7] sm:$0xf]
        %v1013 = vld [vmem:[%s7 + $0x4] sm:$0xf]
        %v1014 = vld [vmem:[%s7 + $0x8] sm:$0xf]
        %v1015 = vld [vmem:[%s7 + $0xc] sm:$0xf]
        %v1016 = vld [vmem:[%s7 + $0x10] sm:$0xf]
        %v1017 = vld [vmem:[%s7 + $0x14] sm:$0xf]
        %v1018 = vld [vmem:[%s7 + $0x18] sm:$0xf]
        %v1019 = vld [vmem:[%s7 + $0x1c] sm:$0xf]
        %v1020 = vld [vmem:[%s7 + $0x20] sm:$0xf]
        %v1021 = vld [vmem:[%s7 + $0x24] sm:$0xf]
        %v1022 = vld [vmem:[%s7 + $0x28] sm:$0xf]
        %v1023 = vld [vmem:[%s7 + $0x2c] sm:$0xf]
        %v1024 = vld [vmem:[%s7 + $0x30] sm:$0xf]
        %v1025 = vld [vmem:[%s7 + $0x34] sm:$0xf]
        %v1026 = vld [vmem:[%s7 + $0x38] sm:$0xf]
        %v1027 = vld [vmem:[%s7 + $0x3c] sm:$0xf]
        %v1028 = vld [vmem:[%s8] sm:$0x1]
        %v1030 = vlaneseq
        %v1031 = vshrl.u32 %v1030, 7
        %v1032 = vsub.s32 0, %v1031
        %v1033 = vrot.slane %v1028, %v1032
        %v1051 = vunpack.c.l.b16 %v1012
        %v1052 = vunpack.c.l.b16 %v1013
        %v1053 = vunpack.c.l.b16 %v1014
        %v1054 = vunpack.c.l.b16 %v1015
        %v1055 = vunpack.c.l.b16 %v1016
        %v1056 = vunpack.c.l.b16 %v1017
        %v1057 = vunpack.c.l.b16 %v1018
        %v1058 = vunpack.c.l.b16 %v1019
        %v1059 = vunpack.c.l.b16 %v1020
        %v1060 = vunpack.c.l.b16 %v1021
        %v1061 = vunpack.c.l.b16 %v1022
        %v1062 = vunpack.c.l.b16 %v1023
        %v1063 = vunpack.c.l.b16 %v1024
        %v1064 = vunpack.c.l.b16 %v1025
        %v1065 = vunpack.c.l.b16 %v1026
        %v1066 = vunpack.c.l.b16 %v1027
        %v1067 = vpack.c.b16 %v1052, %v1051
        %v1068 = vpack.c.b16 %v1054, %v1053
        %v1069 = vpack.c.b16 %v1056, %v1055
        %v1070 = vpack.c.b16 %v1058, %v1057
        %v1071 = vpack.c.b16 %v1060, %v1059
        %v1072 = vpack.c.b16 %v1062, %v1061
        %v1073 = vpack.c.b16 %v1064, %v1063
        %v1074 = vpack.c.b16 %v1066, %v1065
        %1083 = vmatprep.subr.bf16.mxu0 0
        %1084 = vmatpush1.bf16.msra.mxu0 %v1067
        %1085 = vmatprep.subr.bf16.mxu0 0
        %1086 = vmatpush1.bf16.msra.mxu0 %v1068
        %1087 = vmatprep.subr.bf16.mxu0 0
        %1088 = vmatpush1.bf16.msra.mxu0 %v1069
        %1089 = vmatprep.subr.bf16.mxu0 0
        %1090 = vmatpush1.bf16.msra.mxu0 %v1070
        %1091 = vmatprep.subr.bf16.mxu0 0
        %1092 = vmatpush1.bf16.msra.mxu0 %v1071
        %1093 = vmatprep.subr.bf16.mxu0 0
        %1094 = vmatpush1.bf16.msra.mxu0 %v1072
        %1095 = vmatprep.subr.bf16.mxu0 0
        %1096 = vmatpush1.bf16.msra.mxu0 %v1073
        %1097 = vmatprep.subr.bf16.mxu0 0
        %1098 = vmatpush1.bf16.msra.mxu0 %v1074
        %1099 = vmatprep.subr.bf16.mxu0 0
        %1100 = vmatpush1.bf16.msra.mxu0 0
        %1101 = vmatprep.subr.bf16.mxu0 0
        %1102 = vmatpush1.bf16.msra.mxu0 0
        %1103 = vmatprep.subr.bf16.mxu0 0
        %1104 = vmatpush1.bf16.msra.mxu0 0
        %1105 = vmatprep.subr.bf16.mxu0 0
        %1106 = vmatpush1.bf16.msra.mxu0 0
        %1107 = vmatprep.subr.bf16.mxu0 0
        %1108 = vmatpush1.bf16.msra.mxu0 0
        %1109 = vmatprep.subr.bf16.mxu0 0
        %1110 = vmatpush1.bf16.msra.mxu0 0
        %1111 = vmatprep.subr.bf16.mxu0 0
        %1112 = vmatpush1.bf16.msra.mxu0 0
        %1113 = vmatprep.subr.bf16.mxu0 0
        %1114 = vmatpush1.bf16.msra.mxu0 0
        %1115 = vmatprep.mubr.bf16.mxu0 0
        %1116 = vmatmul.mubr.bf16.gmra.mrb[0].mxu0 %v1011
        %v1117 = vpop.f32.mrb[0].mxu0
        %v1118 = vadd.f32 %v1033, %v1117
        %v1119 = vpop.f32.mrb[0].mxu0
        %v1120 = vpop.f32.mrb[0].mxu0
        %v1121 = vadd.f32 %v1033, %v1120
        %v1122 = vpop.f32.mrb[0].mxu0
        %1123 = vdwg.mxu0
        %v1124 = vld [vmem:[%s428] sm:$0xff]
        %v1125 = vld [vmem:[%s428 + $0x8] sm:$0xff]
        %v1126 = vadd.f32 %v1124, %v1118
        %v1127 = vadd.f32 %v1125, %v1121
        %v1128 = vsel %vm458, %v1126, 0.0
        %1129 = vadd.xlane.f32.xlu0 %v1128
        %v1130 = vpop.xlane.xlu0 %1129
        %v1131 = vsel %vm458, %v1127, 0.0
        %1132 = vadd.xlane.f32.xlu0 %v1131
        %v1133 = vpop.xlane.xlu0 %1132
        %v1134 = vrcp.pop 32.0
        %v1135 = vmul.f32 %v1130, %v1134
        %v1136 = vmul.f32 %v1133, %v1134
        %v1137 = vsub.f32 %v1126, %v1135
        %v1138 = vsub.f32 %v1127, %v1136
        %v1139 = vmul.f32 %v1137, %v1137
        %v1140 = vmul.f32 %v1138, %v1138
        %v1141 = vsel %vm458, %v1139, 0.0
        %1142 = vadd.xlane.f32.xlu0 %v1141
        %v1143 = vpop.xlane.xlu0 %1142
        %v1144 = vsel %vm458, %v1140, 0.0
        %1145 = vadd.xlane.f32.xlu0 %v1144
        %v1146 = vpop.xlane.xlu0 %1145
        %v1147 = vmul.f32 %v1143, %v1134
        %v1148 = vmul.f32 %v1146, %v1134
        %v1149 = vadd.f32 %v1147, 1e-05
        %v1150 = vadd.f32 %v1148, 1e-05
        %v1151 = vrsqrt.pop %v1149
        %v1152 = vrsqrt.pop %v1150
        %v1153 = vmul.f32 %v1137, %v1151
        %v1154 = vmul.f32 %v1138, %v1152
        %v1155 = vld [vmem:[%s9] sm:$0x1]
        %v1157 = vlaneseq
        %v1158 = vshrl.u32 %v1157, 7
        %v1159 = vsub.s32 0, %v1158
        %v1160 = vrot.slane %v1155, %v1159
        %v1162 = vmul.f32 %v1153, %v1160
        %v1163 = vmul.f32 %v1154, %v1160
        %v1164 = vld [vmem:[%s10] sm:$0x1]
        %v1166 = vlaneseq
        %v1167 = vshrl.u32 %v1166, 7
        %v1168 = vsub.s32 0, %v1167
        %v1169 = vrot.slane %v1164, %v1168
        %v1171 = vadd.f32 %v1162, %v1169
        %v1172 = vadd.f32 %v1163, %v1169
        %1173 = vst.msk [vmem:[%s419] sm:$0xff] %vm458, %v1171
        %1174 = vst.msk [vmem:[%s419 + $0x8] sm:$0xff] %vm458, %v1172
        %s1175 = sand.u32 %s286, 1
        %s1176 = scalar_lea.sflag [#allocation7], %s1175
        %s1177 = sand.u32 %s286, 1
        %s1178 = smul.addr %s1177, 16
        %s1179 = scalar_lea.vmem [#allocation8], %s1178
        // Predicated region
        $region73: #{tpu_custom_call.1} parent=63 // pred_check
          %p1180 = pneg %p296
        $region74: #{tpu_custom_call.1} parent=63 // pred_check_branch
          %1182 = sbr.rel (%p1180) target = $region76
        $region75: #{tpu_custom_call.1} parent=63 // pred_region
          %s1183 = smul.u32 2, %s31
          %s1185 = ssub.s32 256, 256
          %1186 = vsyncadd %s1176, %s1185
          %s1187 = smul.addr %s30, 2
          %s1188 = sadd.s32 %s1183, %s1187
          %s1189 = smul.addr %s1188, 128
          %s1190 = scalar_lea.hbm %s11, %s1189
          %s1191 = sshll.u32 %s1179, 4
          %s1192 = int_to_ptr.vmem [resolvable:$true] %s1191
          %1197 = dma.vmem_to_hbm [thread:$0]  %s1192, 256, %s1190, %s1176, 128, 128, 8
        $region76: #{tpu_custom_call.1} parent=63 // pred_fallthru
          _
      $region64: #{tpu_custom_call.1} parent=5 // pred_fallthru
        _
      %p1198 = scmp.le.s32.totalorder 2, %s21
      // Predicated region
      $region77: #{tpu_custom_call.1} parent=5 // pred_check
        %p1199 = pneg %p1198
      $region78: #{tpu_custom_call.1} parent=5 // pred_check_branch
        %1201 = sbr.rel (%p1199) target = $region80
      $region79: #{tpu_custom_call.1} parent=5 // pred_region
        %s1202 = ssub.s32 %s21, 2
        // Predicated region
        $region81: #{tpu_custom_call.1} parent=79 // pred_check
          %p1203 = pneg %p302
        $region82: #{tpu_custom_call.1} parent=79 // pred_check_branch
          %1205 = sbr.rel (%p1203) target = $region84
        $region83: #{tpu_custom_call.1} parent=79 // pred_region
          %s1206 = sand.u32 %s287, 1
          %s1207 = scalar_lea.sflag [#allocation7], %s1206
          %s1208 = sand.u32 %s287, 1
          %s1209 = smul.addr %s1208, 16
          %s1210 = scalar_lea.vmem [#allocation8], %s1209
          %1211 = dma.done %s1207, 256
        $region84: #{tpu_custom_call.1} parent=79 // pred_fallthru
          _
      $region80: #{tpu_custom_call.1} parent=5 // pred_fallthru
        _
    $region6: #{tpu_custom_call.1} parent=1 // loop_footer
      %s25 = sadd.s32 1, %s21
    $region7: #{tpu_custom_call.1} parent=1 // loop_footer_branch
      %20 = sbr.rel target = $region3
    $region8: #{tpu_custom_call.1} parent=1 // loop_exit
      _
    %1212 = vsyncpa [#allocation6], 1
    %s1213 = scalar_lea.sflag [#allocation6], 1
    %1214 = vsyncpa %s1213, 1
    %1215 = vsyncpa [#allocation7], 1
    %s1216 = scalar_lea.sflag [#allocation7], 1
    %1217 = vsyncpa %s1216, 1

// kernel: tpu_custom_call.1
$region0: #{tpu_custom_call.1}
  #allocation0 [shape = 'u32[]', space=smem, size = 0x4, offset = 0x4, fixed_abs, tag = 'smem constant byte address 0x4 - core index']
  #allocation1 [shape = 'u32[144,128]{1,0:T(1,128)}', space=vmem, size = 0x12000, scoped, tag = 'internal scratch']
  #allocation2 [shape = 'f32[1,16,128]{2,1,0:T(8,128)}', space=vmem, size = 0x2000, scoped, tag = 'scratch operand']
  #allocation3 [shape = 'bf16[1,16,128]{2,1,0:T(16,128)(2,1)}', space=vmem, size = 0x1000, scoped, tag = 'scratch operand']
  #allocation4 [shape = 'f32[1,16,128]{2,1,0:T(8,128)}', space=vmem, size = 0x2000, scoped, tag = 'scratch operand']
  %s0 = inlined_call_operand.vmem [shape: f32[2,16,32], index: 0, kind: input, shape index: {}]
  %s1 = inlined_call_operand.vmem [shape: bf16[32,128], index: 1, kind: input, shape index: {}]
  %s2 = inlined_call_operand.vmem [shape: f32[1,128], index: 2, kind: input, shape index: {}]
  %s3 = inlined_call_operand.vmem [shape: bf16[32,128], index: 3, kind: input, shape index: {}]
  %s4 = inlined_call_operand.vmem [shape: f32[1,128], index: 4, kind: input, shape index: {}]
  %s5 = inlined_call_operand.vmem [shape: f32[16,128], index: 5, kind: input, shape index: {}]
  %s6 = inlined_call_operand.hbm [shape: f32[16,128], index: 6, kind: input, shape index: {}]
  %s7 = inlined_call_operand.vmem [shape: bf16[128,32], index: 7, kind: input, shape index: {}]
  %s8 = inlined_call_operand.vmem [shape: f32[1,32], index: 8, kind: input, shape index: {}]
  %s9 = inlined_call_operand.vmem [shape: f32[1,32], index: 9, kind: input, shape index: {}]
  %s10 = inlined_call_operand.vmem [shape: f32[1,32], index: 10, kind: input, shape index: {}]
  %s11 = inlined_call_operand.hbm [shape: f32[2,16,32], index: 11, kind: output, shape index: {}]
  %s12 = sld [smem:[#allocation0]]
  $region85: #{tpu_custom_call.1} parent=0
    _
  %s14 = ssub.s32 1, %s12
  %s15 = scalar_select 0, %s14, %s12
  $region1: #{tpu_custom_call.1} parent=0
    #allocation5 [shape = 'u8[8192]{0}', space=vmem, size = 0x2000, scoped, tag = 'input window, operand 6, single buffered']
    #allocation6 [shape = 's32[2]{0}', space=sflag, size = 0x8, scoped, tag = 'scoped memory for tpu_custom_call.1']
    #allocation7 [shape = 's32[2]{0}', space=sflag, size = 0x8, scoped, tag = 'scoped memory for tpu_custom_call.1']
    #allocation8 [shape = 'u8[16384]{0}', space=vmem, size = 0x4000, scoped, tag = 'output window, operand 0']
    %16 = vsyncpa [#allocation6], 0
    %17 = vsyncpa [#allocation7], 0
    %s18 = scalar_lea.sflag [#allocation7], 1
    %19 = vsyncpa %s18, 0
    loop: start=0, step=1, limit=4
    $region2: #{tpu_custom_call.1} parent=1 // loop_pre_header
      _
    $region3: #{tpu_custom_call.1} parent=1 // loop_header
      %s21 = sphi 0, %s25
      %p22 = scmp.ge.s32.totalorder %s21, 4
      %s28 = sphi 0, %s40
      %s29 = sphi 0, %s36
      %s30 = sphi 0, %s28
      %s31 = sphi 0, %s29
      %s32 = sphi 0, %s30
      %s33 = sphi 0, %s31
      %s45 = sphi 0, %s47
      %s48 = sphi 0, %s45
      %s49 = sphi 0, %s48
      %s65 = sphi 0, %s49
      %s69 = sphi 0, %s69
      %s71 = sphi 0, %s69
      %s72 = sphi 0, %s71
      %s86 = sphi 0, %s72
      %s90 = sphi 0, %s90
      %s92 = sphi 0, %s90
      %s93 = sphi 0, %s92
      %s107 = sphi 0, %s93
      %s111 = sphi 0, %s111
      %s113 = sphi 0, %s111
      %s114 = sphi 0, %s113
      %s128 = sphi 0, %s114
      %s132 = sphi 0, %s132
      %s134 = sphi 0, %s132
      %s135 = sphi 0, %s134
      %s149 = sphi 0, %s135
      %s153 = sphi 0, %s153
      %s155 = sphi 0, %s153
      %s156 = sphi 0, %s155
      %s170 = sphi 0, %s156
      %s174 = sphi 0, %s174
      %s176 = sphi 0, %s174
      %s177 = sphi 0, %s176
      %s191 = sphi 0, %s177
      %s195 = sphi 0, %s195
      %s197 = sphi 0, %s195
      %s198 = sphi 0, %s197
      %s212 = sphi 0, %s198
      %s216 = sphi 0, %s216
      %s218 = sphi 0, %s216
      %s219 = sphi 0, %s218
      %s233 = sphi 0, %s219
      %s237 = sphi 0, %s237
      %s239 = sphi 0, %s237
      %s240 = sphi 0, %s239
      %s254 = sphi 0, %s240
      %s258 = sphi 0, %s258
      %s260 = sphi 0, %s258
      %s261 = sphi 0, %s260
      %s275 = sphi 0, %s261
      %s283 = sphi 0, %s285
      %s286 = sphi 0, %s283
      %s287 = sphi 0, %s286
      %s303 = sphi 0, %s287
    $region4: #{tpu_custom_call.1} parent=1 // loop_header_branch
      %24 = sbr.rel (%p22) target = $region8
    $region5: #{tpu_custom_call.1} parent=1 // loop_body
      %s26 = ssub.s32 %s21, 1
      %s27 = ssub.s32 %s21, 2
      %s34 = sadd.s32 1, %s29
      %p35 = scmp.ge.s32.totalorder %s34, 1
      %s36 = scalar_select %p35, 0, %s34
      %s37 = sadd.s32 1, %s28
      %s38 = scalar_select %p35, %s37, %s28
      %p39 = scmp.ge.s32.totalorder %s38, 2
      %s40 = scalar_select %p39, 0, %s38
      %s41 = ssub.s32 %s28, %s40
      %s42 = ssub.s32 %s29, %s36
      %s43 = sor.u32 %s41, %s42
      %p44 = scmp.eq.s32.totalorder %s43, 0
      %s46 = sadd.s32 %s45, 1
      %s47 = scalar_select %p44, %s45, %s46
      %p50 = pneg %p44
      %p51 = scmp.eq.s32.totalorder %s21, 1
      %p52 = por %p50, %p51
      %p53 = scmp.ne.s32.totalorder %s45, %s48
      %p54 = scmp.eq.s32.totalorder %s21, 0
      %p55 = por %p53, %p54
      %p56 = scmp.ne.s32.totalorder %s45, %s48
      %p57 = scmp.eq.s32.totalorder %s26, 1
      %p58 = por %p56, %p57
      %p59 = scmp.ne.s32.totalorder %s48, %s49
      %p60 = scmp.eq.s32.totalorder %s26, 0
      %p61 = por %p59, %p60
      %p62 = scmp.ne.s32.totalorder %s48, %s49
      %p63 = scmp.eq.s32.totalorder %s27, 1
      %p64 = por %p62, %p63
      %p66 = scmp.ne.s32.totalorder %s49, %s65
      %p67 = scmp.eq.s32.totalorder %s27, 0
      %p68 = por %p66, %p67
      %s70 = sadd.s32 %s69, 1
      %p73 = scmp.eq.s32.totalorder %s21, 1
      %p74 = scmp.ne.s32.totalorder %s69, %s71
      %p75 = scmp.eq.s32.totalorder %s21, 0
      %p76 = por %p74, %p75
      %p77 = scmp.ne.s32.totalorder %s69, %s71
      %p78 = scmp.eq.s32.totalorder %s26, 1
      %p79 = por %p77, %p78
      %p80 = scmp.ne.s32.totalorder %s71, %s72
      %p81 = scmp.eq.s32.totalorder %s26, 0
      %p82 = por %p80, %p81
      %p83 = scmp.ne.s32.totalorder %s71, %s72
      %p84 = scmp.eq.s32.totalorder %s27, 1
      %p85 = por %p83, %p84
      %p87 = scmp.ne.s32.totalorder %s72, %s86
      %p88 = scmp.eq.s32.totalorder %s27, 0
      %p89 = por %p87, %p88
      %s91 = sadd.s32 %s90, 1
      %p94 = scmp.eq.s32.totalorder %s21, 1
      %p95 = scmp.ne.s32.totalorder %s90, %s92
      %p96 = scmp.eq.s32.totalorder %s21, 0
      %p97 = por %p95, %p96
      %p98 = scmp.ne.s32.totalorder %s90, %s92
      %p99 = scmp.eq.s32.totalorder %s26, 1
      %p100 = por %p98, %p99
      %p101 = scmp.ne.s32.totalorder %s92, %s93
      %p102 = scmp.eq.s32.totalorder %s26, 0
      %p103 = por %p101, %p102
      %p104 = scmp.ne.s32.totalorder %s92, %s93
      %p105 = scmp.eq.s32.totalorder %s27, 1
      %p106 = por %p104, %p105
      %p108 = scmp.ne.s32.totalorder %s93, %s107
      %p109 = scmp.eq.s32.totalorder %s27, 0
      %p110 = por %p108, %p109
      %s112 = sadd.s32 %s111, 1
      %p115 = scmp.eq.s32.totalorder %s21, 1
      %p116 = scmp.ne.s32.totalorder %s111, %s113
      %p117 = scmp.eq.s32.totalorder %s21, 0
      %p118 = por %p116, %p117
      %p119 = scmp.ne.s32.totalorder %s111, %s113
      %p120 = scmp.eq.s32.totalorder %s26, 1
      %p121 = por %p119, %p120
      %p122 = scmp.ne.s32.totalorder %s113, %s114
      %p123 = scmp.eq.s32.totalorder %s26, 0
      %p124 = por %p122, %p123
      %p125 = scmp.ne.s32.totalorder %s113, %s114
      %p126 = scmp.eq.s32.totalorder %s27, 1
      %p127 = por %p125, %p126
      %p129 = scmp.ne.s32.totalorder %s114, %s128
      %p130 = scmp.eq.s32.totalorder %s27, 0
      %p131 = por %p129, %p130
      %s133 = sadd.s32 %s132, 1
      %p136 = scmp.eq.s32.totalorder %s21, 1
      %p137 = scmp.ne.s32.totalorder %s132, %s134
      %p138 = scmp.eq.s32.totalorder %s21, 0
      %p139 = por %p137, %p138
      %p140 = scmp.ne.s32.totalorder %s132, %s134
      %p141 = scmp.eq.s32.totalorder %s26, 1
      %p142 = por %p140, %p141
      %p143 = scmp.ne.s32.totalorder %s134, %s135
      %p144 = scmp.eq.s32.totalorder %s26, 0
      %p145 = por %p143, %p144
      %p146 = scmp.ne.s32.totalorder %s134, %s135
      %p147 = scmp.eq.s32.totalorder %s27, 1
      %p148 = por %p146, %p147
      %p150 = scmp.ne.s32.totalorder %s135, %s149
      %p151 = scmp.eq.s32.totalorder %s27, 0
      %p152 = por %p150, %p151
      %s154 = sadd.s32 %s153, 1
      %p157 = scmp.eq.s32.totalorder %s21, 1
      %p158 = scmp.ne.s32.totalorder %s153, %s155
      %p159 = scmp.eq.s32.totalorder %s21, 0
      %p160 = por %p158, %p159
      %p161 = scmp.ne.s32.totalorder %s153, %s155
      %p162 = scmp.eq.s32.totalorder %s26, 1
      %p163 = por %p161, %p162
      %p164 = scmp.ne.s32.totalorder %s155, %s156
      %p165 = scmp.eq.s32.totalorder %s26, 0
      %p166 = por %p164, %p165
      %p167 = scmp.ne.s32.totalorder %s155, %s156
      %p168 = scmp.eq.s32.totalorder %s27, 1
      %p169 = por %p167, %p168
      %p171 = scmp.ne.s32.totalorder %s156, %s170
      %p172 = scmp.eq.s32.totalorder %s27, 0
      %p173 = por %p171, %p172
      %s175 = sadd.s32 %s174, 1
      %p178 = scmp.eq.s32.totalorder %s21, 1
      %p179 = scmp.ne.s32.totalorder %s174, %s176
      %p180 = scmp.eq.s32.totalorder %s21, 0
      %p181 = por %p179, %p180
      %p182 = scmp.ne.s32.totalorder %s174, %s176
      %p183 = scmp.eq.s32.totalorder %s26, 1
      %p184 = por %p182, %p183
      %p185 = scmp.ne.s32.totalorder %s176, %s177
      %p186 = scmp.eq.s32.totalorder %s26, 0
      %p187 = por %p185, %p186
      %p188 = scmp.ne.s32.totalorder %s176, %s177
      %p189 = scmp.eq.s32.totalorder %s27, 1
      %p190 = por %p188, %p189
      %p192 = scmp.ne.s32.totalorder %s177, %s191
      %p193 = scmp.eq.s32.totalorder %s27, 0
      %p194 = por %p192, %p193
      %s196 = sadd.s32 %s195, 1
      %p199 = scmp.eq.s32.totalorder %s21, 1
      %p200 = scmp.ne.s32.totalorder %s195, %s197
      %p201 = scmp.eq.s32.totalorder %s21, 0
      %p202 = por %p200, %p201
      %p203 = scmp.ne.s32.totalorder %s195, %s197
      %p204 = scmp.eq.s32.totalorder %s26, 1
      %p205 = por %p203, %p204
      %p206 = scmp.ne.s32.totalorder %s197, %s198
      %p207 = scmp.eq.s32.totalorder %s26, 0
      %p208 = por %p206, %p207
      %p209 = scmp.ne.s32.totalorder %s197, %s198
      %p210 = scmp.eq.s32.totalorder %s27, 1
      %p211 = por %p209, %p210
      %p213 = scmp.ne.s32.totalorder %s198, %s212
      %p214 = scmp.eq.s32.totalorder %s27, 0
      %p215 = por %p213, %p214
      %s217 = sadd.s32 %s216, 1
      %p220 = scmp.eq.s32.totalorder %s21, 1
      %p221 = scmp.ne.s32.totalorder %s216, %s218
      %p222 = scmp.eq.s32.totalorder %s21, 0
      %p223 = por %p221, %p222
      %p224 = scmp.ne.s32.totalorder %s216, %s218
      %p225 = scmp.eq.s32.totalorder %s26, 1
      %p226 = por %p224, %p225
      %p227 = scmp.ne.s32.totalorder %s218, %s219
      %p228 = scmp.eq.s32.totalorder %s26, 0
      %p229 = por %p227, %p228
      %p230 = scmp.ne.s32.totalorder %s218, %s219
      %p231 = scmp.eq.s32.totalorder %s27, 1
      %p232 = por %p230, %p231
      %p234 = scmp.ne.s32.totalorder %s219, %s233
      %p235 = scmp.eq.s32.totalorder %s27, 0
      %p236 = por %p234, %p235
      %s238 = sadd.s32 %s237, 1
      %p241 = scmp.eq.s32.totalorder %s21, 1
      %p242 = scmp.ne.s32.totalorder %s237, %s239
      %p243 = scmp.eq.s32.totalorder %s21, 0
      %p244 = por %p242, %p243
      %p245 = scmp.ne.s32.totalorder %s237, %s239
      %p246 = scmp.eq.s32.totalorder %s26, 1
      %p247 = por %p245, %p246
      %p248 = scmp.ne.s32.totalorder %s239, %s240
      %p249 = scmp.eq.s32.totalorder %s26, 0
      %p250 = por %p248, %p249
      %p251 = scmp.ne.s32.totalorder %s239, %s240
      %p252 = scmp.eq.s32.totalorder %s27, 1
      %p253 = por %p251, %p252
      %p255 = scmp.ne.s32.totalorder %s240, %s254
      %p256 = scmp.eq.s32.totalorder %s27, 0
      %p257 = por %p255, %p256
      %s259 = sadd.s32 %s258, 1
      %p262 = scmp.eq.s32.totalorder %s21, 1
      %p263 = scmp.ne.s32.totalorder %s258, %s260
      %p264 = scmp.eq.s32.totalorder %s21, 0
      %p265 = por %p263, %p264
      %p266 = scmp.ne.s32.totalorder %s258, %s260
      %p267 = scmp.eq.s32.totalorder %s26, 1
      %p268 = por %p266, %p267
      %p269 = scmp.ne.s32.totalorder %s260, %s261
      %p270 = scmp.eq.s32.totalorder %s26, 0
      %p271 = por %p269, %p270
      %p272 = scmp.ne.s32.totalorder %s260, %s261
      %p273 = scmp.eq.s32.totalorder %s27, 1
      %p274 = por %p272, %p273
      %p276 = scmp.ne.s32.totalorder %s261, %s275
      %p277 = scmp.eq.s32.totalorder %s27, 0
      %p278 = por %p276, %p277
      %s279 = ssub.s32 %s28, %s40
      %s280 = ssub.s32 %s29, %s36
      %s281 = sor.u32 %s279, %s280
      %p282 = scmp.eq.s32.totalorder %s281, 0
      %s284 = sadd.s32 %s283, 1
      %s285 = scalar_select %p282, %s283, %s284
      %p288 = pneg %p282
      %p289 = scmp.eq.s32.totalorder %s21, 1
      %p290 = por %p288, %p289
      %p291 = scmp.ne.s32.totalorder %s283, %s286
      %p292 = scmp.eq.s32.totalorder %s21, 0
      %p293 = por %p291, %p292
      %p294 = scmp.ne.s32.totalorder %s283, %s286
      %p295 = scmp.eq.s32.totalorder %s26, 1
      %p296 = por %p294, %p295
      %p297 = scmp.ne.s32.totalorder %s286, %s287
      %p298 = scmp.eq.s32.totalorder %s26, 0
      %p299 = por %p297, %p298
      %p300 = scmp.ne.s32.totalorder %s286, %s287
      %p301 = scmp.eq.s32.totalorder %s27, 1
      %p302 = por %p300, %p301
      %p304 = scmp.ne.s32.totalorder %s287, %s303
      %p305 = scmp.eq.s32.totalorder %s27, 0
      %p306 = por %p304, %p305
      %p307 = scmp.le.s32.totalorder 1, %s21
      %p308 = scmp.lt.s32.totalorder %s21, 3
      %p309 = pnand %p307, %p308
      %p310 = pneg %p309
      // Predicated region
      $region9: #{tpu_custom_call.1} parent=5 // pred_check
        _
      $region10: #{tpu_custom_call.1} parent=5 // pred_check_branch
        %312 = sbr.rel (%p309) target = $region12
      $region11: #{tpu_custom_call.1} parent=5 // pred_region
        %s313 = ssub.s32 %s21, 1
        // Predicated region
        $region13: #{tpu_custom_call.1} parent=11 // pred_check
          %p314 = pneg %p82
        $region14: #{tpu_custom_call.1} parent=11 // pred_check_branch
          %316 = sbr.rel (%p314) target = $region16
        $region15: #{tpu_custom_call.1} parent=11 // pred_region
          _
        $region16: #{tpu_custom_call.1} parent=11 // pred_fallthru
          _
        // Predicated region
        $region17: #{tpu_custom_call.1} parent=11 // pred_check
          %p317 = pneg %p103
        $region18: #{tpu_custom_call.1} parent=11 // pred_check_branch
          %319 = sbr.rel (%p317) target = $region20
        $region19: #{tpu_custom_call.1} parent=11 // pred_region
          _
        $region20: #{tpu_custom_call.1} parent=11 // pred_fallthru
          _
        // Predicated region
        $region21: #{tpu_custom_call.1} parent=11 // pred_check
          %p320 = pneg %p124
        $region22: #{tpu_custom_call.1} parent=11 // pred_check_branch
          %322 = sbr.rel (%p320) target = $region24
        $region23: #{tpu_custom_call.1} parent=11 // pred_region
          _
        $region24: #{tpu_custom_call.1} parent=11 // pred_fallthru
          _
        // Predicated region
        $region25: #{tpu_custom_call.1} parent=11 // pred_check
          %p323 = pneg %p145
        $region26: #{tpu_custom_call.1} parent=11 // pred_check_branch
          %325 = sbr.rel (%p323) target = $region28
        $region27: #{tpu_custom_call.1} parent=11 // pred_region
          _
        $region28: #{tpu_custom_call.1} parent=11 // pred_fallthru
          _
        // Predicated region
        $region29: #{tpu_custom_call.1} parent=11 // pred_check
          %p326 = pneg %p166
        $region30: #{tpu_custom_call.1} parent=11 // pred_check_branch
          %328 = sbr.rel (%p326) target = $region32
        $region31: #{tpu_custom_call.1} parent=11 // pred_region
          _
        $region32: #{tpu_custom_call.1} parent=11 // pred_fallthru
          _
        // Predicated region
        $region33: #{tpu_custom_call.1} parent=11 // pred_check
          %p329 = pneg %p187
        $region34: #{tpu_custom_call.1} parent=11 // pred_check_branch
          %331 = sbr.rel (%p329) target = $region36
        $region35: #{tpu_custom_call.1} parent=11 // pred_region
          %s333 = ssub.s32 256, 256
          %334 = vsyncadd [#allocation6], %s333
          %s335 = sshll.u32 [#allocation5], 4
          %s336 = int_to_ptr.vmem [resolvable:$true] %s335
          %341 = dma.hbm_to_vmem [thread:$0]  %s6, 256, %s336, [#allocation6], 128, 128, 8
        $region36: #{tpu_custom_call.1} parent=11 // pred_fallthru
          _
        // Predicated region
        $region37: #{tpu_custom_call.1} parent=11 // pred_check
          %p342 = pneg %p208
        $region38: #{tpu_custom_call.1} parent=11 // pred_check_branch
          %344 = sbr.rel (%p342) target = $region40
        $region39: #{tpu_custom_call.1} parent=11 // pred_region
          _
        $region40: #{tpu_custom_call.1} parent=11 // pred_fallthru
          _
        // Predicated region
        $region41: #{tpu_custom_call.1} parent=11 // pred_check
          %p345 = pneg %p229
        $region42: #{tpu_custom_call.1} parent=11 // pred_check_branch
          %347 = sbr.rel (%p345) target = $region44
        $region43: #{tpu_custom_call.1} parent=11 // pred_region
          _
        $region44: #{tpu_custom_call.1} parent=11 // pred_fallthru
          _
        // Predicated region
        $region45: #{tpu_custom_call.1} parent=11 // pred_check
          %p348 = pneg %p250
        $region46: #{tpu_custom_call.1} parent=11 // pred_check_branch
          %350 = sbr.rel (%p348) target = $region48
        $region47: #{tpu_custom_call.1} parent=11 // pred_region
          _
        $region48: #{tpu_custom_call.1} parent=11 // pred_fallthru
          _
        // Predicated region
        $region49: #{tpu_custom_call.1} parent=11 // pred_check
          %p351 = pneg %p271
        $region50: #{tpu_custom_call.1} parent=11 // pred_check_branch
          %353 = sbr.rel (%p351) target = $region52
        $region51: #{tpu_custom_call.1} parent=11 // pred_region
          _
        $region52: #{tpu_custom_call.1} parent=11 // pred_fallthru
          _
      $region12: #{tpu_custom_call.1} parent=5 // pred_fallthru
        _
      %p354 = scmp.lt.s32.totalorder %s21, 2
      // Predicated region
      $region53: #{tpu_custom_call.1} parent=5 // pred_check
        %p355 = pneg %p354
      $region54: #{tpu_custom_call.1} parent=5 // pred_check_branch
        %357 = sbr.rel (%p355) target = $region56
      $region55: #{tpu_custom_call.1} parent=5 // pred_region
        // Predicated region
        $region57: #{tpu_custom_call.1} parent=55 // pred_check
          %p358 = pneg %p55
        $region58: #{tpu_custom_call.1} parent=55 // pred_check_branch
          %360 = sbr.rel (%p358) target = $region60
        $region59: #{tpu_custom_call.1} parent=55 // pred_region
          %s361 = smul.u32 2, %s29
          %p362 = scmp.lt.s32.totalorder %s28, 1
          %s363 = scalar_select %p362, %s28, 1
          %p364 = scmp.lt.s32.totalorder %s361, 1
          %s365 = scalar_select %p364, %s361, 1
          %s366 = smul.addr %s363, 2
          %s367 = sadd.s32 %s365, %s366
          %s368 = smul.addr %s367, 8
          %s369 = scalar_lea.vmem %s0, %s368
          %s370 = smul.u32 2, %s29
        $region60: #{tpu_custom_call.1} parent=55 // pred_fallthru
          _
      $region56: #{tpu_custom_call.1} parent=5 // pred_fallthru
        _
      %p371 = scmp.le.s32.totalorder 1, %s21
      %p372 = scmp.lt.s32.totalorder %s21, 3
      %p373 = pnand %p371, %p372
      %p374 = pneg %p373
      // Predicated region
      $region61: #{tpu_custom_call.1} parent=5 // pred_check
        _
      $region62: #{tpu_custom_call.1} parent=5 // pred_check_branch
        %376 = sbr.rel (%p373) target = $region64
      $region63: #{tpu_custom_call.1} parent=5 // pred_region
        %s377 = ssub.s32 %s21, 1
        // Predicated region
        $region65: #{tpu_custom_call.1} parent=63 // pred_check
          %p378 = pneg %p187
        $region66: #{tpu_custom_call.1} parent=63 // pred_check_branch
          %380 = sbr.rel (%p378) target = $region68
        $region67: #{tpu_custom_call.1} parent=63 // pred_region
          %381 = dma.done [#allocation6], 256
        $region68: #{tpu_custom_call.1} parent=63 // pred_fallthru
          _
        %s382 = smul.u32 2, %s31
        %p383 = scmp.lt.s32.totalorder %s30, 1
        %s384 = scalar_select %p383, %s30, 1
        %p385 = scmp.lt.s32.totalorder %s382, 1
        %s386 = scalar_select %p385, %s382, 1
        %s387 = smul.addr %s384, 2
        %s388 = sadd.s32 %s386, %s387
        %s389 = smul.addr %s388, 8
        %s390 = scalar_lea.vmem %s0, %s389
        %p391 = pneg %p61
        %p392 = pneg %p58
        %p393 = pneg %p82
        %p394 = pneg %p79
        %p395 = pneg %p103
        %p396 = pneg %p100
        %p397 = pneg %p124
        %p398 = pneg %p121
        %p399 = pneg %p145
        %p400 = pneg %p142
        %p401 = pneg %p166
        %p402 = pneg %p163
        %p403 = pneg %p187
        %p404 = pneg %p184
        %p405 = pneg %p208
        %p406 = pneg %p205
        %p407 = pneg %p229
        %p408 = pneg %p226
        %p409 = pneg %p250
        %p410 = pneg %p247
        %p411 = pneg %p271
        %p412 = pneg %p268
        %p413 = pneg %p299
        %p414 = pneg %p296
        %s415 = sand.u32 %s286, 1
        %s416 = scalar_lea.sflag [#allocation7], %s415
        %s417 = sand.u32 %s286, 1
        %s418 = smul.addr %s417, 16
        %s419 = scalar_lea.vmem [#allocation8], %s418
        %s420 = smul.u32 2, %s31
        %p421 = scmp.lt.s32.totalorder %s30, 1
        %s422 = scalar_select %p421, %s30, 1
        %p423 = scmp.lt.s32.totalorder %s420, 1
        %s424 = scalar_select %p423, %s420, 1
        %s425 = smul.addr %s422, 2
        %s426 = sadd.s32 %s424, %s425
        %s427 = smul.addr %s426, 8
        %s428 = scalar_lea.vmem %s0, %s427
        %s429 = smul.u32 2, %s31
        %s430 = smul.u32 2, %s31
        %v432 = vld [vmem:[%s428] sm:$0xff]
        %v433 = vld [vmem:[%s428 + $0x8] sm:$0xff]
        %v434 = vpack.c.bf16 %v433, %v432
        %v435 = vld [vmem:[%s1] sm:$0xf]
        %v436 = vld [vmem:[%s1 + $0x4] sm:$0xf]
        %v437 = vld [vmem:[%s1 + $0x8] sm:$0xf]
        %v438 = vld [vmem:[%s1 + $0xc] sm:$0xf]
        %v439 = vld [vmem:[%s2] sm:$0x1]
        %v441 = vlaneseq
        %v442 = vshrl.u32 %v441, 7
        %v443 = vsub.s32 0, %v442
        %v444 = vrot.slane %v439, %v443
        %v450 = vunpack.c.l.b16 %v435
        %v451 = vunpack.c.l.b16 %v436
        %v452 = vunpack.c.l.b16 %v437
        %v453 = vunpack.c.l.b16 %v438
        %v454 = vpack.c.b16 %v451, %v450
        %v455 = vpack.c.b16 %v453, %v452
        %vm458 = vcmask 261120
        %v460 = vsel %vm458, %v434, 0
        %462 = vmatprep.subr.bf16.mxu0 0
        %463 = vmatpush1.bf16.msra.mxu0 %v454
        %464 = vmatprep.subr.bf16.mxu0 0
        %465 = vmatpush1.bf16.msra.mxu0 %v455
        %466 = vmatprep.subr.bf16.mxu0 0
        %467 = vmatpush1.bf16.msra.mxu0 0
        %468 = vmatprep.subr.bf16.mxu0 0
        %469 = vmatpush1.bf16.msra.mxu0 0
        %470 = vmatprep.subr.bf16.mxu0 0
        %471 = vmatpush1.bf16.msra.mxu0 0
        %472 = vmatprep.subr.bf16.mxu0 0
        %473 = vmatpush1.bf16.msra.mxu0 0
        %474 = vmatprep.subr.bf16.mxu0 0
        %475 = vmatpush1.bf16.msra.mxu0 0
        %476 = vmatprep.subr.bf16.mxu0 0
        %477 = vmatpush1.bf16.msra.mxu0 0
        %478 = vmatprep.subr.bf16.mxu0 0
        %479 = vmatpush1.bf16.msra.mxu0 0
        %480 = vmatprep.subr.bf16.mxu0 0
        %481 = vmatpush1.bf16.msra.mxu0 0
        %482 = vmatprep.subr.bf16.mxu0 0
        %483 = vmatpush1.bf16.msra.mxu0 0
        %484 = vmatprep.subr.bf16.mxu0 0
        %485 = vmatpush1.bf16.msra.mxu0 0
        %486 = vmatprep.subr.bf16.mxu0 0
        %487 = vmatpush1.bf16.msra.mxu0 0
        %488 = vmatprep.subr.bf16.mxu0 0
        %489 = vmatpush1.bf16.msra.mxu0 0
        %490 = vmatprep.subr.bf16.mxu0 0
        %491 = vmatpush1.bf16.msra.mxu0 0
        %492 = vmatprep.subr.bf16.mxu0 0
        %493 = vmatpush1.bf16.msra.mxu0 0
        %494 = vmatprep.mubr.bf16.mxu0 0
        %495 = vmatmul.mubr.bf16.gmra.mrb[0].mxu0 %v460
        %v496 = vpop.f32.mrb[0].mxu0
        %v497 = vadd.f32 %v444, %v496
        %v498 = vpop.f32.mrb[0].mxu0
        %v499 = vpop.f32.mrb[0].mxu0
        %v500 = vadd.f32 %v444, %v499
        %v501 = vpop.f32.mrb[0].mxu0
        %502 = vdwg.mxu0
        %503 = vst [vmem:[#allocation2] sm:$0xff] %v497
        %504 = vst [vmem:[#allocation2 + $0x8] sm:$0xff] %v500
        %v505 = vld [vmem:[%s3] sm:$0xf]
        %v506 = vld [vmem:[%s3 + $0x4] sm:$0xf]
        %v507 = vld [vmem:[%s3 + $0x8] sm:$0xf]
        %v508 = vld [vmem:[%s3 + $0xc] sm:$0xf]
        %v509 = vld [vmem:[%s4] sm:$0x1]
        %v511 = vlaneseq
        %v512 = vshrl.u32 %v511, 7
        %v513 = vsub.s32 0, %v512
        %v514 = vrot.slane %v509, %v513
        %v520 = vunpack.c.l.b16 %v505
        %v521 = vunpack.c.l.b16 %v506
        %v522 = vunpack.c.l.b16 %v507
        %v523 = vunpack.c.l.b16 %v508
        %v524 = vpack.c.b16 %v521, %v520
        %v525 = vpack.c.b16 %v523, %v522
        %528 = vmatprep.subr.bf16.mxu0 0
        %529 = vmatpush1.bf16.msra.mxu0 %v524
        %530 = vmatprep.subr.bf16.mxu0 0
        %531 = vmatpush1.bf16.msra.mxu0 %v525
        %532 = vmatprep.subr.bf16.mxu0 0
        %533 = vmatpush1.bf16.msra.mxu0 0
        %534 = vmatprep.subr.bf16.mxu0 0
        %535 = vmatpush1.bf16.msra.mxu0 0
        %536 = vmatprep.subr.bf16.mxu0 0
        %537 = vmatpush1.bf16.msra.mxu0 0
        %538 = vmatprep.subr.bf16.mxu0 0
        %539 = vmatpush1.bf16.msra.mxu0 0
        %540 = vmatprep.subr.bf16.mxu0 0
        %541 = vmatpush1.bf16.msra.mxu0 0
        %542 = vmatprep.subr.bf16.mxu0 0
        %543 = vmatpush1.bf16.msra.mxu0 0
        %544 = vmatprep.subr.bf16.mxu0 0
        %545 = vmatpush1.bf16.msra.mxu0 0
        %546 = vmatprep.subr.bf16.mxu0 0
        %547 = vmatpush1.bf16.msra.mxu0 0
        %548 = vmatprep.subr.bf16.mxu0 0
        %549 = vmatpush1.bf16.msra.mxu0 0
        %550 = vmatprep.subr.bf16.mxu0 0
        %551 = vmatpush1.bf16.msra.mxu0 0
        %552 = vmatprep.subr.bf16.mxu0 0
        %553 = vmatpush1.bf16.msra.mxu0 0
        %554 = vmatprep.subr.bf16.mxu0 0
        %555 = vmatpush1.bf16.msra.mxu0 0
        %556 = vmatprep.subr.bf16.mxu0 0
        %557 = vmatpush1.bf16.msra.mxu0 0
        %558 = vmatprep.subr.bf16.mxu0 0
        %559 = vmatpush1.bf16.msra.mxu0 0
        %560 = vmatprep.mubr.bf16.mxu0 0
        %561 = vmatmul.mubr.bf16.gmra.mrb[0].mxu0 %v460
        %v562 = vpop.f32.mrb[0].mxu0
        %v563 = vadd.f32 %v514, %v562
        %v564 = vpop.f32.mrb[0].mxu0
        %v565 = vpop.f32.mrb[0].mxu0
        %v566 = vadd.f32 %v514, %v565
        %v567 = vpop.f32.mrb[0].mxu0
        %568 = vdwg.mxu0
        %v569 = vxor.u32 %v563, 2147483648
        %v570 = vxor.u32 %v566, 2147483648
        %v571 = vmul.f32 %v569, 1.442695
        %v572 = vpow.pop %v571
        %v573 = vmul.f32 %v570, 1.442695
        %v574 = vpow.pop %v573
        %v575 = vadd.f32 %v572, 1.0
        %v576 = vadd.f32 %v574, 1.0
        %v577 = vrcp.pop %v575
        %v578 = vmul.f32 1.0, %v577
        %v579 = vrcp.pop %v576
        %v580 = vmul.f32 1.0, %v579
        %v581 = vpack.c.bf16 %v580, %v578
        %582 = vst [vmem:[#allocation3] sm:$0xff] %v581
        %p583 = scmp.eq.s32.totalorder %s31, 0
        // Predicated region
        $region69: #{tpu_custom_call.1} parent=63 // pred_check
          %p584 = pneg %p583
        $region70: #{tpu_custom_call.1} parent=63 // pred_check_branch
          %586 = sbr.rel (%p584) target = $region72
        $region71: #{tpu_custom_call.1} parent=63 // pred_region
          %587 = vst [vmem:[#allocation4] sm:$0xff] 0.0
          %588 = vst [vmem:[#allocation4 + $0x8] sm:$0xff] 0.0
        $region72: #{tpu_custom_call.1} parent=63 // pred_fallthru
          _
        %v589 = vld [vmem:[%s5] sm:$0xff]
        %v590 = vld [vmem:[%s5 + $0x8] sm:$0xff]
        %v591 = vld [vmem:[#allocation5] sm:$0xff]
        %v592 = vld [vmem:[#allocation5 + $0x8] sm:$0xff]
        %v593 = vld [vmem:[#allocation4] sm:$0xff]
        %v594 = vld [vmem:[#allocation4 + $0x8] sm:$0xff]
        %v595 = vld [vmem:[#allocation2] sm:$0xff]
        %v596 = vld [vmem:[#allocation2 + $0x8] sm:$0xff]
        %v597 = vld [vmem:[#allocation3] sm:$0xff]
        %v598 = vlaneseq
        %v599 = vshrl.u32 %v598, 7
        %v600 = vadd.s32 %v599, 8
        %v601 = vmul.f32 %v589, %v593
        %v602 = vmul.f32 %v590, %v594
        %v603 = vlaneseq
        %v604 = vshrl.u32 %v603, 7
        %v605 = vsub.s32 0, %v604
        %v606 = vrot.slane %v595, %v605
        %v607 = vmul.f32 %v591, %v606
        %v608 = vmul.f32 %v592, %v606
        %v609 = vadd.f32 %v601, %v607
        %v610 = vadd.f32 %v602, %v608
        %v611 = vadd.f32 %v609, %v610
        %v612 = vrot.slane %v611, 4
        %v613 = vadd.f32 %v611, %v612
        %v614 = vrot.slane %v613, 2
        %v615 = vadd.f32 %v613, %v614
        %v616 = vrot.slane %v615, 1
        %v617 = vadd.f32 %v615, %v616
        %vm618 = vcmp.eq.s32.totalorder %v599, 0
        %vm619 = vcmp.eq.s32.totalorder %v600, 0
        %v620 = vsel %vm618, 1, 0
        %v621 = vsel %vm619, 1, 0
        %vm622 = vcmp.eq.s32.totalorder %v620, 1
        %vm623 = vcmp.eq.s32.totalorder %v621, 1
        %v624 = vsel %vm622, %v617, 0.0
        %v625 = vsel %vm623, %v617, 0.0
        %v626 = vmul.f32 %v589, %v609
        %v627 = vmul.f32 %v590, %v610
        %v628 = vlaneseq
        %v629 = vshrl.u32 %v628, 7
        %v630 = vsub.s32 1, %v629
        %v631 = vrot.slane %v595, %v630
        %v632 = vmul.f32 %v591, %v631
        %v633 = vmul.f32 %v592, %v631
        %v634 = vadd.f32 %v626, %v632
        %v635 = vadd.f32 %v627, %v633
        %v636 = vadd.f32 %v634, %v635
        %v637 = vrot.slane %v636, 4
        %v638 = vadd.f32 %v636, %v637
        %v639 = vrot.slane %v638, 2
        %v640 = vadd.f32 %v638, %v639
        %v641 = vrot.slane %v640, 1
        %v642 = vadd.f32 %v640, %v641
        %vm643 = vcmp.eq.s32.totalorder %v599, 1
        %vm644 = vcmp.eq.s32.totalorder %v600, 1
        %v645 = vsel %vm643, 1, 0
        %v646 = vsel %vm644, 1, 0
        %vm647 = vcmp.eq.s32.totalorder %v645, 1
        %vm648 = vcmp.eq.s32.totalorder %v646, 1
        %v649 = vsel %vm647, %v642, %v624
        %v650 = vsel %vm648, %v642, %v625
        %v651 = vmul.f32 %v589, %v634
        %v652 = vmul.f32 %v590, %v635
        %v653 = vlaneseq
        %v654 = vshrl.u32 %v653, 7
        %v655 = vsub.s32 2, %v654
        %v656 = vrot.slane %v595, %v655
        %v657 = vmul.f32 %v591, %v656
        %v658 = vmul.f32 %v592, %v656
        %v659 = vadd.f32 %v651, %v657
        %v660 = vadd.f32 %v652, %v658
        %v661 = vadd.f32 %v659, %v660
        %v662 = vrot.slane %v661, 4
        %v663 = vadd.f32 %v661, %v662
        %v664 = vrot.slane %v663, 2
        %v665 = vadd.f32 %v663, %v664
        %v666 = vrot.slane %v665, 1
        %v667 = vadd.f32 %v665, %v666
        %vm668 = vcmp.eq.s32.totalorder %v599, 2
        %vm669 = vcmp.eq.s32.totalorder %v600, 2
        %v670 = vsel %vm668, 1, 0
        %v671 = vsel %vm669, 1, 0
        %vm672 = vcmp.eq.s32.totalorder %v670, 1
        %vm673 = vcmp.eq.s32.totalorder %v671, 1
        %v674 = vsel %vm672, %v667, %v649
        %v675 = vsel %vm673, %v667, %v650
        %v676 = vmul.f32 %v589, %v659
        %v677 = vmul.f32 %v590, %v660
        %v678 = vlaneseq
        %v679 = vshrl.u32 %v678, 7
        %v680 = vsub.s32 3, %v679
        %v681 = vrot.slane %v595, %v680
        %v682 = vmul.f32 %v591, %v681
        %v683 = vmul.f32 %v592, %v681
        %v684 = vadd.f32 %v676, %v682
        %v685 = vadd.f32 %v677, %v683
        %v686 = vadd.f32 %v684, %v685
        %v687 = vrot.slane %v686, 4
        %v688 = vadd.f32 %v686, %v687
        %v689 = vrot.slane %v688, 2
        %v690 = vadd.f32 %v688, %v689
        %v691 = vrot.slane %v690, 1
        %v692 = vadd.f32 %v690, %v691
        %vm693 = vcmp.eq.s32.totalorder %v599, 3
        %vm694 = vcmp.eq.s32.totalorder %v600, 3
        %v695 = vsel %vm693, 1, 0
        %v696 = vsel %vm694, 1, 0
        %vm697 = vcmp.eq.s32.totalorder %v695, 1
        %vm698 = vcmp.eq.s32.totalorder %v696, 1
        %v699 = vsel %vm697, %v692, %v674
        %v700 = vsel %vm698, %v692, %v675
        %v701 = vmul.f32 %v589, %v684
        %v702 = vmul.f32 %v590, %v685
        %v703 = vlaneseq
        %v704 = vshrl.u32 %v703, 7
        %v705 = vsub.s32 4, %v704
        %v706 = vrot.slane %v595, %v705
        %v707 = vmul.f32 %v591, %v706
        %v708 = vmul.f32 %v592, %v706
        %v709 = vadd.f32 %v701, %v707
        %v710 = vadd.f32 %v702, %v708
        %v711 = vadd.f32 %v709, %v710
        %v712 = vrot.slane %v711, 4
        %v713 = vadd.f32 %v711, %v712
        %v714 = vrot.slane %v713, 2
        %v715 = vadd.f32 %v713, %v714
        %v716 = vrot.slane %v715, 1
        %v717 = vadd.f32 %v715, %v716
        %vm718 = vcmp.eq.s32.totalorder %v599, 4
        %vm719 = vcmp.eq.s32.totalorder %v600, 4
        %v720 = vsel %vm718, 1, 0
        %v721 = vsel %vm719, 1, 0
        %vm722 = vcmp.eq.s32.totalorder %v720, 1
        %vm723 = vcmp.eq.s32.totalorder %v721, 1
        %v724 = vsel %vm722, %v717, %v699
        %v725 = vsel %vm723, %v717, %v700
        %v726 = vmul.f32 %v589, %v709
        %v727 = vmul.f32 %v590, %v710
        %v728 = vlaneseq
        %v729 = vshrl.u32 %v728, 7
        %v730 = vsub.s32 5, %v729
        %v731 = vrot.slane %v595, %v730
        %v732 = vmul.f32 %v591, %v731
        %v733 = vmul.f32 %v592, %v731
        %v734 = vadd.f32 %v726, %v732
        %v735 = vadd.f32 %v727, %v733
        %v736 = vadd.f32 %v734, %v735
        %v737 = vrot.slane %v736, 4
        %v738 = vadd.f32 %v736, %v737
        %v739 = vrot.slane %v738, 2
        %v740 = vadd.f32 %v738, %v739
        %v741 = vrot.slane %v740, 1
        %v742 = vadd.f32 %v740, %v741
        %vm743 = vcmp.eq.s32.totalorder %v599, 5
        %vm744 = vcmp.eq.s32.totalorder %v600, 5
        %v745 = vsel %vm743, 1, 0
        %v746 = vsel %vm744, 1, 0
        %vm747 = vcmp.eq.s32.totalorder %v745, 1
        %vm748 = vcmp.eq.s32.totalorder %v746, 1
        %v749 = vsel %vm747, %v742, %v724
        %v750 = vsel %vm748, %v742, %v725
        %v751 = vmul.f32 %v589, %v734
        %v752 = vmul.f32 %v590, %v735
        %v753 = vlaneseq
        %v754 = vshrl.u32 %v753, 7
        %v755 = vsub.s32 6, %v754
        %v756 = vrot.slane %v595, %v755
        %v757 = vmul.f32 %v591, %v756
        %v758 = vmul.f32 %v592, %v756
        %v759 = vadd.f32 %v751, %v757
        %v760 = vadd.f32 %v752, %v758
        %v761 = vadd.f32 %v759, %v760
        %v762 = vrot.slane %v761, 4
        %v763 = vadd.f32 %v761, %v762
        %v764 = vrot.slane %v763, 2
        %v765 = vadd.f32 %v763, %v764
        %v766 = vrot.slane %v765, 1
        %v767 = vadd.f32 %v765, %v766
        %vm768 = vcmp.eq.s32.totalorder %v599, 6
        %vm769 = vcmp.eq.s32.totalorder %v600, 6
        %v770 = vsel %vm768, 1, 0
        %v771 = vsel %vm769, 1, 0
        %vm772 = vcmp.eq.s32.totalorder %v770, 1
        %vm773 = vcmp.eq.s32.totalorder %v771, 1
        %v774 = vsel %vm772, %v767, %v749
        %v775 = vsel %vm773, %v767, %v750
        %v776 = vmul.f32 %v589, %v759
        %v777 = vmul.f32 %v590, %v760
        %v778 = vlaneseq
        %v779 = vshrl.u32 %v778, 7
        %v780 = vsub.s32 7, %v779
        %v781 = vrot.slane %v595, %v780
        %v782 = vmul.f32 %v591, %v781
        %v783 = vmul.f32 %v592, %v781
        %v784 = vadd.f32 %v776, %v782
        %v785 = vadd.f32 %v777, %v783
        %v786 = vadd.f32 %v784, %v785
        %v787 = vrot.slane %v786, 4
        %v788 = vadd.f32 %v786, %v787
        %v789 = vrot.slane %v788, 2
        %v790 = vadd.f32 %v788, %v789
        %v791 = vrot.slane %v790, 1
        %v792 = vadd.f32 %v790, %v791
        %vm793 = vcmp.eq.s32.totalorder %v599, 7
        %vm794 = vcmp.eq.s32.totalorder %v600, 7
        %v795 = vsel %vm793, 1, 0
        %v796 = vsel %vm794, 1, 0
        %vm797 = vcmp.eq.s32.totalorder %v795, 1
        %vm798 = vcmp.eq.s32.totalorder %v796, 1
        %v799 = vsel %vm797, %v792, %v774
        %v800 = vsel %vm798, %v792, %v775
        %v801 = vmul.f32 %v589, %v784
        %v802 = vmul.f32 %v590, %v785
        %v803 = vlaneseq
        %v804 = vshrl.u32 %v803, 7
        %v805 = vsub.s32 0, %v804
        %v806 = vrot.slane %v596, %v805
        %v807 = vmul.f32 %v591, %v806
        %v808 = vmul.f32 %v592, %v806
        %v809 = vadd.f32 %v801, %v807
        %v810 = vadd.f32 %v802, %v808
        %v811 = vadd.f32 %v809, %v810
        %v812 = vrot.slane %v811, 4
        %v813 = vadd.f32 %v811, %v812
        %v814 = vrot.slane %v813, 2
        %v815 = vadd.f32 %v813, %v814
        %v816 = vrot.slane %v815, 1
        %v817 = vadd.f32 %v815, %v816
        %vm818 = vcmp.eq.s32.totalorder %v599, 8
        %vm819 = vcmp.eq.s32.totalorder %v600, 8
        %v820 = vsel %vm818, 1, 0
        %v821 = vsel %vm819, 1, 0
        %vm822 = vcmp.eq.s32.totalorder %v820, 1
        %vm823 = vcmp.eq.s32.totalorder %v821, 1
        %v824 = vsel %vm822, %v817, %v799
        %v825 = vsel %vm823, %v817, %v800
        %v826 = vmul.f32 %v589, %v809
        %v827 = vmul.f32 %v590, %v810
        %v828 = vlaneseq
        %v829 = vshrl.u32 %v828, 7
        %v830 = vsub.s32 1, %v829
        %v831 = vrot.slane %v596, %v830
        %v832 = vmul.f32 %v591, %v831
        %v833 = vmul.f32 %v592, %v831
        %v834 = vadd.f32 %v826, %v832
        %v835 = vadd.f32 %v827, %v833
        %v836 = vadd.f32 %v834, %v835
        %v837 = vrot.slane %v836, 4
        %v838 = vadd.f32 %v836, %v837
        %v839 = vrot.slane %v838, 2
        %v840 = vadd.f32 %v838, %v839
        %v841 = vrot.slane %v840, 1
        %v842 = vadd.f32 %v840, %v841
        %vm843 = vcmp.eq.s32.totalorder %v599, 9
        %vm844 = vcmp.eq.s32.totalorder %v600, 9
        %v845 = vsel %vm843, 1, 0
        %v846 = vsel %vm844, 1, 0
        %vm847 = vcmp.eq.s32.totalorder %v845, 1
        %vm848 = vcmp.eq.s32.totalorder %v846, 1
        %v849 = vsel %vm847, %v842, %v824
        %v850 = vsel %vm848, %v842, %v825
        %v851 = vmul.f32 %v589, %v834
        %v852 = vmul.f32 %v590, %v835
        %v853 = vlaneseq
        %v854 = vshrl.u32 %v853, 7
        %v855 = vsub.s32 2, %v854
        %v856 = vrot.slane %v596, %v855
        %v857 = vmul.f32 %v591, %v856
        %v858 = vmul.f32 %v592, %v856
        %v859 = vadd.f32 %v851, %v857
        %v860 = vadd.f32 %v852, %v858
        %v861 = vadd.f32 %v859, %v860
        %v862 = vrot.slane %v861, 4
        %v863 = vadd.f32 %v861, %v862
        %v864 = vrot.slane %v863, 2
        %v865 = vadd.f32 %v863, %v864
        %v866 = vrot.slane %v865, 1
        %v867 = vadd.f32 %v865, %v866
        %vm868 = vcmp.eq.s32.totalorder %v599, 10
        %vm869 = vcmp.eq.s32.totalorder %v600, 10
        %v870 = vsel %vm868, 1, 0
        %v871 = vsel %vm869, 1, 0
        %vm872 = vcmp.eq.s32.totalorder %v870, 1
        %vm873 = vcmp.eq.s32.totalorder %v871, 1
        %v874 = vsel %vm872, %v867, %v849
        %v875 = vsel %vm873, %v867, %v850
        %v876 = vmul.f32 %v589, %v859
        %v877 = vmul.f32 %v590, %v860
        %v878 = vlaneseq
        %v879 = vshrl.u32 %v878, 7
        %v880 = vsub.s32 3, %v879
        %v881 = vrot.slane %v596, %v880
        %v882 = vmul.f32 %v591, %v881
        %v883 = vmul.f32 %v592, %v881
        %v884 = vadd.f32 %v876, %v882
        %v885 = vadd.f32 %v877, %v883
        %v886 = vadd.f32 %v884, %v885
        %v887 = vrot.slane %v886, 4
        %v888 = vadd.f32 %v886, %v887
        %v889 = vrot.slane %v888, 2
        %v890 = vadd.f32 %v888, %v889
        %v891 = vrot.slane %v890, 1
        %v892 = vadd.f32 %v890, %v891
        %vm893 = vcmp.eq.s32.totalorder %v599, 11
        %vm894 = vcmp.eq.s32.totalorder %v600, 11
        %v895 = vsel %vm893, 1, 0
        %v896 = vsel %vm894, 1, 0
        %vm897 = vcmp.eq.s32.totalorder %v895, 1
        %vm898 = vcmp.eq.s32.totalorder %v896, 1
        %v899 = vsel %vm897, %v892, %v874
        %v900 = vsel %vm898, %v892, %v875
        %v901 = vmul.f32 %v589, %v884
        %v902 = vmul.f32 %v590, %v885
        %v903 = vlaneseq
        %v904 = vshrl.u32 %v903, 7
        %v905 = vsub.s32 4, %v904
        %v906 = vrot.slane %v596, %v905
        %v907 = vmul.f32 %v591, %v906
        %v908 = vmul.f32 %v592, %v906
        %v909 = vadd.f32 %v901, %v907
        %v910 = vadd.f32 %v902, %v908
        %v911 = vadd.f32 %v909, %v910
        %v912 = vrot.slane %v911, 4
        %v913 = vadd.f32 %v911, %v912
        %v914 = vrot.slane %v913, 2
        %v915 = vadd.f32 %v913, %v914
        %v916 = vrot.slane %v915, 1
        %v917 = vadd.f32 %v915, %v916
        %vm918 = vcmp.eq.s32.totalorder %v599, 12
        %vm919 = vcmp.eq.s32.totalorder %v600, 12
        %v920 = vsel %vm918, 1, 0
        %v921 = vsel %vm919, 1, 0
        %vm922 = vcmp.eq.s32.totalorder %v920, 1
        %vm923 = vcmp.eq.s32.totalorder %v921, 1
        %v924 = vsel %vm922, %v917, %v899
        %v925 = vsel %vm923, %v917, %v900
        %v926 = vmul.f32 %v589, %v909
        %v927 = vmul.f32 %v590, %v910
        %v928 = vlaneseq
        %v929 = vshrl.u32 %v928, 7
        %v930 = vsub.s32 5, %v929
        %v931 = vrot.slane %v596, %v930
        %v932 = vmul.f32 %v591, %v931
        %v933 = vmul.f32 %v592, %v931
        %v934 = vadd.f32 %v926, %v932
        %v935 = vadd.f32 %v927, %v933
        %v936 = vadd.f32 %v934, %v935
        %v937 = vrot.slane %v936, 4
        %v938 = vadd.f32 %v936, %v937
        %v939 = vrot.slane %v938, 2
        %v940 = vadd.f32 %v938, %v939
        %v941 = vrot.slane %v940, 1
        %v942 = vadd.f32 %v940, %v941
        %vm943 = vcmp.eq.s32.totalorder %v599, 13
        %vm944 = vcmp.eq.s32.totalorder %v600, 13
        %v945 = vsel %vm943, 1, 0
        %v946 = vsel %vm944, 1, 0
        %vm947 = vcmp.eq.s32.totalorder %v945, 1
        %vm948 = vcmp.eq.s32.totalorder %v946, 1
        %v949 = vsel %vm947, %v942, %v924
        %v950 = vsel %vm948, %v942, %v925
        %v951 = vmul.f32 %v589, %v934
        %v952 = vmul.f32 %v590, %v935
        %v953 = vlaneseq
        %v954 = vshrl.u32 %v953, 7
        %v955 = vsub.s32 6, %v954
        %v956 = vrot.slane %v596, %v955
        %v957 = vmul.f32 %v591, %v956
        %v958 = vmul.f32 %v592, %v956
        %v959 = vadd.f32 %v951, %v957
        %v960 = vadd.f32 %v952, %v958
        %v961 = vadd.f32 %v959, %v960
        %v962 = vrot.slane %v961, 4
        %v963 = vadd.f32 %v961, %v962
        %v964 = vrot.slane %v963, 2
        %v965 = vadd.f32 %v963, %v964
        %v966 = vrot.slane %v965, 1
        %v967 = vadd.f32 %v965, %v966
        %vm968 = vcmp.eq.s32.totalorder %v599, 14
        %vm969 = vcmp.eq.s32.totalorder %v600, 14
        %v970 = vsel %vm968, 1, 0
        %v971 = vsel %vm969, 1, 0
        %vm972 = vcmp.eq.s32.totalorder %v970, 1
        %vm973 = vcmp.eq.s32.totalorder %v971, 1
        %v974 = vsel %vm972, %v967, %v949
        %v975 = vsel %vm973, %v967, %v950
        %v976 = vmul.f32 %v589, %v959
        %v977 = vmul.f32 %v590, %v960
        %v978 = vlaneseq
        %v979 = vshrl.u32 %v978, 7
        %v980 = vsub.s32 7, %v979
        %v981 = vrot.slane %v596, %v980
        %v982 = vmul.f32 %v591, %v981
        %v983 = vmul.f32 %v592, %v981
        %v984 = vadd.f32 %v976, %v982
        %v985 = vadd.f32 %v977, %v983
        %v986 = vadd.f32 %v984, %v985
        %v987 = vrot.slane %v986, 4
        %v988 = vadd.f32 %v986, %v987
        %v989 = vrot.slane %v988, 2
        %v990 = vadd.f32 %v988, %v989
        %v991 = vrot.slane %v990, 1
        %v992 = vadd.f32 %v990, %v991
        %vm993 = vcmp.eq.s32.totalorder %v599, 15
        %vm994 = vcmp.eq.s32.totalorder %v600, 15
        %v995 = vsel %vm993, 1, 0
        %v996 = vsel %vm994, 1, 0
        %vm997 = vcmp.eq.s32.totalorder %v995, 1
        %vm998 = vcmp.eq.s32.totalorder %v996, 1
        %v999 = vsel %vm997, %v992, %v974
        %v1000 = vsel %vm998, %v992, %v975
        %v1001 = vunpack.c.l.bf16 %v597
        %v1002 = vunpack.c.h.bf16 %v597
        %v1003 = vmul.f32 %v999, %v1001
        %v1004 = vmul.f32 %v1000, %v1002
        %1005 = vst [vmem:[#allocation2] sm:$0xff] %v1003
        %1006 = vst [vmem:[#allocation2 + $0x8] sm:$0xff] %v1004
        %1007 = vst [vmem:[#allocation4] sm:$0xff] %v984
        %1008 = vst [vmem:[#allocation4 + $0x8] sm:$0xff] %v985
        %v1009 = vld [vmem:[#allocation2] sm:$0xff]
        %v1010 = vld [vmem:[#allocation2 + $0x8] sm:$0xff]
        %v1011 = vpack.c.bf16 %v1010, %v1009
        %v1012 = vld [vmem:[%s7] sm:$0xf]
        %v1013 = vld [vmem:[%s7 + $0x4] sm:$0xf]
        %v1014 = vld [vmem:[%s7 + $0x8] sm:$0xf]
        %v1015 = vld [vmem:[%s7 + $0xc] sm:$0xf]
        %v1016 = vld [vmem:[%s7 + $0x10] sm:$0xf]
        %v1017 = vld [vmem:[%s7 + $0x14] sm:$0xf]
        %v1018 = vld [vmem:[%s7 + $0x18] sm:$0xf]
        %v1019 = vld [vmem:[%s7 + $0x1c] sm:$0xf]
        %v1020 = vld [vmem:[%s7 + $0x20] sm:$0xf]
        %v1021 = vld [vmem:[%s7 + $0x24] sm:$0xf]
        %v1022 = vld [vmem:[%s7 + $0x28] sm:$0xf]
        %v1023 = vld [vmem:[%s7 + $0x2c] sm:$0xf]
        %v1024 = vld [vmem:[%s7 + $0x30] sm:$0xf]
        %v1025 = vld [vmem:[%s7 + $0x34] sm:$0xf]
        %v1026 = vld [vmem:[%s7 + $0x38] sm:$0xf]
        %v1027 = vld [vmem:[%s7 + $0x3c] sm:$0xf]
        %v1028 = vld [vmem:[%s8] sm:$0x1]
        %v1030 = vlaneseq
        %v1031 = vshrl.u32 %v1030, 7
        %v1032 = vsub.s32 0, %v1031
        %v1033 = vrot.slane %v1028, %v1032
        %v1051 = vunpack.c.l.b16 %v1012
        %v1052 = vunpack.c.l.b16 %v1013
        %v1053 = vunpack.c.l.b16 %v1014
        %v1054 = vunpack.c.l.b16 %v1015
        %v1055 = vunpack.c.l.b16 %v1016
        %v1056 = vunpack.c.l.b16 %v1017
        %v1057 = vunpack.c.l.b16 %v1018
        %v1058 = vunpack.c.l.b16 %v1019
        %v1059 = vunpack.c.l.b16 %v1020
        %v1060 = vunpack.c.l.b16 %v1021
        %v1061 = vunpack.c.l.b16 %v1022
        %v1062 = vunpack.c.l.b16 %v1023
        %v1063 = vunpack.c.l.b16 %v1024
        %v1064 = vunpack.c.l.b16 %v1025
        %v1065 = vunpack.c.l.b16 %v1026
        %v1066 = vunpack.c.l.b16 %v1027
        %v1067 = vpack.c.b16 %v1052, %v1051
        %v1068 = vpack.c.b16 %v1054, %v1053
        %v1069 = vpack.c.b16 %v1056, %v1055
        %v1070 = vpack.c.b16 %v1058, %v1057
        %v1071 = vpack.c.b16 %v1060, %v1059
        %v1072 = vpack.c.b16 %v1062, %v1061
        %v1073 = vpack.c.b16 %v1064, %v1063
        %v1074 = vpack.c.b16 %v1066, %v1065
        %1083 = vmatprep.subr.bf16.mxu0 0
        %1084 = vmatpush1.bf16.msra.mxu0 %v1067
        %1085 = vmatprep.subr.bf16.mxu0 0
        %1086 = vmatpush1.bf16.msra.mxu0 %v1068
        %1087 = vmatprep.subr.bf16.mxu0 0
        %1088 = vmatpush1.bf16.msra.mxu0 %v1069
        %1089 = vmatprep.subr.bf16.mxu0 0
        %1090 = vmatpush1.bf16.msra.mxu0 %v1070
        %1091 = vmatprep.subr.bf16.mxu0 0
        %1092 = vmatpush1.bf16.msra.mxu0 %v1071
        %1093 = vmatprep.subr.bf16.mxu0 0
        %1094 = vmatpush1.bf16.msra.mxu0 %v1072
        %1095 = vmatprep.subr.bf16.mxu0 0
        %1096 = vmatpush1.bf16.msra.mxu0 %v1073
        %1097 = vmatprep.subr.bf16.mxu0 0
        %1098 = vmatpush1.bf16.msra.mxu0 %v1074
        %1099 = vmatprep.subr.bf16.mxu0 0
        %1100 = vmatpush1.bf16.msra.mxu0 0
        %1101 = vmatprep.subr.bf16.mxu0 0
        %1102 = vmatpush1.bf16.msra.mxu0 0
        %1103 = vmatprep.subr.bf16.mxu0 0
        %1104 = vmatpush1.bf16.msra.mxu0 0
        %1105 = vmatprep.subr.bf16.mxu0 0
        %1106 = vmatpush1.bf16.msra.mxu0 0
        %1107 = vmatprep.subr.bf16.mxu0 0
        %1108 = vmatpush1.bf16.msra.mxu0 0
        %1109 = vmatprep.subr.bf16.mxu0 0
        %1110 = vmatpush1.bf16.msra.mxu0 0
        %1111 = vmatprep.subr.bf16.mxu0 0
        %1112 = vmatpush1.bf16.msra.mxu0 0
        %1113 = vmatprep.subr.bf16.mxu0 0
        %1114 = vmatpush1.bf16.msra.mxu0 0
        %1115 = vmatprep.mubr.bf16.mxu0 0
        %1116 = vmatmul.mubr.bf16.gmra.mrb[0].mxu0 %v1011
        %v1117 = vpop.f32.mrb[0].mxu0
        %v1118 = vadd.f32 %v1033, %v1117
        %v1119 = vpop.f32.mrb[0].mxu0
        %v1120 = vpop.f32.mrb[0].mxu0
        %v1121 = vadd.f32 %v1033, %v1120
        %v1122 = vpop.f32.mrb[0].mxu0
        %1123 = vdwg.mxu0
        %v1124 = vld [vmem:[%s428] sm:$0xff]
        %v1125 = vld [vmem:[%s428 + $0x8] sm:$0xff]
        %v1126 = vadd.f32 %v1124, %v1118
        %v1127 = vadd.f32 %v1125, %v1121
        %v1128 = vsel %vm458, %v1126, 0.0
        %1129 = vadd.xlane.f32.xlu0 %v1128
        %v1130 = vpop.xlane.xlu0 %1129
        %v1131 = vsel %vm458, %v1127, 0.0
        %1132 = vadd.xlane.f32.xlu0 %v1131
        %v1133 = vpop.xlane.xlu0 %1132
        %v1134 = vrcp.pop 32.0
        %v1135 = vmul.f32 %v1130, %v1134
        %v1136 = vmul.f32 %v1133, %v1134
        %v1137 = vsub.f32 %v1126, %v1135
        %v1138 = vsub.f32 %v1127, %v1136
        %v1139 = vmul.f32 %v1137, %v1137
        %v1140 = vmul.f32 %v1138, %v1138
        %v1141 = vsel %vm458, %v1139, 0.0
        %1142 = vadd.xlane.f32.xlu0 %v1141
        %v1143 = vpop.xlane.xlu0 %1142
        %v1144 = vsel %vm458, %v1140, 0.0
        %1145 = vadd.xlane.f32.xlu0 %v1144
        %v1146 = vpop.xlane.xlu0 %1145
        %v1147 = vmul.f32 %v1143, %v1134
        %v1148 = vmul.f32 %v1146, %v1134
        %v1149 = vadd.f32 %v1147, 1e-05
        %v1150 = vadd.f32 %v1148, 1e-05
        %v1151 = vrsqrt.pop %v1149
        %v1152 = vrsqrt.pop %v1150
        %v1153 = vmul.f32 %v1137, %v1151
        %v1154 = vmul.f32 %v1138, %v1152
        %v1155 = vld [vmem:[%s9] sm:$0x1]
        %v1157 = vlaneseq
        %v1158 = vshrl.u32 %v1157, 7
        %v1159 = vsub.s32 0, %v1158
        %v1160 = vrot.slane %v1155, %v1159
        %v1162 = vmul.f32 %v1153, %v1160
        %v1163 = vmul.f32 %v1154, %v1160
        %v1164 = vld [vmem:[%s10] sm:$0x1]
        %v1166 = vlaneseq
        %v1167 = vshrl.u32 %v1166, 7
        %v1168 = vsub.s32 0, %v1167
        %v1169 = vrot.slane %v1164, %v1168
        %v1171 = vadd.f32 %v1162, %v1169
        %v1172 = vadd.f32 %v1163, %v1169
        %1173 = vst.msk [vmem:[%s419] sm:$0xff] %vm458, %v1171
        %1174 = vst.msk [vmem:[%s419 + $0x8] sm:$0xff] %vm458, %v1172
        %s1175 = sand.u32 %s286, 1
        %s1176 = scalar_lea.sflag [#allocation7], %s1175
        %s1177 = sand.u32 %s286, 1
        %s1178 = smul.addr %s1177, 16
        %s1179 = scalar_lea.vmem [#allocation8], %s1178
        // Predicated region
        $region73: #{tpu_custom_call.1} parent=63 // pred_check
          %p1180 = pneg %p296
        $region74: #{tpu_custom_call.1} parent=63 // pred_check_branch
          %1182 = sbr.rel (%p1180) target = $region76
        $region75: #{tpu_custom_call.1} parent=63 // pred_region
          %s1183 = smul.u32 2, %s31
          %s1185 = ssub.s32 256, 256
          %1186 = vsyncadd %s1176, %s1185
          %s1187 = smul.addr %s30, 2
          %s1188 = sadd.s32 %s1183, %s1187
          %s1189 = smul.addr %s1188, 128
          %s1190 = scalar_lea.hbm %s11, %s1189
          %s1191 = sshll.u32 %s1179, 4
          %s1192 = int_to_ptr.vmem [resolvable:$true] %s1191
          %1197 = dma.vmem_to_hbm [thread:$0]  %s1192, 256, %s1190, %s1176, 128, 128, 8
        $region76: #{tpu_custom_call.1} parent=63 // pred_fallthru
          _
      $region64: #{tpu_custom_call.1} parent=5 // pred_fallthru
        _
      %p1198 = scmp.le.s32.totalorder 2, %s21
      // Predicated region
      $region77: #{tpu_custom_call.1} parent=5 // pred_check
        %p1199 = pneg %p1198
      $region78: #{tpu_custom_call.1} parent=5 // pred_check_branch
        %1201 = sbr.rel (%p1199) target = $region80
      $region79: #{tpu_custom_call.1} parent=5 // pred_region
        %s1202 = ssub.s32 %s21, 2
        // Predicated region
        $region81: #{tpu_custom_call.1} parent=79 // pred_check
          %p1203 = pneg %p302
        $region82: #{tpu_custom_call.1} parent=79 // pred_check_branch
          %1205 = sbr.rel (%p1203) target = $region84
        $region83: #{tpu_custom_call.1} parent=79 // pred_region
          %s1206 = sand.u32 %s287, 1
          %s1207 = scalar_lea.sflag [#allocation7], %s1206
          %s1208 = sand.u32 %s287, 1
          %s1209 = smul.addr %s1208, 16
          %s1210 = scalar_lea.vmem [#allocation8], %s1209
          %1211 = dma.done %s1207, 256
        $region84: #{tpu_custom_call.1} parent=79 // pred_fallthru
          _
      $region80: #{tpu_custom_call.1} parent=5 // pred_fallthru
        _
    $region6: #{tpu_custom_call.1} parent=1 // loop_footer
      %s25 = sadd.s32 1, %s21
    $region7: #{tpu_custom_call.1} parent=1 // loop_footer_branch
      %20 = sbr.rel target = $region3
    $region8: #{tpu_custom_call.1} parent=1 // loop_exit
      _
    %1212 = vsyncpa [#allocation6], 1
    %s1213 = scalar_lea.sflag [#allocation6], 1
    %1214 = vsyncpa %s1213, 1
    %1215 = vsyncpa [#allocation7], 1
    %s1216 = scalar_lea.sflag [#allocation7], 1
    %1217 = vsyncpa %s1216, 1

</llo_original>
